<compile_context>
chip_gen: v5e
topology: v5e:2x2
jax: 0.10.0
libtpu: 0.0.40
codegen_flags: <defaults>
</compile_context>

<pallas_src>
import functools
import math

import jax
import jax.numpy as jnp
from jax import lax
from jax.experimental import pallas as pl
from jax.experimental.pallas import tpu as pltpu


def _round_up(n, m):
    return ((n + m - 1) // m) * m


def _pad_axis(a, target, axis):
    if a.shape[axis] == target:
        return a
    pw = [(0, 0)] * a.ndim
    pw[axis] = (0, target - a.shape[axis])
    return jnp.pad(a, pw)


# ------------------------------ fused kernel --------------------------------

def _make_layer_kernel(B, L, K, block_cfgs):
    """block_cfgs: tuple of (dilation, has_downsample, do_pool) per block."""

    def kernel(*refs):
        x_ref, o_ref = refs[0], refs[-1]
        prefs = refs[1:-1]

        # Stack the batch along the lane axis: (C, B*L).  Pieces are 128-lane
        # aligned so this concat is just vreg placement.
        h = jnp.concatenate([x_ref[b] for b in range(B)], axis=1)

        L_cur = L
        idx = 0
        for dilation, has_ds, do_pool in block_cfgs:
            w1, b1, sc1, sh1, w2, b2, sc2, sh2 = prefs[idx:idx + 8]
            idx += 8
            if has_ds:
                wd, bd = prefs[idx:idx + 2]
                idx += 2

            N = B * L_cur
            pad_left = dilation * (K - 1) // 2       # PyTorch 'same' left pad
            # within-batch position of every lane (for the 'same' edge masks)
            pos = jnp.concatenate(
                [lax.broadcasted_iota(jnp.int32, (1, L_cur), 1)] * B, axis=1)

            def shifted(x, s, N=N, L_cur=L_cur, pos=pos):
                # out[:, b*L+j] = x[:, b*L + (j+s)] if 0 <= j+s < L else 0
                # (XLU lane rotate + VPU edge mask; batch-crossing lanes are
                #  exactly the masked-out "zero padding" lanes)
                xs = x if s == 0 else pltpu.roll(x, (-s) % N, 1)
                valid = jnp.logical_and(pos >= -s, pos < L_cur - s)
                return jnp.where(valid, xs, 0.0)

            def conv_same(x, w_ref, b_ref, dil=dilation, lp=pad_left):
                # im2col: one deep MXU contraction instead of K shallow ones.
                # Slab row k*C + c holds channel c shifted by (k*dil - lp);
                # the weight was pre-flattened to (C_out, K*C) to match.
                slab = jnp.concatenate(
                    [shifted(x, k * dil - lp) for k in range(K)], axis=0)
                return jnp.dot(w_ref[...], slab,
                               preferred_element_type=jnp.float32) + b_ref[...]

            # residual path: 1x1 conv with its BatchNorm pre-folded, or identity
            if has_ds:
                r = jnp.dot(wd[...], h,
                            preferred_element_type=jnp.float32) + bd[...]
            else:
                r = h

            # conv1 -> relu -> bn1 -> relu              (module ordering)
            y = conv_same(h, w1, b1)
            y = jnp.maximum(y, 0.0)
            y = y * sc1[...] + sh1[...]
            y = jnp.maximum(y, 0.0)
            # TODO(synk): Dropout is identity (eval mode); training-mode masking
            # and batch-statistics BatchNorm are not implemented.
            # conv2 -> relu -> bn2
            y = conv_same(y, w2, b2)
            y = jnp.maximum(y, 0.0)
            y = y * sc2[...] + sh2[...]
            # residual add -> relu -> MaxPool1d(2) on the last block only
            y = jnp.maximum(y + r, 0.0)
            if do_pool:
                # adjacent lane pairs (2j, 2j+1) never straddle a batch
                # boundary since L is even.
                y = jnp.max(y.reshape(y.shape[0], N // 2, 2), axis=-1)
                L_cur //= 2
            h = y

        o_ref[...] = h          # (CP_out, B*L_out): lane-dense store

    return kernel


# ------------------------------ layer wrapper --------------------------------

def dilated_basic_block_layer(x, layer_params, *, kernel_size=8, dilation=2,
                              increase_dilation=True):
    """DilatedBasicBlockLayer.forward (eval mode).  x: (B, C_in, L) float32."""
    B, C_in, L = x.shape
    K = kernel_size
    blocks = len(layer_params)
    filter_num = layer_params[0]['w1'].shape[0]
    CP_out = _round_up(filter_num, 8)
    CP_in0 = _round_up(C_in, 8)

    # channel-pad the input so every sublane operand is tile-aligned
    xp = _pad_axis(x.astype(jnp.float32), CP_in0, 1)

    block_cfgs = []
    flat_args = []
    for i, p in enumerate(layer_params):
        d = dilation * 2 ** i if increase_dilation else dilation
        do_pool = (i == blocks - 1)     # MaxPool1d(2) only on the last block
        has_ds = 'wd' in p              # downsample iff in_channels != filter_num
        cpin = CP_in0 if i == 0 else CP_out
        block_cfgs.append((d, has_ds, do_pool))

        def prep_conv(w, b, cin_pad):
            # (C_out, C_in, K) -> (CP_out, K*cin_pad); flat column = k*cin_pad + ci
            wp = _pad_axis(_pad_axis(w, CP_out, 0), cin_pad, 1)
            wp = jnp.transpose(wp, (0, 2, 1)).reshape(CP_out, K * cin_pad)
            return wp, _pad_axis(b, CP_out, 0)[:, None]

        def prep_bn(scale, shift):
            # padded channels get scale=1, shift=0 so they stay exactly zero
            sc = jnp.concatenate(
                [scale, jnp.ones((CP_out - scale.shape[0],), scale.dtype)])
            sh = _pad_axis(shift, CP_out, 0)
            return sc[:, None], sh[:, None]

        w1p, b1p = prep_conv(p['w1'], p['b1'], cpin)
        sc1, sh1 = prep_bn(p['bn1_scale'], p['bn1_shift'])
        w2p, b2p = prep_conv(p['w2'], p['b2'], CP_out)
        sc2, sh2 = prep_bn(p['bn2_scale'], p['bn2_shift'])
        flat_args += [w1p, b1p, sc1, sh1, w2p, b2p, sc2, sh2]
        if has_ds:
            # fold the downsample BatchNorm into the 1x1 conv (no ReLU between)
            wdf = p['bnd_scale'][:, None] * p['wd']
            bdf = p['bnd_scale'] * p['bd'] + p['bnd_shift']
            flat_args += [_pad_axis(_pad_axis(wdf, CP_out, 0), cpin, 1),
                          _pad_axis(bdf, CP_out, 0)[:, None]]

    L_out = L
    for _, _, dp in block_cfgs:
        if dp:
            L_out //= 2

    kernel = _make_layer_kernel(B, L, K, tuple(block_cfgs))
    out = pl.pallas_call(
        kernel,
        out_shape=jax.ShapeDtypeStruct((CP_out, B * L_out), jnp.float32),
    )(xp, *flat_args)

    # drop the padded channels and unstack the batch from the lane axis
    out = out[:filter_num].reshape(filter_num, B, L_out).transpose(1, 0, 2)
    return out


# --------------------------- pure-JAX reference ------------------------------

def _ref_conv1d_same(x, w, b, dilation):
    Bb, _, L = x.shape
    Cout, _, Kk = w.shape
    total = dilation * (Kk - 1)
    lp = total // 2
    xp = jnp.pad(x, ((0, 0), (0, 0), (lp, total - lp)))
    y = jnp.zeros((Bb, Cout, L), jnp.float32) + b[None, :, None]
    for k in range(Kk):
        y = y + jnp.einsum('oi,bil->bol', w[:, :, k],
                           xp[:, :, k * dilation:k * dilation + L],
                           precision=lax.Precision.HIGHEST)
    return y


def _ref_block(x, p, dilation, do_pool):
    if 'wd' in p:
        r = jnp.einsum('oi,bil->bol', p['wd'], x,
                       precision=lax.Precision.HIGHEST) + p['bd'][None, :, None]
        r = r * p['bnd_scale'][None, :, None] + p['bnd_shift'][None, :, None]
    else:
        r = x
    h = _ref_conv1d_same(x, p['w1'], p['b1'], dilation)
    h = jax.nn.relu(h)
    h = h * p['bn1_scale'][None, :, None] + p['bn1_shift'][None, :, None]
    h = jax.nn.relu(h)
    h = _ref_conv1d_same(h, p['w2'], p['b2'], dilation)
    h = jax.nn.relu(h)
    h = h * p['bn2_scale'][None, :, None] + p['bn2_shift'][None, :, None]
    h = jax.nn.relu(h + r)
    if do_pool:
        Bb, Co, L = h.shape
        h = jnp.max(h.reshape(Bb, Co, L // 2, 2), axis=-1)
    return h


def _ref_layer(x, layer_params, *, kernel_size=8, dilation=2,
               increase_dilation=True):
    del kernel_size
    blocks = len(layer_params)
    h = x
    for i, p in enumerate(layer_params):
        d = dilation * 2 ** i if increase_dilation else dilation
        h = _ref_block(h, p, d, do_pool=(i == blocks - 1))
    return h


# ------------------------ deterministic parameter init -----------------------

def init_block_params(key, C_in, C_out, K):
    ks = jax.random.split(key, 16)

    def conv_init(k, shape, fan_in):
        bound = 1.0 / math.sqrt(fan_in)
        return jax.random.uniform(k, shape, jnp.float32, -bound, bound)

    def bn_init(k1, k2, k3):
        gamma = 1.0 + 0.1 * jax.random.normal(k1, (C_out,), jnp.float32)
        beta = 0.1 * jax.random.normal(k2, (C_out,), jnp.float32)
        mean = 0.1 * jax.random.normal(k3, (C_out,), jnp.float32)
        var = jnp.ones((C_out,), jnp.float32)
        scale = gamma / jnp.sqrt(var + 1e-5)          # eval-mode folded BN
        shift = beta - mean * scale
        return scale, shift

    p = {}
    p['w1'] = conv_init(ks[0], (C_out, C_in, K), C_in * K)
    p['b1'] = conv_init(ks[1], (C_out,), C_in * K)
    p['bn1_scale'], p['bn1_shift'] = bn_init(ks[2], ks[3], ks[4])
    p['w2'] = conv_init(ks[5], (C_out, C_out, K), C_out * K)
    p['b2'] = conv_init(ks[6], (C_out,), C_out * K)
    p['bn2_scale'], p['bn2_shift'] = bn_init(ks[7], ks[8], ks[9])
    if C_in != C_out:                                  # downsample branch
        p['wd'] = conv_init(ks[10], (C_out, C_in), C_in)
        p['bd'] = conv_init(ks[11], (C_out,), C_in)
        p['bnd_scale'], p['bnd_shift'] = bn_init(ks[12], ks[13], ks[14])
    return p


if __name__ == "__main__":
    # DilatedBasicBlockLayer defaults at small shapes.
    B, C_in, L = 2, 4, 128
    filter_num, K, blocks = 21, 8, 2
    base_dilation = 2

    key = jax.random.PRNGKey(0)
    kx, k0, k1 = jax.random.split(key, 3)
    x = jax.random.normal(kx, (B, C_in, L), jnp.float32)

    layer_params = [
        init_block_params(k0, C_in, filter_num, K),        # block 0: dil 2, downsample, no pool
        init_block_params(k1, filter_num, filter_num, K),  # block 1: dil 4, identity residual, max_pool
    ]

    run = jax.jit(functools.partial(dilated_basic_block_layer,
                                    kernel_size=K, dilation=base_dilation,
                                    increase_dilation=True))
    out = jax.block_until_ready(run(x, layer_params))
    assert out.shape == (B, filter_num, L // 2), out.shape
    assert out.dtype == jnp.float32

    # verify against a pure-JAX reference of the PyTorch module (eval mode)
    ref = jax.block_until_ready(
        _ref_layer(x, layer_params, kernel_size=K, dilation=base_dilation,
                   increase_dilation=True))
    max_err = float(jnp.max(jnp.abs(out - ref)))
    assert max_err < 5e-2, f"kernel/reference mismatch: max abs err {max_err}"

    print("KERNEL_OK")
</pallas_src>

<mosaic_0001>
module attributes {stable_mosaic.version = 11 : i64} {
  func.func @kernel(%arg0: memref<2x8x128xf32, #tpu.memory_space<vmem>>, %arg1: memref<24x64xf32, #tpu.memory_space<vmem>>, %arg2: memref<24x1xf32, #tpu.memory_space<vmem>>, %arg3: memref<24x1xf32, #tpu.memory_space<vmem>>, %arg4: memref<24x1xf32, #tpu.memory_space<vmem>>, %arg5: memref<24x192xf32, #tpu.memory_space<vmem>>, %arg6: memref<24x1xf32, #tpu.memory_space<vmem>>, %arg7: memref<24x1xf32, #tpu.memory_space<vmem>>, %arg8: memref<24x1xf32, #tpu.memory_space<vmem>>, %arg9: memref<24x8xf32, #tpu.memory_space<vmem>>, %arg10: memref<24x1xf32, #tpu.memory_space<vmem>>, %arg11: memref<24x192xf32, #tpu.memory_space<vmem>>, %arg12: memref<24x1xf32, #tpu.memory_space<vmem>>, %arg13: memref<24x1xf32, #tpu.memory_space<vmem>>, %arg14: memref<24x1xf32, #tpu.memory_space<vmem>>, %arg15: memref<24x192xf32, #tpu.memory_space<vmem>>, %arg16: memref<24x1xf32, #tpu.memory_space<vmem>>, %arg17: memref<24x1xf32, #tpu.memory_space<vmem>>, %arg18: memref<24x1xf32, #tpu.memory_space<vmem>>, %arg19: memref<24x128xf32, #tpu.memory_space<vmem>>) attributes {dimension_semantics = [], scalar_prefetch = 0 : i64, scratch_operands = 0 : i64, tpu.core_type = #tpu.core_type<tc>} {
    %c0 = arith.constant 0 : index
    %c0_0 = arith.constant 0 : index
    %c0_1 = arith.constant 0 : index
    %0 = vector.load %arg0[%c0, %c0_0, %c0_1] : memref<2x8x128xf32, #tpu.memory_space<vmem>>, vector<1x8x128xf32>
    %1 = vector.shape_cast %0 : vector<1x8x128xf32> to vector<8x128xf32>
    %c1 = arith.constant 1 : index
    %c0_2 = arith.constant 0 : index
    %c0_3 = arith.constant 0 : index
    %2 = vector.load %arg0[%c1, %c0_2, %c0_3] : memref<2x8x128xf32, #tpu.memory_space<vmem>>, vector<1x8x128xf32>
    %3 = vector.shape_cast %2 : vector<1x8x128xf32> to vector<8x128xf32>
    %4 = tpu.concatenate %1, %3 in 1 : vector<8x128xf32>, vector<8x128xf32> -> vector<8x256xf32>
    %5 = tpu.iota {dimensions = array<i32: 1>} : vector<1x128xi32>
    %6 = tpu.concatenate %5, %5 in 1 : vector<1x128xi32>, vector<1x128xi32> -> vector<1x256xi32>
    %c0_4 = arith.constant 0 : index
    %c0_5 = arith.constant 0 : index
    %7 = vector.load %arg9[%c0_4, %c0_5] : memref<24x8xf32, #tpu.memory_space<vmem>>, vector<24x8xf32>
    %cst = arith.constant dense<0.000000e+00> : vector<24x256xf32>
    %8 = tpu.matmul %7, %4, %cst {dimension_numbers = #tpu.dot_dimension_numbers<[1], [0], [0], [1], [0, 0, 1, 1], [], []>} : vector<24x8xf32>, vector<8x256xf32>, vector<24x256xf32> -> vector<24x256xf32>
    %c0_6 = arith.constant 0 : index
    %c0_7 = arith.constant 0 : index
    %9 = vector.load %arg10[%c0_6, %c0_7] : memref<24x1xf32, #tpu.memory_space<vmem>>, vector<24x1xf32>
    %10 = vector.broadcast %9 : vector<24x1xf32> to vector<24x256xf32>
    %11 = arith.addf %8, %10 : vector<24x256xf32>
    %c7_i32 = arith.constant 7 : i32
    %12 = tpu.dynamic_rotate %4 by %c7_i32 dim 1 : vector<8x256xf32>, i32 -> vector<8x256xf32>
    %c7_i32_8 = arith.constant 7 : i32
    %13 = vector.broadcast %c7_i32_8 : i32 to vector<1x256xi32>
    %14 = arith.cmpi sge, %6, %13 : vector<1x256xi32>
    %c135_i32 = arith.constant 135 : i32
    %15 = vector.broadcast %c135_i32 : i32 to vector<1x256xi32>
    %16 = arith.cmpi slt, %6, %15 : vector<1x256xi32>
    %17 = arith.andi %14, %16 : vector<1x256xi1>
    %cst_9 = arith.constant 0.000000e+00 : f32
    %18 = vector.shape_cast %17 : vector<1x256xi1> to vector<1x256xi1>
    %19 = vector.broadcast %18 : vector<1x256xi1> to vector<8x256xi1>
    %20 = vector.broadcast %cst_9 : f32 to vector<8x256xf32>
    %21 = arith.select %19, %12, %20 : vector<8x256xi1>, vector<8x256xf32>
    %c5_i32 = arith.constant 5 : i32
    %22 = tpu.dynamic_rotate %4 by %c5_i32 dim 1 : vector<8x256xf32>, i32 -> vector<8x256xf32>
    %c5_i32_10 = arith.constant 5 : i32
    %23 = vector.broadcast %c5_i32_10 : i32 to vector<1x256xi32>
    %24 = arith.cmpi sge, %6, %23 : vector<1x256xi32>
    %c133_i32 = arith.constant 133 : i32
    %25 = vector.broadcast %c133_i32 : i32 to vector<1x256xi32>
    %26 = arith.cmpi slt, %6, %25 : vector<1x256xi32>
    %27 = arith.andi %24, %26 : vector<1x256xi1>
    %cst_11 = arith.constant 0.000000e+00 : f32
    %28 = vector.shape_cast %27 : vector<1x256xi1> to vector<1x256xi1>
    %29 = vector.broadcast %28 : vector<1x256xi1> to vector<8x256xi1>
    %30 = vector.broadcast %cst_11 : f32 to vector<8x256xf32>
    %31 = arith.select %29, %22, %30 : vector<8x256xi1>, vector<8x256xf32>
    %c3_i32 = arith.constant 3 : i32
    %32 = tpu.dynamic_rotate %4 by %c3_i32 dim 1 : vector<8x256xf32>, i32 -> vector<8x256xf32>
    %c3_i32_12 = arith.constant 3 : i32
    %33 = vector.broadcast %c3_i32_12 : i32 to vector<1x256xi32>
    %34 = arith.cmpi sge, %6, %33 : vector<1x256xi32>
    %c131_i32 = arith.constant 131 : i32
    %35 = vector.broadcast %c131_i32 : i32 to vector<1x256xi32>
    %36 = arith.cmpi slt, %6, %35 : vector<1x256xi32>
    %37 = arith.andi %34, %36 : vector<1x256xi1>
    %cst_13 = arith.constant 0.000000e+00 : f32
    %38 = vector.shape_cast %37 : vector<1x256xi1> to vector<1x256xi1>
    %39 = vector.broadcast %38 : vector<1x256xi1> to vector<8x256xi1>
    %40 = vector.broadcast %cst_13 : f32 to vector<8x256xf32>
    %41 = arith.select %39, %32, %40 : vector<8x256xi1>, vector<8x256xf32>
    %c1_i32 = arith.constant 1 : i32
    %42 = tpu.dynamic_rotate %4 by %c1_i32 dim 1 : vector<8x256xf32>, i32 -> vector<8x256xf32>
    %c1_i32_14 = arith.constant 1 : i32
    %43 = vector.broadcast %c1_i32_14 : i32 to vector<1x256xi32>
    %44 = arith.cmpi sge, %6, %43 : vector<1x256xi32>
    %c129_i32 = arith.constant 129 : i32
    %45 = vector.broadcast %c129_i32 : i32 to vector<1x256xi32>
    %46 = arith.cmpi slt, %6, %45 : vector<1x256xi32>
    %47 = arith.andi %44, %46 : vector<1x256xi1>
    %cst_15 = arith.constant 0.000000e+00 : f32
    %48 = vector.shape_cast %47 : vector<1x256xi1> to vector<1x256xi1>
    %49 = vector.broadcast %48 : vector<1x256xi1> to vector<8x256xi1>
    %50 = vector.broadcast %cst_15 : f32 to vector<8x256xf32>
    %51 = arith.select %49, %42, %50 : vector<8x256xi1>, vector<8x256xf32>
    %c255_i32 = arith.constant 255 : i32
    %52 = tpu.dynamic_rotate %4 by %c255_i32 dim 1 : vector<8x256xf32>, i32 -> vector<8x256xf32>
    %c-1_i32 = arith.constant -1 : i32
    %53 = vector.broadcast %c-1_i32 : i32 to vector<1x256xi32>
    %54 = arith.cmpi sge, %6, %53 : vector<1x256xi32>
    %c127_i32 = arith.constant 127 : i32
    %55 = vector.broadcast %c127_i32 : i32 to vector<1x256xi32>
    %56 = arith.cmpi slt, %6, %55 : vector<1x256xi32>
    %57 = arith.andi %54, %56 : vector<1x256xi1>
    %cst_16 = arith.constant 0.000000e+00 : f32
    %58 = vector.shape_cast %57 : vector<1x256xi1> to vector<1x256xi1>
    %59 = vector.broadcast %58 : vector<1x256xi1> to vector<8x256xi1>
    %60 = vector.broadcast %cst_16 : f32 to vector<8x256xf32>
    %61 = arith.select %59, %52, %60 : vector<8x256xi1>, vector<8x256xf32>
    %c253_i32 = arith.constant 253 : i32
    %62 = tpu.dynamic_rotate %4 by %c253_i32 dim 1 : vector<8x256xf32>, i32 -> vector<8x256xf32>
    %c-3_i32 = arith.constant -3 : i32
    %63 = vector.broadcast %c-3_i32 : i32 to vector<1x256xi32>
    %64 = arith.cmpi sge, %6, %63 : vector<1x256xi32>
    %c125_i32 = arith.constant 125 : i32
    %65 = vector.broadcast %c125_i32 : i32 to vector<1x256xi32>
    %66 = arith.cmpi slt, %6, %65 : vector<1x256xi32>
    %67 = arith.andi %64, %66 : vector<1x256xi1>
    %cst_17 = arith.constant 0.000000e+00 : f32
    %68 = vector.shape_cast %67 : vector<1x256xi1> to vector<1x256xi1>
    %69 = vector.broadcast %68 : vector<1x256xi1> to vector<8x256xi1>
    %70 = vector.broadcast %cst_17 : f32 to vector<8x256xf32>
    %71 = arith.select %69, %62, %70 : vector<8x256xi1>, vector<8x256xf32>
    %c251_i32 = arith.constant 251 : i32
    %72 = tpu.dynamic_rotate %4 by %c251_i32 dim 1 : vector<8x256xf32>, i32 -> vector<8x256xf32>
    %c-5_i32 = arith.constant -5 : i32
    %73 = vector.broadcast %c-5_i32 : i32 to vector<1x256xi32>
    %74 = arith.cmpi sge, %6, %73 : vector<1x256xi32>
    %c123_i32 = arith.constant 123 : i32
    %75 = vector.broadcast %c123_i32 : i32 to vector<1x256xi32>
    %76 = arith.cmpi slt, %6, %75 : vector<1x256xi32>
    %77 = arith.andi %74, %76 : vector<1x256xi1>
    %cst_18 = arith.constant 0.000000e+00 : f32
    %78 = vector.shape_cast %77 : vector<1x256xi1> to vector<1x256xi1>
    %79 = vector.broadcast %78 : vector<1x256xi1> to vector<8x256xi1>
    %80 = vector.broadcast %cst_18 : f32 to vector<8x256xf32>
    %81 = arith.select %79, %72, %80 : vector<8x256xi1>, vector<8x256xf32>
    %c249_i32 = arith.constant 249 : i32
    %82 = tpu.dynamic_rotate %4 by %c249_i32 dim 1 : vector<8x256xf32>, i32 -> vector<8x256xf32>
    %c-7_i32 = arith.constant -7 : i32
    %83 = vector.broadcast %c-7_i32 : i32 to vector<1x256xi32>
    %84 = arith.cmpi sge, %6, %83 : vector<1x256xi32>
    %c121_i32 = arith.constant 121 : i32
    %85 = vector.broadcast %c121_i32 : i32 to vector<1x256xi32>
    %86 = arith.cmpi slt, %6, %85 : vector<1x256xi32>
    %87 = arith.andi %84, %86 : vector<1x256xi1>
    %cst_19 = arith.constant 0.000000e+00 : f32
    %88 = vector.shape_cast %87 : vector<1x256xi1> to vector<1x256xi1>
    %89 = vector.broadcast %88 : vector<1x256xi1> to vector<8x256xi1>
    %90 = vector.broadcast %cst_19 : f32 to vector<8x256xf32>
    %91 = arith.select %89, %82, %90 : vector<8x256xi1>, vector<8x256xf32>
    %92 = tpu.concatenate %21, %31, %41, %51, %61, %71, %81, %91 in 0 : vector<8x256xf32>, vector<8x256xf32>, vector<8x256xf32>, vector<8x256xf32>, vector<8x256xf32>, vector<8x256xf32>, vector<8x256xf32>, vector<8x256xf32> -> vector<64x256xf32>
    %c0_20 = arith.constant 0 : index
    %c0_21 = arith.constant 0 : index
    %93 = vector.load %arg1[%c0_20, %c0_21] : memref<24x64xf32, #tpu.memory_space<vmem>>, vector<24x64xf32>
    %cst_22 = arith.constant dense<0.000000e+00> : vector<24x256xf32>
    %94 = tpu.matmul %93, %92, %cst_22 {dimension_numbers = #tpu.dot_dimension_numbers<[1], [0], [0], [1], [0, 0, 1, 1], [], []>} : vector<24x64xf32>, vector<64x256xf32>, vector<24x256xf32> -> vector<24x256xf32>
    %c0_23 = arith.constant 0 : index
    %c0_24 = arith.constant 0 : index
    %95 = vector.load %arg2[%c0_23, %c0_24] : memref<24x1xf32, #tpu.memory_space<vmem>>, vector<24x1xf32>
    %96 = vector.broadcast %95 : vector<24x1xf32> to vector<24x256xf32>
    %97 = arith.addf %94, %96 : vector<24x256xf32>
    %cst_25 = arith.constant 0.000000e+00 : f32
    %98 = vector.broadcast %cst_25 : f32 to vector<24x256xf32>
    %99 = arith.maximumf %97, %98 : vector<24x256xf32>
    %c0_26 = arith.constant 0 : index
    %c0_27 = arith.constant 0 : index
    %100 = vector.load %arg3[%c0_26, %c0_27] : memref<24x1xf32, #tpu.memory_space<vmem>>, vector<24x1xf32>
    %101 = vector.broadcast %100 : vector<24x1xf32> to vector<24x256xf32>
    %102 = arith.mulf %99, %101 : vector<24x256xf32>
    %c0_28 = arith.constant 0 : index
    %c0_29 = arith.constant 0 : index
    %103 = vector.load %arg4[%c0_28, %c0_29] : memref<24x1xf32, #tpu.memory_space<vmem>>, vector<24x1xf32>
    %104 = vector.broadcast %103 : vector<24x1xf32> to vector<24x256xf32>
    %105 = arith.addf %102, %104 : vector<24x256xf32>
    %cst_30 = arith.constant 0.000000e+00 : f32
    %106 = vector.broadcast %cst_30 : f32 to vector<24x256xf32>
    %107 = arith.maximumf %105, %106 : vector<24x256xf32>
    %c7_i32_31 = arith.constant 7 : i32
    %108 = tpu.dynamic_rotate %107 by %c7_i32_31 dim 1 : vector<24x256xf32>, i32 -> vector<24x256xf32>
    %c7_i32_32 = arith.constant 7 : i32
    %109 = vector.broadcast %c7_i32_32 : i32 to vector<1x256xi32>
    %110 = arith.cmpi sge, %6, %109 : vector<1x256xi32>
    %c135_i32_33 = arith.constant 135 : i32
    %111 = vector.broadcast %c135_i32_33 : i32 to vector<1x256xi32>
    %112 = arith.cmpi slt, %6, %111 : vector<1x256xi32>
    %113 = arith.andi %110, %112 : vector<1x256xi1>
    %cst_34 = arith.constant 0.000000e+00 : f32
    %114 = vector.shape_cast %113 : vector<1x256xi1> to vector<1x256xi1>
    %115 = vector.broadcast %114 : vector<1x256xi1> to vector<24x256xi1>
    %116 = vector.broadcast %cst_34 : f32 to vector<24x256xf32>
    %117 = arith.select %115, %108, %116 : vector<24x256xi1>, vector<24x256xf32>
    %c5_i32_35 = arith.constant 5 : i32
    %118 = tpu.dynamic_rotate %107 by %c5_i32_35 dim 1 : vector<24x256xf32>, i32 -> vector<24x256xf32>
    %c5_i32_36 = arith.constant 5 : i32
    %119 = vector.broadcast %c5_i32_36 : i32 to vector<1x256xi32>
    %120 = arith.cmpi sge, %6, %119 : vector<1x256xi32>
    %c133_i32_37 = arith.constant 133 : i32
    %121 = vector.broadcast %c133_i32_37 : i32 to vector<1x256xi32>
    %122 = arith.cmpi slt, %6, %121 : vector<1x256xi32>
    %123 = arith.andi %120, %122 : vector<1x256xi1>
    %cst_38 = arith.constant 0.000000e+00 : f32
    %124 = vector.shape_cast %123 : vector<1x256xi1> to vector<1x256xi1>
    %125 = vector.broadcast %124 : vector<1x256xi1> to vector<24x256xi1>
    %126 = vector.broadcast %cst_38 : f32 to vector<24x256xf32>
    %127 = arith.select %125, %118, %126 : vector<24x256xi1>, vector<24x256xf32>
    %c3_i32_39 = arith.constant 3 : i32
    %128 = tpu.dynamic_rotate %107 by %c3_i32_39 dim 1 : vector<24x256xf32>, i32 -> vector<24x256xf32>
    %c3_i32_40 = arith.constant 3 : i32
    %129 = vector.broadcast %c3_i32_40 : i32 to vector<1x256xi32>
    %130 = arith.cmpi sge, %6, %129 : vector<1x256xi32>
    %c131_i32_41 = arith.constant 131 : i32
    %131 = vector.broadcast %c131_i32_41 : i32 to vector<1x256xi32>
    %132 = arith.cmpi slt, %6, %131 : vector<1x256xi32>
    %133 = arith.andi %130, %132 : vector<1x256xi1>
    %cst_42 = arith.constant 0.000000e+00 : f32
    %134 = vector.shape_cast %133 : vector<1x256xi1> to vector<1x256xi1>
    %135 = vector.broadcast %134 : vector<1x256xi1> to vector<24x256xi1>
    %136 = vector.broadcast %cst_42 : f32 to vector<24x256xf32>
    %137 = arith.select %135, %128, %136 : vector<24x256xi1>, vector<24x256xf32>
    %c1_i32_43 = arith.constant 1 : i32
    %138 = tpu.dynamic_rotate %107 by %c1_i32_43 dim 1 : vector<24x256xf32>, i32 -> vector<24x256xf32>
    %c1_i32_44 = arith.constant 1 : i32
    %139 = vector.broadcast %c1_i32_44 : i32 to vector<1x256xi32>
    %140 = arith.cmpi sge, %6, %139 : vector<1x256xi32>
    %c129_i32_45 = arith.constant 129 : i32
    %141 = vector.broadcast %c129_i32_45 : i32 to vector<1x256xi32>
    %142 = arith.cmpi slt, %6, %141 : vector<1x256xi32>
    %143 = arith.andi %140, %142 : vector<1x256xi1>
    %cst_46 = arith.constant 0.000000e+00 : f32
    %144 = vector.shape_cast %143 : vector<1x256xi1> to vector<1x256xi1>
    %145 = vector.broadcast %144 : vector<1x256xi1> to vector<24x256xi1>
    %146 = vector.broadcast %cst_46 : f32 to vector<24x256xf32>
    %147 = arith.select %145, %138, %146 : vector<24x256xi1>, vector<24x256xf32>
    %c255_i32_47 = arith.constant 255 : i32
    %148 = tpu.dynamic_rotate %107 by %c255_i32_47 dim 1 : vector<24x256xf32>, i32 -> vector<24x256xf32>
    %c-1_i32_48 = arith.constant -1 : i32
    %149 = vector.broadcast %c-1_i32_48 : i32 to vector<1x256xi32>
    %150 = arith.cmpi sge, %6, %149 : vector<1x256xi32>
    %c127_i32_49 = arith.constant 127 : i32
    %151 = vector.broadcast %c127_i32_49 : i32 to vector<1x256xi32>
    %152 = arith.cmpi slt, %6, %151 : vector<1x256xi32>
    %153 = arith.andi %150, %152 : vector<1x256xi1>
    %cst_50 = arith.constant 0.000000e+00 : f32
    %154 = vector.shape_cast %153 : vector<1x256xi1> to vector<1x256xi1>
    %155 = vector.broadcast %154 : vector<1x256xi1> to vector<24x256xi1>
    %156 = vector.broadcast %cst_50 : f32 to vector<24x256xf32>
    %157 = arith.select %155, %148, %156 : vector<24x256xi1>, vector<24x256xf32>
    %c253_i32_51 = arith.constant 253 : i32
    %158 = tpu.dynamic_rotate %107 by %c253_i32_51 dim 1 : vector<24x256xf32>, i32 -> vector<24x256xf32>
    %c-3_i32_52 = arith.constant -3 : i32
    %159 = vector.broadcast %c-3_i32_52 : i32 to vector<1x256xi32>
    %160 = arith.cmpi sge, %6, %159 : vector<1x256xi32>
    %c125_i32_53 = arith.constant 125 : i32
    %161 = vector.broadcast %c125_i32_53 : i32 to vector<1x256xi32>
    %162 = arith.cmpi slt, %6, %161 : vector<1x256xi32>
    %163 = arith.andi %160, %162 : vector<1x256xi1>
    %cst_54 = arith.constant 0.000000e+00 : f32
    %164 = vector.shape_cast %163 : vector<1x256xi1> to vector<1x256xi1>
    %165 = vector.broadcast %164 : vector<1x256xi1> to vector<24x256xi1>
    %166 = vector.broadcast %cst_54 : f32 to vector<24x256xf32>
    %167 = arith.select %165, %158, %166 : vector<24x256xi1>, vector<24x256xf32>
    %c251_i32_55 = arith.constant 251 : i32
    %168 = tpu.dynamic_rotate %107 by %c251_i32_55 dim 1 : vector<24x256xf32>, i32 -> vector<24x256xf32>
    %c-5_i32_56 = arith.constant -5 : i32
    %169 = vector.broadcast %c-5_i32_56 : i32 to vector<1x256xi32>
    %170 = arith.cmpi sge, %6, %169 : vector<1x256xi32>
    %c123_i32_57 = arith.constant 123 : i32
    %171 = vector.broadcast %c123_i32_57 : i32 to vector<1x256xi32>
    %172 = arith.cmpi slt, %6, %171 : vector<1x256xi32>
    %173 = arith.andi %170, %172 : vector<1x256xi1>
    %cst_58 = arith.constant 0.000000e+00 : f32
    %174 = vector.shape_cast %173 : vector<1x256xi1> to vector<1x256xi1>
    %175 = vector.broadcast %174 : vector<1x256xi1> to vector<24x256xi1>
    %176 = vector.broadcast %cst_58 : f32 to vector<24x256xf32>
    %177 = arith.select %175, %168, %176 : vector<24x256xi1>, vector<24x256xf32>
    %c249_i32_59 = arith.constant 249 : i32
    %178 = tpu.dynamic_rotate %107 by %c249_i32_59 dim 1 : vector<24x256xf32>, i32 -> vector<24x256xf32>
    %c-7_i32_60 = arith.constant -7 : i32
    %179 = vector.broadcast %c-7_i32_60 : i32 to vector<1x256xi32>
    %180 = arith.cmpi sge, %6, %179 : vector<1x256xi32>
    %c121_i32_61 = arith.constant 121 : i32
    %181 = vector.broadcast %c121_i32_61 : i32 to vector<1x256xi32>
    %182 = arith.cmpi slt, %6, %181 : vector<1x256xi32>
    %183 = arith.andi %180, %182 : vector<1x256xi1>
    %cst_62 = arith.constant 0.000000e+00 : f32
    %184 = vector.shape_cast %183 : vector<1x256xi1> to vector<1x256xi1>
    %185 = vector.broadcast %184 : vector<1x256xi1> to vector<24x256xi1>
    %186 = vector.broadcast %cst_62 : f32 to vector<24x256xf32>
    %187 = arith.select %185, %178, %186 : vector<24x256xi1>, vector<24x256xf32>
    %188 = tpu.concatenate %117, %127, %137, %147, %157, %167, %177, %187 in 0 : vector<24x256xf32>, vector<24x256xf32>, vector<24x256xf32>, vector<24x256xf32>, vector<24x256xf32>, vector<24x256xf32>, vector<24x256xf32>, vector<24x256xf32> -> vector<192x256xf32>
    %c0_63 = arith.constant 0 : index
    %c0_64 = arith.constant 0 : index
    %189 = vector.load %arg5[%c0_63, %c0_64] : memref<24x192xf32, #tpu.memory_space<vmem>>, vector<24x192xf32>
    %cst_65 = arith.constant dense<0.000000e+00> : vector<24x256xf32>
    %190 = tpu.matmul %189, %188, %cst_65 {dimension_numbers = #tpu.dot_dimension_numbers<[1], [0], [0], [1], [0, 0, 1, 1], [], []>} : vector<24x192xf32>, vector<192x256xf32>, vector<24x256xf32> -> vector<24x256xf32>
    %c0_66 = arith.constant 0 : index
    %c0_67 = arith.constant 0 : index
    %191 = vector.load %arg6[%c0_66, %c0_67] : memref<24x1xf32, #tpu.memory_space<vmem>>, vector<24x1xf32>
    %192 = vector.broadcast %191 : vector<24x1xf32> to vector<24x256xf32>
    %193 = arith.addf %190, %192 : vector<24x256xf32>
    %cst_68 = arith.constant 0.000000e+00 : f32
    %194 = vector.broadcast %cst_68 : f32 to vector<24x256xf32>
    %195 = arith.maximumf %193, %194 : vector<24x256xf32>
    %c0_69 = arith.constant 0 : index
    %c0_70 = arith.constant 0 : index
    %196 = vector.load %arg7[%c0_69, %c0_70] : memref<24x1xf32, #tpu.memory_space<vmem>>, vector<24x1xf32>
    %197 = vector.broadcast %196 : vector<24x1xf32> to vector<24x256xf32>
    %198 = arith.mulf %195, %197 : vector<24x256xf32>
    %c0_71 = arith.constant 0 : index
    %c0_72 = arith.constant 0 : index
    %199 = vector.load %arg8[%c0_71, %c0_72] : memref<24x1xf32, #tpu.memory_space<vmem>>, vector<24x1xf32>
    %200 = vector.broadcast %199 : vector<24x1xf32> to vector<24x256xf32>
    %201 = arith.addf %198, %200 : vector<24x256xf32>
    %202 = arith.addf %201, %11 : vector<24x256xf32>
    %cst_73 = arith.constant 0.000000e+00 : f32
    %203 = vector.broadcast %cst_73 : f32 to vector<24x256xf32>
    %204 = arith.maximumf %202, %203 : vector<24x256xf32>
    %205 = tpu.iota {dimensions = array<i32: 1>} : vector<1x128xi32>
    %206 = tpu.concatenate %205, %205 in 1 : vector<1x128xi32>, vector<1x128xi32> -> vector<1x256xi32>
    %c14_i32 = arith.constant 14 : i32
    %207 = tpu.dynamic_rotate %204 by %c14_i32 dim 1 : vector<24x256xf32>, i32 -> vector<24x256xf32>
    %c14_i32_74 = arith.constant 14 : i32
    %208 = vector.broadcast %c14_i32_74 : i32 to vector<1x256xi32>
    %209 = arith.cmpi sge, %206, %208 : vector<1x256xi32>
    %c142_i32 = arith.constant 142 : i32
    %210 = vector.broadcast %c142_i32 : i32 to vector<1x256xi32>
    %211 = arith.cmpi slt, %206, %210 : vector<1x256xi32>
    %212 = arith.andi %209, %211 : vector<1x256xi1>
    %cst_75 = arith.constant 0.000000e+00 : f32
    %213 = vector.shape_cast %212 : vector<1x256xi1> to vector<1x256xi1>
    %214 = vector.broadcast %213 : vector<1x256xi1> to vector<24x256xi1>
    %215 = vector.broadcast %cst_75 : f32 to vector<24x256xf32>
    %216 = arith.select %214, %207, %215 : vector<24x256xi1>, vector<24x256xf32>
    %c10_i32 = arith.constant 10 : i32
    %217 = tpu.dynamic_rotate %204 by %c10_i32 dim 1 : vector<24x256xf32>, i32 -> vector<24x256xf32>
    %c10_i32_76 = arith.constant 10 : i32
    %218 = vector.broadcast %c10_i32_76 : i32 to vector<1x256xi32>
    %219 = arith.cmpi sge, %206, %218 : vector<1x256xi32>
    %c138_i32 = arith.constant 138 : i32
    %220 = vector.broadcast %c138_i32 : i32 to vector<1x256xi32>
    %221 = arith.cmpi slt, %206, %220 : vector<1x256xi32>
    %222 = arith.andi %219, %221 : vector<1x256xi1>
    %cst_77 = arith.constant 0.000000e+00 : f32
    %223 = vector.shape_cast %222 : vector<1x256xi1> to vector<1x256xi1>
    %224 = vector.broadcast %223 : vector<1x256xi1> to vector<24x256xi1>
    %225 = vector.broadcast %cst_77 : f32 to vector<24x256xf32>
    %226 = arith.select %224, %217, %225 : vector<24x256xi1>, vector<24x256xf32>
    %c6_i32 = arith.constant 6 : i32
    %227 = tpu.dynamic_rotate %204 by %c6_i32 dim 1 : vector<24x256xf32>, i32 -> vector<24x256xf32>
    %c6_i32_78 = arith.constant 6 : i32
    %228 = vector.broadcast %c6_i32_78 : i32 to vector<1x256xi32>
    %229 = arith.cmpi sge, %206, %228 : vector<1x256xi32>
    %c134_i32 = arith.constant 134 : i32
    %230 = vector.broadcast %c134_i32 : i32 to vector<1x256xi32>
    %231 = arith.cmpi slt, %206, %230 : vector<1x256xi32>
    %232 = arith.andi %229, %231 : vector<1x256xi1>
    %cst_79 = arith.constant 0.000000e+00 : f32
    %233 = vector.shape_cast %232 : vector<1x256xi1> to vector<1x256xi1>
    %234 = vector.broadcast %233 : vector<1x256xi1> to vector<24x256xi1>
    %235 = vector.broadcast %cst_79 : f32 to vector<24x256xf32>
    %236 = arith.select %234, %227, %235 : vector<24x256xi1>, vector<24x256xf32>
    %c2_i32 = arith.constant 2 : i32
    %237 = tpu.dynamic_rotate %204 by %c2_i32 dim 1 : vector<24x256xf32>, i32 -> vector<24x256xf32>
    %c2_i32_80 = arith.constant 2 : i32
    %238 = vector.broadcast %c2_i32_80 : i32 to vector<1x256xi32>
    %239 = arith.cmpi sge, %206, %238 : vector<1x256xi32>
    %c130_i32 = arith.constant 130 : i32
    %240 = vector.broadcast %c130_i32 : i32 to vector<1x256xi32>
    %241 = arith.cmpi slt, %206, %240 : vector<1x256xi32>
    %242 = arith.andi %239, %241 : vector<1x256xi1>
    %cst_81 = arith.constant 0.000000e+00 : f32
    %243 = vector.shape_cast %242 : vector<1x256xi1> to vector<1x256xi1>
    %244 = vector.broadcast %243 : vector<1x256xi1> to vector<24x256xi1>
    %245 = vector.broadcast %cst_81 : f32 to vector<24x256xf32>
    %246 = arith.select %244, %237, %245 : vector<24x256xi1>, vector<24x256xf32>
    %c254_i32 = arith.constant 254 : i32
    %247 = tpu.dynamic_rotate %204 by %c254_i32 dim 1 : vector<24x256xf32>, i32 -> vector<24x256xf32>
    %c-2_i32 = arith.constant -2 : i32
    %248 = vector.broadcast %c-2_i32 : i32 to vector<1x256xi32>
    %249 = arith.cmpi sge, %206, %248 : vector<1x256xi32>
    %c126_i32 = arith.constant 126 : i32
    %250 = vector.broadcast %c126_i32 : i32 to vector<1x256xi32>
    %251 = arith.cmpi slt, %206, %250 : vector<1x256xi32>
    %252 = arith.andi %249, %251 : vector<1x256xi1>
    %cst_82 = arith.constant 0.000000e+00 : f32
    %253 = vector.shape_cast %252 : vector<1x256xi1> to vector<1x256xi1>
    %254 = vector.broadcast %253 : vector<1x256xi1> to vector<24x256xi1>
    %255 = vector.broadcast %cst_82 : f32 to vector<24x256xf32>
    %256 = arith.select %254, %247, %255 : vector<24x256xi1>, vector<24x256xf32>
    %c250_i32 = arith.constant 250 : i32
    %257 = tpu.dynamic_rotate %204 by %c250_i32 dim 1 : vector<24x256xf32>, i32 -> vector<24x256xf32>
    %c-6_i32 = arith.constant -6 : i32
    %258 = vector.broadcast %c-6_i32 : i32 to vector<1x256xi32>
    %259 = arith.cmpi sge, %206, %258 : vector<1x256xi32>
    %c122_i32 = arith.constant 122 : i32
    %260 = vector.broadcast %c122_i32 : i32 to vector<1x256xi32>
    %261 = arith.cmpi slt, %206, %260 : vector<1x256xi32>
    %262 = arith.andi %259, %261 : vector<1x256xi1>
    %cst_83 = arith.constant 0.000000e+00 : f32
    %263 = vector.shape_cast %262 : vector<1x256xi1> to vector<1x256xi1>
    %264 = vector.broadcast %263 : vector<1x256xi1> to vector<24x256xi1>
    %265 = vector.broadcast %cst_83 : f32 to vector<24x256xf32>
    %266 = arith.select %264, %257, %265 : vector<24x256xi1>, vector<24x256xf32>
    %c246_i32 = arith.constant 246 : i32
    %267 = tpu.dynamic_rotate %204 by %c246_i32 dim 1 : vector<24x256xf32>, i32 -> vector<24x256xf32>
    %c-10_i32 = arith.constant -10 : i32
    %268 = vector.broadcast %c-10_i32 : i32 to vector<1x256xi32>
    %269 = arith.cmpi sge, %206, %268 : vector<1x256xi32>
    %c118_i32 = arith.constant 118 : i32
    %270 = vector.broadcast %c118_i32 : i32 to vector<1x256xi32>
    %271 = arith.cmpi slt, %206, %270 : vector<1x256xi32>
    %272 = arith.andi %269, %271 : vector<1x256xi1>
    %cst_84 = arith.constant 0.000000e+00 : f32
    %273 = vector.shape_cast %272 : vector<1x256xi1> to vector<1x256xi1>
    %274 = vector.broadcast %273 : vector<1x256xi1> to vector<24x256xi1>
    %275 = vector.broadcast %cst_84 : f32 to vector<24x256xf32>
    %276 = arith.select %274, %267, %275 : vector<24x256xi1>, vector<24x256xf32>
    %c242_i32 = arith.constant 242 : i32
    %277 = tpu.dynamic_rotate %204 by %c242_i32 dim 1 : vector<24x256xf32>, i32 -> vector<24x256xf32>
    %c-14_i32 = arith.constant -14 : i32
    %278 = vector.broadcast %c-14_i32 : i32 to vector<1x256xi32>
    %279 = arith.cmpi sge, %206, %278 : vector<1x256xi32>
    %c114_i32 = arith.constant 114 : i32
    %280 = vector.broadcast %c114_i32 : i32 to vector<1x256xi32>
    %281 = arith.cmpi slt, %206, %280 : vector<1x256xi32>
    %282 = arith.andi %279, %281 : vector<1x256xi1>
    %cst_85 = arith.constant 0.000000e+00 : f32
    %283 = vector.shape_cast %282 : vector<1x256xi1> to vector<1x256xi1>
    %284 = vector.broadcast %283 : vector<1x256xi1> to vector<24x256xi1>
    %285 = vector.broadcast %cst_85 : f32 to vector<24x256xf32>
    %286 = arith.select %284, %277, %285 : vector<24x256xi1>, vector<24x256xf32>
    %287 = tpu.concatenate %216, %226, %236, %246, %256, %266, %276, %286 in 0 : vector<24x256xf32>, vector<24x256xf32>, vector<24x256xf32>, vector<24x256xf32>, vector<24x256xf32>, vector<24x256xf32>, vector<24x256xf32>, vector<24x256xf32> -> vector<192x256xf32>
    %c0_86 = arith.constant 0 : index
    %c0_87 = arith.constant 0 : index
    %288 = vector.load %arg11[%c0_86, %c0_87] : memref<24x192xf32, #tpu.memory_space<vmem>>, vector<24x192xf32>
    %cst_88 = arith.constant dense<0.000000e+00> : vector<24x256xf32>
    %289 = tpu.matmul %288, %287, %cst_88 {dimension_numbers = #tpu.dot_dimension_numbers<[1], [0], [0], [1], [0, 0, 1, 1], [], []>} : vector<24x192xf32>, vector<192x256xf32>, vector<24x256xf32> -> vector<24x256xf32>
    %c0_89 = arith.constant 0 : index
    %c0_90 = arith.constant 0 : index
    %290 = vector.load %arg12[%c0_89, %c0_90] : memref<24x1xf32, #tpu.memory_space<vmem>>, vector<24x1xf32>
    %291 = vector.broadcast %290 : vector<24x1xf32> to vector<24x256xf32>
    %292 = arith.addf %289, %291 : vector<24x256xf32>
    %cst_91 = arith.constant 0.000000e+00 : f32
    %293 = vector.broadcast %cst_91 : f32 to vector<24x256xf32>
    %294 = arith.maximumf %292, %293 : vector<24x256xf32>
    %c0_92 = arith.constant 0 : index
    %c0_93 = arith.constant 0 : index
    %295 = vector.load %arg13[%c0_92, %c0_93] : memref<24x1xf32, #tpu.memory_space<vmem>>, vector<24x1xf32>
    %296 = vector.broadcast %295 : vector<24x1xf32> to vector<24x256xf32>
    %297 = arith.mulf %294, %296 : vector<24x256xf32>
    %c0_94 = arith.constant 0 : index
    %c0_95 = arith.constant 0 : index
    %298 = vector.load %arg14[%c0_94, %c0_95] : memref<24x1xf32, #tpu.memory_space<vmem>>, vector<24x1xf32>
    %299 = vector.broadcast %298 : vector<24x1xf32> to vector<24x256xf32>
    %300 = arith.addf %297, %299 : vector<24x256xf32>
    %cst_96 = arith.constant 0.000000e+00 : f32
    %301 = vector.broadcast %cst_96 : f32 to vector<24x256xf32>
    %302 = arith.maximumf %300, %301 : vector<24x256xf32>
    %c14_i32_97 = arith.constant 14 : i32
    %303 = tpu.dynamic_rotate %302 by %c14_i32_97 dim 1 : vector<24x256xf32>, i32 -> vector<24x256xf32>
    %c14_i32_98 = arith.constant 14 : i32
    %304 = vector.broadcast %c14_i32_98 : i32 to vector<1x256xi32>
    %305 = arith.cmpi sge, %206, %304 : vector<1x256xi32>
    %c142_i32_99 = arith.constant 142 : i32
    %306 = vector.broadcast %c142_i32_99 : i32 to vector<1x256xi32>
    %307 = arith.cmpi slt, %206, %306 : vector<1x256xi32>
    %308 = arith.andi %305, %307 : vector<1x256xi1>
    %cst_100 = arith.constant 0.000000e+00 : f32
    %309 = vector.shape_cast %308 : vector<1x256xi1> to vector<1x256xi1>
    %310 = vector.broadcast %309 : vector<1x256xi1> to vector<24x256xi1>
    %311 = vector.broadcast %cst_100 : f32 to vector<24x256xf32>
    %312 = arith.select %310, %303, %311 : vector<24x256xi1>, vector<24x256xf32>
    %c10_i32_101 = arith.constant 10 : i32
    %313 = tpu.dynamic_rotate %302 by %c10_i32_101 dim 1 : vector<24x256xf32>, i32 -> vector<24x256xf32>
    %c10_i32_102 = arith.constant 10 : i32
    %314 = vector.broadcast %c10_i32_102 : i32 to vector<1x256xi32>
    %315 = arith.cmpi sge, %206, %314 : vector<1x256xi32>
    %c138_i32_103 = arith.constant 138 : i32
    %316 = vector.broadcast %c138_i32_103 : i32 to vector<1x256xi32>
    %317 = arith.cmpi slt, %206, %316 : vector<1x256xi32>
    %318 = arith.andi %315, %317 : vector<1x256xi1>
    %cst_104 = arith.constant 0.000000e+00 : f32
    %319 = vector.shape_cast %318 : vector<1x256xi1> to vector<1x256xi1>
    %320 = vector.broadcast %319 : vector<1x256xi1> to vector<24x256xi1>
    %321 = vector.broadcast %cst_104 : f32 to vector<24x256xf32>
    %322 = arith.select %320, %313, %321 : vector<24x256xi1>, vector<24x256xf32>
    %c6_i32_105 = arith.constant 6 : i32
    %323 = tpu.dynamic_rotate %302 by %c6_i32_105 dim 1 : vector<24x256xf32>, i32 -> vector<24x256xf32>
    %c6_i32_106 = arith.constant 6 : i32
    %324 = vector.broadcast %c6_i32_106 : i32 to vector<1x256xi32>
    %325 = arith.cmpi sge, %206, %324 : vector<1x256xi32>
    %c134_i32_107 = arith.constant 134 : i32
    %326 = vector.broadcast %c134_i32_107 : i32 to vector<1x256xi32>
    %327 = arith.cmpi slt, %206, %326 : vector<1x256xi32>
    %328 = arith.andi %325, %327 : vector<1x256xi1>
    %cst_108 = arith.constant 0.000000e+00 : f32
    %329 = vector.shape_cast %328 : vector<1x256xi1> to vector<1x256xi1>
    %330 = vector.broadcast %329 : vector<1x256xi1> to vector<24x256xi1>
    %331 = vector.broadcast %cst_108 : f32 to vector<24x256xf32>
    %332 = arith.select %330, %323, %331 : vector<24x256xi1>, vector<24x256xf32>
    %c2_i32_109 = arith.constant 2 : i32
    %333 = tpu.dynamic_rotate %302 by %c2_i32_109 dim 1 : vector<24x256xf32>, i32 -> vector<24x256xf32>
    %c2_i32_110 = arith.constant 2 : i32
    %334 = vector.broadcast %c2_i32_110 : i32 to vector<1x256xi32>
    %335 = arith.cmpi sge, %206, %334 : vector<1x256xi32>
    %c130_i32_111 = arith.constant 130 : i32
    %336 = vector.broadcast %c130_i32_111 : i32 to vector<1x256xi32>
    %337 = arith.cmpi slt, %206, %336 : vector<1x256xi32>
    %338 = arith.andi %335, %337 : vector<1x256xi1>
    %cst_112 = arith.constant 0.000000e+00 : f32
    %339 = vector.shape_cast %338 : vector<1x256xi1> to vector<1x256xi1>
    %340 = vector.broadcast %339 : vector<1x256xi1> to vector<24x256xi1>
    %341 = vector.broadcast %cst_112 : f32 to vector<24x256xf32>
    %342 = arith.select %340, %333, %341 : vector<24x256xi1>, vector<24x256xf32>
    %c254_i32_113 = arith.constant 254 : i32
    %343 = tpu.dynamic_rotate %302 by %c254_i32_113 dim 1 : vector<24x256xf32>, i32 -> vector<24x256xf32>
    %c-2_i32_114 = arith.constant -2 : i32
    %344 = vector.broadcast %c-2_i32_114 : i32 to vector<1x256xi32>
    %345 = arith.cmpi sge, %206, %344 : vector<1x256xi32>
    %c126_i32_115 = arith.constant 126 : i32
    %346 = vector.broadcast %c126_i32_115 : i32 to vector<1x256xi32>
    %347 = arith.cmpi slt, %206, %346 : vector<1x256xi32>
    %348 = arith.andi %345, %347 : vector<1x256xi1>
    %cst_116 = arith.constant 0.000000e+00 : f32
    %349 = vector.shape_cast %348 : vector<1x256xi1> to vector<1x256xi1>
    %350 = vector.broadcast %349 : vector<1x256xi1> to vector<24x256xi1>
    %351 = vector.broadcast %cst_116 : f32 to vector<24x256xf32>
    %352 = arith.select %350, %343, %351 : vector<24x256xi1>, vector<24x256xf32>
    %c250_i32_117 = arith.constant 250 : i32
    %353 = tpu.dynamic_rotate %302 by %c250_i32_117 dim 1 : vector<24x256xf32>, i32 -> vector<24x256xf32>
    %c-6_i32_118 = arith.constant -6 : i32
    %354 = vector.broadcast %c-6_i32_118 : i32 to vector<1x256xi32>
    %355 = arith.cmpi sge, %206, %354 : vector<1x256xi32>
    %c122_i32_119 = arith.constant 122 : i32
    %356 = vector.broadcast %c122_i32_119 : i32 to vector<1x256xi32>
    %357 = arith.cmpi slt, %206, %356 : vector<1x256xi32>
    %358 = arith.andi %355, %357 : vector<1x256xi1>
    %cst_120 = arith.constant 0.000000e+00 : f32
    %359 = vector.shape_cast %358 : vector<1x256xi1> to vector<1x256xi1>
    %360 = vector.broadcast %359 : vector<1x256xi1> to vector<24x256xi1>
    %361 = vector.broadcast %cst_120 : f32 to vector<24x256xf32>
    %362 = arith.select %360, %353, %361 : vector<24x256xi1>, vector<24x256xf32>
    %c246_i32_121 = arith.constant 246 : i32
    %363 = tpu.dynamic_rotate %302 by %c246_i32_121 dim 1 : vector<24x256xf32>, i32 -> vector<24x256xf32>
    %c-10_i32_122 = arith.constant -10 : i32
    %364 = vector.broadcast %c-10_i32_122 : i32 to vector<1x256xi32>
    %365 = arith.cmpi sge, %206, %364 : vector<1x256xi32>
    %c118_i32_123 = arith.constant 118 : i32
    %366 = vector.broadcast %c118_i32_123 : i32 to vector<1x256xi32>
    %367 = arith.cmpi slt, %206, %366 : vector<1x256xi32>
    %368 = arith.andi %365, %367 : vector<1x256xi1>
    %cst_124 = arith.constant 0.000000e+00 : f32
    %369 = vector.shape_cast %368 : vector<1x256xi1> to vector<1x256xi1>
    %370 = vector.broadcast %369 : vector<1x256xi1> to vector<24x256xi1>
    %371 = vector.broadcast %cst_124 : f32 to vector<24x256xf32>
    %372 = arith.select %370, %363, %371 : vector<24x256xi1>, vector<24x256xf32>
    %c242_i32_125 = arith.constant 242 : i32
    %373 = tpu.dynamic_rotate %302 by %c242_i32_125 dim 1 : vector<24x256xf32>, i32 -> vector<24x256xf32>
    %c-14_i32_126 = arith.constant -14 : i32
    %374 = vector.broadcast %c-14_i32_126 : i32 to vector<1x256xi32>
    %375 = arith.cmpi sge, %206, %374 : vector<1x256xi32>
    %c114_i32_127 = arith.constant 114 : i32
    %376 = vector.broadcast %c114_i32_127 : i32 to vector<1x256xi32>
    %377 = arith.cmpi slt, %206, %376 : vector<1x256xi32>
    %378 = arith.andi %375, %377 : vector<1x256xi1>
    %cst_128 = arith.constant 0.000000e+00 : f32
    %379 = vector.shape_cast %378 : vector<1x256xi1> to vector<1x256xi1>
    %380 = vector.broadcast %379 : vector<1x256xi1> to vector<24x256xi1>
    %381 = vector.broadcast %cst_128 : f32 to vector<24x256xf32>
    %382 = arith.select %380, %373, %381 : vector<24x256xi1>, vector<24x256xf32>
    %383 = tpu.concatenate %312, %322, %332, %342, %352, %362, %372, %382 in 0 : vector<24x256xf32>, vector<24x256xf32>, vector<24x256xf32>, vector<24x256xf32>, vector<24x256xf32>, vector<24x256xf32>, vector<24x256xf32>, vector<24x256xf32> -> vector<192x256xf32>
    %c0_129 = arith.constant 0 : index
    %c0_130 = arith.constant 0 : index
    %384 = vector.load %arg15[%c0_129, %c0_130] : memref<24x192xf32, #tpu.memory_space<vmem>>, vector<24x192xf32>
    %cst_131 = arith.constant dense<0.000000e+00> : vector<24x256xf32>
    %385 = tpu.matmul %384, %383, %cst_131 {dimension_numbers = #tpu.dot_dimension_numbers<[1], [0], [0], [1], [0, 0, 1, 1], [], []>} : vector<24x192xf32>, vector<192x256xf32>, vector<24x256xf32> -> vector<24x256xf32>
    %c0_132 = arith.constant 0 : index
    %c0_133 = arith.constant 0 : index
    %386 = vector.load %arg16[%c0_132, %c0_133] : memref<24x1xf32, #tpu.memory_space<vmem>>, vector<24x1xf32>
    %387 = vector.broadcast %386 : vector<24x1xf32> to vector<24x256xf32>
    %388 = arith.addf %385, %387 : vector<24x256xf32>
    %cst_134 = arith.constant 0.000000e+00 : f32
    %389 = vector.broadcast %cst_134 : f32 to vector<24x256xf32>
    %390 = arith.maximumf %388, %389 : vector<24x256xf32>
    %c0_135 = arith.constant 0 : index
    %c0_136 = arith.constant 0 : index
    %391 = vector.load %arg17[%c0_135, %c0_136] : memref<24x1xf32, #tpu.memory_space<vmem>>, vector<24x1xf32>
    %392 = vector.broadcast %391 : vector<24x1xf32> to vector<24x256xf32>
    %393 = arith.mulf %390, %392 : vector<24x256xf32>
    %c0_137 = arith.constant 0 : index
    %c0_138 = arith.constant 0 : index
    %394 = vector.load %arg18[%c0_137, %c0_138] : memref<24x1xf32, #tpu.memory_space<vmem>>, vector<24x1xf32>
    %395 = vector.broadcast %394 : vector<24x1xf32> to vector<24x256xf32>
    %396 = arith.addf %393, %395 : vector<24x256xf32>
    %397 = arith.addf %396, %204 : vector<24x256xf32>
    %cst_139 = arith.constant 0.000000e+00 : f32
    %398 = vector.broadcast %cst_139 : f32 to vector<24x256xf32>
    %399 = arith.maximumf %397, %398 : vector<24x256xf32>
    %400 = vector.shape_cast %399 : vector<24x256xf32> to vector<24x128x2xf32>
    %cst_140 = arith.constant dense<0xFF800000> : vector<24x128xf32>
    %401 = vector.multi_reduction <maximumf>, %400, %cst_140 [2] : vector<24x128x2xf32> to vector<24x128xf32>
    %c0_141 = arith.constant 0 : index
    %c0_142 = arith.constant 0 : index
    %402 = vector.load %arg19[%c0_141, %c0_142] : memref<24x128xf32, #tpu.memory_space<vmem>>, vector<24x128xf32>
    tpu.vector_store %arg19[%c0_141, %c0_142], %401 {strides = array<i32>} : memref<24x128xf32, #tpu.memory_space<vmem>>, vector<24x128xf32>,
    return
  }
}

</mosaic_0001>

<llo_original>
// kernel: dilated_basic_block_layer.1
$region0: #{dilated_basic_block_layer.1}
  #allocation0 [shape = 'u32[]', space=smem, size = 0x4, offset = 0x4, fixed_abs, tag = 'smem constant byte address 0x4 - core index']
  #allocation1 [shape = 'u32[72,128]{1,0:T(1,128)}', space=vmem, size = 0x9000, scoped, tag = 'internal scratch']
  %s0 = inlined_call_operand.vmem [shape: f32[2,8,128], index: 0, kind: input, shape index: {}]
  %s1 = inlined_call_operand.vmem [shape: f32[24,64], index: 1, kind: input, shape index: {}]
  %s2 = inlined_call_operand.vmem [shape: f32[24,1], index: 2, kind: input, shape index: {}]
  %s3 = inlined_call_operand.vmem [shape: f32[24,1], index: 3, kind: input, shape index: {}]
  %s4 = inlined_call_operand.vmem [shape: f32[24,1], index: 4, kind: input, shape index: {}]
  %s5 = inlined_call_operand.vmem [shape: f32[24,192], index: 5, kind: input, shape index: {}]
  %s6 = inlined_call_operand.vmem [shape: f32[24,1], index: 6, kind: input, shape index: {}]
  %s7 = inlined_call_operand.vmem [shape: f32[24,1], index: 7, kind: input, shape index: {}]
  %s8 = inlined_call_operand.vmem [shape: f32[24,1], index: 8, kind: input, shape index: {}]
  %s9 = inlined_call_operand.vmem [shape: f32[24,8], index: 9, kind: input, shape index: {}]
  %s10 = inlined_call_operand.vmem [shape: f32[24,1], index: 10, kind: input, shape index: {}]
  %s11 = inlined_call_operand.vmem [shape: f32[24,192], index: 11, kind: input, shape index: {}]
  %s12 = inlined_call_operand.vmem [shape: f32[24,1], index: 12, kind: input, shape index: {}]
  %s13 = inlined_call_operand.vmem [shape: f32[24,1], index: 13, kind: input, shape index: {}]
  %s14 = inlined_call_operand.vmem [shape: f32[24,1], index: 14, kind: input, shape index: {}]
  %s15 = inlined_call_operand.vmem [shape: f32[24,192], index: 15, kind: input, shape index: {}]
  %s16 = inlined_call_operand.vmem [shape: f32[24,1], index: 16, kind: input, shape index: {}]
  %s17 = inlined_call_operand.vmem [shape: f32[24,1], index: 17, kind: input, shape index: {}]
  %s18 = inlined_call_operand.vmem [shape: f32[24,1], index: 18, kind: input, shape index: {}]
  %s19 = inlined_call_operand.vmem [shape: f32[24,128], index: 19, kind: output, shape index: {}]
  %s20 = sld [smem:[#allocation0]]
  $region86: #{dilated_basic_block_layer.1} parent=0
    _
  %s22 = ssub.s32 1, %s20
  %s23 = scalar_select 0, %s22, %s20
  // Predicated region
  $region2: #{dilated_basic_block_layer.1} parent=0 // pred_check
    _
  $region3: #{dilated_basic_block_layer.1} parent=0 // pred_check_branch
    %25 = sbr.rel (0) target = $region5
  $region4: #{dilated_basic_block_layer.1} parent=0 // pred_region
    _
  $region5: #{dilated_basic_block_layer.1} parent=0 // pred_fallthru
    _
  // Predicated region
  $region6: #{dilated_basic_block_layer.1} parent=0 // pred_check
    _
  $region7: #{dilated_basic_block_layer.1} parent=0 // pred_check_branch
    %27 = sbr.rel (0) target = $region9
  $region8: #{dilated_basic_block_layer.1} parent=0 // pred_region
    _
  $region9: #{dilated_basic_block_layer.1} parent=0 // pred_fallthru
    _
  // Predicated region
  $region10: #{dilated_basic_block_layer.1} parent=0 // pred_check
    _
  $region11: #{dilated_basic_block_layer.1} parent=0 // pred_check_branch
    %29 = sbr.rel (0) target = $region13
  $region12: #{dilated_basic_block_layer.1} parent=0 // pred_region
    _
  $region13: #{dilated_basic_block_layer.1} parent=0 // pred_fallthru
    _
  // Predicated region
  $region14: #{dilated_basic_block_layer.1} parent=0 // pred_check
    _
  $region15: #{dilated_basic_block_layer.1} parent=0 // pred_check_branch
    %31 = sbr.rel (0) target = $region17
  $region16: #{dilated_basic_block_layer.1} parent=0 // pred_region
    _
  $region17: #{dilated_basic_block_layer.1} parent=0 // pred_fallthru
    _
  // Predicated region
  $region18: #{dilated_basic_block_layer.1} parent=0 // pred_check
    _
  $region19: #{dilated_basic_block_layer.1} parent=0 // pred_check_branch
    %33 = sbr.rel (0) target = $region21
  $region20: #{dilated_basic_block_layer.1} parent=0 // pred_region
    _
  $region21: #{dilated_basic_block_layer.1} parent=0 // pred_fallthru
    _
  // Predicated region
  $region22: #{dilated_basic_block_layer.1} parent=0 // pred_check
    _
  $region23: #{dilated_basic_block_layer.1} parent=0 // pred_check_branch
    %35 = sbr.rel (0) target = $region25
  $region24: #{dilated_basic_block_layer.1} parent=0 // pred_region
    _
  $region25: #{dilated_basic_block_layer.1} parent=0 // pred_fallthru
    _
  // Predicated region
  $region26: #{dilated_basic_block_layer.1} parent=0 // pred_check
    _
  $region27: #{dilated_basic_block_layer.1} parent=0 // pred_check_branch
    %37 = sbr.rel (0) target = $region29
  $region28: #{dilated_basic_block_layer.1} parent=0 // pred_region
    _
  $region29: #{dilated_basic_block_layer.1} parent=0 // pred_fallthru
    _
  // Predicated region
  $region30: #{dilated_basic_block_layer.1} parent=0 // pred_check
    _
  $region31: #{dilated_basic_block_layer.1} parent=0 // pred_check_branch
    %39 = sbr.rel (0) target = $region33
  $region32: #{dilated_basic_block_layer.1} parent=0 // pred_region
    _
  $region33: #{dilated_basic_block_layer.1} parent=0 // pred_fallthru
    _
  // Predicated region
  $region34: #{dilated_basic_block_layer.1} parent=0 // pred_check
    _
  $region35: #{dilated_basic_block_layer.1} parent=0 // pred_check_branch
    %41 = sbr.rel (0) target = $region37
  $region36: #{dilated_basic_block_layer.1} parent=0 // pred_region
    _
  $region37: #{dilated_basic_block_layer.1} parent=0 // pred_fallthru
    _
  // Predicated region
  $region38: #{dilated_basic_block_layer.1} parent=0 // pred_check
    _
  $region39: #{dilated_basic_block_layer.1} parent=0 // pred_check_branch
    %43 = sbr.rel (0) target = $region41
  $region40: #{dilated_basic_block_layer.1} parent=0 // pred_region
    _
  $region41: #{dilated_basic_block_layer.1} parent=0 // pred_fallthru
    _
  // Predicated region
  $region42: #{dilated_basic_block_layer.1} parent=0 // pred_check
    _
  $region43: #{dilated_basic_block_layer.1} parent=0 // pred_check_branch
    %45 = sbr.rel (0) target = $region45
  $region44: #{dilated_basic_block_layer.1} parent=0 // pred_region
    _
  $region45: #{dilated_basic_block_layer.1} parent=0 // pred_fallthru
    _
  // Predicated region
  $region46: #{dilated_basic_block_layer.1} parent=0 // pred_check
    _
  $region47: #{dilated_basic_block_layer.1} parent=0 // pred_check_branch
    %47 = sbr.rel (0) target = $region49
  $region48: #{dilated_basic_block_layer.1} parent=0 // pred_region
    _
  $region49: #{dilated_basic_block_layer.1} parent=0 // pred_fallthru
    _
  // Predicated region
  $region50: #{dilated_basic_block_layer.1} parent=0 // pred_check
    _
  $region51: #{dilated_basic_block_layer.1} parent=0 // pred_check_branch
    %49 = sbr.rel (0) target = $region53
  $region52: #{dilated_basic_block_layer.1} parent=0 // pred_region
    _
  $region53: #{dilated_basic_block_layer.1} parent=0 // pred_fallthru
    _
  // Predicated region
  $region54: #{dilated_basic_block_layer.1} parent=0 // pred_check
    _
  $region55: #{dilated_basic_block_layer.1} parent=0 // pred_check_branch
    %51 = sbr.rel (0) target = $region57
  $region56: #{dilated_basic_block_layer.1} parent=0 // pred_region
    _
  $region57: #{dilated_basic_block_layer.1} parent=0 // pred_fallthru
    _
  // Predicated region
  $region58: #{dilated_basic_block_layer.1} parent=0 // pred_check
    _
  $region59: #{dilated_basic_block_layer.1} parent=0 // pred_check_branch
    %53 = sbr.rel (0) target = $region61
  $region60: #{dilated_basic_block_layer.1} parent=0 // pred_region
    _
  $region61: #{dilated_basic_block_layer.1} parent=0 // pred_fallthru
    _
  // Predicated region
  $region62: #{dilated_basic_block_layer.1} parent=0 // pred_check
    _
  $region63: #{dilated_basic_block_layer.1} parent=0 // pred_check_branch
    %55 = sbr.rel (0) target = $region65
  $region64: #{dilated_basic_block_layer.1} parent=0 // pred_region
    _
  $region65: #{dilated_basic_block_layer.1} parent=0 // pred_fallthru
    _
  // Predicated region
  $region66: #{dilated_basic_block_layer.1} parent=0 // pred_check
    _
  $region67: #{dilated_basic_block_layer.1} parent=0 // pred_check_branch
    %57 = sbr.rel (0) target = $region69
  $region68: #{dilated_basic_block_layer.1} parent=0 // pred_region
    _
  $region69: #{dilated_basic_block_layer.1} parent=0 // pred_fallthru
    _
  // Predicated region
  $region70: #{dilated_basic_block_layer.1} parent=0 // pred_check
    _
  $region71: #{dilated_basic_block_layer.1} parent=0 // pred_check_branch
    %59 = sbr.rel (0) target = $region73
  $region72: #{dilated_basic_block_layer.1} parent=0 // pred_region
    _
  $region73: #{dilated_basic_block_layer.1} parent=0 // pred_fallthru
    _
  // Predicated region
  $region74: #{dilated_basic_block_layer.1} parent=0 // pred_check
    _
  $region75: #{dilated_basic_block_layer.1} parent=0 // pred_check_branch
    %61 = sbr.rel (0) target = $region77
  $region76: #{dilated_basic_block_layer.1} parent=0 // pred_region
    _
  $region77: #{dilated_basic_block_layer.1} parent=0 // pred_fallthru
    _
  %v62 = vld [vmem:[%s0] sm:$0xff]
  %s63 = scalar_lea.vmem %s0, 8
  %v64 = vld [vmem:[%s63] sm:$0xff]
  %v65 = vlaneseq
  %v66 = vand.u32 %v65, 127
  %v67 = vld [vmem:[%s9] sm:$0xff]
  %v68 = vld [vmem:[%s9 + $0x8] sm:$0xff]
  %v69 = vld [vmem:[%s9 + $0x10] sm:$0xff]
  %v70 = vld [vmem:[%s10] sm:$0xff]
  %v71 = vld [vmem:[%s10 + $0x8] sm:$0xff]
  %v72 = vld [vmem:[%s10 + $0x10] sm:$0xff]
  %74 = vset.pattern.permute.xlu0 0
  %75 = vperm.xlu0 %74, %v70
  %v76 = vpop.permute.xlu0 %75
  %79 = vset.pattern.permute.xlu0 0
  %80 = vperm.xlu0 %79, %v71
  %v81 = vpop.permute.xlu0 %80
  %84 = vset.pattern.permute.xlu0 0
  %85 = vperm.xlu0 %84, %v72
  %v86 = vpop.permute.xlu0 %85
  %vm88 = vcmask 64512
  %v90 = vsel %vm88, %v67, 0
  %v93 = vsel %vm88, %v68, 0
  %v96 = vsel %vm88, %v69, 0
  %98 = vmatpush.msra.mxu0 0.0
  %99 = vmatpush.msra.mxu0 0.0
  %100 = vmatpush.msra.mxu0 0.0
  %101 = vmatpush.msra.mxu0 0.0
  %102 = vmatpush.msra.mxu0 0.0
  %103 = vmatpush.msra.mxu0 0.0
  %104 = vmatpush.msra.mxu0 0.0
  %105 = vmatpush.msra.mxu0 0.0
  %106 = vmatpush.msra.mxu0 0.0
  %107 = vmatpush.msra.mxu0 0.0
  %108 = vmatpush.msra.mxu0 0.0
  %109 = vmatpush.msra.mxu0 0.0
  %110 = vmatpush.msra.mxu0 0.0
  %111 = vmatpush.msra.mxu0 0.0
  %112 = vmatpush.msra.mxu0 0.0
  %113 = vmatpush.msra.mxu0 %v62
  %114 = vmatmul.f32.gmra.mxu0 %v90
  %v115 = vpop.f32.mrf.mxu0
  %v116 = vadd.f32 %v76, %v115
  %117 = vmatmul.f32.gmra.mxu0 %v93
  %v118 = vpop.f32.mrf.mxu0
  %v119 = vadd.f32 %v81, %v118
  %120 = vmatmul.f32.gmra.mxu0 %v96
  %v121 = vpop.f32.mrf.mxu0
  %v122 = vadd.f32 %v86, %v121
  %123 = vdwg.mxu0
  %124 = vmatpush.msra.mxu0 0.0
  %125 = vmatpush.msra.mxu0 0.0
  %126 = vmatpush.msra.mxu0 0.0
  %127 = vmatpush.msra.mxu0 0.0
  %128 = vmatpush.msra.mxu0 0.0
  %129 = vmatpush.msra.mxu0 0.0
  %130 = vmatpush.msra.mxu0 0.0
  %131 = vmatpush.msra.mxu0 0.0
  %132 = vmatpush.msra.mxu0 0.0
  %133 = vmatpush.msra.mxu0 0.0
  %134 = vmatpush.msra.mxu0 0.0
  %135 = vmatpush.msra.mxu0 0.0
  %136 = vmatpush.msra.mxu0 0.0
  %137 = vmatpush.msra.mxu0 0.0
  %138 = vmatpush.msra.mxu0 0.0
  %139 = vmatpush.msra.mxu0 %v64
  %140 = vmatmul.f32.gmra.mxu0 %v90
  %v141 = vpop.f32.mrf.mxu0
  %v142 = vadd.f32 %v76, %v141
  %143 = vmatmul.f32.gmra.mxu0 %v93
  %v144 = vpop.f32.mrf.mxu0
  %v145 = vadd.f32 %v81, %v144
  %146 = vmatmul.f32.gmra.mxu0 %v96
  %v147 = vpop.f32.mrf.mxu0
  %v148 = vadd.f32 %v86, %v147
  %149 = vdwg.mxu0
  %150 = vrot.lane.b32.xlu0 %v62, 7
  %v151 = vpop.permute.xlu0 %150
  %152 = vrot.lane.b32.xlu0 %v64, 7
  %v153 = vpop.permute.xlu0 %152
  %vm154 = vcmp.lt.s32.totalorder %v66, 7
  %v155 = vsel %vm154, %v151, %v153
  %v156 = vsel %vm154, %v153, %v151
  %vm157 = vcmp.ge.s32.totalorder %v66, 7
  %vm158 = vcmp.lt.s32.totalorder %v66, 135
  %vm159 = vmand %vm157, %vm158
  %v160 = vsel %vm159, 1, 0
  %v161 = vperm.slane %v160, 0
  %vm162 = vcmp.eq.s32.totalorder %v161, 1
  %v163 = vsel %vm162, %v156, 0.0
  %v164 = vsel %vm162, %v155, 0.0
  %165 = vrot.lane.b32.xlu0 %v62, 5
  %v166 = vpop.permute.xlu0 %165
  %167 = vrot.lane.b32.xlu0 %v64, 5
  %v168 = vpop.permute.xlu0 %167
  %vm169 = vcmp.lt.s32.totalorder %v66, 5
  %v170 = vsel %vm169, %v166, %v168
  %v171 = vsel %vm169, %v168, %v166
  %vm172 = vcmp.ge.s32.totalorder %v66, 5
  %vm173 = vcmp.lt.s32.totalorder %v66, 133
  %vm174 = vmand %vm172, %vm173
  %v175 = vsel %vm174, 1, 0
  %v176 = vperm.slane %v175, 0
  %vm177 = vcmp.eq.s32.totalorder %v176, 1
  %v178 = vsel %vm177, %v171, 0.0
  %v179 = vsel %vm177, %v170, 0.0
  %180 = vrot.lane.b32.xlu0 %v62, 3
  %v181 = vpop.permute.xlu0 %180
  %182 = vrot.lane.b32.xlu0 %v64, 3
  %v183 = vpop.permute.xlu0 %182
  %vm184 = vcmp.lt.s32.totalorder %v66, 3
  %v185 = vsel %vm184, %v181, %v183
  %v186 = vsel %vm184, %v183, %v181
  %vm187 = vcmp.ge.s32.totalorder %v66, 3
  %vm188 = vcmp.lt.s32.totalorder %v66, 131
  %vm189 = vmand %vm187, %vm188
  %v190 = vsel %vm189, 1, 0
  %v191 = vperm.slane %v190, 0
  %vm192 = vcmp.eq.s32.totalorder %v191, 1
  %v193 = vsel %vm192, %v186, 0.0
  %v194 = vsel %vm192, %v185, 0.0
  %195 = vrot.lane.b32.xlu0 %v62, 1
  %v196 = vpop.permute.xlu0 %195
  %197 = vrot.lane.b32.xlu0 %v64, 1
  %v198 = vpop.permute.xlu0 %197
  %vm199 = vcmp.lt.s32.totalorder %v66, 1
  %v200 = vsel %vm199, %v196, %v198
  %v201 = vsel %vm199, %v198, %v196
  %vm202 = vcmp.ge.s32.totalorder %v66, 1
  %vm203 = vcmp.lt.s32.totalorder %v66, 129
  %vm204 = vmand %vm202, %vm203
  %v205 = vsel %vm204, 1, 0
  %v206 = vperm.slane %v205, 0
  %vm207 = vcmp.eq.s32.totalorder %v206, 1
  %v208 = vsel %vm207, %v201, 0.0
  %v209 = vsel %vm207, %v200, 0.0
  %210 = vrot.lane.b32.xlu0 %v62, 127
  %v211 = vpop.permute.xlu0 %210
  %212 = vrot.lane.b32.xlu0 %v64, 127
  %v213 = vpop.permute.xlu0 %212
  %vm214 = vcmp.lt.s32.totalorder %v66, 127
  %v215 = vsel %vm214, %v211, %v213
  %v216 = vsel %vm214, %v213, %v211
  %vm217 = vcmp.ge.s32.totalorder %v66, 4294967295
  %vm218 = vmand %vm217, %vm214
  %v219 = vsel %vm218, 1, 0
  %v220 = vperm.slane %v219, 0
  %vm221 = vcmp.eq.s32.totalorder %v220, 1
  %v222 = vsel %vm221, %v215, 0.0
  %v223 = vsel %vm221, %v216, 0.0
  %224 = vrot.lane.b32.xlu0 %v62, 125
  %v225 = vpop.permute.xlu0 %224
  %226 = vrot.lane.b32.xlu0 %v64, 125
  %v227 = vpop.permute.xlu0 %226
  %vm228 = vcmp.lt.s32.totalorder %v66, 125
  %v229 = vsel %vm228, %v225, %v227
  %v230 = vsel %vm228, %v227, %v225
  %vm231 = vcmp.ge.s32.totalorder %v66, 4294967293
  %vm232 = vmand %vm231, %vm228
  %v233 = vsel %vm232, 1, 0
  %v234 = vperm.slane %v233, 0
  %vm235 = vcmp.eq.s32.totalorder %v234, 1
  %v236 = vsel %vm235, %v229, 0.0
  %v237 = vsel %vm235, %v230, 0.0
  %238 = vrot.lane.b32.xlu0 %v62, 123
  %v239 = vpop.permute.xlu0 %238
  %240 = vrot.lane.b32.xlu0 %v64, 123
  %v241 = vpop.permute.xlu0 %240
  %vm242 = vcmp.lt.s32.totalorder %v66, 123
  %v243 = vsel %vm242, %v239, %v241
  %v244 = vsel %vm242, %v241, %v239
  %vm245 = vcmp.ge.s32.totalorder %v66, 4294967291
  %vm246 = vmand %vm245, %vm242
  %v247 = vsel %vm246, 1, 0
  %v248 = vperm.slane %v247, 0
  %vm249 = vcmp.eq.s32.totalorder %v248, 1
  %v250 = vsel %vm249, %v243, 0.0
  %v251 = vsel %vm249, %v244, 0.0
  %252 = vrot.lane.b32.xlu0 %v62, 121
  %v253 = vpop.permute.xlu0 %252
  %254 = vrot.lane.b32.xlu0 %v64, 121
  %v255 = vpop.permute.xlu0 %254
  %vm256 = vcmp.lt.s32.totalorder %v66, 121
  %v257 = vsel %vm256, %v253, %v255
  %v258 = vsel %vm256, %v255, %v253
  %vm259 = vcmp.ge.s32.totalorder %v66, 4294967289
  %vm260 = vmand %vm259, %vm256
  %v261 = vsel %vm260, 1, 0
  %v262 = vperm.slane %v261, 0
  %vm263 = vcmp.eq.s32.totalorder %v262, 1
  %v264 = vsel %vm263, %v257, 0.0
  %v265 = vsel %vm263, %v258, 0.0
  %v266 = vld [vmem:[%s1] sm:$0xff]
  %v267 = vld [vmem:[%s1 + $0x8] sm:$0xff]
  %v268 = vld [vmem:[%s1 + $0x10] sm:$0xff]
  %v269 = vld [vmem:[%s2] sm:$0xff]
  %v270 = vld [vmem:[%s2 + $0x8] sm:$0xff]
  %v271 = vld [vmem:[%s2 + $0x10] sm:$0xff]
  %273 = vset.pattern.permute.xlu0 0
  %274 = vperm.xlu0 %273, %v269
  %v275 = vpop.permute.xlu0 %274
  %278 = vset.pattern.permute.xlu0 0
  %279 = vperm.xlu0 %278, %v270
  %v280 = vpop.permute.xlu0 %279
  %283 = vset.pattern.permute.xlu0 0
  %284 = vperm.xlu0 %283, %v271
  %v285 = vpop.permute.xlu0 %284
  %vm287 = vcmask 523264
  %v289 = vsel %vm287, %v266, 0
  %v292 = vsel %vm287, %v267, 0
  %v295 = vsel %vm287, %v268, 0
  %297 = vmatpush.msra.mxu0 0.0
  %298 = vmatpush.msra.mxu0 0.0
  %299 = vmatpush.msra.mxu0 0.0
  %300 = vmatpush.msra.mxu0 0.0
  %301 = vmatpush.msra.mxu0 0.0
  %302 = vmatpush.msra.mxu0 0.0
  %303 = vmatpush.msra.mxu0 0.0
  %304 = vmatpush.msra.mxu0 0.0
  %305 = vmatpush.msra.mxu0 %v264
  %306 = vmatpush.msra.mxu0 %v250
  %307 = vmatpush.msra.mxu0 %v236
  %308 = vmatpush.msra.mxu0 %v222
  %309 = vmatpush.msra.mxu0 %v208
  %310 = vmatpush.msra.mxu0 %v193
  %311 = vmatpush.msra.mxu0 %v178
  %312 = vmatpush.msra.mxu0 %v163
  %313 = vmatmul.f32.gmra.mxu0 %v289
  %v314 = vpop.f32.mrf.mxu0
  %v315 = vadd.f32 %v275, %v314
  %316 = vmatmul.f32.gmra.mxu0 %v292
  %v317 = vpop.f32.mrf.mxu0
  %v318 = vadd.f32 %v280, %v317
  %319 = vmatmul.f32.gmra.mxu0 %v295
  %v320 = vpop.f32.mrf.mxu0
  %v321 = vadd.f32 %v285, %v320
  %322 = vdwg.mxu0
  %323 = vmatpush.msra.mxu0 0.0
  %324 = vmatpush.msra.mxu0 0.0
  %325 = vmatpush.msra.mxu0 0.0
  %326 = vmatpush.msra.mxu0 0.0
  %327 = vmatpush.msra.mxu0 0.0
  %328 = vmatpush.msra.mxu0 0.0
  %329 = vmatpush.msra.mxu0 0.0
  %330 = vmatpush.msra.mxu0 0.0
  %331 = vmatpush.msra.mxu0 %v265
  %332 = vmatpush.msra.mxu0 %v251
  %333 = vmatpush.msra.mxu0 %v237
  %334 = vmatpush.msra.mxu0 %v223
  %335 = vmatpush.msra.mxu0 %v209
  %336 = vmatpush.msra.mxu0 %v194
  %337 = vmatpush.msra.mxu0 %v179
  %338 = vmatpush.msra.mxu0 %v164
  %339 = vmatmul.f32.gmra.mxu0 %v289
  %v340 = vpop.f32.mrf.mxu0
  %v341 = vadd.f32 %v275, %v340
  %342 = vmatmul.f32.gmra.mxu0 %v292
  %v343 = vpop.f32.mrf.mxu0
  %v344 = vadd.f32 %v280, %v343
  %345 = vmatmul.f32.gmra.mxu0 %v295
  %v346 = vpop.f32.mrf.mxu0
  %v347 = vadd.f32 %v285, %v346
  %348 = vdwg.mxu0
  %v349 = vmax.f32 %v315, 0.0
  %v350 = vmax.f32 %v341, 0.0
  %v351 = vmax.f32 %v318, 0.0
  %v352 = vmax.f32 %v344, 0.0
  %v353 = vmax.f32 %v321, 0.0
  %v354 = vmax.f32 %v347, 0.0
  %v355 = vld [vmem:[%s3] sm:$0xff]
  %v356 = vld [vmem:[%s3 + $0x8] sm:$0xff]
  %v357 = vld [vmem:[%s3 + $0x10] sm:$0xff]
  %359 = vset.pattern.permute.xlu0 0
  %360 = vperm.xlu0 %359, %v355
  %v361 = vpop.permute.xlu0 %360
  %364 = vset.pattern.permute.xlu0 0
  %365 = vperm.xlu0 %364, %v356
  %v366 = vpop.permute.xlu0 %365
  %369 = vset.pattern.permute.xlu0 0
  %370 = vperm.xlu0 %369, %v357
  %v371 = vpop.permute.xlu0 %370
  %v373 = vmul.f32 %v349, %v361
  %v374 = vmul.f32 %v350, %v361
  %v375 = vmul.f32 %v351, %v366
  %v376 = vmul.f32 %v352, %v366
  %v377 = vmul.f32 %v353, %v371
  %v378 = vmul.f32 %v354, %v371
  %v379 = vld [vmem:[%s4] sm:$0xff]
  %v380 = vld [vmem:[%s4 + $0x8] sm:$0xff]
  %v381 = vld [vmem:[%s4 + $0x10] sm:$0xff]
  %383 = vset.pattern.permute.xlu0 0
  %384 = vperm.xlu0 %383, %v379
  %v385 = vpop.permute.xlu0 %384
  %388 = vset.pattern.permute.xlu0 0
  %389 = vperm.xlu0 %388, %v380
  %v390 = vpop.permute.xlu0 %389
  %393 = vset.pattern.permute.xlu0 0
  %394 = vperm.xlu0 %393, %v381
  %v395 = vpop.permute.xlu0 %394
  %v397 = vadd.f32 %v373, %v385
  %v398 = vadd.f32 %v374, %v385
  %v399 = vadd.f32 %v375, %v390
  %v400 = vadd.f32 %v376, %v390
  %v401 = vadd.f32 %v377, %v395
  %v402 = vadd.f32 %v378, %v395
  %v403 = vmax.f32 %v397, 0.0
  %v404 = vmax.f32 %v398, 0.0
  %v405 = vmax.f32 %v399, 0.0
  %v406 = vmax.f32 %v400, 0.0
  %v407 = vmax.f32 %v401, 0.0
  %v408 = vmax.f32 %v402, 0.0
  %409 = vrot.lane.b32.xlu0 %v403, 7
  %v410 = vpop.permute.xlu0 %409
  %411 = vrot.lane.b32.xlu0 %v405, 7
  %v412 = vpop.permute.xlu0 %411
  %413 = vrot.lane.b32.xlu0 %v407, 7
  %v414 = vpop.permute.xlu0 %413
  %415 = vrot.lane.b32.xlu0 %v404, 7
  %v416 = vpop.permute.xlu0 %415
  %417 = vrot.lane.b32.xlu0 %v406, 7
  %v418 = vpop.permute.xlu0 %417
  %419 = vrot.lane.b32.xlu0 %v408, 7
  %v420 = vpop.permute.xlu0 %419
  %v421 = vsel %vm154, %v410, %v416
  %v422 = vsel %vm154, %v412, %v418
  %v423 = vsel %vm154, %v414, %v420
  %v424 = vsel %vm154, %v416, %v410
  %v425 = vsel %vm154, %v418, %v412
  %v426 = vsel %vm154, %v420, %v414
  %v427 = vsel %vm162, %v424, 0.0
  %v428 = vsel %vm162, %v421, 0.0
  %v429 = vsel %vm162, %v425, 0.0
  %v430 = vsel %vm162, %v422, 0.0
  %v431 = vsel %vm162, %v426, 0.0
  %v432 = vsel %vm162, %v423, 0.0
  %433 = vrot.lane.b32.xlu0 %v403, 5
  %v434 = vpop.permute.xlu0 %433
  %435 = vrot.lane.b32.xlu0 %v405, 5
  %v436 = vpop.permute.xlu0 %435
  %437 = vrot.lane.b32.xlu0 %v407, 5
  %v438 = vpop.permute.xlu0 %437
  %439 = vrot.lane.b32.xlu0 %v404, 5
  %v440 = vpop.permute.xlu0 %439
  %441 = vrot.lane.b32.xlu0 %v406, 5
  %v442 = vpop.permute.xlu0 %441
  %443 = vrot.lane.b32.xlu0 %v408, 5
  %v444 = vpop.permute.xlu0 %443
  %v445 = vsel %vm169, %v434, %v440
  %v446 = vsel %vm169, %v436, %v442
  %v447 = vsel %vm169, %v438, %v444
  %v448 = vsel %vm169, %v440, %v434
  %v449 = vsel %vm169, %v442, %v436
  %v450 = vsel %vm169, %v444, %v438
  %v451 = vsel %vm177, %v448, 0.0
  %v452 = vsel %vm177, %v445, 0.0
  %v453 = vsel %vm177, %v449, 0.0
  %v454 = vsel %vm177, %v446, 0.0
  %v455 = vsel %vm177, %v450, 0.0
  %v456 = vsel %vm177, %v447, 0.0
  %457 = vrot.lane.b32.xlu0 %v403, 3
  %v458 = vpop.permute.xlu0 %457
  %459 = vrot.lane.b32.xlu0 %v405, 3
  %v460 = vpop.permute.xlu0 %459
  %461 = vrot.lane.b32.xlu0 %v407, 3
  %v462 = vpop.permute.xlu0 %461
  %463 = vrot.lane.b32.xlu0 %v404, 3
  %v464 = vpop.permute.xlu0 %463
  %465 = vrot.lane.b32.xlu0 %v406, 3
  %v466 = vpop.permute.xlu0 %465
  %467 = vrot.lane.b32.xlu0 %v408, 3
  %v468 = vpop.permute.xlu0 %467
  %v469 = vsel %vm184, %v458, %v464
  %v470 = vsel %vm184, %v460, %v466
  %v471 = vsel %vm184, %v462, %v468
  %v472 = vsel %vm184, %v464, %v458
  %v473 = vsel %vm184, %v466, %v460
  %v474 = vsel %vm184, %v468, %v462
  %v475 = vsel %vm192, %v472, 0.0
  %v476 = vsel %vm192, %v469, 0.0
  %v477 = vsel %vm192, %v473, 0.0
  %v478 = vsel %vm192, %v470, 0.0
  %v479 = vsel %vm192, %v474, 0.0
  %v480 = vsel %vm192, %v471, 0.0
  %481 = vrot.lane.b32.xlu0 %v403, 1
  %v482 = vpop.permute.xlu0 %481
  %483 = vrot.lane.b32.xlu0 %v405, 1
  %v484 = vpop.permute.xlu0 %483
  %485 = vrot.lane.b32.xlu0 %v407, 1
  %v486 = vpop.permute.xlu0 %485
  %487 = vrot.lane.b32.xlu0 %v404, 1
  %v488 = vpop.permute.xlu0 %487
  %489 = vrot.lane.b32.xlu0 %v406, 1
  %v490 = vpop.permute.xlu0 %489
  %491 = vrot.lane.b32.xlu0 %v408, 1
  %v492 = vpop.permute.xlu0 %491
  %v493 = vsel %vm199, %v482, %v488
  %v494 = vsel %vm199, %v484, %v490
  %v495 = vsel %vm199, %v486, %v492
  %v496 = vsel %vm199, %v488, %v482
  %v497 = vsel %vm199, %v490, %v484
  %v498 = vsel %vm199, %v492, %v486
  %v499 = vsel %vm207, %v496, 0.0
  %v500 = vsel %vm207, %v493, 0.0
  %v501 = vsel %vm207, %v497, 0.0
  %v502 = vsel %vm207, %v494, 0.0
  %v503 = vsel %vm207, %v498, 0.0
  %v504 = vsel %vm207, %v495, 0.0
  %505 = vrot.lane.b32.xlu0 %v403, 127
  %v506 = vpop.permute.xlu0 %505
  %507 = vrot.lane.b32.xlu0 %v405, 127
  %v508 = vpop.permute.xlu0 %507
  %509 = vrot.lane.b32.xlu0 %v407, 127
  %v510 = vpop.permute.xlu0 %509
  %511 = vrot.lane.b32.xlu0 %v404, 127
  %v512 = vpop.permute.xlu0 %511
  %513 = vrot.lane.b32.xlu0 %v406, 127
  %v514 = vpop.permute.xlu0 %513
  %515 = vrot.lane.b32.xlu0 %v408, 127
  %v516 = vpop.permute.xlu0 %515
  %v517 = vsel %vm214, %v506, %v512
  %v518 = vsel %vm214, %v508, %v514
  %v519 = vsel %vm214, %v510, %v516
  %v520 = vsel %vm214, %v512, %v506
  %v521 = vsel %vm214, %v514, %v508
  %v522 = vsel %vm214, %v516, %v510
  %v523 = vsel %vm221, %v517, 0.0
  %v524 = vsel %vm221, %v520, 0.0
  %v525 = vsel %vm221, %v518, 0.0
  %v526 = vsel %vm221, %v521, 0.0
  %v527 = vsel %vm221, %v519, 0.0
  %v528 = vsel %vm221, %v522, 0.0
  %529 = vrot.lane.b32.xlu0 %v403, 125
  %v530 = vpop.permute.xlu0 %529
  %531 = vrot.lane.b32.xlu0 %v405, 125
  %v532 = vpop.permute.xlu0 %531
  %533 = vrot.lane.b32.xlu0 %v407, 125
  %v534 = vpop.permute.xlu0 %533
  %535 = vrot.lane.b32.xlu0 %v404, 125
  %v536 = vpop.permute.xlu0 %535
  %537 = vrot.lane.b32.xlu0 %v406, 125
  %v538 = vpop.permute.xlu0 %537
  %539 = vrot.lane.b32.xlu0 %v408, 125
  %v540 = vpop.permute.xlu0 %539
  %v541 = vsel %vm228, %v530, %v536
  %v542 = vsel %vm228, %v532, %v538
  %v543 = vsel %vm228, %v534, %v540
  %v544 = vsel %vm228, %v536, %v530
  %v545 = vsel %vm228, %v538, %v532
  %v546 = vsel %vm228, %v540, %v534
  %v547 = vsel %vm235, %v541, 0.0
  %v548 = vsel %vm235, %v544, 0.0
  %v549 = vsel %vm235, %v542, 0.0
  %v550 = vsel %vm235, %v545, 0.0
  %v551 = vsel %vm235, %v543, 0.0
  %v552 = vsel %vm235, %v546, 0.0
  %553 = vrot.lane.b32.xlu0 %v403, 123
  %v554 = vpop.permute.xlu0 %553
  %555 = vrot.lane.b32.xlu0 %v405, 123
  %v556 = vpop.permute.xlu0 %555
  %557 = vrot.lane.b32.xlu0 %v407, 123
  %v558 = vpop.permute.xlu0 %557
  %559 = vrot.lane.b32.xlu0 %v404, 123
  %v560 = vpop.permute.xlu0 %559
  %561 = vrot.lane.b32.xlu0 %v406, 123
  %v562 = vpop.permute.xlu0 %561
  %563 = vrot.lane.b32.xlu0 %v408, 123
  %v564 = vpop.permute.xlu0 %563
  %v565 = vsel %vm242, %v554, %v560
  %v566 = vsel %vm242, %v556, %v562
  %v567 = vsel %vm242, %v558, %v564
  %v568 = vsel %vm242, %v560, %v554
  %v569 = vsel %vm242, %v562, %v556
  %v570 = vsel %vm242, %v564, %v558
  %v571 = vsel %vm249, %v565, 0.0
  %v572 = vsel %vm249, %v568, 0.0
  %v573 = vsel %vm249, %v566, 0.0
  %v574 = vsel %vm249, %v569, 0.0
  %v575 = vsel %vm249, %v567, 0.0
  %v576 = vsel %vm249, %v570, 0.0
  %577 = vrot.lane.b32.xlu0 %v403, 121
  %v578 = vpop.permute.xlu0 %577
  %579 = vrot.lane.b32.xlu0 %v405, 121
  %v580 = vpop.permute.xlu0 %579
  %581 = vrot.lane.b32.xlu0 %v407, 121
  %v582 = vpop.permute.xlu0 %581
  %583 = vrot.lane.b32.xlu0 %v404, 121
  %v584 = vpop.permute.xlu0 %583
  %585 = vrot.lane.b32.xlu0 %v406, 121
  %v586 = vpop.permute.xlu0 %585
  %587 = vrot.lane.b32.xlu0 %v408, 121
  %v588 = vpop.permute.xlu0 %587
  %v589 = vsel %vm256, %v578, %v584
  %v590 = vsel %vm256, %v580, %v586
  %v591 = vsel %vm256, %v582, %v588
  %v592 = vsel %vm256, %v584, %v578
  %v593 = vsel %vm256, %v586, %v580
  %v594 = vsel %vm256, %v588, %v582
  %v595 = vsel %vm263, %v589, 0.0
  %v596 = vsel %vm263, %v592, 0.0
  %v597 = vsel %vm263, %v590, 0.0
  %v598 = vsel %vm263, %v593, 0.0
  %v599 = vsel %vm263, %v591, 0.0
  %v600 = vsel %vm263, %v594, 0.0
  %v601 = vld [vmem:[%s5] sm:$0xff]
  %v602 = vld [vmem:[%s5 + $0x8] sm:$0xff]
  %v603 = vld [vmem:[%s5 + $0x10] sm:$0xff]
  %v604 = vld [vmem:[%s5 + $0x18] sm:$0xff]
  %v605 = vld [vmem:[%s5 + $0x20] sm:$0xff]
  %v606 = vld [vmem:[%s5 + $0x28] sm:$0xff]
  %v607 = vld [vmem:[%s6] sm:$0xff]
  %v608 = vld [vmem:[%s6 + $0x8] sm:$0xff]
  %v609 = vld [vmem:[%s6 + $0x10] sm:$0xff]
  %611 = vset.pattern.permute.xlu0 0
  %612 = vperm.xlu0 %611, %v607
  %v613 = vpop.permute.xlu0 %612
  %616 = vset.pattern.permute.xlu0 0
  %617 = vperm.xlu0 %616, %v608
  %v618 = vpop.permute.xlu0 %617
  %621 = vset.pattern.permute.xlu0 0
  %622 = vperm.xlu0 %621, %v609
  %v623 = vpop.permute.xlu0 %622
  %v626 = vsel %vm287, %v602, 0
  %v629 = vsel %vm287, %v604, 0
  %v632 = vsel %vm287, %v606, 0
  %634 = vmatpush.msra.mxu0 %v547
  %635 = vmatpush.msra.mxu0 %v527
  %636 = vmatpush.msra.mxu0 %v525
  %637 = vmatpush.msra.mxu0 %v523
  %638 = vmatpush.msra.mxu0 %v503
  %639 = vmatpush.msra.mxu0 %v501
  %640 = vmatpush.msra.mxu0 %v499
  %641 = vmatpush.msra.mxu0 %v479
  %642 = vmatpush.msra.mxu0 %v477
  %643 = vmatpush.msra.mxu0 %v475
  %644 = vmatpush.msra.mxu0 %v455
  %645 = vmatpush.msra.mxu0 %v453
  %646 = vmatpush.msra.mxu0 %v451
  %647 = vmatpush.msra.mxu0 %v431
  %648 = vmatpush.msra.mxu0 %v429
  %649 = vmatpush.msra.mxu0 %v427
  %650 = vmatmul.f32.gmra.mxu0 %v601
  %v651 = vpop.f32.mrf.mxu0
  %v652 = vadd.f32 %v613, %v651
  %653 = vmatmul.f32.gmra.mxu0 %v603
  %v654 = vpop.f32.mrf.mxu0
  %v655 = vadd.f32 %v618, %v654
  %656 = vmatmul.f32.gmra.mxu0 %v605
  %v657 = vpop.f32.mrf.mxu0
  %v658 = vadd.f32 %v623, %v657
  %659 = vdwg.mxu0
  %660 = vmatpush.msra.mxu0 0.0
  %661 = vmatpush.msra.mxu0 0.0
  %662 = vmatpush.msra.mxu0 0.0
  %663 = vmatpush.msra.mxu0 0.0
  %664 = vmatpush.msra.mxu0 0.0
  %665 = vmatpush.msra.mxu0 0.0
  %666 = vmatpush.msra.mxu0 0.0
  %667 = vmatpush.msra.mxu0 0.0
  %668 = vmatpush.msra.mxu0 %v599
  %669 = vmatpush.msra.mxu0 %v597
  %670 = vmatpush.msra.mxu0 %v595
  %671 = vmatpush.msra.mxu0 %v575
  %672 = vmatpush.msra.mxu0 %v573
  %673 = vmatpush.msra.mxu0 %v571
  %674 = vmatpush.msra.mxu0 %v551
  %675 = vmatpush.msra.mxu0 %v549
  %676 = vmatmul.f32.gmra.mxu0 %v626
  %v677 = vpop.f32.mrf.mxu0
  %v678 = vadd.f32 %v652, %v677
  %679 = vmatmul.f32.gmra.mxu0 %v629
  %v680 = vpop.f32.mrf.mxu0
  %v681 = vadd.f32 %v655, %v680
  %682 = vmatmul.f32.gmra.mxu0 %v632
  %v683 = vpop.f32.mrf.mxu0
  %v684 = vadd.f32 %v658, %v683
  %685 = vdwg.mxu0
  %686 = vmatpush.msra.mxu0 %v548
  %687 = vmatpush.msra.mxu0 %v528
  %688 = vmatpush.msra.mxu0 %v526
  %689 = vmatpush.msra.mxu0 %v524
  %690 = vmatpush.msra.mxu0 %v504
  %691 = vmatpush.msra.mxu0 %v502
  %692 = vmatpush.msra.mxu0 %v500
  %693 = vmatpush.msra.mxu0 %v480
  %694 = vmatpush.msra.mxu0 %v478
  %695 = vmatpush.msra.mxu0 %v476
  %696 = vmatpush.msra.mxu0 %v456
  %697 = vmatpush.msra.mxu0 %v454
  %698 = vmatpush.msra.mxu0 %v452
  %699 = vmatpush.msra.mxu0 %v432
  %700 = vmatpush.msra.mxu0 %v430
  %701 = vmatpush.msra.mxu0 %v428
  %702 = vmatmul.f32.gmra.mxu0 %v601
  %v703 = vpop.f32.mrf.mxu0
  %v704 = vadd.f32 %v613, %v703
  %705 = vmatmul.f32.gmra.mxu0 %v603
  %v706 = vpop.f32.mrf.mxu0
  %v707 = vadd.f32 %v618, %v706
  %708 = vmatmul.f32.gmra.mxu0 %v605
  %v709 = vpop.f32.mrf.mxu0
  %v710 = vadd.f32 %v623, %v709
  %711 = vdwg.mxu0
  %712 = vmatpush.msra.mxu0 0.0
  %713 = vmatpush.msra.mxu0 0.0
  %714 = vmatpush.msra.mxu0 0.0
  %715 = vmatpush.msra.mxu0 0.0
  %716 = vmatpush.msra.mxu0 0.0
  %717 = vmatpush.msra.mxu0 0.0
  %718 = vmatpush.msra.mxu0 0.0
  %719 = vmatpush.msra.mxu0 0.0
  %720 = vmatpush.msra.mxu0 %v600
  %721 = vmatpush.msra.mxu0 %v598
  %722 = vmatpush.msra.mxu0 %v596
  %723 = vmatpush.msra.mxu0 %v576
  %724 = vmatpush.msra.mxu0 %v574
  %725 = vmatpush.msra.mxu0 %v572
  %726 = vmatpush.msra.mxu0 %v552
  %727 = vmatpush.msra.mxu0 %v550
  %728 = vmatmul.f32.gmra.mxu0 %v626
  %v729 = vpop.f32.mrf.mxu0
  %v730 = vadd.f32 %v704, %v729
  %731 = vmatmul.f32.gmra.mxu0 %v629
  %v732 = vpop.f32.mrf.mxu0
  %v733 = vadd.f32 %v707, %v732
  %734 = vmatmul.f32.gmra.mxu0 %v632
  %v735 = vpop.f32.mrf.mxu0
  %v736 = vadd.f32 %v710, %v735
  %737 = vdwg.mxu0
  %v738 = vmax.f32 %v678, 0.0
  %v739 = vmax.f32 %v730, 0.0
  %v740 = vmax.f32 %v681, 0.0
  %v741 = vmax.f32 %v733, 0.0
  %v742 = vmax.f32 %v684, 0.0
  %v743 = vmax.f32 %v736, 0.0
  %v744 = vld [vmem:[%s7] sm:$0xff]
  %v745 = vld [vmem:[%s7 + $0x8] sm:$0xff]
  %v746 = vld [vmem:[%s7 + $0x10] sm:$0xff]
  %748 = vset.pattern.permute.xlu0 0
  %749 = vperm.xlu0 %748, %v744
  %v750 = vpop.permute.xlu0 %749
  %753 = vset.pattern.permute.xlu0 0
  %754 = vperm.xlu0 %753, %v745
  %v755 = vpop.permute.xlu0 %754
  %758 = vset.pattern.permute.xlu0 0
  %759 = vperm.xlu0 %758, %v746
  %v760 = vpop.permute.xlu0 %759
  %v762 = vmul.f32 %v738, %v750
  %v763 = vmul.f32 %v739, %v750
  %v764 = vmul.f32 %v740, %v755
  %v765 = vmul.f32 %v741, %v755
  %v766 = vmul.f32 %v742, %v760
  %v767 = vmul.f32 %v743, %v760
  %v768 = vld [vmem:[%s8] sm:$0xff]
  %v769 = vld [vmem:[%s8 + $0x8] sm:$0xff]
  %v770 = vld [vmem:[%s8 + $0x10] sm:$0xff]
  %772 = vset.pattern.permute.xlu0 0
  %773 = vperm.xlu0 %772, %v768
  %v774 = vpop.permute.xlu0 %773
  %777 = vset.pattern.permute.xlu0 0
  %778 = vperm.xlu0 %777, %v769
  %v779 = vpop.permute.xlu0 %778
  %782 = vset.pattern.permute.xlu0 0
  %783 = vperm.xlu0 %782, %v770
  %v784 = vpop.permute.xlu0 %783
  %v786 = vadd.f32 %v762, %v774
  %v787 = vadd.f32 %v763, %v774
  %v788 = vadd.f32 %v764, %v779
  %v789 = vadd.f32 %v765, %v779
  %v790 = vadd.f32 %v766, %v784
  %v791 = vadd.f32 %v767, %v784
  %v792 = vadd.f32 %v786, %v116
  %v793 = vadd.f32 %v787, %v142
  %v794 = vadd.f32 %v788, %v119
  %v795 = vadd.f32 %v789, %v145
  %v796 = vadd.f32 %v790, %v122
  %v797 = vadd.f32 %v791, %v148
  %v798 = vmax.f32 %v792, 0.0
  %v799 = vmax.f32 %v793, 0.0
  %v800 = vmax.f32 %v794, 0.0
  %v801 = vmax.f32 %v795, 0.0
  %v802 = vmax.f32 %v796, 0.0
  %v803 = vmax.f32 %v797, 0.0
  %804 = vrot.lane.b32.xlu0 %v798, 14
  %v805 = vpop.permute.xlu0 %804
  %806 = vrot.lane.b32.xlu0 %v800, 14
  %v807 = vpop.permute.xlu0 %806
  %808 = vrot.lane.b32.xlu0 %v802, 14
  %v809 = vpop.permute.xlu0 %808
  %810 = vrot.lane.b32.xlu0 %v799, 14
  %v811 = vpop.permute.xlu0 %810
  %812 = vrot.lane.b32.xlu0 %v801, 14
  %v813 = vpop.permute.xlu0 %812
  %814 = vrot.lane.b32.xlu0 %v803, 14
  %v815 = vpop.permute.xlu0 %814
  %vm816 = vcmp.lt.s32.totalorder %v66, 14
  %v817 = vsel %vm816, %v805, %v811
  %v818 = vsel %vm816, %v807, %v813
  %v819 = vsel %vm816, %v809, %v815
  %v820 = vsel %vm816, %v811, %v805
  %v821 = vsel %vm816, %v813, %v807
  %v822 = vsel %vm816, %v815, %v809
  %vm823 = vcmp.ge.s32.totalorder %v66, 14
  %vm824 = vcmp.lt.s32.totalorder %v66, 142
  %vm825 = vmand %vm823, %vm824
  %v826 = vsel %vm825, 1, 0
  %v827 = vperm.slane %v826, 0
  %vm828 = vcmp.eq.s32.totalorder %v827, 1
  %v829 = vsel %vm828, %v820, 0.0
  %v830 = vsel %vm828, %v817, 0.0
  %v831 = vsel %vm828, %v821, 0.0
  %v832 = vsel %vm828, %v818, 0.0
  %v833 = vsel %vm828, %v822, 0.0
  %v834 = vsel %vm828, %v819, 0.0
  %835 = vrot.lane.b32.xlu0 %v798, 10
  %v836 = vpop.permute.xlu0 %835
  %837 = vrot.lane.b32.xlu0 %v800, 10
  %v838 = vpop.permute.xlu0 %837
  %839 = vrot.lane.b32.xlu0 %v802, 10
  %v840 = vpop.permute.xlu0 %839
  %841 = vrot.lane.b32.xlu0 %v799, 10
  %v842 = vpop.permute.xlu0 %841
  %843 = vrot.lane.b32.xlu0 %v801, 10
  %v844 = vpop.permute.xlu0 %843
  %845 = vrot.lane.b32.xlu0 %v803, 10
  %v846 = vpop.permute.xlu0 %845
  %vm847 = vcmp.lt.s32.totalorder %v66, 10
  %v848 = vsel %vm847, %v836, %v842
  %v849 = vsel %vm847, %v838, %v844
  %v850 = vsel %vm847, %v840, %v846
  %v851 = vsel %vm847, %v842, %v836
  %v852 = vsel %vm847, %v844, %v838
  %v853 = vsel %vm847, %v846, %v840
  %vm854 = vcmp.ge.s32.totalorder %v66, 10
  %vm855 = vcmp.lt.s32.totalorder %v66, 138
  %vm856 = vmand %vm854, %vm855
  %v857 = vsel %vm856, 1, 0
  %v858 = vperm.slane %v857, 0
  %vm859 = vcmp.eq.s32.totalorder %v858, 1
  %v860 = vsel %vm859, %v851, 0.0
  %v861 = vsel %vm859, %v848, 0.0
  %v862 = vsel %vm859, %v852, 0.0
  %v863 = vsel %vm859, %v849, 0.0
  %v864 = vsel %vm859, %v853, 0.0
  %v865 = vsel %vm859, %v850, 0.0
  %866 = vrot.lane.b32.xlu0 %v798, 6
  %v867 = vpop.permute.xlu0 %866
  %868 = vrot.lane.b32.xlu0 %v800, 6
  %v869 = vpop.permute.xlu0 %868
  %870 = vrot.lane.b32.xlu0 %v802, 6
  %v871 = vpop.permute.xlu0 %870
  %872 = vrot.lane.b32.xlu0 %v799, 6
  %v873 = vpop.permute.xlu0 %872
  %874 = vrot.lane.b32.xlu0 %v801, 6
  %v875 = vpop.permute.xlu0 %874
  %876 = vrot.lane.b32.xlu0 %v803, 6
  %v877 = vpop.permute.xlu0 %876
  %vm878 = vcmp.lt.s32.totalorder %v66, 6
  %v879 = vsel %vm878, %v867, %v873
  %v880 = vsel %vm878, %v869, %v875
  %v881 = vsel %vm878, %v871, %v877
  %v882 = vsel %vm878, %v873, %v867
  %v883 = vsel %vm878, %v875, %v869
  %v884 = vsel %vm878, %v877, %v871
  %vm885 = vcmp.ge.s32.totalorder %v66, 6
  %vm886 = vcmp.lt.s32.totalorder %v66, 134
  %vm887 = vmand %vm885, %vm886
  %v888 = vsel %vm887, 1, 0
  %v889 = vperm.slane %v888, 0
  %vm890 = vcmp.eq.s32.totalorder %v889, 1
  %v891 = vsel %vm890, %v882, 0.0
  %v892 = vsel %vm890, %v879, 0.0
  %v893 = vsel %vm890, %v883, 0.0
  %v894 = vsel %vm890, %v880, 0.0
  %v895 = vsel %vm890, %v884, 0.0
  %v896 = vsel %vm890, %v881, 0.0
  %897 = vrot.lane.b32.xlu0 %v798, 2
  %v898 = vpop.permute.xlu0 %897
  %899 = vrot.lane.b32.xlu0 %v800, 2
  %v900 = vpop.permute.xlu0 %899
  %901 = vrot.lane.b32.xlu0 %v802, 2
  %v902 = vpop.permute.xlu0 %901
  %903 = vrot.lane.b32.xlu0 %v799, 2
  %v904 = vpop.permute.xlu0 %903
  %905 = vrot.lane.b32.xlu0 %v801, 2
  %v906 = vpop.permute.xlu0 %905
  %907 = vrot.lane.b32.xlu0 %v803, 2
  %v908 = vpop.permute.xlu0 %907
  %vm909 = vcmp.lt.s32.totalorder %v66, 2
  %v910 = vsel %vm909, %v898, %v904
  %v911 = vsel %vm909, %v900, %v906
  %v912 = vsel %vm909, %v902, %v908
  %v913 = vsel %vm909, %v904, %v898
  %v914 = vsel %vm909, %v906, %v900
  %v915 = vsel %vm909, %v908, %v902
  %vm916 = vcmp.ge.s32.totalorder %v66, 2
  %vm917 = vcmp.lt.s32.totalorder %v66, 130
  %vm918 = vmand %vm916, %vm917
  %v919 = vsel %vm918, 1, 0
  %v920 = vperm.slane %v919, 0
  %vm921 = vcmp.eq.s32.totalorder %v920, 1
  %v922 = vsel %vm921, %v913, 0.0
  %v923 = vsel %vm921, %v910, 0.0
  %v924 = vsel %vm921, %v914, 0.0
  %v925 = vsel %vm921, %v911, 0.0
  %v926 = vsel %vm921, %v915, 0.0
  %v927 = vsel %vm921, %v912, 0.0
  %928 = vrot.lane.b32.xlu0 %v798, 126
  %v929 = vpop.permute.xlu0 %928
  %930 = vrot.lane.b32.xlu0 %v800, 126
  %v931 = vpop.permute.xlu0 %930
  %932 = vrot.lane.b32.xlu0 %v802, 126
  %v933 = vpop.permute.xlu0 %932
  %934 = vrot.lane.b32.xlu0 %v799, 126
  %v935 = vpop.permute.xlu0 %934
  %936 = vrot.lane.b32.xlu0 %v801, 126
  %v937 = vpop.permute.xlu0 %936
  %938 = vrot.lane.b32.xlu0 %v803, 126
  %v939 = vpop.permute.xlu0 %938
  %vm940 = vcmp.lt.s32.totalorder %v66, 126
  %v941 = vsel %vm940, %v929, %v935
  %v942 = vsel %vm940, %v931, %v937
  %v943 = vsel %vm940, %v933, %v939
  %v944 = vsel %vm940, %v935, %v929
  %v945 = vsel %vm940, %v937, %v931
  %v946 = vsel %vm940, %v939, %v933
  %vm947 = vcmp.ge.s32.totalorder %v66, 4294967294
  %vm948 = vmand %vm947, %vm940
  %v949 = vsel %vm948, 1, 0
  %v950 = vperm.slane %v949, 0
  %vm951 = vcmp.eq.s32.totalorder %v950, 1
  %v952 = vsel %vm951, %v941, 0.0
  %v953 = vsel %vm951, %v944, 0.0
  %v954 = vsel %vm951, %v942, 0.0
  %v955 = vsel %vm951, %v945, 0.0
  %v956 = vsel %vm951, %v943, 0.0
  %v957 = vsel %vm951, %v946, 0.0
  %958 = vrot.lane.b32.xlu0 %v798, 122
  %v959 = vpop.permute.xlu0 %958
  %960 = vrot.lane.b32.xlu0 %v800, 122
  %v961 = vpop.permute.xlu0 %960
  %962 = vrot.lane.b32.xlu0 %v802, 122
  %v963 = vpop.permute.xlu0 %962
  %964 = vrot.lane.b32.xlu0 %v799, 122
  %v965 = vpop.permute.xlu0 %964
  %966 = vrot.lane.b32.xlu0 %v801, 122
  %v967 = vpop.permute.xlu0 %966
  %968 = vrot.lane.b32.xlu0 %v803, 122
  %v969 = vpop.permute.xlu0 %968
  %vm970 = vcmp.lt.s32.totalorder %v66, 122
  %v971 = vsel %vm970, %v959, %v965
  %v972 = vsel %vm970, %v961, %v967
  %v973 = vsel %vm970, %v963, %v969
  %v974 = vsel %vm970, %v965, %v959
  %v975 = vsel %vm970, %v967, %v961
  %v976 = vsel %vm970, %v969, %v963
  %vm977 = vcmp.ge.s32.totalorder %v66, 4294967290
  %vm978 = vmand %vm977, %vm970
  %v979 = vsel %vm978, 1, 0
  %v980 = vperm.slane %v979, 0
  %vm981 = vcmp.eq.s32.totalorder %v980, 1
  %v982 = vsel %vm981, %v971, 0.0
  %v983 = vsel %vm981, %v974, 0.0
  %v984 = vsel %vm981, %v972, 0.0
  %v985 = vsel %vm981, %v975, 0.0
  %v986 = vsel %vm981, %v973, 0.0
  %v987 = vsel %vm981, %v976, 0.0
  %988 = vrot.lane.b32.xlu0 %v798, 118
  %v989 = vpop.permute.xlu0 %988
  %990 = vrot.lane.b32.xlu0 %v800, 118
  %v991 = vpop.permute.xlu0 %990
  %992 = vrot.lane.b32.xlu0 %v802, 118
  %v993 = vpop.permute.xlu0 %992
  %994 = vrot.lane.b32.xlu0 %v799, 118
  %v995 = vpop.permute.xlu0 %994
  %996 = vrot.lane.b32.xlu0 %v801, 118
  %v997 = vpop.permute.xlu0 %996
  %998 = vrot.lane.b32.xlu0 %v803, 118
  %v999 = vpop.permute.xlu0 %998
  %vm1000 = vcmp.lt.s32.totalorder %v66, 118
  %v1001 = vsel %vm1000, %v989, %v995
  %v1002 = vsel %vm1000, %v991, %v997
  %v1003 = vsel %vm1000, %v993, %v999
  %v1004 = vsel %vm1000, %v995, %v989
  %v1005 = vsel %vm1000, %v997, %v991
  %v1006 = vsel %vm1000, %v999, %v993
  %vm1007 = vcmp.ge.s32.totalorder %v66, 4294967286
  %vm1008 = vmand %vm1007, %vm1000
  %v1009 = vsel %vm1008, 1, 0
  %v1010 = vperm.slane %v1009, 0
  %vm1011 = vcmp.eq.s32.totalorder %v1010, 1
  %v1012 = vsel %vm1011, %v1001, 0.0
  %v1013 = vsel %vm1011, %v1004, 0.0
  %v1014 = vsel %vm1011, %v1002, 0.0
  %v1015 = vsel %vm1011, %v1005, 0.0
  %v1016 = vsel %vm1011, %v1003, 0.0
  %v1017 = vsel %vm1011, %v1006, 0.0
  %1018 = vrot.lane.b32.xlu0 %v798, 114
  %v1019 = vpop.permute.xlu0 %1018
  %1020 = vrot.lane.b32.xlu0 %v800, 114
  %v1021 = vpop.permute.xlu0 %1020
  %1022 = vrot.lane.b32.xlu0 %v802, 114
  %v1023 = vpop.permute.xlu0 %1022
  %1024 = vrot.lane.b32.xlu0 %v799, 114
  %v1025 = vpop.permute.xlu0 %1024
  %1026 = vrot.lane.b32.xlu0 %v801, 114
  %v1027 = vpop.permute.xlu0 %1026
  %1028 = vrot.lane.b32.xlu0 %v803, 114
  %v1029 = vpop.permute.xlu0 %1028
  %vm1030 = vcmp.lt.s32.totalorder %v66, 114
  %v1031 = vsel %vm1030, %v1019, %v1025
  %v1032 = vsel %vm1030, %v1021, %v1027
  %v1033 = vsel %vm1030, %v1023, %v1029
  %v1034 = vsel %vm1030, %v1025, %v1019
  %v1035 = vsel %vm1030, %v1027, %v1021
  %v1036 = vsel %vm1030, %v1029, %v1023
  %vm1037 = vcmp.ge.s32.totalorder %v66, 4294967282
  %vm1038 = vmand %vm1037, %vm1030
  %v1039 = vsel %vm1038, 1, 0
  %v1040 = vperm.slane %v1039, 0
  %vm1041 = vcmp.eq.s32.totalorder %v1040, 1
  %v1042 = vsel %vm1041, %v1031, 0.0
  %v1043 = vsel %vm1041, %v1034, 0.0
  %v1044 = vsel %vm1041, %v1032, 0.0
  %v1045 = vsel %vm1041, %v1035, 0.0
  %v1046 = vsel %vm1041, %v1033, 0.0
  %v1047 = vsel %vm1041, %v1036, 0.0
  %v1048 = vld [vmem:[%s11] sm:$0xff]
  %v1049 = vld [vmem:[%s11 + $0x8] sm:$0xff]
  %v1050 = vld [vmem:[%s11 + $0x10] sm:$0xff]
  %v1051 = vld [vmem:[%s11 + $0x18] sm:$0xff]
  %v1052 = vld [vmem:[%s11 + $0x20] sm:$0xff]
  %v1053 = vld [vmem:[%s11 + $0x28] sm:$0xff]
  %v1054 = vld [vmem:[%s12] sm:$0xff]
  %v1055 = vld [vmem:[%s12 + $0x8] sm:$0xff]
  %v1056 = vld [vmem:[%s12 + $0x10] sm:$0xff]
  %1058 = vset.pattern.permute.xlu0 0
  %1059 = vperm.xlu0 %1058, %v1054
  %v1060 = vpop.permute.xlu0 %1059
  %1063 = vset.pattern.permute.xlu0 0
  %1064 = vperm.xlu0 %1063, %v1055
  %v1065 = vpop.permute.xlu0 %1064
  %1068 = vset.pattern.permute.xlu0 0
  %1069 = vperm.xlu0 %1068, %v1056
  %v1070 = vpop.permute.xlu0 %1069
  %v1073 = vsel %vm287, %v1049, 0
  %v1076 = vsel %vm287, %v1051, 0
  %v1079 = vsel %vm287, %v1053, 0
  %1081 = vmatpush.msra.mxu0 %v982
  %1082 = vmatpush.msra.mxu0 %v956
  %1083 = vmatpush.msra.mxu0 %v954
  %1084 = vmatpush.msra.mxu0 %v952
  %1085 = vmatpush.msra.mxu0 %v926
  %1086 = vmatpush.msra.mxu0 %v924
  %1087 = vmatpush.msra.mxu0 %v922
  %1088 = vmatpush.msra.mxu0 %v895
  %1089 = vmatpush.msra.mxu0 %v893
  %1090 = vmatpush.msra.mxu0 %v891
  %1091 = vmatpush.msra.mxu0 %v864
  %1092 = vmatpush.msra.mxu0 %v862
  %1093 = vmatpush.msra.mxu0 %v860
  %1094 = vmatpush.msra.mxu0 %v833
  %1095 = vmatpush.msra.mxu0 %v831
  %1096 = vmatpush.msra.mxu0 %v829
  %1097 = vmatmul.f32.gmra.mxu0 %v1048
  %v1098 = vpop.f32.mrf.mxu0
  %v1099 = vadd.f32 %v1060, %v1098
  %1100 = vmatmul.f32.gmra.mxu0 %v1050
  %v1101 = vpop.f32.mrf.mxu0
  %v1102 = vadd.f32 %v1065, %v1101
  %1103 = vmatmul.f32.gmra.mxu0 %v1052
  %v1104 = vpop.f32.mrf.mxu0
  %v1105 = vadd.f32 %v1070, %v1104
  %1106 = vdwg.mxu0
  %1107 = vmatpush.msra.mxu0 0.0
  %1108 = vmatpush.msra.mxu0 0.0
  %1109 = vmatpush.msra.mxu0 0.0
  %1110 = vmatpush.msra.mxu0 0.0
  %1111 = vmatpush.msra.mxu0 0.0
  %1112 = vmatpush.msra.mxu0 0.0
  %1113 = vmatpush.msra.mxu0 0.0
  %1114 = vmatpush.msra.mxu0 0.0
  %1115 = vmatpush.msra.mxu0 %v1046
  %1116 = vmatpush.msra.mxu0 %v1044
  %1117 = vmatpush.msra.mxu0 %v1042
  %1118 = vmatpush.msra.mxu0 %v1016
  %1119 = vmatpush.msra.mxu0 %v1014
  %1120 = vmatpush.msra.mxu0 %v1012
  %1121 = vmatpush.msra.mxu0 %v986
  %1122 = vmatpush.msra.mxu0 %v984
  %1123 = vmatmul.f32.gmra.mxu0 %v1073
  %v1124 = vpop.f32.mrf.mxu0
  %v1125 = vadd.f32 %v1099, %v1124
  %1126 = vmatmul.f32.gmra.mxu0 %v1076
  %v1127 = vpop.f32.mrf.mxu0
  %v1128 = vadd.f32 %v1102, %v1127
  %1129 = vmatmul.f32.gmra.mxu0 %v1079
  %v1130 = vpop.f32.mrf.mxu0
  %v1131 = vadd.f32 %v1105, %v1130
  %1132 = vdwg.mxu0
  %1133 = vmatpush.msra.mxu0 %v983
  %1134 = vmatpush.msra.mxu0 %v957
  %1135 = vmatpush.msra.mxu0 %v955
  %1136 = vmatpush.msra.mxu0 %v953
  %1137 = vmatpush.msra.mxu0 %v927
  %1138 = vmatpush.msra.mxu0 %v925
  %1139 = vmatpush.msra.mxu0 %v923
  %1140 = vmatpush.msra.mxu0 %v896
  %1141 = vmatpush.msra.mxu0 %v894
  %1142 = vmatpush.msra.mxu0 %v892
  %1143 = vmatpush.msra.mxu0 %v865
  %1144 = vmatpush.msra.mxu0 %v863
  %1145 = vmatpush.msra.mxu0 %v861
  %1146 = vmatpush.msra.mxu0 %v834
  %1147 = vmatpush.msra.mxu0 %v832
  %1148 = vmatpush.msra.mxu0 %v830
  %1149 = vmatmul.f32.gmra.mxu0 %v1048
  %v1150 = vpop.f32.mrf.mxu0
  %v1151 = vadd.f32 %v1060, %v1150
  %1152 = vmatmul.f32.gmra.mxu0 %v1050
  %v1153 = vpop.f32.mrf.mxu0
  %v1154 = vadd.f32 %v1065, %v1153
  %1155 = vmatmul.f32.gmra.mxu0 %v1052
  %v1156 = vpop.f32.mrf.mxu0
  %v1157 = vadd.f32 %v1070, %v1156
  %1158 = vdwg.mxu0
  %1159 = vmatpush.msra.mxu0 0.0
  %1160 = vmatpush.msra.mxu0 0.0
  %1161 = vmatpush.msra.mxu0 0.0
  %1162 = vmatpush.msra.mxu0 0.0
  %1163 = vmatpush.msra.mxu0 0.0
  %1164 = vmatpush.msra.mxu0 0.0
  %1165 = vmatpush.msra.mxu0 0.0
  %1166 = vmatpush.msra.mxu0 0.0
  %1167 = vmatpush.msra.mxu0 %v1047
  %1168 = vmatpush.msra.mxu0 %v1045
  %1169 = vmatpush.msra.mxu0 %v1043
  %1170 = vmatpush.msra.mxu0 %v1017
  %1171 = vmatpush.msra.mxu0 %v1015
  %1172 = vmatpush.msra.mxu0 %v1013
  %1173 = vmatpush.msra.mxu0 %v987
  %1174 = vmatpush.msra.mxu0 %v985
  %1175 = vmatmul.f32.gmra.mxu0 %v1073
  %v1176 = vpop.f32.mrf.mxu0
  %v1177 = vadd.f32 %v1151, %v1176
  %1178 = vmatmul.f32.gmra.mxu0 %v1076
  %v1179 = vpop.f32.mrf.mxu0
  %v1180 = vadd.f32 %v1154, %v1179
  %1181 = vmatmul.f32.gmra.mxu0 %v1079
  %v1182 = vpop.f32.mrf.mxu0
  %v1183 = vadd.f32 %v1157, %v1182
  %1184 = vdwg.mxu0
  %v1185 = vmax.f32 %v1125, 0.0
  %v1186 = vmax.f32 %v1177, 0.0
  %v1187 = vmax.f32 %v1128, 0.0
  %v1188 = vmax.f32 %v1180, 0.0
  %v1189 = vmax.f32 %v1131, 0.0
  %v1190 = vmax.f32 %v1183, 0.0
  %v1191 = vld [vmem:[%s13] sm:$0xff]
  %v1192 = vld [vmem:[%s13 + $0x8] sm:$0xff]
  %v1193 = vld [vmem:[%s13 + $0x10] sm:$0xff]
  %1195 = vset.pattern.permute.xlu0 0
  %1196 = vperm.xlu0 %1195, %v1191
  %v1197 = vpop.permute.xlu0 %1196
  %1200 = vset.pattern.permute.xlu0 0
  %1201 = vperm.xlu0 %1200, %v1192
  %v1202 = vpop.permute.xlu0 %1201
  %1205 = vset.pattern.permute.xlu0 0
  %1206 = vperm.xlu0 %1205, %v1193
  %v1207 = vpop.permute.xlu0 %1206
  %v1209 = vmul.f32 %v1185, %v1197
  %v1210 = vmul.f32 %v1186, %v1197
  %v1211 = vmul.f32 %v1187, %v1202
  %v1212 = vmul.f32 %v1188, %v1202
  %v1213 = vmul.f32 %v1189, %v1207
  %v1214 = vmul.f32 %v1190, %v1207
  %v1215 = vld [vmem:[%s14] sm:$0xff]
  %v1216 = vld [vmem:[%s14 + $0x8] sm:$0xff]
  %v1217 = vld [vmem:[%s14 + $0x10] sm:$0xff]
  %1219 = vset.pattern.permute.xlu0 0
  %1220 = vperm.xlu0 %1219, %v1215
  %v1221 = vpop.permute.xlu0 %1220
  %1224 = vset.pattern.permute.xlu0 0
  %1225 = vperm.xlu0 %1224, %v1216
  %v1226 = vpop.permute.xlu0 %1225
  %1229 = vset.pattern.permute.xlu0 0
  %1230 = vperm.xlu0 %1229, %v1217
  %v1231 = vpop.permute.xlu0 %1230
  %v1233 = vadd.f32 %v1209, %v1221
  %v1234 = vadd.f32 %v1210, %v1221
  %v1235 = vadd.f32 %v1211, %v1226
  %v1236 = vadd.f32 %v1212, %v1226
  %v1237 = vadd.f32 %v1213, %v1231
  %v1238 = vadd.f32 %v1214, %v1231
  %v1239 = vmax.f32 %v1233, 0.0
  %v1240 = vmax.f32 %v1234, 0.0
  %v1241 = vmax.f32 %v1235, 0.0
  %v1242 = vmax.f32 %v1236, 0.0
  %v1243 = vmax.f32 %v1237, 0.0
  %v1244 = vmax.f32 %v1238, 0.0
  %1245 = vrot.lane.b32.xlu0 %v1239, 14
  %v1246 = vpop.permute.xlu0 %1245
  %1247 = vrot.lane.b32.xlu0 %v1241, 14
  %v1248 = vpop.permute.xlu0 %1247
  %1249 = vrot.lane.b32.xlu0 %v1243, 14
  %v1250 = vpop.permute.xlu0 %1249
  %1251 = vrot.lane.b32.xlu0 %v1240, 14
  %v1252 = vpop.permute.xlu0 %1251
  %1253 = vrot.lane.b32.xlu0 %v1242, 14
  %v1254 = vpop.permute.xlu0 %1253
  %1255 = vrot.lane.b32.xlu0 %v1244, 14
  %v1256 = vpop.permute.xlu0 %1255
  %v1257 = vsel %vm816, %v1246, %v1252
  %v1258 = vsel %vm816, %v1248, %v1254
  %v1259 = vsel %vm816, %v1250, %v1256
  %v1260 = vsel %vm816, %v1252, %v1246
  %v1261 = vsel %vm816, %v1254, %v1248
  %v1262 = vsel %vm816, %v1256, %v1250
  %v1263 = vsel %vm828, %v1260, 0.0
  %v1264 = vsel %vm828, %v1257, 0.0
  %v1265 = vsel %vm828, %v1261, 0.0
  %v1266 = vsel %vm828, %v1258, 0.0
  %v1267 = vsel %vm828, %v1262, 0.0
  %v1268 = vsel %vm828, %v1259, 0.0
  %1269 = vrot.lane.b32.xlu0 %v1239, 10
  %v1270 = vpop.permute.xlu0 %1269
  %1271 = vrot.lane.b32.xlu0 %v1241, 10
  %v1272 = vpop.permute.xlu0 %1271
  %1273 = vrot.lane.b32.xlu0 %v1243, 10
  %v1274 = vpop.permute.xlu0 %1273
  %1275 = vrot.lane.b32.xlu0 %v1240, 10
  %v1276 = vpop.permute.xlu0 %1275
  %1277 = vrot.lane.b32.xlu0 %v1242, 10
  %v1278 = vpop.permute.xlu0 %1277
  %1279 = vrot.lane.b32.xlu0 %v1244, 10
  %v1280 = vpop.permute.xlu0 %1279
  %v1281 = vsel %vm847, %v1270, %v1276
  %v1282 = vsel %vm847, %v1272, %v1278
  %v1283 = vsel %vm847, %v1274, %v1280
  %v1284 = vsel %vm847, %v1276, %v1270
  %v1285 = vsel %vm847, %v1278, %v1272
  %v1286 = vsel %vm847, %v1280, %v1274
  %v1287 = vsel %vm859, %v1284, 0.0
  %v1288 = vsel %vm859, %v1281, 0.0
  %v1289 = vsel %vm859, %v1285, 0.0
  %v1290 = vsel %vm859, %v1282, 0.0
  %v1291 = vsel %vm859, %v1286, 0.0
  %v1292 = vsel %vm859, %v1283, 0.0
  %1293 = vrot.lane.b32.xlu0 %v1239, 6
  %v1294 = vpop.permute.xlu0 %1293
  %1295 = vrot.lane.b32.xlu0 %v1241, 6
  %v1296 = vpop.permute.xlu0 %1295
  %1297 = vrot.lane.b32.xlu0 %v1243, 6
  %v1298 = vpop.permute.xlu0 %1297
  %1299 = vrot.lane.b32.xlu0 %v1240, 6
  %v1300 = vpop.permute.xlu0 %1299
  %1301 = vrot.lane.b32.xlu0 %v1242, 6
  %v1302 = vpop.permute.xlu0 %1301
  %1303 = vrot.lane.b32.xlu0 %v1244, 6
  %v1304 = vpop.permute.xlu0 %1303
  %v1305 = vsel %vm878, %v1294, %v1300
  %v1306 = vsel %vm878, %v1296, %v1302
  %v1307 = vsel %vm878, %v1298, %v1304
  %v1308 = vsel %vm878, %v1300, %v1294
  %v1309 = vsel %vm878, %v1302, %v1296
  %v1310 = vsel %vm878, %v1304, %v1298
  %v1311 = vsel %vm890, %v1308, 0.0
  %v1312 = vsel %vm890, %v1305, 0.0
  %v1313 = vsel %vm890, %v1309, 0.0
  %v1314 = vsel %vm890, %v1306, 0.0
  %v1315 = vsel %vm890, %v1310, 0.0
  %v1316 = vsel %vm890, %v1307, 0.0
  %1317 = vrot.lane.b32.xlu0 %v1239, 2
  %v1318 = vpop.permute.xlu0 %1317
  %1319 = vrot.lane.b32.xlu0 %v1241, 2
  %v1320 = vpop.permute.xlu0 %1319
  %1321 = vrot.lane.b32.xlu0 %v1243, 2
  %v1322 = vpop.permute.xlu0 %1321
  %1323 = vrot.lane.b32.xlu0 %v1240, 2
  %v1324 = vpop.permute.xlu0 %1323
  %1325 = vrot.lane.b32.xlu0 %v1242, 2
  %v1326 = vpop.permute.xlu0 %1325
  %1327 = vrot.lane.b32.xlu0 %v1244, 2
  %v1328 = vpop.permute.xlu0 %1327
  %v1329 = vsel %vm909, %v1318, %v1324
  %v1330 = vsel %vm909, %v1320, %v1326
  %v1331 = vsel %vm909, %v1322, %v1328
  %v1332 = vsel %vm909, %v1324, %v1318
  %v1333 = vsel %vm909, %v1326, %v1320
  %v1334 = vsel %vm909, %v1328, %v1322
  %v1335 = vsel %vm921, %v1332, 0.0
  %v1336 = vsel %vm921, %v1329, 0.0
  %v1337 = vsel %vm921, %v1333, 0.0
  %v1338 = vsel %vm921, %v1330, 0.0
  %v1339 = vsel %vm921, %v1334, 0.0
  %v1340 = vsel %vm921, %v1331, 0.0
  %1341 = vrot.lane.b32.xlu0 %v1239, 126
  %v1342 = vpop.permute.xlu0 %1341
  %1343 = vrot.lane.b32.xlu0 %v1241, 126
  %v1344 = vpop.permute.xlu0 %1343
  %1345 = vrot.lane.b32.xlu0 %v1243, 126
  %v1346 = vpop.permute.xlu0 %1345
  %1347 = vrot.lane.b32.xlu0 %v1240, 126
  %v1348 = vpop.permute.xlu0 %1347
  %1349 = vrot.lane.b32.xlu0 %v1242, 126
  %v1350 = vpop.permute.xlu0 %1349
  %1351 = vrot.lane.b32.xlu0 %v1244, 126
  %v1352 = vpop.permute.xlu0 %1351
  %v1353 = vsel %vm940, %v1342, %v1348
  %v1354 = vsel %vm940, %v1344, %v1350
  %v1355 = vsel %vm940, %v1346, %v1352
  %v1356 = vsel %vm940, %v1348, %v1342
  %v1357 = vsel %vm940, %v1350, %v1344
  %v1358 = vsel %vm940, %v1352, %v1346
  %v1359 = vsel %vm951, %v1353, 0.0
  %v1360 = vsel %vm951, %v1356, 0.0
  %v1361 = vsel %vm951, %v1354, 0.0
  %v1362 = vsel %vm951, %v1357, 0.0
  %v1363 = vsel %vm951, %v1355, 0.0
  %v1364 = vsel %vm951, %v1358, 0.0
  %1365 = vrot.lane.b32.xlu0 %v1239, 122
  %v1366 = vpop.permute.xlu0 %1365
  %1367 = vrot.lane.b32.xlu0 %v1241, 122
  %v1368 = vpop.permute.xlu0 %1367
  %1369 = vrot.lane.b32.xlu0 %v1243, 122
  %v1370 = vpop.permute.xlu0 %1369
  %1371 = vrot.lane.b32.xlu0 %v1240, 122
  %v1372 = vpop.permute.xlu0 %1371
  %1373 = vrot.lane.b32.xlu0 %v1242, 122
  %v1374 = vpop.permute.xlu0 %1373
  %1375 = vrot.lane.b32.xlu0 %v1244, 122
  %v1376 = vpop.permute.xlu0 %1375
  %v1377 = vsel %vm970, %v1366, %v1372
  %v1378 = vsel %vm970, %v1368, %v1374
  %v1379 = vsel %vm970, %v1370, %v1376
  %v1380 = vsel %vm970, %v1372, %v1366
  %v1381 = vsel %vm970, %v1374, %v1368
  %v1382 = vsel %vm970, %v1376, %v1370
  %v1383 = vsel %vm981, %v1377, 0.0
  %v1384 = vsel %vm981, %v1380, 0.0
  %v1385 = vsel %vm981, %v1378, 0.0
  %v1386 = vsel %vm981, %v1381, 0.0
  %v1387 = vsel %vm981, %v1379, 0.0
  %v1388 = vsel %vm981, %v1382, 0.0
  %1389 = vrot.lane.b32.xlu0 %v1239, 118
  %v1390 = vpop.permute.xlu0 %1389
  %1391 = vrot.lane.b32.xlu0 %v1241, 118
  %v1392 = vpop.permute.xlu0 %1391
  %1393 = vrot.lane.b32.xlu0 %v1243, 118
  %v1394 = vpop.permute.xlu0 %1393
  %1395 = vrot.lane.b32.xlu0 %v1240, 118
  %v1396 = vpop.permute.xlu0 %1395
  %1397 = vrot.lane.b32.xlu0 %v1242, 118
  %v1398 = vpop.permute.xlu0 %1397
  %1399 = vrot.lane.b32.xlu0 %v1244, 118
  %v1400 = vpop.permute.xlu0 %1399
  %v1401 = vsel %vm1000, %v1390, %v1396
  %v1402 = vsel %vm1000, %v1392, %v1398
  %v1403 = vsel %vm1000, %v1394, %v1400
  %v1404 = vsel %vm1000, %v1396, %v1390
  %v1405 = vsel %vm1000, %v1398, %v1392
  %v1406 = vsel %vm1000, %v1400, %v1394
  %v1407 = vsel %vm1011, %v1401, 0.0
  %v1408 = vsel %vm1011, %v1404, 0.0
  %v1409 = vsel %vm1011, %v1402, 0.0
  %v1410 = vsel %vm1011, %v1405, 0.0
  %v1411 = vsel %vm1011, %v1403, 0.0
  %v1412 = vsel %vm1011, %v1406, 0.0
  %1413 = vrot.lane.b32.xlu0 %v1239, 114
  %v1414 = vpop.permute.xlu0 %1413
  %1415 = vrot.lane.b32.xlu0 %v1241, 114
  %v1416 = vpop.permute.xlu0 %1415
  %1417 = vrot.lane.b32.xlu0 %v1243, 114
  %v1418 = vpop.permute.xlu0 %1417
  %1419 = vrot.lane.b32.xlu0 %v1240, 114
  %v1420 = vpop.permute.xlu0 %1419
  %1421 = vrot.lane.b32.xlu0 %v1242, 114
  %v1422 = vpop.permute.xlu0 %1421
  %1423 = vrot.lane.b32.xlu0 %v1244, 114
  %v1424 = vpop.permute.xlu0 %1423
  %v1425 = vsel %vm1030, %v1414, %v1420
  %v1426 = vsel %vm1030, %v1416, %v1422
  %v1427 = vsel %vm1030, %v1418, %v1424
  %v1428 = vsel %vm1030, %v1420, %v1414
  %v1429 = vsel %vm1030, %v1422, %v1416
  %v1430 = vsel %vm1030, %v1424, %v1418
  %v1431 = vsel %vm1041, %v1425, 0.0
  %v1432 = vsel %vm1041, %v1428, 0.0
  %v1433 = vsel %vm1041, %v1426, 0.0
  %v1434 = vsel %vm1041, %v1429, 0.0
  %v1435 = vsel %vm1041, %v1427, 0.0
  %v1436 = vsel %vm1041, %v1430, 0.0
  %v1437 = vld [vmem:[%s15] sm:$0xff]
  %v1438 = vld [vmem:[%s15 + $0x8] sm:$0xff]
  %v1439 = vld [vmem:[%s15 + $0x10] sm:$0xff]
  %v1440 = vld [vmem:[%s15 + $0x18] sm:$0xff]
  %v1441 = vld [vmem:[%s15 + $0x20] sm:$0xff]
  %v1442 = vld [vmem:[%s15 + $0x28] sm:$0xff]
  %v1443 = vld [vmem:[%s16] sm:$0xff]
  %v1444 = vld [vmem:[%s16 + $0x8] sm:$0xff]
  %v1445 = vld [vmem:[%s16 + $0x10] sm:$0xff]
  %1447 = vset.pattern.permute.xlu0 0
  %1448 = vperm.xlu0 %1447, %v1443
  %v1449 = vpop.permute.xlu0 %1448
  %1452 = vset.pattern.permute.xlu0 0
  %1453 = vperm.xlu0 %1452, %v1444
  %v1454 = vpop.permute.xlu0 %1453
  %1457 = vset.pattern.permute.xlu0 0
  %1458 = vperm.xlu0 %1457, %v1445
  %v1459 = vpop.permute.xlu0 %1458
  %v1462 = vsel %vm287, %v1438, 0
  %v1465 = vsel %vm287, %v1440, 0
  %v1468 = vsel %vm287, %v1442, 0
  %1470 = vmatpush.msra.mxu0 %v1383
  %1471 = vmatpush.msra.mxu0 %v1363
  %1472 = vmatpush.msra.mxu0 %v1361
  %1473 = vmatpush.msra.mxu0 %v1359
  %1474 = vmatpush.msra.mxu0 %v1339
  %1475 = vmatpush.msra.mxu0 %v1337
  %1476 = vmatpush.msra.mxu0 %v1335
  %1477 = vmatpush.msra.mxu0 %v1315
  %1478 = vmatpush.msra.mxu0 %v1313
  %1479 = vmatpush.msra.mxu0 %v1311
  %1480 = vmatpush.msra.mxu0 %v1291
  %1481 = vmatpush.msra.mxu0 %v1289
  %1482 = vmatpush.msra.mxu0 %v1287
  %1483 = vmatpush.msra.mxu0 %v1267
  %1484 = vmatpush.msra.mxu0 %v1265
  %1485 = vmatpush.msra.mxu0 %v1263
  %1486 = vmatmul.f32.gmra.mxu0 %v1437
  %v1487 = vpop.f32.mrf.mxu0
  %v1488 = vadd.f32 %v1449, %v1487
  %1489 = vmatmul.f32.gmra.mxu0 %v1439
  %v1490 = vpop.f32.mrf.mxu0
  %v1491 = vadd.f32 %v1454, %v1490
  %1492 = vmatmul.f32.gmra.mxu0 %v1441
  %v1493 = vpop.f32.mrf.mxu0
  %v1494 = vadd.f32 %v1459, %v1493
  %1495 = vdwg.mxu0
  %1496 = vmatpush.msra.mxu0 0.0
  %1497 = vmatpush.msra.mxu0 0.0
  %1498 = vmatpush.msra.mxu0 0.0
  %1499 = vmatpush.msra.mxu0 0.0
  %1500 = vmatpush.msra.mxu0 0.0
  %1501 = vmatpush.msra.mxu0 0.0
  %1502 = vmatpush.msra.mxu0 0.0
  %1503 = vmatpush.msra.mxu0 0.0
  %1504 = vmatpush.msra.mxu0 %v1435
  %1505 = vmatpush.msra.mxu0 %v1433
  %1506 = vmatpush.msra.mxu0 %v1431
  %1507 = vmatpush.msra.mxu0 %v1411
  %1508 = vmatpush.msra.mxu0 %v1409
  %1509 = vmatpush.msra.mxu0 %v1407
  %1510 = vmatpush.msra.mxu0 %v1387
  %1511 = vmatpush.msra.mxu0 %v1385
  %1512 = vmatmul.f32.gmra.mxu0 %v1462
  %v1513 = vpop.f32.mrf.mxu0
  %v1514 = vadd.f32 %v1488, %v1513
  %1515 = vmatmul.f32.gmra.mxu0 %v1465
  %v1516 = vpop.f32.mrf.mxu0
  %v1517 = vadd.f32 %v1491, %v1516
  %1518 = vmatmul.f32.gmra.mxu0 %v1468
  %v1519 = vpop.f32.mrf.mxu0
  %v1520 = vadd.f32 %v1494, %v1519
  %1521 = vdwg.mxu0
  %1522 = vmatpush.msra.mxu0 %v1384
  %1523 = vmatpush.msra.mxu0 %v1364
  %1524 = vmatpush.msra.mxu0 %v1362
  %1525 = vmatpush.msra.mxu0 %v1360
  %1526 = vmatpush.msra.mxu0 %v1340
  %1527 = vmatpush.msra.mxu0 %v1338
  %1528 = vmatpush.msra.mxu0 %v1336
  %1529 = vmatpush.msra.mxu0 %v1316
  %1530 = vmatpush.msra.mxu0 %v1314
  %1531 = vmatpush.msra.mxu0 %v1312
  %1532 = vmatpush.msra.mxu0 %v1292
  %1533 = vmatpush.msra.mxu0 %v1290
  %1534 = vmatpush.msra.mxu0 %v1288
  %1535 = vmatpush.msra.mxu0 %v1268
  %1536 = vmatpush.msra.mxu0 %v1266
  %1537 = vmatpush.msra.mxu0 %v1264
  %1538 = vmatmul.f32.gmra.mxu0 %v1437
  %v1539 = vpop.f32.mrf.mxu0
  %v1540 = vadd.f32 %v1449, %v1539
  %1541 = vmatmul.f32.gmra.mxu0 %v1439
  %v1542 = vpop.f32.mrf.mxu0
  %v1543 = vadd.f32 %v1454, %v1542
  %1544 = vmatmul.f32.gmra.mxu0 %v1441
  %v1545 = vpop.f32.mrf.mxu0
  %v1546 = vadd.f32 %v1459, %v1545
  %1547 = vdwg.mxu0
  %1548 = vmatpush.msra.mxu0 0.0
  %1549 = vmatpush.msra.mxu0 0.0
  %1550 = vmatpush.msra.mxu0 0.0
  %1551 = vmatpush.msra.mxu0 0.0
  %1552 = vmatpush.msra.mxu0 0.0
  %1553 = vmatpush.msra.mxu0 0.0
  %1554 = vmatpush.msra.mxu0 0.0
  %1555 = vmatpush.msra.mxu0 0.0
  %1556 = vmatpush.msra.mxu0 %v1436
  %1557 = vmatpush.msra.mxu0 %v1434
  %1558 = vmatpush.msra.mxu0 %v1432
  %1559 = vmatpush.msra.mxu0 %v1412
  %1560 = vmatpush.msra.mxu0 %v1410
  %1561 = vmatpush.msra.mxu0 %v1408
  %1562 = vmatpush.msra.mxu0 %v1388
  %1563 = vmatpush.msra.mxu0 %v1386
  %1564 = vmatmul.f32.gmra.mxu0 %v1462
  %v1565 = vpop.f32.mrf.mxu0
  %v1566 = vadd.f32 %v1540, %v1565
  %1567 = vmatmul.f32.gmra.mxu0 %v1465
  %v1568 = vpop.f32.mrf.mxu0
  %v1569 = vadd.f32 %v1543, %v1568
  %1570 = vmatmul.f32.gmra.mxu0 %v1468
  %v1571 = vpop.f32.mrf.mxu0
  %v1572 = vadd.f32 %v1546, %v1571
  %1573 = vdwg.mxu0
  %v1574 = vmax.f32 %v1514, 0.0
  %v1575 = vmax.f32 %v1566, 0.0
  %v1576 = vmax.f32 %v1517, 0.0
  %v1577 = vmax.f32 %v1569, 0.0
  %v1578 = vmax.f32 %v1520, 0.0
  %v1579 = vmax.f32 %v1572, 0.0
  %v1580 = vld [vmem:[%s17] sm:$0xff]
  %v1581 = vld [vmem:[%s17 + $0x8] sm:$0xff]
  %v1582 = vld [vmem:[%s17 + $0x10] sm:$0xff]
  %1584 = vset.pattern.permute.xlu0 0
  %1585 = vperm.xlu0 %1584, %v1580
  %v1586 = vpop.permute.xlu0 %1585
  %1589 = vset.pattern.permute.xlu0 0
  %1590 = vperm.xlu0 %1589, %v1581
  %v1591 = vpop.permute.xlu0 %1590
  %1594 = vset.pattern.permute.xlu0 0
  %1595 = vperm.xlu0 %1594, %v1582
  %v1596 = vpop.permute.xlu0 %1595
  %v1598 = vmul.f32 %v1574, %v1586
  %v1599 = vmul.f32 %v1575, %v1586
  %v1600 = vmul.f32 %v1576, %v1591
  %v1601 = vmul.f32 %v1577, %v1591
  %v1602 = vmul.f32 %v1578, %v1596
  %v1603 = vmul.f32 %v1579, %v1596
  %v1604 = vld [vmem:[%s18] sm:$0xff]
  %v1605 = vld [vmem:[%s18 + $0x8] sm:$0xff]
  %v1606 = vld [vmem:[%s18 + $0x10] sm:$0xff]
  %1608 = vset.pattern.permute.xlu0 0
  %1609 = vperm.xlu0 %1608, %v1604
  %v1610 = vpop.permute.xlu0 %1609
  %1613 = vset.pattern.permute.xlu0 0
  %1614 = vperm.xlu0 %1613, %v1605
  %v1615 = vpop.permute.xlu0 %1614
  %1618 = vset.pattern.permute.xlu0 0
  %1619 = vperm.xlu0 %1618, %v1606
  %v1620 = vpop.permute.xlu0 %1619
  %v1622 = vadd.f32 %v1598, %v1610
  %v1623 = vadd.f32 %v1599, %v1610
  %v1624 = vadd.f32 %v1600, %v1615
  %v1625 = vadd.f32 %v1601, %v1615
  %v1626 = vadd.f32 %v1602, %v1620
  %v1627 = vadd.f32 %v1603, %v1620
  %v1628 = vadd.f32 %v1622, %v798
  %v1629 = vadd.f32 %v1623, %v799
  %v1630 = vadd.f32 %v1624, %v800
  %v1631 = vadd.f32 %v1625, %v801
  %v1632 = vadd.f32 %v1626, %v802
  %v1633 = vadd.f32 %v1627, %v803
  %v1634 = vmax.f32 %v1628, 0.0
  %v1635 = vmax.f32 %v1629, 0.0
  %v1636 = vmax.f32 %v1630, 0.0
  %v1637 = vmax.f32 %v1631, 0.0
  %v1638 = vmax.f32 %v1632, 0.0
  %v1639 = vmax.f32 %v1633, 0.0
  %1643 = vrot.lane.b32.xlu0 %v1634, 126
  %v1644 = vpop.permute.xlu0 %1643
  %1645 = vrot.lane.b32.xlu0 %v1636, 126
  %v1646 = vpop.permute.xlu0 %1645
  %1647 = vrot.lane.b32.xlu0 %v1638, 126
  %v1648 = vpop.permute.xlu0 %1647
  %1652 = vrot.lane.b32.xlu0 %v1634, 124
  %v1653 = vpop.permute.xlu0 %1652
  %1654 = vrot.lane.b32.xlu0 %v1636, 124
  %v1655 = vpop.permute.xlu0 %1654
  %1656 = vrot.lane.b32.xlu0 %v1638, 124
  %v1657 = vpop.permute.xlu0 %1656
  %1661 = vrot.lane.b32.xlu0 %v1634, 122
  %v1662 = vpop.permute.xlu0 %1661
  %1663 = vrot.lane.b32.xlu0 %v1636, 122
  %v1664 = vpop.permute.xlu0 %1663
  %1665 = vrot.lane.b32.xlu0 %v1638, 122
  %v1666 = vpop.permute.xlu0 %1665
  %1670 = vrot.lane.b32.xlu0 %v1634, 120
  %v1671 = vpop.permute.xlu0 %1670
  %1672 = vrot.lane.b32.xlu0 %v1636, 120
  %v1673 = vpop.permute.xlu0 %1672
  %1674 = vrot.lane.b32.xlu0 %v1638, 120
  %v1675 = vpop.permute.xlu0 %1674
  %1679 = vrot.lane.b32.xlu0 %v1634, 118
  %v1680 = vpop.permute.xlu0 %1679
  %1681 = vrot.lane.b32.xlu0 %v1636, 118
  %v1682 = vpop.permute.xlu0 %1681
  %1683 = vrot.lane.b32.xlu0 %v1638, 118
  %v1684 = vpop.permute.xlu0 %1683
  %1688 = vrot.lane.b32.xlu0 %v1634, 116
  %v1689 = vpop.permute.xlu0 %1688
  %1690 = vrot.lane.b32.xlu0 %v1636, 116
  %v1691 = vpop.permute.xlu0 %1690
  %1692 = vrot.lane.b32.xlu0 %v1638, 116
  %v1693 = vpop.permute.xlu0 %1692
  %1697 = vrot.lane.b32.xlu0 %v1634, 114
  %v1698 = vpop.permute.xlu0 %1697
  %1699 = vrot.lane.b32.xlu0 %v1636, 114
  %v1700 = vpop.permute.xlu0 %1699
  %1701 = vrot.lane.b32.xlu0 %v1638, 114
  %v1702 = vpop.permute.xlu0 %1701
  %1706 = vrot.lane.b32.xlu0 %v1634, 112
  %v1707 = vpop.permute.xlu0 %1706
  %1708 = vrot.lane.b32.xlu0 %v1636, 112
  %v1709 = vpop.permute.xlu0 %1708
  %1710 = vrot.lane.b32.xlu0 %v1638, 112
  %v1711 = vpop.permute.xlu0 %1710
  %1715 = vrot.lane.b32.xlu0 %v1634, 110
  %v1716 = vpop.permute.xlu0 %1715
  %1717 = vrot.lane.b32.xlu0 %v1636, 110
  %v1718 = vpop.permute.xlu0 %1717
  %1719 = vrot.lane.b32.xlu0 %v1638, 110
  %v1720 = vpop.permute.xlu0 %1719
  %1724 = vrot.lane.b32.xlu0 %v1634, 108
  %v1725 = vpop.permute.xlu0 %1724
  %1726 = vrot.lane.b32.xlu0 %v1636, 108
  %v1727 = vpop.permute.xlu0 %1726
  %1728 = vrot.lane.b32.xlu0 %v1638, 108
  %v1729 = vpop.permute.xlu0 %1728
  %1733 = vrot.lane.b32.xlu0 %v1634, 106
  %v1734 = vpop.permute.xlu0 %1733
  %1735 = vrot.lane.b32.xlu0 %v1636, 106
  %v1736 = vpop.permute.xlu0 %1735
  %1737 = vrot.lane.b32.xlu0 %v1638, 106
  %v1738 = vpop.permute.xlu0 %1737
  %1742 = vrot.lane.b32.xlu0 %v1634, 104
  %v1743 = vpop.permute.xlu0 %1742
  %1744 = vrot.lane.b32.xlu0 %v1636, 104
  %v1745 = vpop.permute.xlu0 %1744
  %1746 = vrot.lane.b32.xlu0 %v1638, 104
  %v1747 = vpop.permute.xlu0 %1746
  %1751 = vrot.lane.b32.xlu0 %v1634, 102
  %v1752 = vpop.permute.xlu0 %1751
  %1753 = vrot.lane.b32.xlu0 %v1636, 102
  %v1754 = vpop.permute.xlu0 %1753
  %1755 = vrot.lane.b32.xlu0 %v1638, 102
  %v1756 = vpop.permute.xlu0 %1755
  %1760 = vrot.lane.b32.xlu0 %v1634, 100
  %v1761 = vpop.permute.xlu0 %1760
  %1762 = vrot.lane.b32.xlu0 %v1636, 100
  %v1763 = vpop.permute.xlu0 %1762
  %1764 = vrot.lane.b32.xlu0 %v1638, 100
  %v1765 = vpop.permute.xlu0 %1764
  %1769 = vrot.lane.b32.xlu0 %v1634, 98
  %v1770 = vpop.permute.xlu0 %1769
  %1771 = vrot.lane.b32.xlu0 %v1636, 98
  %v1772 = vpop.permute.xlu0 %1771
  %1773 = vrot.lane.b32.xlu0 %v1638, 98
  %v1774 = vpop.permute.xlu0 %1773
  %1778 = vrot.lane.b32.xlu0 %v1634, 96
  %v1779 = vpop.permute.xlu0 %1778
  %1780 = vrot.lane.b32.xlu0 %v1636, 96
  %v1781 = vpop.permute.xlu0 %1780
  %1782 = vrot.lane.b32.xlu0 %v1638, 96
  %v1783 = vpop.permute.xlu0 %1782
  %1787 = vrot.lane.b32.xlu0 %v1634, 94
  %v1788 = vpop.permute.xlu0 %1787
  %1789 = vrot.lane.b32.xlu0 %v1636, 94
  %v1790 = vpop.permute.xlu0 %1789
  %1791 = vrot.lane.b32.xlu0 %v1638, 94
  %v1792 = vpop.permute.xlu0 %1791
  %1796 = vrot.lane.b32.xlu0 %v1634, 92
  %v1797 = vpop.permute.xlu0 %1796
  %1798 = vrot.lane.b32.xlu0 %v1636, 92
  %v1799 = vpop.permute.xlu0 %1798
  %1800 = vrot.lane.b32.xlu0 %v1638, 92
  %v1801 = vpop.permute.xlu0 %1800
  %1805 = vrot.lane.b32.xlu0 %v1634, 90
  %v1806 = vpop.permute.xlu0 %1805
  %1807 = vrot.lane.b32.xlu0 %v1636, 90
  %v1808 = vpop.permute.xlu0 %1807
  %1809 = vrot.lane.b32.xlu0 %v1638, 90
  %v1810 = vpop.permute.xlu0 %1809
  %1814 = vrot.lane.b32.xlu0 %v1634, 88
  %v1815 = vpop.permute.xlu0 %1814
  %1816 = vrot.lane.b32.xlu0 %v1636, 88
  %v1817 = vpop.permute.xlu0 %1816
  %1818 = vrot.lane.b32.xlu0 %v1638, 88
  %v1819 = vpop.permute.xlu0 %1818
  %1823 = vrot.lane.b32.xlu0 %v1634, 86
  %v1824 = vpop.permute.xlu0 %1823
  %1825 = vrot.lane.b32.xlu0 %v1636, 86
  %v1826 = vpop.permute.xlu0 %1825
  %1827 = vrot.lane.b32.xlu0 %v1638, 86
  %v1828 = vpop.permute.xlu0 %1827
  %1832 = vrot.lane.b32.xlu0 %v1634, 84
  %v1833 = vpop.permute.xlu0 %1832
  %1834 = vrot.lane.b32.xlu0 %v1636, 84
  %v1835 = vpop.permute.xlu0 %1834
  %1836 = vrot.lane.b32.xlu0 %v1638, 84
  %v1837 = vpop.permute.xlu0 %1836
  %1841 = vrot.lane.b32.xlu0 %v1634, 82
  %v1842 = vpop.permute.xlu0 %1841
  %1843 = vrot.lane.b32.xlu0 %v1636, 82
  %v1844 = vpop.permute.xlu0 %1843
  %1845 = vrot.lane.b32.xlu0 %v1638, 82
  %v1846 = vpop.permute.xlu0 %1845
  %1850 = vrot.lane.b32.xlu0 %v1634, 80
  %v1851 = vpop.permute.xlu0 %1850
  %1852 = vrot.lane.b32.xlu0 %v1636, 80
  %v1853 = vpop.permute.xlu0 %1852
  %1854 = vrot.lane.b32.xlu0 %v1638, 80
  %v1855 = vpop.permute.xlu0 %1854
  %1859 = vrot.lane.b32.xlu0 %v1634, 78
  %v1860 = vpop.permute.xlu0 %1859
  %1861 = vrot.lane.b32.xlu0 %v1636, 78
  %v1862 = vpop.permute.xlu0 %1861
  %1863 = vrot.lane.b32.xlu0 %v1638, 78
  %v1864 = vpop.permute.xlu0 %1863
  %1868 = vrot.lane.b32.xlu0 %v1634, 76
  %v1869 = vpop.permute.xlu0 %1868
  %1870 = vrot.lane.b32.xlu0 %v1636, 76
  %v1871 = vpop.permute.xlu0 %1870
  %1872 = vrot.lane.b32.xlu0 %v1638, 76
  %v1873 = vpop.permute.xlu0 %1872
  %1877 = vrot.lane.b32.xlu0 %v1634, 74
  %v1878 = vpop.permute.xlu0 %1877
  %1879 = vrot.lane.b32.xlu0 %v1636, 74
  %v1880 = vpop.permute.xlu0 %1879
  %1881 = vrot.lane.b32.xlu0 %v1638, 74
  %v1882 = vpop.permute.xlu0 %1881
  %1886 = vrot.lane.b32.xlu0 %v1634, 72
  %v1887 = vpop.permute.xlu0 %1886
  %1888 = vrot.lane.b32.xlu0 %v1636, 72
  %v1889 = vpop.permute.xlu0 %1888
  %1890 = vrot.lane.b32.xlu0 %v1638, 72
  %v1891 = vpop.permute.xlu0 %1890
  %1895 = vrot.lane.b32.xlu0 %v1634, 70
  %v1896 = vpop.permute.xlu0 %1895
  %1897 = vrot.lane.b32.xlu0 %v1636, 70
  %v1898 = vpop.permute.xlu0 %1897
  %1899 = vrot.lane.b32.xlu0 %v1638, 70
  %v1900 = vpop.permute.xlu0 %1899
  %1904 = vrot.lane.b32.xlu0 %v1634, 68
  %v1905 = vpop.permute.xlu0 %1904
  %1906 = vrot.lane.b32.xlu0 %v1636, 68
  %v1907 = vpop.permute.xlu0 %1906
  %1908 = vrot.lane.b32.xlu0 %v1638, 68
  %v1909 = vpop.permute.xlu0 %1908
  %1913 = vrot.lane.b32.xlu0 %v1634, 66
  %v1914 = vpop.permute.xlu0 %1913
  %1915 = vrot.lane.b32.xlu0 %v1636, 66
  %v1916 = vpop.permute.xlu0 %1915
  %1917 = vrot.lane.b32.xlu0 %v1638, 66
  %v1918 = vpop.permute.xlu0 %1917
  %1922 = vrot.lane.b32.xlu0 %v1634, 64
  %v1923 = vpop.permute.xlu0 %1922
  %1924 = vrot.lane.b32.xlu0 %v1636, 64
  %v1925 = vpop.permute.xlu0 %1924
  %1926 = vrot.lane.b32.xlu0 %v1638, 64
  %v1927 = vpop.permute.xlu0 %1926
  %1931 = vrot.lane.b32.xlu0 %v1634, 62
  %v1932 = vpop.permute.xlu0 %1931
  %1933 = vrot.lane.b32.xlu0 %v1636, 62
  %v1934 = vpop.permute.xlu0 %1933
  %1935 = vrot.lane.b32.xlu0 %v1638, 62
  %v1936 = vpop.permute.xlu0 %1935
  %1940 = vrot.lane.b32.xlu0 %v1634, 60
  %v1941 = vpop.permute.xlu0 %1940
  %1942 = vrot.lane.b32.xlu0 %v1636, 60
  %v1943 = vpop.permute.xlu0 %1942
  %1944 = vrot.lane.b32.xlu0 %v1638, 60
  %v1945 = vpop.permute.xlu0 %1944
  %1949 = vrot.lane.b32.xlu0 %v1634, 58
  %v1950 = vpop.permute.xlu0 %1949
  %1951 = vrot.lane.b32.xlu0 %v1636, 58
  %v1952 = vpop.permute.xlu0 %1951
  %1953 = vrot.lane.b32.xlu0 %v1638, 58
  %v1954 = vpop.permute.xlu0 %1953
  %1958 = vrot.lane.b32.xlu0 %v1634, 56
  %v1959 = vpop.permute.xlu0 %1958
  %1960 = vrot.lane.b32.xlu0 %v1636, 56
  %v1961 = vpop.permute.xlu0 %1960
  %1962 = vrot.lane.b32.xlu0 %v1638, 56
  %v1963 = vpop.permute.xlu0 %1962
  %1967 = vrot.lane.b32.xlu0 %v1634, 54
  %v1968 = vpop.permute.xlu0 %1967
  %1969 = vrot.lane.b32.xlu0 %v1636, 54
  %v1970 = vpop.permute.xlu0 %1969
  %1971 = vrot.lane.b32.xlu0 %v1638, 54
  %v1972 = vpop.permute.xlu0 %1971
  %1976 = vrot.lane.b32.xlu0 %v1634, 52
  %v1977 = vpop.permute.xlu0 %1976
  %1978 = vrot.lane.b32.xlu0 %v1636, 52
  %v1979 = vpop.permute.xlu0 %1978
  %1980 = vrot.lane.b32.xlu0 %v1638, 52
  %v1981 = vpop.permute.xlu0 %1980
  %1985 = vrot.lane.b32.xlu0 %v1634, 50
  %v1986 = vpop.permute.xlu0 %1985
  %1987 = vrot.lane.b32.xlu0 %v1636, 50
  %v1988 = vpop.permute.xlu0 %1987
  %1989 = vrot.lane.b32.xlu0 %v1638, 50
  %v1990 = vpop.permute.xlu0 %1989
  %1994 = vrot.lane.b32.xlu0 %v1634, 48
  %v1995 = vpop.permute.xlu0 %1994
  %1996 = vrot.lane.b32.xlu0 %v1636, 48
  %v1997 = vpop.permute.xlu0 %1996
  %1998 = vrot.lane.b32.xlu0 %v1638, 48
  %v1999 = vpop.permute.xlu0 %1998
  %2003 = vrot.lane.b32.xlu0 %v1634, 46
  %v2004 = vpop.permute.xlu0 %2003
  %2005 = vrot.lane.b32.xlu0 %v1636, 46
  %v2006 = vpop.permute.xlu0 %2005
  %2007 = vrot.lane.b32.xlu0 %v1638, 46
  %v2008 = vpop.permute.xlu0 %2007
  %2012 = vrot.lane.b32.xlu0 %v1634, 44
  %v2013 = vpop.permute.xlu0 %2012
  %2014 = vrot.lane.b32.xlu0 %v1636, 44
  %v2015 = vpop.permute.xlu0 %2014
  %2016 = vrot.lane.b32.xlu0 %v1638, 44
  %v2017 = vpop.permute.xlu0 %2016
  %2021 = vrot.lane.b32.xlu0 %v1634, 42
  %v2022 = vpop.permute.xlu0 %2021
  %2023 = vrot.lane.b32.xlu0 %v1636, 42
  %v2024 = vpop.permute.xlu0 %2023
  %2025 = vrot.lane.b32.xlu0 %v1638, 42
  %v2026 = vpop.permute.xlu0 %2025
  %2030 = vrot.lane.b32.xlu0 %v1634, 40
  %v2031 = vpop.permute.xlu0 %2030
  %2032 = vrot.lane.b32.xlu0 %v1636, 40
  %v2033 = vpop.permute.xlu0 %2032
  %2034 = vrot.lane.b32.xlu0 %v1638, 40
  %v2035 = vpop.permute.xlu0 %2034
  %2039 = vrot.lane.b32.xlu0 %v1634, 38
  %v2040 = vpop.permute.xlu0 %2039
  %2041 = vrot.lane.b32.xlu0 %v1636, 38
  %v2042 = vpop.permute.xlu0 %2041
  %2043 = vrot.lane.b32.xlu0 %v1638, 38
  %v2044 = vpop.permute.xlu0 %2043
  %2048 = vrot.lane.b32.xlu0 %v1634, 36
  %v2049 = vpop.permute.xlu0 %2048
  %2050 = vrot.lane.b32.xlu0 %v1636, 36
  %v2051 = vpop.permute.xlu0 %2050
  %2052 = vrot.lane.b32.xlu0 %v1638, 36
  %v2053 = vpop.permute.xlu0 %2052
  %2057 = vrot.lane.b32.xlu0 %v1634, 34
  %v2058 = vpop.permute.xlu0 %2057
  %2059 = vrot.lane.b32.xlu0 %v1636, 34
  %v2060 = vpop.permute.xlu0 %2059
  %2061 = vrot.lane.b32.xlu0 %v1638, 34
  %v2062 = vpop.permute.xlu0 %2061
  %2066 = vrot.lane.b32.xlu0 %v1634, 32
  %v2067 = vpop.permute.xlu0 %2066
  %2068 = vrot.lane.b32.xlu0 %v1636, 32
  %v2069 = vpop.permute.xlu0 %2068
  %2070 = vrot.lane.b32.xlu0 %v1638, 32
  %v2071 = vpop.permute.xlu0 %2070
  %2075 = vrot.lane.b32.xlu0 %v1634, 30
  %v2076 = vpop.permute.xlu0 %2075
  %2077 = vrot.lane.b32.xlu0 %v1636, 30
  %v2078 = vpop.permute.xlu0 %2077
  %2079 = vrot.lane.b32.xlu0 %v1638, 30
  %v2080 = vpop.permute.xlu0 %2079
  %2084 = vrot.lane.b32.xlu0 %v1634, 28
  %v2085 = vpop.permute.xlu0 %2084
  %2086 = vrot.lane.b32.xlu0 %v1636, 28
  %v2087 = vpop.permute.xlu0 %2086
  %2088 = vrot.lane.b32.xlu0 %v1638, 28
  %v2089 = vpop.permute.xlu0 %2088
  %2093 = vrot.lane.b32.xlu0 %v1634, 26
  %v2094 = vpop.permute.xlu0 %2093
  %2095 = vrot.lane.b32.xlu0 %v1636, 26
  %v2096 = vpop.permute.xlu0 %2095
  %2097 = vrot.lane.b32.xlu0 %v1638, 26
  %v2098 = vpop.permute.xlu0 %2097
  %2102 = vrot.lane.b32.xlu0 %v1634, 24
  %v2103 = vpop.permute.xlu0 %2102
  %2104 = vrot.lane.b32.xlu0 %v1636, 24
  %v2105 = vpop.permute.xlu0 %2104
  %2106 = vrot.lane.b32.xlu0 %v1638, 24
  %v2107 = vpop.permute.xlu0 %2106
  %2111 = vrot.lane.b32.xlu0 %v1634, 22
  %v2112 = vpop.permute.xlu0 %2111
  %2113 = vrot.lane.b32.xlu0 %v1636, 22
  %v2114 = vpop.permute.xlu0 %2113
  %2115 = vrot.lane.b32.xlu0 %v1638, 22
  %v2116 = vpop.permute.xlu0 %2115
  %2120 = vrot.lane.b32.xlu0 %v1634, 20
  %v2121 = vpop.permute.xlu0 %2120
  %2122 = vrot.lane.b32.xlu0 %v1636, 20
  %v2123 = vpop.permute.xlu0 %2122
  %2124 = vrot.lane.b32.xlu0 %v1638, 20
  %v2125 = vpop.permute.xlu0 %2124
  %2129 = vrot.lane.b32.xlu0 %v1634, 18
  %v2130 = vpop.permute.xlu0 %2129
  %2131 = vrot.lane.b32.xlu0 %v1636, 18
  %v2132 = vpop.permute.xlu0 %2131
  %2133 = vrot.lane.b32.xlu0 %v1638, 18
  %v2134 = vpop.permute.xlu0 %2133
  %2138 = vrot.lane.b32.xlu0 %v1634, 16
  %v2139 = vpop.permute.xlu0 %2138
  %2140 = vrot.lane.b32.xlu0 %v1636, 16
  %v2141 = vpop.permute.xlu0 %2140
  %2142 = vrot.lane.b32.xlu0 %v1638, 16
  %v2143 = vpop.permute.xlu0 %2142
  %2147 = vrot.lane.b32.xlu0 %v1634, 14
  %v2148 = vpop.permute.xlu0 %2147
  %2149 = vrot.lane.b32.xlu0 %v1636, 14
  %v2150 = vpop.permute.xlu0 %2149
  %2151 = vrot.lane.b32.xlu0 %v1638, 14
  %v2152 = vpop.permute.xlu0 %2151
  %2156 = vrot.lane.b32.xlu0 %v1634, 12
  %v2157 = vpop.permute.xlu0 %2156
  %2158 = vrot.lane.b32.xlu0 %v1636, 12
  %v2159 = vpop.permute.xlu0 %2158
  %2160 = vrot.lane.b32.xlu0 %v1638, 12
  %v2161 = vpop.permute.xlu0 %2160
  %2165 = vrot.lane.b32.xlu0 %v1634, 10
  %v2166 = vpop.permute.xlu0 %2165
  %2167 = vrot.lane.b32.xlu0 %v1636, 10
  %v2168 = vpop.permute.xlu0 %2167
  %2169 = vrot.lane.b32.xlu0 %v1638, 10
  %v2170 = vpop.permute.xlu0 %2169
  %2174 = vrot.lane.b32.xlu0 %v1634, 8
  %v2175 = vpop.permute.xlu0 %2174
  %2176 = vrot.lane.b32.xlu0 %v1636, 8
  %v2177 = vpop.permute.xlu0 %2176
  %2178 = vrot.lane.b32.xlu0 %v1638, 8
  %v2179 = vpop.permute.xlu0 %2178
  %2183 = vrot.lane.b32.xlu0 %v1634, 6
  %v2184 = vpop.permute.xlu0 %2183
  %2185 = vrot.lane.b32.xlu0 %v1636, 6
  %v2186 = vpop.permute.xlu0 %2185
  %2187 = vrot.lane.b32.xlu0 %v1638, 6
  %v2188 = vpop.permute.xlu0 %2187
  %2192 = vrot.lane.b32.xlu0 %v1634, 4
  %v2193 = vpop.permute.xlu0 %2192
  %2194 = vrot.lane.b32.xlu0 %v1636, 4
  %v2195 = vpop.permute.xlu0 %2194
  %2196 = vrot.lane.b32.xlu0 %v1638, 4
  %v2197 = vpop.permute.xlu0 %2196
  %2201 = vrot.lane.b32.xlu0 %v1634, 2
  %v2202 = vpop.permute.xlu0 %2201
  %2203 = vrot.lane.b32.xlu0 %v1636, 2
  %v2204 = vpop.permute.xlu0 %2203
  %2205 = vrot.lane.b32.xlu0 %v1638, 2
  %v2206 = vpop.permute.xlu0 %2205
  %2213 = vrot.lane.b32.xlu0 %v1635, 126
  %v2214 = vpop.permute.xlu0 %2213
  %2215 = vrot.lane.b32.xlu0 %v1637, 126
  %v2216 = vpop.permute.xlu0 %2215
  %2217 = vrot.lane.b32.xlu0 %v1639, 126
  %v2218 = vpop.permute.xlu0 %2217
  %2222 = vrot.lane.b32.xlu0 %v1635, 124
  %v2223 = vpop.permute.xlu0 %2222
  %2224 = vrot.lane.b32.xlu0 %v1637, 124
  %v2225 = vpop.permute.xlu0 %2224
  %2226 = vrot.lane.b32.xlu0 %v1639, 124
  %v2227 = vpop.permute.xlu0 %2226
  %2231 = vrot.lane.b32.xlu0 %v1635, 122
  %v2232 = vpop.permute.xlu0 %2231
  %2233 = vrot.lane.b32.xlu0 %v1637, 122
  %v2234 = vpop.permute.xlu0 %2233
  %2235 = vrot.lane.b32.xlu0 %v1639, 122
  %v2236 = vpop.permute.xlu0 %2235
  %2240 = vrot.lane.b32.xlu0 %v1635, 120
  %v2241 = vpop.permute.xlu0 %2240
  %2242 = vrot.lane.b32.xlu0 %v1637, 120
  %v2243 = vpop.permute.xlu0 %2242
  %2244 = vrot.lane.b32.xlu0 %v1639, 120
  %v2245 = vpop.permute.xlu0 %2244
  %2249 = vrot.lane.b32.xlu0 %v1635, 118
  %v2250 = vpop.permute.xlu0 %2249
  %2251 = vrot.lane.b32.xlu0 %v1637, 118
  %v2252 = vpop.permute.xlu0 %2251
  %2253 = vrot.lane.b32.xlu0 %v1639, 118
  %v2254 = vpop.permute.xlu0 %2253
  %2258 = vrot.lane.b32.xlu0 %v1635, 116
  %v2259 = vpop.permute.xlu0 %2258
  %2260 = vrot.lane.b32.xlu0 %v1637, 116
  %v2261 = vpop.permute.xlu0 %2260
  %2262 = vrot.lane.b32.xlu0 %v1639, 116
  %v2263 = vpop.permute.xlu0 %2262
  %2267 = vrot.lane.b32.xlu0 %v1635, 114
  %v2268 = vpop.permute.xlu0 %2267
  %2269 = vrot.lane.b32.xlu0 %v1637, 114
  %v2270 = vpop.permute.xlu0 %2269
  %2271 = vrot.lane.b32.xlu0 %v1639, 114
  %v2272 = vpop.permute.xlu0 %2271
  %2276 = vrot.lane.b32.xlu0 %v1635, 112
  %v2277 = vpop.permute.xlu0 %2276
  %2278 = vrot.lane.b32.xlu0 %v1637, 112
  %v2279 = vpop.permute.xlu0 %2278
  %2280 = vrot.lane.b32.xlu0 %v1639, 112
  %v2281 = vpop.permute.xlu0 %2280
  %2285 = vrot.lane.b32.xlu0 %v1635, 110
  %v2286 = vpop.permute.xlu0 %2285
  %2287 = vrot.lane.b32.xlu0 %v1637, 110
  %v2288 = vpop.permute.xlu0 %2287
  %2289 = vrot.lane.b32.xlu0 %v1639, 110
  %v2290 = vpop.permute.xlu0 %2289
  %2294 = vrot.lane.b32.xlu0 %v1635, 108
  %v2295 = vpop.permute.xlu0 %2294
  %2296 = vrot.lane.b32.xlu0 %v1637, 108
  %v2297 = vpop.permute.xlu0 %2296
  %2298 = vrot.lane.b32.xlu0 %v1639, 108
  %v2299 = vpop.permute.xlu0 %2298
  %2303 = vrot.lane.b32.xlu0 %v1635, 106
  %v2304 = vpop.permute.xlu0 %2303
  %2305 = vrot.lane.b32.xlu0 %v1637, 106
  %v2306 = vpop.permute.xlu0 %2305
  %2307 = vrot.lane.b32.xlu0 %v1639, 106
  %v2308 = vpop.permute.xlu0 %2307
  %2312 = vrot.lane.b32.xlu0 %v1635, 104
  %v2313 = vpop.permute.xlu0 %2312
  %2314 = vrot.lane.b32.xlu0 %v1637, 104
  %v2315 = vpop.permute.xlu0 %2314
  %2316 = vrot.lane.b32.xlu0 %v1639, 104
  %v2317 = vpop.permute.xlu0 %2316
  %2321 = vrot.lane.b32.xlu0 %v1635, 102
  %v2322 = vpop.permute.xlu0 %2321
  %2323 = vrot.lane.b32.xlu0 %v1637, 102
  %v2324 = vpop.permute.xlu0 %2323
  %2325 = vrot.lane.b32.xlu0 %v1639, 102
  %v2326 = vpop.permute.xlu0 %2325
  %2330 = vrot.lane.b32.xlu0 %v1635, 100
  %v2331 = vpop.permute.xlu0 %2330
  %2332 = vrot.lane.b32.xlu0 %v1637, 100
  %v2333 = vpop.permute.xlu0 %2332
  %2334 = vrot.lane.b32.xlu0 %v1639, 100
  %v2335 = vpop.permute.xlu0 %2334
  %2339 = vrot.lane.b32.xlu0 %v1635, 98
  %v2340 = vpop.permute.xlu0 %2339
  %2341 = vrot.lane.b32.xlu0 %v1637, 98
  %v2342 = vpop.permute.xlu0 %2341
  %2343 = vrot.lane.b32.xlu0 %v1639, 98
  %v2344 = vpop.permute.xlu0 %2343
  %2348 = vrot.lane.b32.xlu0 %v1635, 96
  %v2349 = vpop.permute.xlu0 %2348
  %2350 = vrot.lane.b32.xlu0 %v1637, 96
  %v2351 = vpop.permute.xlu0 %2350
  %2352 = vrot.lane.b32.xlu0 %v1639, 96
  %v2353 = vpop.permute.xlu0 %2352
  %2357 = vrot.lane.b32.xlu0 %v1635, 94
  %v2358 = vpop.permute.xlu0 %2357
  %2359 = vrot.lane.b32.xlu0 %v1637, 94
  %v2360 = vpop.permute.xlu0 %2359
  %2361 = vrot.lane.b32.xlu0 %v1639, 94
  %v2362 = vpop.permute.xlu0 %2361
  %2366 = vrot.lane.b32.xlu0 %v1635, 92
  %v2367 = vpop.permute.xlu0 %2366
  %2368 = vrot.lane.b32.xlu0 %v1637, 92
  %v2369 = vpop.permute.xlu0 %2368
  %2370 = vrot.lane.b32.xlu0 %v1639, 92
  %v2371 = vpop.permute.xlu0 %2370
  %2375 = vrot.lane.b32.xlu0 %v1635, 90
  %v2376 = vpop.permute.xlu0 %2375
  %2377 = vrot.lane.b32.xlu0 %v1637, 90
  %v2378 = vpop.permute.xlu0 %2377
  %2379 = vrot.lane.b32.xlu0 %v1639, 90
  %v2380 = vpop.permute.xlu0 %2379
  %2384 = vrot.lane.b32.xlu0 %v1635, 88
  %v2385 = vpop.permute.xlu0 %2384
  %2386 = vrot.lane.b32.xlu0 %v1637, 88
  %v2387 = vpop.permute.xlu0 %2386
  %2388 = vrot.lane.b32.xlu0 %v1639, 88
  %v2389 = vpop.permute.xlu0 %2388
  %2393 = vrot.lane.b32.xlu0 %v1635, 86
  %v2394 = vpop.permute.xlu0 %2393
  %2395 = vrot.lane.b32.xlu0 %v1637, 86
  %v2396 = vpop.permute.xlu0 %2395
  %2397 = vrot.lane.b32.xlu0 %v1639, 86
  %v2398 = vpop.permute.xlu0 %2397
  %2402 = vrot.lane.b32.xlu0 %v1635, 84
  %v2403 = vpop.permute.xlu0 %2402
  %2404 = vrot.lane.b32.xlu0 %v1637, 84
  %v2405 = vpop.permute.xlu0 %2404
  %2406 = vrot.lane.b32.xlu0 %v1639, 84
  %v2407 = vpop.permute.xlu0 %2406
  %2411 = vrot.lane.b32.xlu0 %v1635, 82
  %v2412 = vpop.permute.xlu0 %2411
  %2413 = vrot.lane.b32.xlu0 %v1637, 82
  %v2414 = vpop.permute.xlu0 %2413
  %2415 = vrot.lane.b32.xlu0 %v1639, 82
  %v2416 = vpop.permute.xlu0 %2415
  %2420 = vrot.lane.b32.xlu0 %v1635, 80
  %v2421 = vpop.permute.xlu0 %2420
  %2422 = vrot.lane.b32.xlu0 %v1637, 80
  %v2423 = vpop.permute.xlu0 %2422
  %2424 = vrot.lane.b32.xlu0 %v1639, 80
  %v2425 = vpop.permute.xlu0 %2424
  %2429 = vrot.lane.b32.xlu0 %v1635, 78
  %v2430 = vpop.permute.xlu0 %2429
  %2431 = vrot.lane.b32.xlu0 %v1637, 78
  %v2432 = vpop.permute.xlu0 %2431
  %2433 = vrot.lane.b32.xlu0 %v1639, 78
  %v2434 = vpop.permute.xlu0 %2433
  %2438 = vrot.lane.b32.xlu0 %v1635, 76
  %v2439 = vpop.permute.xlu0 %2438
  %2440 = vrot.lane.b32.xlu0 %v1637, 76
  %v2441 = vpop.permute.xlu0 %2440
  %2442 = vrot.lane.b32.xlu0 %v1639, 76
  %v2443 = vpop.permute.xlu0 %2442
  %2447 = vrot.lane.b32.xlu0 %v1635, 74
  %v2448 = vpop.permute.xlu0 %2447
  %2449 = vrot.lane.b32.xlu0 %v1637, 74
  %v2450 = vpop.permute.xlu0 %2449
  %2451 = vrot.lane.b32.xlu0 %v1639, 74
  %v2452 = vpop.permute.xlu0 %2451
  %2456 = vrot.lane.b32.xlu0 %v1635, 72
  %v2457 = vpop.permute.xlu0 %2456
  %2458 = vrot.lane.b32.xlu0 %v1637, 72
  %v2459 = vpop.permute.xlu0 %2458
  %2460 = vrot.lane.b32.xlu0 %v1639, 72
  %v2461 = vpop.permute.xlu0 %2460
  %2465 = vrot.lane.b32.xlu0 %v1635, 70
  %v2466 = vpop.permute.xlu0 %2465
  %2467 = vrot.lane.b32.xlu0 %v1637, 70
  %v2468 = vpop.permute.xlu0 %2467
  %2469 = vrot.lane.b32.xlu0 %v1639, 70
  %v2470 = vpop.permute.xlu0 %2469
  %2474 = vrot.lane.b32.xlu0 %v1635, 68
  %v2475 = vpop.permute.xlu0 %2474
  %2476 = vrot.lane.b32.xlu0 %v1637, 68
  %v2477 = vpop.permute.xlu0 %2476
  %2478 = vrot.lane.b32.xlu0 %v1639, 68
  %v2479 = vpop.permute.xlu0 %2478
  %2483 = vrot.lane.b32.xlu0 %v1635, 66
  %v2484 = vpop.permute.xlu0 %2483
  %2485 = vrot.lane.b32.xlu0 %v1637, 66
  %v2486 = vpop.permute.xlu0 %2485
  %2487 = vrot.lane.b32.xlu0 %v1639, 66
  %v2488 = vpop.permute.xlu0 %2487
  %2492 = vrot.lane.b32.xlu0 %v1635, 64
  %v2493 = vpop.permute.xlu0 %2492
  %2494 = vrot.lane.b32.xlu0 %v1637, 64
  %v2495 = vpop.permute.xlu0 %2494
  %2496 = vrot.lane.b32.xlu0 %v1639, 64
  %v2497 = vpop.permute.xlu0 %2496
  %2501 = vrot.lane.b32.xlu0 %v1635, 62
  %v2502 = vpop.permute.xlu0 %2501
  %2503 = vrot.lane.b32.xlu0 %v1637, 62
  %v2504 = vpop.permute.xlu0 %2503
  %2505 = vrot.lane.b32.xlu0 %v1639, 62
  %v2506 = vpop.permute.xlu0 %2505
  %2510 = vrot.lane.b32.xlu0 %v1635, 60
  %v2511 = vpop.permute.xlu0 %2510
  %2512 = vrot.lane.b32.xlu0 %v1637, 60
  %v2513 = vpop.permute.xlu0 %2512
  %2514 = vrot.lane.b32.xlu0 %v1639, 60
  %v2515 = vpop.permute.xlu0 %2514
  %2519 = vrot.lane.b32.xlu0 %v1635, 58
  %v2520 = vpop.permute.xlu0 %2519
  %2521 = vrot.lane.b32.xlu0 %v1637, 58
  %v2522 = vpop.permute.xlu0 %2521
  %2523 = vrot.lane.b32.xlu0 %v1639, 58
  %v2524 = vpop.permute.xlu0 %2523
  %2528 = vrot.lane.b32.xlu0 %v1635, 56
  %v2529 = vpop.permute.xlu0 %2528
  %2530 = vrot.lane.b32.xlu0 %v1637, 56
  %v2531 = vpop.permute.xlu0 %2530
  %2532 = vrot.lane.b32.xlu0 %v1639, 56
  %v2533 = vpop.permute.xlu0 %2532
  %2537 = vrot.lane.b32.xlu0 %v1635, 54
  %v2538 = vpop.permute.xlu0 %2537
  %2539 = vrot.lane.b32.xlu0 %v1637, 54
  %v2540 = vpop.permute.xlu0 %2539
  %2541 = vrot.lane.b32.xlu0 %v1639, 54
  %v2542 = vpop.permute.xlu0 %2541
  %2546 = vrot.lane.b32.xlu0 %v1635, 52
  %v2547 = vpop.permute.xlu0 %2546
  %2548 = vrot.lane.b32.xlu0 %v1637, 52
  %v2549 = vpop.permute.xlu0 %2548
  %2550 = vrot.lane.b32.xlu0 %v1639, 52
  %v2551 = vpop.permute.xlu0 %2550
  %2555 = vrot.lane.b32.xlu0 %v1635, 50
  %v2556 = vpop.permute.xlu0 %2555
  %2557 = vrot.lane.b32.xlu0 %v1637, 50
  %v2558 = vpop.permute.xlu0 %2557
  %2559 = vrot.lane.b32.xlu0 %v1639, 50
  %v2560 = vpop.permute.xlu0 %2559
  %2564 = vrot.lane.b32.xlu0 %v1635, 48
  %v2565 = vpop.permute.xlu0 %2564
  %2566 = vrot.lane.b32.xlu0 %v1637, 48
  %v2567 = vpop.permute.xlu0 %2566
  %2568 = vrot.lane.b32.xlu0 %v1639, 48
  %v2569 = vpop.permute.xlu0 %2568
  %2573 = vrot.lane.b32.xlu0 %v1635, 46
  %v2574 = vpop.permute.xlu0 %2573
  %2575 = vrot.lane.b32.xlu0 %v1637, 46
  %v2576 = vpop.permute.xlu0 %2575
  %2577 = vrot.lane.b32.xlu0 %v1639, 46
  %v2578 = vpop.permute.xlu0 %2577
  %2582 = vrot.lane.b32.xlu0 %v1635, 44
  %v2583 = vpop.permute.xlu0 %2582
  %2584 = vrot.lane.b32.xlu0 %v1637, 44
  %v2585 = vpop.permute.xlu0 %2584
  %2586 = vrot.lane.b32.xlu0 %v1639, 44
  %v2587 = vpop.permute.xlu0 %2586
  %2591 = vrot.lane.b32.xlu0 %v1635, 42
  %v2592 = vpop.permute.xlu0 %2591
  %2593 = vrot.lane.b32.xlu0 %v1637, 42
  %v2594 = vpop.permute.xlu0 %2593
  %2595 = vrot.lane.b32.xlu0 %v1639, 42
  %v2596 = vpop.permute.xlu0 %2595
  %2600 = vrot.lane.b32.xlu0 %v1635, 40
  %v2601 = vpop.permute.xlu0 %2600
  %2602 = vrot.lane.b32.xlu0 %v1637, 40
  %v2603 = vpop.permute.xlu0 %2602
  %2604 = vrot.lane.b32.xlu0 %v1639, 40
  %v2605 = vpop.permute.xlu0 %2604
  %2609 = vrot.lane.b32.xlu0 %v1635, 38
  %v2610 = vpop.permute.xlu0 %2609
  %2611 = vrot.lane.b32.xlu0 %v1637, 38
  %v2612 = vpop.permute.xlu0 %2611
  %2613 = vrot.lane.b32.xlu0 %v1639, 38
  %v2614 = vpop.permute.xlu0 %2613
  %2618 = vrot.lane.b32.xlu0 %v1635, 36
  %v2619 = vpop.permute.xlu0 %2618
  %2620 = vrot.lane.b32.xlu0 %v1637, 36
  %v2621 = vpop.permute.xlu0 %2620
  %2622 = vrot.lane.b32.xlu0 %v1639, 36
  %v2623 = vpop.permute.xlu0 %2622
  %2627 = vrot.lane.b32.xlu0 %v1635, 34
  %v2628 = vpop.permute.xlu0 %2627
  %2629 = vrot.lane.b32.xlu0 %v1637, 34
  %v2630 = vpop.permute.xlu0 %2629
  %2631 = vrot.lane.b32.xlu0 %v1639, 34
  %v2632 = vpop.permute.xlu0 %2631
  %2636 = vrot.lane.b32.xlu0 %v1635, 32
  %v2637 = vpop.permute.xlu0 %2636
  %2638 = vrot.lane.b32.xlu0 %v1637, 32
  %v2639 = vpop.permute.xlu0 %2638
  %2640 = vrot.lane.b32.xlu0 %v1639, 32
  %v2641 = vpop.permute.xlu0 %2640
  %2645 = vrot.lane.b32.xlu0 %v1635, 30
  %v2646 = vpop.permute.xlu0 %2645
  %2647 = vrot.lane.b32.xlu0 %v1637, 30
  %v2648 = vpop.permute.xlu0 %2647
  %2649 = vrot.lane.b32.xlu0 %v1639, 30
  %v2650 = vpop.permute.xlu0 %2649
  %2654 = vrot.lane.b32.xlu0 %v1635, 28
  %v2655 = vpop.permute.xlu0 %2654
  %2656 = vrot.lane.b32.xlu0 %v1637, 28
  %v2657 = vpop.permute.xlu0 %2656
  %2658 = vrot.lane.b32.xlu0 %v1639, 28
  %v2659 = vpop.permute.xlu0 %2658
  %2663 = vrot.lane.b32.xlu0 %v1635, 26
  %v2664 = vpop.permute.xlu0 %2663
  %2665 = vrot.lane.b32.xlu0 %v1637, 26
  %v2666 = vpop.permute.xlu0 %2665
  %2667 = vrot.lane.b32.xlu0 %v1639, 26
  %v2668 = vpop.permute.xlu0 %2667
  %2672 = vrot.lane.b32.xlu0 %v1635, 24
  %v2673 = vpop.permute.xlu0 %2672
  %2674 = vrot.lane.b32.xlu0 %v1637, 24
  %v2675 = vpop.permute.xlu0 %2674
  %2676 = vrot.lane.b32.xlu0 %v1639, 24
  %v2677 = vpop.permute.xlu0 %2676
  %2681 = vrot.lane.b32.xlu0 %v1635, 22
  %v2682 = vpop.permute.xlu0 %2681
  %2683 = vrot.lane.b32.xlu0 %v1637, 22
  %v2684 = vpop.permute.xlu0 %2683
  %2685 = vrot.lane.b32.xlu0 %v1639, 22
  %v2686 = vpop.permute.xlu0 %2685
  %2690 = vrot.lane.b32.xlu0 %v1635, 20
  %v2691 = vpop.permute.xlu0 %2690
  %2692 = vrot.lane.b32.xlu0 %v1637, 20
  %v2693 = vpop.permute.xlu0 %2692
  %2694 = vrot.lane.b32.xlu0 %v1639, 20
  %v2695 = vpop.permute.xlu0 %2694
  %2699 = vrot.lane.b32.xlu0 %v1635, 18
  %v2700 = vpop.permute.xlu0 %2699
  %2701 = vrot.lane.b32.xlu0 %v1637, 18
  %v2702 = vpop.permute.xlu0 %2701
  %2703 = vrot.lane.b32.xlu0 %v1639, 18
  %v2704 = vpop.permute.xlu0 %2703
  %2708 = vrot.lane.b32.xlu0 %v1635, 16
  %v2709 = vpop.permute.xlu0 %2708
  %2710 = vrot.lane.b32.xlu0 %v1637, 16
  %v2711 = vpop.permute.xlu0 %2710
  %2712 = vrot.lane.b32.xlu0 %v1639, 16
  %v2713 = vpop.permute.xlu0 %2712
  %2717 = vrot.lane.b32.xlu0 %v1635, 14
  %v2718 = vpop.permute.xlu0 %2717
  %2719 = vrot.lane.b32.xlu0 %v1637, 14
  %v2720 = vpop.permute.xlu0 %2719
  %2721 = vrot.lane.b32.xlu0 %v1639, 14
  %v2722 = vpop.permute.xlu0 %2721
  %2726 = vrot.lane.b32.xlu0 %v1635, 12
  %v2727 = vpop.permute.xlu0 %2726
  %2728 = vrot.lane.b32.xlu0 %v1637, 12
  %v2729 = vpop.permute.xlu0 %2728
  %2730 = vrot.lane.b32.xlu0 %v1639, 12
  %v2731 = vpop.permute.xlu0 %2730
  %2735 = vrot.lane.b32.xlu0 %v1635, 10
  %v2736 = vpop.permute.xlu0 %2735
  %2737 = vrot.lane.b32.xlu0 %v1637, 10
  %v2738 = vpop.permute.xlu0 %2737
  %2739 = vrot.lane.b32.xlu0 %v1639, 10
  %v2740 = vpop.permute.xlu0 %2739
  %2744 = vrot.lane.b32.xlu0 %v1635, 8
  %v2745 = vpop.permute.xlu0 %2744
  %2746 = vrot.lane.b32.xlu0 %v1637, 8
  %v2747 = vpop.permute.xlu0 %2746
  %2748 = vrot.lane.b32.xlu0 %v1639, 8
  %v2749 = vpop.permute.xlu0 %2748
  %2753 = vrot.lane.b32.xlu0 %v1635, 6
  %v2754 = vpop.permute.xlu0 %2753
  %2755 = vrot.lane.b32.xlu0 %v1637, 6
  %v2756 = vpop.permute.xlu0 %2755
  %2757 = vrot.lane.b32.xlu0 %v1639, 6
  %v2758 = vpop.permute.xlu0 %2757
  %2762 = vrot.lane.b32.xlu0 %v1635, 4
  %v2763 = vpop.permute.xlu0 %2762
  %2764 = vrot.lane.b32.xlu0 %v1637, 4
  %v2765 = vpop.permute.xlu0 %2764
  %2766 = vrot.lane.b32.xlu0 %v1639, 4
  %v2767 = vpop.permute.xlu0 %2766
  %2771 = vrot.lane.b32.xlu0 %v1635, 2
  %v2772 = vpop.permute.xlu0 %2771
  %2773 = vrot.lane.b32.xlu0 %v1637, 2
  %v2774 = vpop.permute.xlu0 %2773
  %2775 = vrot.lane.b32.xlu0 %v1639, 2
  %v2776 = vpop.permute.xlu0 %2775
  %v2780 = vrot.slane %v1653, 4
  %vm2781 = vcmask 1047556
  %v2782 = vsel %vm2781, %v2780, %v1634
  %v2783 = vrot.slane %v1634, 4
  %v2784 = vsel %vm2781, %v1653, %v2783
  %v2786 = vunpack.c.l.s4 1983009808
  %v2787 = vunpack.c.0.s8 %v2786
  %v2788 = vperm.slane %v2782, %v2787
  %v2790 = vunpack.c.l.s4 1983009808
  %v2791 = vunpack.c.0.s8 %v2790
  %v2792 = vperm.slane %v2784, %v2791
  %v2793 = vrot.slane %v1662, 4
  %v2794 = vsel %vm2781, %v2793, %v1644
  %v2795 = vrot.slane %v1644, 4
  %v2796 = vsel %vm2781, %v1662, %v2795
  %v2798 = vunpack.c.l.s4 1983009808
  %v2799 = vunpack.c.0.s8 %v2798
  %v2800 = vperm.slane %v2794, %v2799
  %v2802 = vunpack.c.l.s4 1983009808
  %v2803 = vunpack.c.0.s8 %v2802
  %v2804 = vperm.slane %v2796, %v2803
  %v2805 = vrot.slane %v1689, 4
  %v2806 = vsel %vm2781, %v2805, %v1671
  %v2807 = vrot.slane %v1671, 4
  %v2808 = vsel %vm2781, %v1689, %v2807
  %v2810 = vunpack.c.l.s4 1983009808
  %v2811 = vunpack.c.0.s8 %v2810
  %v2812 = vperm.slane %v2806, %v2811
  %v2814 = vunpack.c.l.s4 1983009808
  %v2815 = vunpack.c.0.s8 %v2814
  %v2816 = vperm.slane %v2808, %v2815
  %v2817 = vrot.slane %v1698, 4
  %v2818 = vsel %vm2781, %v2817, %v1680
  %v2819 = vrot.slane %v1680, 4
  %v2820 = vsel %vm2781, %v1698, %v2819
  %v2822 = vunpack.c.l.s4 1983009808
  %v2823 = vunpack.c.0.s8 %v2822
  %v2824 = vperm.slane %v2818, %v2823
  %v2826 = vunpack.c.l.s4 1983009808
  %v2827 = vunpack.c.0.s8 %v2826
  %v2828 = vperm.slane %v2820, %v2827
  %v2829 = vrot.slane %v2800, 4
  %v2830 = vsel %vm2781, %v2829, %v2788
  %v2831 = vrot.slane %v2788, 4
  %v2832 = vsel %vm2781, %v2800, %v2831
  %v2834 = vunpack.c.l.s4 1934713408
  %v2835 = vunpack.c.0.s8 %v2834
  %v2836 = vperm.slane %v2830, %v2835
  %v2838 = vunpack.c.l.s4 1934713408
  %v2839 = vunpack.c.0.s8 %v2838
  %v2840 = vperm.slane %v2832, %v2839
  %v2841 = vrot.slane %v2804, 4
  %v2842 = vsel %vm2781, %v2841, %v2792
  %v2843 = vrot.slane %v2792, 4
  %v2844 = vsel %vm2781, %v2804, %v2843
  %v2846 = vunpack.c.l.s4 1934713408
  %v2847 = vunpack.c.0.s8 %v2846
  %v2848 = vperm.slane %v2842, %v2847
  %v2850 = vunpack.c.l.s4 1934713408
  %v2851 = vunpack.c.0.s8 %v2850
  %v2852 = vperm.slane %v2844, %v2851
  %v2853 = vrot.slane %v2824, 4
  %v2854 = vsel %vm2781, %v2853, %v2812
  %v2855 = vrot.slane %v2812, 4
  %v2856 = vsel %vm2781, %v2824, %v2855
  %v2858 = vunpack.c.l.s4 1934713408
  %v2859 = vunpack.c.0.s8 %v2858
  %v2860 = vperm.slane %v2854, %v2859
  %v2862 = vunpack.c.l.s4 1934713408
  %v2863 = vunpack.c.0.s8 %v2862
  %v2864 = vperm.slane %v2856, %v2863
  %v2865 = vrot.slane %v2828, 4
  %v2866 = vsel %vm2781, %v2865, %v2816
  %v2867 = vrot.slane %v2816, 4
  %v2868 = vsel %vm2781, %v2828, %v2867
  %v2870 = vunpack.c.l.s4 1934713408
  %v2871 = vunpack.c.0.s8 %v2870
  %v2872 = vperm.slane %v2866, %v2871
  %v2874 = vunpack.c.l.s4 1934713408
  %v2875 = vunpack.c.0.s8 %v2874
  %v2876 = vperm.slane %v2868, %v2875
  %v2877 = vrot.slane %v2860, 4
  %v2878 = vsel %vm2781, %v2877, %v2836
  %v2879 = vrot.slane %v2836, 4
  %v2880 = vsel %vm2781, %v2860, %v2879
  %v2881 = vrot.slane %v2864, 4
  %v2882 = vsel %vm2781, %v2881, %v2840
  %v2883 = vrot.slane %v2840, 4
  %v2884 = vsel %vm2781, %v2864, %v2883
  %v2885 = vrot.slane %v2872, 4
  %v2886 = vsel %vm2781, %v2885, %v2848
  %v2887 = vrot.slane %v2848, 4
  %v2888 = vsel %vm2781, %v2872, %v2887
  %v2889 = vrot.slane %v2876, 4
  %v2890 = vsel %vm2781, %v2889, %v2852
  %v2891 = vrot.slane %v2852, 4
  %v2892 = vsel %vm2781, %v2876, %v2891
  %v2893 = vrot.slane %v1725, 4
  %v2894 = vsel %vm2781, %v2893, %v1707
  %v2895 = vrot.slane %v1707, 4
  %v2896 = vsel %vm2781, %v1725, %v2895
  %v2898 = vunpack.c.l.s4 1983009808
  %v2899 = vunpack.c.0.s8 %v2898
  %v2900 = vperm.slane %v2894, %v2899
  %v2902 = vunpack.c.l.s4 1983009808
  %v2903 = vunpack.c.0.s8 %v2902
  %v2904 = vperm.slane %v2896, %v2903
  %v2905 = vrot.slane %v1734, 4
  %v2906 = vsel %vm2781, %v2905, %v1716
  %v2907 = vrot.slane %v1716, 4
  %v2908 = vsel %vm2781, %v1734, %v2907
  %v2910 = vunpack.c.l.s4 1983009808
  %v2911 = vunpack.c.0.s8 %v2910
  %v2912 = vperm.slane %v2906, %v2911
  %v2914 = vunpack.c.l.s4 1983009808
  %v2915 = vunpack.c.0.s8 %v2914
  %v2916 = vperm.slane %v2908, %v2915
  %v2917 = vrot.slane %v1761, 4
  %v2918 = vsel %vm2781, %v2917, %v1743
  %v2919 = vrot.slane %v1743, 4
  %v2920 = vsel %vm2781, %v1761, %v2919
  %v2922 = vunpack.c.l.s4 1983009808
  %v2923 = vunpack.c.0.s8 %v2922
  %v2924 = vperm.slane %v2918, %v2923
  %v2926 = vunpack.c.l.s4 1983009808
  %v2927 = vunpack.c.0.s8 %v2926
  %v2928 = vperm.slane %v2920, %v2927
  %v2929 = vrot.slane %v1770, 4
  %v2930 = vsel %vm2781, %v2929, %v1752
  %v2931 = vrot.slane %v1752, 4
  %v2932 = vsel %vm2781, %v1770, %v2931
  %v2934 = vunpack.c.l.s4 1983009808
  %v2935 = vunpack.c.0.s8 %v2934
  %v2936 = vperm.slane %v2930, %v2935
  %v2938 = vunpack.c.l.s4 1983009808
  %v2939 = vunpack.c.0.s8 %v2938
  %v2940 = vperm.slane %v2932, %v2939
  %v2941 = vrot.slane %v2912, 4
  %v2942 = vsel %vm2781, %v2941, %v2900
  %v2943 = vrot.slane %v2900, 4
  %v2944 = vsel %vm2781, %v2912, %v2943
  %v2946 = vunpack.c.l.s4 1934713408
  %v2947 = vunpack.c.0.s8 %v2946
  %v2948 = vperm.slane %v2942, %v2947
  %v2950 = vunpack.c.l.s4 1934713408
  %v2951 = vunpack.c.0.s8 %v2950
  %v2952 = vperm.slane %v2944, %v2951
  %v2953 = vrot.slane %v2916, 4
  %v2954 = vsel %vm2781, %v2953, %v2904
  %v2955 = vrot.slane %v2904, 4
  %v2956 = vsel %vm2781, %v2916, %v2955
  %v2958 = vunpack.c.l.s4 1934713408
  %v2959 = vunpack.c.0.s8 %v2958
  %v2960 = vperm.slane %v2954, %v2959
  %v2962 = vunpack.c.l.s4 1934713408
  %v2963 = vunpack.c.0.s8 %v2962
  %v2964 = vperm.slane %v2956, %v2963
  %v2965 = vrot.slane %v2936, 4
  %v2966 = vsel %vm2781, %v2965, %v2924
  %v2967 = vrot.slane %v2924, 4
  %v2968 = vsel %vm2781, %v2936, %v2967
  %v2970 = vunpack.c.l.s4 1934713408
  %v2971 = vunpack.c.0.s8 %v2970
  %v2972 = vperm.slane %v2966, %v2971
  %v2974 = vunpack.c.l.s4 1934713408
  %v2975 = vunpack.c.0.s8 %v2974
  %v2976 = vperm.slane %v2968, %v2975
  %v2977 = vrot.slane %v2940, 4
  %v2978 = vsel %vm2781, %v2977, %v2928
  %v2979 = vrot.slane %v2928, 4
  %v2980 = vsel %vm2781, %v2940, %v2979
  %v2982 = vunpack.c.l.s4 1934713408
  %v2983 = vunpack.c.0.s8 %v2982
  %v2984 = vperm.slane %v2978, %v2983
  %v2986 = vunpack.c.l.s4 1934713408
  %v2987 = vunpack.c.0.s8 %v2986
  %v2988 = vperm.slane %v2980, %v2987
  %v2989 = vrot.slane %v2972, 4
  %v2990 = vsel %vm2781, %v2989, %v2948
  %v2991 = vrot.slane %v2948, 4
  %v2992 = vsel %vm2781, %v2972, %v2991
  %v2993 = vrot.slane %v2976, 4
  %v2994 = vsel %vm2781, %v2993, %v2952
  %v2995 = vrot.slane %v2952, 4
  %v2996 = vsel %vm2781, %v2976, %v2995
  %v2997 = vrot.slane %v2984, 4
  %v2998 = vsel %vm2781, %v2997, %v2960
  %v2999 = vrot.slane %v2960, 4
  %v3000 = vsel %vm2781, %v2984, %v2999
  %v3001 = vrot.slane %v2988, 4
  %v3002 = vsel %vm2781, %v3001, %v2964
  %v3003 = vrot.slane %v2964, 4
  %v3004 = vsel %vm2781, %v2988, %v3003
  %v3005 = vrot.slane %v1797, 4
  %v3006 = vsel %vm2781, %v3005, %v1779
  %v3007 = vrot.slane %v1779, 4
  %v3008 = vsel %vm2781, %v1797, %v3007
  %v3010 = vunpack.c.l.s4 1983009808
  %v3011 = vunpack.c.0.s8 %v3010
  %v3012 = vperm.slane %v3006, %v3011
  %v3014 = vunpack.c.l.s4 1983009808
  %v3015 = vunpack.c.0.s8 %v3014
  %v3016 = vperm.slane %v3008, %v3015
  %v3017 = vrot.slane %v1806, 4
  %v3018 = vsel %vm2781, %v3017, %v1788
  %v3019 = vrot.slane %v1788, 4
  %v3020 = vsel %vm2781, %v1806, %v3019
  %v3022 = vunpack.c.l.s4 1983009808
  %v3023 = vunpack.c.0.s8 %v3022
  %v3024 = vperm.slane %v3018, %v3023
  %v3026 = vunpack.c.l.s4 1983009808
  %v3027 = vunpack.c.0.s8 %v3026
  %v3028 = vperm.slane %v3020, %v3027
  %v3029 = vrot.slane %v1833, 4
  %v3030 = vsel %vm2781, %v3029, %v1815
  %v3031 = vrot.slane %v1815, 4
  %v3032 = vsel %vm2781, %v1833, %v3031
  %v3034 = vunpack.c.l.s4 1983009808
  %v3035 = vunpack.c.0.s8 %v3034
  %v3036 = vperm.slane %v3030, %v3035
  %v3038 = vunpack.c.l.s4 1983009808
  %v3039 = vunpack.c.0.s8 %v3038
  %v3040 = vperm.slane %v3032, %v3039
  %v3041 = vrot.slane %v1842, 4
  %v3042 = vsel %vm2781, %v3041, %v1824
  %v3043 = vrot.slane %v1824, 4
  %v3044 = vsel %vm2781, %v1842, %v3043
  %v3046 = vunpack.c.l.s4 1983009808
  %v3047 = vunpack.c.0.s8 %v3046
  %v3048 = vperm.slane %v3042, %v3047
  %v3050 = vunpack.c.l.s4 1983009808
  %v3051 = vunpack.c.0.s8 %v3050
  %v3052 = vperm.slane %v3044, %v3051
  %v3053 = vrot.slane %v3024, 4
  %v3054 = vsel %vm2781, %v3053, %v3012
  %v3055 = vrot.slane %v3012, 4
  %v3056 = vsel %vm2781, %v3024, %v3055
  %v3058 = vunpack.c.l.s4 1934713408
  %v3059 = vunpack.c.0.s8 %v3058
  %v3060 = vperm.slane %v3054, %v3059
  %v3062 = vunpack.c.l.s4 1934713408
  %v3063 = vunpack.c.0.s8 %v3062
  %v3064 = vperm.slane %v3056, %v3063
  %v3065 = vrot.slane %v3028, 4
  %v3066 = vsel %vm2781, %v3065, %v3016
  %v3067 = vrot.slane %v3016, 4
  %v3068 = vsel %vm2781, %v3028, %v3067
  %v3070 = vunpack.c.l.s4 1934713408
  %v3071 = vunpack.c.0.s8 %v3070
  %v3072 = vperm.slane %v3066, %v3071
  %v3074 = vunpack.c.l.s4 1934713408
  %v3075 = vunpack.c.0.s8 %v3074
  %v3076 = vperm.slane %v3068, %v3075
  %v3077 = vrot.slane %v3048, 4
  %v3078 = vsel %vm2781, %v3077, %v3036
  %v3079 = vrot.slane %v3036, 4
  %v3080 = vsel %vm2781, %v3048, %v3079
  %v3082 = vunpack.c.l.s4 1934713408
  %v3083 = vunpack.c.0.s8 %v3082
  %v3084 = vperm.slane %v3078, %v3083
  %v3086 = vunpack.c.l.s4 1934713408
  %v3087 = vunpack.c.0.s8 %v3086
  %v3088 = vperm.slane %v3080, %v3087
  %v3089 = vrot.slane %v3052, 4
  %v3090 = vsel %vm2781, %v3089, %v3040
  %v3091 = vrot.slane %v3040, 4
  %v3092 = vsel %vm2781, %v3052, %v3091
  %v3094 = vunpack.c.l.s4 1934713408
  %v3095 = vunpack.c.0.s8 %v3094
  %v3096 = vperm.slane %v3090, %v3095
  %v3098 = vunpack.c.l.s4 1934713408
  %v3099 = vunpack.c.0.s8 %v3098
  %v3100 = vperm.slane %v3092, %v3099
  %v3101 = vrot.slane %v3084, 4
  %v3102 = vsel %vm2781, %v3101, %v3060
  %v3103 = vrot.slane %v3060, 4
  %v3104 = vsel %vm2781, %v3084, %v3103
  %v3105 = vrot.slane %v3088, 4
  %v3106 = vsel %vm2781, %v3105, %v3064
  %v3107 = vrot.slane %v3064, 4
  %v3108 = vsel %vm2781, %v3088, %v3107
  %v3109 = vrot.slane %v3096, 4
  %v3110 = vsel %vm2781, %v3109, %v3072
  %v3111 = vrot.slane %v3072, 4
  %v3112 = vsel %vm2781, %v3096, %v3111
  %v3113 = vrot.slane %v3100, 4
  %v3114 = vsel %vm2781, %v3113, %v3076
  %v3115 = vrot.slane %v3076, 4
  %v3116 = vsel %vm2781, %v3100, %v3115
  %v3117 = vrot.slane %v1869, 4
  %v3118 = vsel %vm2781, %v3117, %v1851
  %v3119 = vrot.slane %v1851, 4
  %v3120 = vsel %vm2781, %v1869, %v3119
  %v3122 = vunpack.c.l.s4 1983009808
  %v3123 = vunpack.c.0.s8 %v3122
  %v3124 = vperm.slane %v3118, %v3123
  %v3126 = vunpack.c.l.s4 1983009808
  %v3127 = vunpack.c.0.s8 %v3126
  %v3128 = vperm.slane %v3120, %v3127
  %v3129 = vrot.slane %v1878, 4
  %v3130 = vsel %vm2781, %v3129, %v1860
  %v3131 = vrot.slane %v1860, 4
  %v3132 = vsel %vm2781, %v1878, %v3131
  %v3134 = vunpack.c.l.s4 1983009808
  %v3135 = vunpack.c.0.s8 %v3134
  %v3136 = vperm.slane %v3130, %v3135
  %v3138 = vunpack.c.l.s4 1983009808
  %v3139 = vunpack.c.0.s8 %v3138
  %v3140 = vperm.slane %v3132, %v3139
  %v3141 = vrot.slane %v1905, 4
  %v3142 = vsel %vm2781, %v3141, %v1887
  %v3143 = vrot.slane %v1887, 4
  %v3144 = vsel %vm2781, %v1905, %v3143
  %v3146 = vunpack.c.l.s4 1983009808
  %v3147 = vunpack.c.0.s8 %v3146
  %v3148 = vperm.slane %v3142, %v3147
  %v3150 = vunpack.c.l.s4 1983009808
  %v3151 = vunpack.c.0.s8 %v3150
  %v3152 = vperm.slane %v3144, %v3151
  %v3153 = vrot.slane %v1914, 4
  %v3154 = vsel %vm2781, %v3153, %v1896
  %v3155 = vrot.slane %v1896, 4
  %v3156 = vsel %vm2781, %v1914, %v3155
  %v3158 = vunpack.c.l.s4 1983009808
  %v3159 = vunpack.c.0.s8 %v3158
  %v3160 = vperm.slane %v3154, %v3159
  %v3162 = vunpack.c.l.s4 1983009808
  %v3163 = vunpack.c.0.s8 %v3162
  %v3164 = vperm.slane %v3156, %v3163
  %v3165 = vrot.slane %v3136, 4
  %v3166 = vsel %vm2781, %v3165, %v3124
  %v3167 = vrot.slane %v3124, 4
  %v3168 = vsel %vm2781, %v3136, %v3167
  %v3170 = vunpack.c.l.s4 1934713408
  %v3171 = vunpack.c.0.s8 %v3170
  %v3172 = vperm.slane %v3166, %v3171
  %v3174 = vunpack.c.l.s4 1934713408
  %v3175 = vunpack.c.0.s8 %v3174
  %v3176 = vperm.slane %v3168, %v3175
  %v3177 = vrot.slane %v3140, 4
  %v3178 = vsel %vm2781, %v3177, %v3128
  %v3179 = vrot.slane %v3128, 4
  %v3180 = vsel %vm2781, %v3140, %v3179
  %v3182 = vunpack.c.l.s4 1934713408
  %v3183 = vunpack.c.0.s8 %v3182
  %v3184 = vperm.slane %v3178, %v3183
  %v3186 = vunpack.c.l.s4 1934713408
  %v3187 = vunpack.c.0.s8 %v3186
  %v3188 = vperm.slane %v3180, %v3187
  %v3189 = vrot.slane %v3160, 4
  %v3190 = vsel %vm2781, %v3189, %v3148
  %v3191 = vrot.slane %v3148, 4
  %v3192 = vsel %vm2781, %v3160, %v3191
  %v3194 = vunpack.c.l.s4 1934713408
  %v3195 = vunpack.c.0.s8 %v3194
  %v3196 = vperm.slane %v3190, %v3195
  %v3198 = vunpack.c.l.s4 1934713408
  %v3199 = vunpack.c.0.s8 %v3198
  %v3200 = vperm.slane %v3192, %v3199
  %v3201 = vrot.slane %v3164, 4
  %v3202 = vsel %vm2781, %v3201, %v3152
  %v3203 = vrot.slane %v3152, 4
  %v3204 = vsel %vm2781, %v3164, %v3203
  %v3206 = vunpack.c.l.s4 1934713408
  %v3207 = vunpack.c.0.s8 %v3206
  %v3208 = vperm.slane %v3202, %v3207
  %v3210 = vunpack.c.l.s4 1934713408
  %v3211 = vunpack.c.0.s8 %v3210
  %v3212 = vperm.slane %v3204, %v3211
  %v3213 = vrot.slane %v3196, 4
  %v3214 = vsel %vm2781, %v3213, %v3172
  %v3215 = vrot.slane %v3172, 4
  %v3216 = vsel %vm2781, %v3196, %v3215
  %v3217 = vrot.slane %v3200, 4
  %v3218 = vsel %vm2781, %v3217, %v3176
  %v3219 = vrot.slane %v3176, 4
  %v3220 = vsel %vm2781, %v3200, %v3219
  %v3221 = vrot.slane %v3208, 4
  %v3222 = vsel %vm2781, %v3221, %v3184
  %v3223 = vrot.slane %v3184, 4
  %v3224 = vsel %vm2781, %v3208, %v3223
  %v3225 = vrot.slane %v3212, 4
  %v3226 = vsel %vm2781, %v3225, %v3188
  %v3227 = vrot.slane %v3188, 4
  %v3228 = vsel %vm2781, %v3212, %v3227
  %v3229 = vrot.slane %v1941, 4
  %v3230 = vsel %vm2781, %v3229, %v1923
  %v3231 = vrot.slane %v1923, 4
  %v3232 = vsel %vm2781, %v1941, %v3231
  %v3234 = vunpack.c.l.s4 1983009808
  %v3235 = vunpack.c.0.s8 %v3234
  %v3236 = vperm.slane %v3230, %v3235
  %v3238 = vunpack.c.l.s4 1983009808
  %v3239 = vunpack.c.0.s8 %v3238
  %v3240 = vperm.slane %v3232, %v3239
  %v3241 = vrot.slane %v1950, 4
  %v3242 = vsel %vm2781, %v3241, %v1932
  %v3243 = vrot.slane %v1932, 4
  %v3244 = vsel %vm2781, %v1950, %v3243
  %v3246 = vunpack.c.l.s4 1983009808
  %v3247 = vunpack.c.0.s8 %v3246
  %v3248 = vperm.slane %v3242, %v3247
  %v3250 = vunpack.c.l.s4 1983009808
  %v3251 = vunpack.c.0.s8 %v3250
  %v3252 = vperm.slane %v3244, %v3251
  %v3253 = vrot.slane %v1977, 4
  %v3254 = vsel %vm2781, %v3253, %v1959
  %v3255 = vrot.slane %v1959, 4
  %v3256 = vsel %vm2781, %v1977, %v3255
  %v3258 = vunpack.c.l.s4 1983009808
  %v3259 = vunpack.c.0.s8 %v3258
  %v3260 = vperm.slane %v3254, %v3259
  %v3262 = vunpack.c.l.s4 1983009808
  %v3263 = vunpack.c.0.s8 %v3262
  %v3264 = vperm.slane %v3256, %v3263
  %v3265 = vrot.slane %v1986, 4
  %v3266 = vsel %vm2781, %v3265, %v1968
  %v3267 = vrot.slane %v1968, 4
  %v3268 = vsel %vm2781, %v1986, %v3267
  %v3270 = vunpack.c.l.s4 1983009808
  %v3271 = vunpack.c.0.s8 %v3270
  %v3272 = vperm.slane %v3266, %v3271
  %v3274 = vunpack.c.l.s4 1983009808
  %v3275 = vunpack.c.0.s8 %v3274
  %v3276 = vperm.slane %v3268, %v3275
  %v3277 = vrot.slane %v3248, 4
  %v3278 = vsel %vm2781, %v3277, %v3236
  %v3279 = vrot.slane %v3236, 4
  %v3280 = vsel %vm2781, %v3248, %v3279
  %v3282 = vunpack.c.l.s4 1934713408
  %v3283 = vunpack.c.0.s8 %v3282
  %v3284 = vperm.slane %v3278, %v3283
  %v3286 = vunpack.c.l.s4 1934713408
  %v3287 = vunpack.c.0.s8 %v3286
  %v3288 = vperm.slane %v3280, %v3287
  %v3289 = vrot.slane %v3252, 4
  %v3290 = vsel %vm2781, %v3289, %v3240
  %v3291 = vrot.slane %v3240, 4
  %v3292 = vsel %vm2781, %v3252, %v3291
  %v3294 = vunpack.c.l.s4 1934713408
  %v3295 = vunpack.c.0.s8 %v3294
  %v3296 = vperm.slane %v3290, %v3295
  %v3298 = vunpack.c.l.s4 1934713408
  %v3299 = vunpack.c.0.s8 %v3298
  %v3300 = vperm.slane %v3292, %v3299
  %v3301 = vrot.slane %v3272, 4
  %v3302 = vsel %vm2781, %v3301, %v3260
  %v3303 = vrot.slane %v3260, 4
  %v3304 = vsel %vm2781, %v3272, %v3303
  %v3306 = vunpack.c.l.s4 1934713408
  %v3307 = vunpack.c.0.s8 %v3306
  %v3308 = vperm.slane %v3302, %v3307
  %v3310 = vunpack.c.l.s4 1934713408
  %v3311 = vunpack.c.0.s8 %v3310
  %v3312 = vperm.slane %v3304, %v3311
  %v3313 = vrot.slane %v3276, 4
  %v3314 = vsel %vm2781, %v3313, %v3264
  %v3315 = vrot.slane %v3264, 4
  %v3316 = vsel %vm2781, %v3276, %v3315
  %v3318 = vunpack.c.l.s4 1934713408
  %v3319 = vunpack.c.0.s8 %v3318
  %v3320 = vperm.slane %v3314, %v3319
  %v3322 = vunpack.c.l.s4 1934713408
  %v3323 = vunpack.c.0.s8 %v3322
  %v3324 = vperm.slane %v3316, %v3323
  %v3325 = vrot.slane %v3308, 4
  %v3326 = vsel %vm2781, %v3325, %v3284
  %v3327 = vrot.slane %v3284, 4
  %v3328 = vsel %vm2781, %v3308, %v3327
  %v3329 = vrot.slane %v3312, 4
  %v3330 = vsel %vm2781, %v3329, %v3288
  %v3331 = vrot.slane %v3288, 4
  %v3332 = vsel %vm2781, %v3312, %v3331
  %v3333 = vrot.slane %v3320, 4
  %v3334 = vsel %vm2781, %v3333, %v3296
  %v3335 = vrot.slane %v3296, 4
  %v3336 = vsel %vm2781, %v3320, %v3335
  %v3337 = vrot.slane %v3324, 4
  %v3338 = vsel %vm2781, %v3337, %v3300
  %v3339 = vrot.slane %v3300, 4
  %v3340 = vsel %vm2781, %v3324, %v3339
  %v3341 = vrot.slane %v2013, 4
  %v3342 = vsel %vm2781, %v3341, %v1995
  %v3343 = vrot.slane %v1995, 4
  %v3344 = vsel %vm2781, %v2013, %v3343
  %v3346 = vunpack.c.l.s4 1983009808
  %v3347 = vunpack.c.0.s8 %v3346
  %v3348 = vperm.slane %v3342, %v3347
  %v3350 = vunpack.c.l.s4 1983009808
  %v3351 = vunpack.c.0.s8 %v3350
  %v3352 = vperm.slane %v3344, %v3351
  %v3353 = vrot.slane %v2022, 4
  %v3354 = vsel %vm2781, %v3353, %v2004
  %v3355 = vrot.slane %v2004, 4
  %v3356 = vsel %vm2781, %v2022, %v3355
  %v3358 = vunpack.c.l.s4 1983009808
  %v3359 = vunpack.c.0.s8 %v3358
  %v3360 = vperm.slane %v3354, %v3359
  %v3362 = vunpack.c.l.s4 1983009808
  %v3363 = vunpack.c.0.s8 %v3362
  %v3364 = vperm.slane %v3356, %v3363
  %v3365 = vrot.slane %v2049, 4
  %v3366 = vsel %vm2781, %v3365, %v2031
  %v3367 = vrot.slane %v2031, 4
  %v3368 = vsel %vm2781, %v2049, %v3367
  %v3370 = vunpack.c.l.s4 1983009808
  %v3371 = vunpack.c.0.s8 %v3370
  %v3372 = vperm.slane %v3366, %v3371
  %v3374 = vunpack.c.l.s4 1983009808
  %v3375 = vunpack.c.0.s8 %v3374
  %v3376 = vperm.slane %v3368, %v3375
  %v3377 = vrot.slane %v2058, 4
  %v3378 = vsel %vm2781, %v3377, %v2040
  %v3379 = vrot.slane %v2040, 4
  %v3380 = vsel %vm2781, %v2058, %v3379
  %v3382 = vunpack.c.l.s4 1983009808
  %v3383 = vunpack.c.0.s8 %v3382
  %v3384 = vperm.slane %v3378, %v3383
  %v3386 = vunpack.c.l.s4 1983009808
  %v3387 = vunpack.c.0.s8 %v3386
  %v3388 = vperm.slane %v3380, %v3387
  %v3389 = vrot.slane %v3360, 4
  %v3390 = vsel %vm2781, %v3389, %v3348
  %v3391 = vrot.slane %v3348, 4
  %v3392 = vsel %vm2781, %v3360, %v3391
  %v3394 = vunpack.c.l.s4 1934713408
  %v3395 = vunpack.c.0.s8 %v3394
  %v3396 = vperm.slane %v3390, %v3395
  %v3398 = vunpack.c.l.s4 1934713408
  %v3399 = vunpack.c.0.s8 %v3398
  %v3400 = vperm.slane %v3392, %v3399
  %v3401 = vrot.slane %v3364, 4
  %v3402 = vsel %vm2781, %v3401, %v3352
  %v3403 = vrot.slane %v3352, 4
  %v3404 = vsel %vm2781, %v3364, %v3403
  %v3406 = vunpack.c.l.s4 1934713408
  %v3407 = vunpack.c.0.s8 %v3406
  %v3408 = vperm.slane %v3402, %v3407
  %v3410 = vunpack.c.l.s4 1934713408
  %v3411 = vunpack.c.0.s8 %v3410
  %v3412 = vperm.slane %v3404, %v3411
  %v3413 = vrot.slane %v3384, 4
  %v3414 = vsel %vm2781, %v3413, %v3372
  %v3415 = vrot.slane %v3372, 4
  %v3416 = vsel %vm2781, %v3384, %v3415
  %v3418 = vunpack.c.l.s4 1934713408
  %v3419 = vunpack.c.0.s8 %v3418
  %v3420 = vperm.slane %v3414, %v3419
  %v3422 = vunpack.c.l.s4 1934713408
  %v3423 = vunpack.c.0.s8 %v3422
  %v3424 = vperm.slane %v3416, %v3423
  %v3425 = vrot.slane %v3388, 4
  %v3426 = vsel %vm2781, %v3425, %v3376
  %v3427 = vrot.slane %v3376, 4
  %v3428 = vsel %vm2781, %v3388, %v3427
  %v3430 = vunpack.c.l.s4 1934713408
  %v3431 = vunpack.c.0.s8 %v3430
  %v3432 = vperm.slane %v3426, %v3431
  %v3434 = vunpack.c.l.s4 1934713408
  %v3435 = vunpack.c.0.s8 %v3434
  %v3436 = vperm.slane %v3428, %v3435
  %v3437 = vrot.slane %v3420, 4
  %v3438 = vsel %vm2781, %v3437, %v3396
  %v3439 = vrot.slane %v3396, 4
  %v3440 = vsel %vm2781, %v3420, %v3439
  %v3441 = vrot.slane %v3424, 4
  %v3442 = vsel %vm2781, %v3441, %v3400
  %v3443 = vrot.slane %v3400, 4
  %v3444 = vsel %vm2781, %v3424, %v3443
  %v3445 = vrot.slane %v3432, 4
  %v3446 = vsel %vm2781, %v3445, %v3408
  %v3447 = vrot.slane %v3408, 4
  %v3448 = vsel %vm2781, %v3432, %v3447
  %v3449 = vrot.slane %v3436, 4
  %v3450 = vsel %vm2781, %v3449, %v3412
  %v3451 = vrot.slane %v3412, 4
  %v3452 = vsel %vm2781, %v3436, %v3451
  %v3453 = vrot.slane %v2085, 4
  %v3454 = vsel %vm2781, %v3453, %v2067
  %v3455 = vrot.slane %v2067, 4
  %v3456 = vsel %vm2781, %v2085, %v3455
  %v3458 = vunpack.c.l.s4 1983009808
  %v3459 = vunpack.c.0.s8 %v3458
  %v3460 = vperm.slane %v3454, %v3459
  %v3462 = vunpack.c.l.s4 1983009808
  %v3463 = vunpack.c.0.s8 %v3462
  %v3464 = vperm.slane %v3456, %v3463
  %v3465 = vrot.slane %v2094, 4
  %v3466 = vsel %vm2781, %v3465, %v2076
  %v3467 = vrot.slane %v2076, 4
  %v3468 = vsel %vm2781, %v2094, %v3467
  %v3470 = vunpack.c.l.s4 1983009808
  %v3471 = vunpack.c.0.s8 %v3470
  %v3472 = vperm.slane %v3466, %v3471
  %v3474 = vunpack.c.l.s4 1983009808
  %v3475 = vunpack.c.0.s8 %v3474
  %v3476 = vperm.slane %v3468, %v3475
  %v3477 = vrot.slane %v2121, 4
  %v3478 = vsel %vm2781, %v3477, %v2103
  %v3479 = vrot.slane %v2103, 4
  %v3480 = vsel %vm2781, %v2121, %v3479
  %v3482 = vunpack.c.l.s4 1983009808
  %v3483 = vunpack.c.0.s8 %v3482
  %v3484 = vperm.slane %v3478, %v3483
  %v3486 = vunpack.c.l.s4 1983009808
  %v3487 = vunpack.c.0.s8 %v3486
  %v3488 = vperm.slane %v3480, %v3487
  %v3489 = vrot.slane %v2130, 4
  %v3490 = vsel %vm2781, %v3489, %v2112
  %v3491 = vrot.slane %v2112, 4
  %v3492 = vsel %vm2781, %v2130, %v3491
  %v3494 = vunpack.c.l.s4 1983009808
  %v3495 = vunpack.c.0.s8 %v3494
  %v3496 = vperm.slane %v3490, %v3495
  %v3498 = vunpack.c.l.s4 1983009808
  %v3499 = vunpack.c.0.s8 %v3498
  %v3500 = vperm.slane %v3492, %v3499
  %v3501 = vrot.slane %v3472, 4
  %v3502 = vsel %vm2781, %v3501, %v3460
  %v3503 = vrot.slane %v3460, 4
  %v3504 = vsel %vm2781, %v3472, %v3503
  %v3506 = vunpack.c.l.s4 1934713408
  %v3507 = vunpack.c.0.s8 %v3506
  %v3508 = vperm.slane %v3502, %v3507
  %v3510 = vunpack.c.l.s4 1934713408
  %v3511 = vunpack.c.0.s8 %v3510
  %v3512 = vperm.slane %v3504, %v3511
  %v3513 = vrot.slane %v3476, 4
  %v3514 = vsel %vm2781, %v3513, %v3464
  %v3515 = vrot.slane %v3464, 4
  %v3516 = vsel %vm2781, %v3476, %v3515
  %v3518 = vunpack.c.l.s4 1934713408
  %v3519 = vunpack.c.0.s8 %v3518
  %v3520 = vperm.slane %v3514, %v3519
  %v3522 = vunpack.c.l.s4 1934713408
  %v3523 = vunpack.c.0.s8 %v3522
  %v3524 = vperm.slane %v3516, %v3523
  %v3525 = vrot.slane %v3496, 4
  %v3526 = vsel %vm2781, %v3525, %v3484
  %v3527 = vrot.slane %v3484, 4
  %v3528 = vsel %vm2781, %v3496, %v3527
  %v3530 = vunpack.c.l.s4 1934713408
  %v3531 = vunpack.c.0.s8 %v3530
  %v3532 = vperm.slane %v3526, %v3531
  %v3534 = vunpack.c.l.s4 1934713408
  %v3535 = vunpack.c.0.s8 %v3534
  %v3536 = vperm.slane %v3528, %v3535
  %v3537 = vrot.slane %v3500, 4
  %v3538 = vsel %vm2781, %v3537, %v3488
  %v3539 = vrot.slane %v3488, 4
  %v3540 = vsel %vm2781, %v3500, %v3539
  %v3542 = vunpack.c.l.s4 1934713408
  %v3543 = vunpack.c.0.s8 %v3542
  %v3544 = vperm.slane %v3538, %v3543
  %v3546 = vunpack.c.l.s4 1934713408
  %v3547 = vunpack.c.0.s8 %v3546
  %v3548 = vperm.slane %v3540, %v3547
  %v3549 = vrot.slane %v3532, 4
  %v3550 = vsel %vm2781, %v3549, %v3508
  %v3551 = vrot.slane %v3508, 4
  %v3552 = vsel %vm2781, %v3532, %v3551
  %v3553 = vrot.slane %v3536, 4
  %v3554 = vsel %vm2781, %v3553, %v3512
  %v3555 = vrot.slane %v3512, 4
  %v3556 = vsel %vm2781, %v3536, %v3555
  %v3557 = vrot.slane %v3544, 4
  %v3558 = vsel %vm2781, %v3557, %v3520
  %v3559 = vrot.slane %v3520, 4
  %v3560 = vsel %vm2781, %v3544, %v3559
  %v3561 = vrot.slane %v3548, 4
  %v3562 = vsel %vm2781, %v3561, %v3524
  %v3563 = vrot.slane %v3524, 4
  %v3564 = vsel %vm2781, %v3548, %v3563
  %v3565 = vrot.slane %v2157, 4
  %v3566 = vsel %vm2781, %v3565, %v2139
  %v3567 = vrot.slane %v2139, 4
  %v3568 = vsel %vm2781, %v2157, %v3567
  %v3570 = vunpack.c.l.s4 1983009808
  %v3571 = vunpack.c.0.s8 %v3570
  %v3572 = vperm.slane %v3566, %v3571
  %v3574 = vunpack.c.l.s4 1983009808
  %v3575 = vunpack.c.0.s8 %v3574
  %v3576 = vperm.slane %v3568, %v3575
  %v3577 = vrot.slane %v2166, 4
  %v3578 = vsel %vm2781, %v3577, %v2148
  %v3579 = vrot.slane %v2148, 4
  %v3580 = vsel %vm2781, %v2166, %v3579
  %v3582 = vunpack.c.l.s4 1983009808
  %v3583 = vunpack.c.0.s8 %v3582
  %v3584 = vperm.slane %v3578, %v3583
  %v3586 = vunpack.c.l.s4 1983009808
  %v3587 = vunpack.c.0.s8 %v3586
  %v3588 = vperm.slane %v3580, %v3587
  %v3589 = vrot.slane %v2193, 4
  %v3590 = vsel %vm2781, %v3589, %v2175
  %v3591 = vrot.slane %v2175, 4
  %v3592 = vsel %vm2781, %v2193, %v3591
  %v3594 = vunpack.c.l.s4 1983009808
  %v3595 = vunpack.c.0.s8 %v3594
  %v3596 = vperm.slane %v3590, %v3595
  %v3598 = vunpack.c.l.s4 1983009808
  %v3599 = vunpack.c.0.s8 %v3598
  %v3600 = vperm.slane %v3592, %v3599
  %v3601 = vrot.slane %v2202, 4
  %v3602 = vsel %vm2781, %v3601, %v2184
  %v3603 = vrot.slane %v2184, 4
  %v3604 = vsel %vm2781, %v2202, %v3603
  %v3606 = vunpack.c.l.s4 1983009808
  %v3607 = vunpack.c.0.s8 %v3606
  %v3608 = vperm.slane %v3602, %v3607
  %v3610 = vunpack.c.l.s4 1983009808
  %v3611 = vunpack.c.0.s8 %v3610
  %v3612 = vperm.slane %v3604, %v3611
  %v3613 = vrot.slane %v3584, 4
  %v3614 = vsel %vm2781, %v3613, %v3572
  %v3615 = vrot.slane %v3572, 4
  %v3616 = vsel %vm2781, %v3584, %v3615
  %v3618 = vunpack.c.l.s4 1934713408
  %v3619 = vunpack.c.0.s8 %v3618
  %v3620 = vperm.slane %v3614, %v3619
  %v3622 = vunpack.c.l.s4 1934713408
  %v3623 = vunpack.c.0.s8 %v3622
  %v3624 = vperm.slane %v3616, %v3623
  %v3625 = vrot.slane %v3588, 4
  %v3626 = vsel %vm2781, %v3625, %v3576
  %v3627 = vrot.slane %v3576, 4
  %v3628 = vsel %vm2781, %v3588, %v3627
  %v3630 = vunpack.c.l.s4 1934713408
  %v3631 = vunpack.c.0.s8 %v3630
  %v3632 = vperm.slane %v3626, %v3631
  %v3634 = vunpack.c.l.s4 1934713408
  %v3635 = vunpack.c.0.s8 %v3634
  %v3636 = vperm.slane %v3628, %v3635
  %v3637 = vrot.slane %v3608, 4
  %v3638 = vsel %vm2781, %v3637, %v3596
  %v3639 = vrot.slane %v3596, 4
  %v3640 = vsel %vm2781, %v3608, %v3639
  %v3642 = vunpack.c.l.s4 1934713408
  %v3643 = vunpack.c.0.s8 %v3642
  %v3644 = vperm.slane %v3638, %v3643
  %v3646 = vunpack.c.l.s4 1934713408
  %v3647 = vunpack.c.0.s8 %v3646
  %v3648 = vperm.slane %v3640, %v3647
  %v3649 = vrot.slane %v3612, 4
  %v3650 = vsel %vm2781, %v3649, %v3600
  %v3651 = vrot.slane %v3600, 4
  %v3652 = vsel %vm2781, %v3612, %v3651
  %v3654 = vunpack.c.l.s4 1934713408
  %v3655 = vunpack.c.0.s8 %v3654
  %v3656 = vperm.slane %v3650, %v3655
  %v3658 = vunpack.c.l.s4 1934713408
  %v3659 = vunpack.c.0.s8 %v3658
  %v3660 = vperm.slane %v3652, %v3659
  %v3661 = vrot.slane %v3644, 4
  %v3662 = vsel %vm2781, %v3661, %v3620
  %v3663 = vrot.slane %v3620, 4
  %v3664 = vsel %vm2781, %v3644, %v3663
  %v3665 = vrot.slane %v3648, 4
  %v3666 = vsel %vm2781, %v3665, %v3624
  %v3667 = vrot.slane %v3624, 4
  %v3668 = vsel %vm2781, %v3648, %v3667
  %v3669 = vrot.slane %v3656, 4
  %v3670 = vsel %vm2781, %v3669, %v3632
  %v3671 = vrot.slane %v3632, 4
  %v3672 = vsel %vm2781, %v3656, %v3671
  %v3673 = vrot.slane %v3660, 4
  %v3674 = vsel %vm2781, %v3673, %v3636
  %v3675 = vrot.slane %v3636, 4
  %v3676 = vsel %vm2781, %v3660, %v3675
  %v3677 = vrot.slane %v2223, 4
  %v3678 = vsel %vm2781, %v3677, %v1635
  %v3679 = vrot.slane %v1635, 4
  %v3680 = vsel %vm2781, %v2223, %v3679
  %v3682 = vunpack.c.l.s4 1983009808
  %v3683 = vunpack.c.0.s8 %v3682
  %v3684 = vperm.slane %v3678, %v3683
  %v3686 = vunpack.c.l.s4 1983009808
  %v3687 = vunpack.c.0.s8 %v3686
  %v3688 = vperm.slane %v3680, %v3687
  %v3689 = vrot.slane %v2232, 4
  %v3690 = vsel %vm2781, %v3689, %v2214
  %v3691 = vrot.slane %v2214, 4
  %v3692 = vsel %vm2781, %v2232, %v3691
  %v3694 = vunpack.c.l.s4 1983009808
  %v3695 = vunpack.c.0.s8 %v3694
  %v3696 = vperm.slane %v3690, %v3695
  %v3698 = vunpack.c.l.s4 1983009808
  %v3699 = vunpack.c.0.s8 %v3698
  %v3700 = vperm.slane %v3692, %v3699
  %v3701 = vrot.slane %v2259, 4
  %v3702 = vsel %vm2781, %v3701, %v2241
  %v3703 = vrot.slane %v2241, 4
  %v3704 = vsel %vm2781, %v2259, %v3703
  %v3706 = vunpack.c.l.s4 1983009808
  %v3707 = vunpack.c.0.s8 %v3706
  %v3708 = vperm.slane %v3702, %v3707
  %v3710 = vunpack.c.l.s4 1983009808
  %v3711 = vunpack.c.0.s8 %v3710
  %v3712 = vperm.slane %v3704, %v3711
  %v3713 = vrot.slane %v2268, 4
  %v3714 = vsel %vm2781, %v3713, %v2250
  %v3715 = vrot.slane %v2250, 4
  %v3716 = vsel %vm2781, %v2268, %v3715
  %v3718 = vunpack.c.l.s4 1983009808
  %v3719 = vunpack.c.0.s8 %v3718
  %v3720 = vperm.slane %v3714, %v3719
  %v3722 = vunpack.c.l.s4 1983009808
  %v3723 = vunpack.c.0.s8 %v3722
  %v3724 = vperm.slane %v3716, %v3723
  %v3725 = vrot.slane %v3696, 4
  %v3726 = vsel %vm2781, %v3725, %v3684
  %v3727 = vrot.slane %v3684, 4
  %v3728 = vsel %vm2781, %v3696, %v3727
  %v3730 = vunpack.c.l.s4 1934713408
  %v3731 = vunpack.c.0.s8 %v3730
  %v3732 = vperm.slane %v3726, %v3731
  %v3734 = vunpack.c.l.s4 1934713408
  %v3735 = vunpack.c.0.s8 %v3734
  %v3736 = vperm.slane %v3728, %v3735
  %v3737 = vrot.slane %v3700, 4
  %v3738 = vsel %vm2781, %v3737, %v3688
  %v3739 = vrot.slane %v3688, 4
  %v3740 = vsel %vm2781, %v3700, %v3739
  %v3742 = vunpack.c.l.s4 1934713408
  %v3743 = vunpack.c.0.s8 %v3742
  %v3744 = vperm.slane %v3738, %v3743
  %v3746 = vunpack.c.l.s4 1934713408
  %v3747 = vunpack.c.0.s8 %v3746
  %v3748 = vperm.slane %v3740, %v3747
  %v3749 = vrot.slane %v3720, 4
  %v3750 = vsel %vm2781, %v3749, %v3708
  %v3751 = vrot.slane %v3708, 4
  %v3752 = vsel %vm2781, %v3720, %v3751
  %v3754 = vunpack.c.l.s4 1934713408
  %v3755 = vunpack.c.0.s8 %v3754
  %v3756 = vperm.slane %v3750, %v3755
  %v3758 = vunpack.c.l.s4 1934713408
  %v3759 = vunpack.c.0.s8 %v3758
  %v3760 = vperm.slane %v3752, %v3759
  %v3761 = vrot.slane %v3724, 4
  %v3762 = vsel %vm2781, %v3761, %v3712
  %v3763 = vrot.slane %v3712, 4
  %v3764 = vsel %vm2781, %v3724, %v3763
  %v3766 = vunpack.c.l.s4 1934713408
  %v3767 = vunpack.c.0.s8 %v3766
  %v3768 = vperm.slane %v3762, %v3767
  %v3770 = vunpack.c.l.s4 1934713408
  %v3771 = vunpack.c.0.s8 %v3770
  %v3772 = vperm.slane %v3764, %v3771
  %v3773 = vrot.slane %v3756, 4
  %v3774 = vsel %vm2781, %v3773, %v3732
  %v3775 = vrot.slane %v3732, 4
  %v3776 = vsel %vm2781, %v3756, %v3775
  %v3777 = vrot.slane %v3760, 4
  %v3778 = vsel %vm2781, %v3777, %v3736
  %v3779 = vrot.slane %v3736, 4
  %v3780 = vsel %vm2781, %v3760, %v3779
  %v3781 = vrot.slane %v3768, 4
  %v3782 = vsel %vm2781, %v3781, %v3744
  %v3783 = vrot.slane %v3744, 4
  %v3784 = vsel %vm2781, %v3768, %v3783
  %v3785 = vrot.slane %v3772, 4
  %v3786 = vsel %vm2781, %v3785, %v3748
  %v3787 = vrot.slane %v3748, 4
  %v3788 = vsel %vm2781, %v3772, %v3787
  %v3789 = vrot.slane %v2295, 4
  %v3790 = vsel %vm2781, %v3789, %v2277
  %v3791 = vrot.slane %v2277, 4
  %v3792 = vsel %vm2781, %v2295, %v3791
  %v3794 = vunpack.c.l.s4 1983009808
  %v3795 = vunpack.c.0.s8 %v3794
  %v3796 = vperm.slane %v3790, %v3795
  %v3798 = vunpack.c.l.s4 1983009808
  %v3799 = vunpack.c.0.s8 %v3798
  %v3800 = vperm.slane %v3792, %v3799
  %v3801 = vrot.slane %v2304, 4
  %v3802 = vsel %vm2781, %v3801, %v2286
  %v3803 = vrot.slane %v2286, 4
  %v3804 = vsel %vm2781, %v2304, %v3803
  %v3806 = vunpack.c.l.s4 1983009808
  %v3807 = vunpack.c.0.s8 %v3806
  %v3808 = vperm.slane %v3802, %v3807
  %v3810 = vunpack.c.l.s4 1983009808
  %v3811 = vunpack.c.0.s8 %v3810
  %v3812 = vperm.slane %v3804, %v3811
  %v3813 = vrot.slane %v2331, 4
  %v3814 = vsel %vm2781, %v3813, %v2313
  %v3815 = vrot.slane %v2313, 4
  %v3816 = vsel %vm2781, %v2331, %v3815
  %v3818 = vunpack.c.l.s4 1983009808
  %v3819 = vunpack.c.0.s8 %v3818
  %v3820 = vperm.slane %v3814, %v3819
  %v3822 = vunpack.c.l.s4 1983009808
  %v3823 = vunpack.c.0.s8 %v3822
  %v3824 = vperm.slane %v3816, %v3823
  %v3825 = vrot.slane %v2340, 4
  %v3826 = vsel %vm2781, %v3825, %v2322
  %v3827 = vrot.slane %v2322, 4
  %v3828 = vsel %vm2781, %v2340, %v3827
  %v3830 = vunpack.c.l.s4 1983009808
  %v3831 = vunpack.c.0.s8 %v3830
  %v3832 = vperm.slane %v3826, %v3831
  %v3834 = vunpack.c.l.s4 1983009808
  %v3835 = vunpack.c.0.s8 %v3834
  %v3836 = vperm.slane %v3828, %v3835
  %v3837 = vrot.slane %v3808, 4
  %v3838 = vsel %vm2781, %v3837, %v3796
  %v3839 = vrot.slane %v3796, 4
  %v3840 = vsel %vm2781, %v3808, %v3839
  %v3842 = vunpack.c.l.s4 1934713408
  %v3843 = vunpack.c.0.s8 %v3842
  %v3844 = vperm.slane %v3838, %v3843
  %v3846 = vunpack.c.l.s4 1934713408
  %v3847 = vunpack.c.0.s8 %v3846
  %v3848 = vperm.slane %v3840, %v3847
  %v3849 = vrot.slane %v3812, 4
  %v3850 = vsel %vm2781, %v3849, %v3800
  %v3851 = vrot.slane %v3800, 4
  %v3852 = vsel %vm2781, %v3812, %v3851
  %v3854 = vunpack.c.l.s4 1934713408
  %v3855 = vunpack.c.0.s8 %v3854
  %v3856 = vperm.slane %v3850, %v3855
  %v3858 = vunpack.c.l.s4 1934713408
  %v3859 = vunpack.c.0.s8 %v3858
  %v3860 = vperm.slane %v3852, %v3859
  %v3861 = vrot.slane %v3832, 4
  %v3862 = vsel %vm2781, %v3861, %v3820
  %v3863 = vrot.slane %v3820, 4
  %v3864 = vsel %vm2781, %v3832, %v3863
  %v3866 = vunpack.c.l.s4 1934713408
  %v3867 = vunpack.c.0.s8 %v3866
  %v3868 = vperm.slane %v3862, %v3867
  %v3870 = vunpack.c.l.s4 1934713408
  %v3871 = vunpack.c.0.s8 %v3870
  %v3872 = vperm.slane %v3864, %v3871
  %v3873 = vrot.slane %v3836, 4
  %v3874 = vsel %vm2781, %v3873, %v3824
  %v3875 = vrot.slane %v3824, 4
  %v3876 = vsel %vm2781, %v3836, %v3875
  %v3878 = vunpack.c.l.s4 1934713408
  %v3879 = vunpack.c.0.s8 %v3878
  %v3880 = vperm.slane %v3874, %v3879
  %v3882 = vunpack.c.l.s4 1934713408
  %v3883 = vunpack.c.0.s8 %v3882
  %v3884 = vperm.slane %v3876, %v3883
  %v3885 = vrot.slane %v3868, 4
  %v3886 = vsel %vm2781, %v3885, %v3844
  %v3887 = vrot.slane %v3844, 4
  %v3888 = vsel %vm2781, %v3868, %v3887
  %v3889 = vrot.slane %v3872, 4
  %v3890 = vsel %vm2781, %v3889, %v3848
  %v3891 = vrot.slane %v3848, 4
  %v3892 = vsel %vm2781, %v3872, %v3891
  %v3893 = vrot.slane %v3880, 4
  %v3894 = vsel %vm2781, %v3893, %v3856
  %v3895 = vrot.slane %v3856, 4
  %v3896 = vsel %vm2781, %v3880, %v3895
  %v3897 = vrot.slane %v3884, 4
  %v3898 = vsel %vm2781, %v3897, %v3860
  %v3899 = vrot.slane %v3860, 4
  %v3900 = vsel %vm2781, %v3884, %v3899
  %v3901 = vrot.slane %v2367, 4
  %v3902 = vsel %vm2781, %v3901, %v2349
  %v3903 = vrot.slane %v2349, 4
  %v3904 = vsel %vm2781, %v2367, %v3903
  %v3906 = vunpack.c.l.s4 1983009808
  %v3907 = vunpack.c.0.s8 %v3906
  %v3908 = vperm.slane %v3902, %v3907
  %v3910 = vunpack.c.l.s4 1983009808
  %v3911 = vunpack.c.0.s8 %v3910
  %v3912 = vperm.slane %v3904, %v3911
  %v3913 = vrot.slane %v2376, 4
  %v3914 = vsel %vm2781, %v3913, %v2358
  %v3915 = vrot.slane %v2358, 4
  %v3916 = vsel %vm2781, %v2376, %v3915
  %v3918 = vunpack.c.l.s4 1983009808
  %v3919 = vunpack.c.0.s8 %v3918
  %v3920 = vperm.slane %v3914, %v3919
  %v3922 = vunpack.c.l.s4 1983009808
  %v3923 = vunpack.c.0.s8 %v3922
  %v3924 = vperm.slane %v3916, %v3923
  %v3925 = vrot.slane %v2403, 4
  %v3926 = vsel %vm2781, %v3925, %v2385
  %v3927 = vrot.slane %v2385, 4
  %v3928 = vsel %vm2781, %v2403, %v3927
  %v3930 = vunpack.c.l.s4 1983009808
  %v3931 = vunpack.c.0.s8 %v3930
  %v3932 = vperm.slane %v3926, %v3931
  %v3934 = vunpack.c.l.s4 1983009808
  %v3935 = vunpack.c.0.s8 %v3934
  %v3936 = vperm.slane %v3928, %v3935
  %v3937 = vrot.slane %v2412, 4
  %v3938 = vsel %vm2781, %v3937, %v2394
  %v3939 = vrot.slane %v2394, 4
  %v3940 = vsel %vm2781, %v2412, %v3939
  %v3942 = vunpack.c.l.s4 1983009808
  %v3943 = vunpack.c.0.s8 %v3942
  %v3944 = vperm.slane %v3938, %v3943
  %v3946 = vunpack.c.l.s4 1983009808
  %v3947 = vunpack.c.0.s8 %v3946
  %v3948 = vperm.slane %v3940, %v3947
  %v3949 = vrot.slane %v3920, 4
  %v3950 = vsel %vm2781, %v3949, %v3908
  %v3951 = vrot.slane %v3908, 4
  %v3952 = vsel %vm2781, %v3920, %v3951
  %v3954 = vunpack.c.l.s4 1934713408
  %v3955 = vunpack.c.0.s8 %v3954
  %v3956 = vperm.slane %v3950, %v3955
  %v3958 = vunpack.c.l.s4 1934713408
  %v3959 = vunpack.c.0.s8 %v3958
  %v3960 = vperm.slane %v3952, %v3959
  %v3961 = vrot.slane %v3924, 4
  %v3962 = vsel %vm2781, %v3961, %v3912
  %v3963 = vrot.slane %v3912, 4
  %v3964 = vsel %vm2781, %v3924, %v3963
  %v3966 = vunpack.c.l.s4 1934713408
  %v3967 = vunpack.c.0.s8 %v3966
  %v3968 = vperm.slane %v3962, %v3967
  %v3970 = vunpack.c.l.s4 1934713408
  %v3971 = vunpack.c.0.s8 %v3970
  %v3972 = vperm.slane %v3964, %v3971
  %v3973 = vrot.slane %v3944, 4
  %v3974 = vsel %vm2781, %v3973, %v3932
  %v3975 = vrot.slane %v3932, 4
  %v3976 = vsel %vm2781, %v3944, %v3975
  %v3978 = vunpack.c.l.s4 1934713408
  %v3979 = vunpack.c.0.s8 %v3978
  %v3980 = vperm.slane %v3974, %v3979
  %v3982 = vunpack.c.l.s4 1934713408
  %v3983 = vunpack.c.0.s8 %v3982
  %v3984 = vperm.slane %v3976, %v3983
  %v3985 = vrot.slane %v3948, 4
  %v3986 = vsel %vm2781, %v3985, %v3936
  %v3987 = vrot.slane %v3936, 4
  %v3988 = vsel %vm2781, %v3948, %v3987
  %v3990 = vunpack.c.l.s4 1934713408
  %v3991 = vunpack.c.0.s8 %v3990
  %v3992 = vperm.slane %v3986, %v3991
  %v3994 = vunpack.c.l.s4 1934713408
  %v3995 = vunpack.c.0.s8 %v3994
  %v3996 = vperm.slane %v3988, %v3995
  %v3997 = vrot.slane %v3980, 4
  %v3998 = vsel %vm2781, %v3997, %v3956
  %v3999 = vrot.slane %v3956, 4
  %v4000 = vsel %vm2781, %v3980, %v3999
  %v4001 = vrot.slane %v3984, 4
  %v4002 = vsel %vm2781, %v4001, %v3960
  %v4003 = vrot.slane %v3960, 4
  %v4004 = vsel %vm2781, %v3984, %v4003
  %v4005 = vrot.slane %v3992, 4
  %v4006 = vsel %vm2781, %v4005, %v3968
  %v4007 = vrot.slane %v3968, 4
  %v4008 = vsel %vm2781, %v3992, %v4007
  %v4009 = vrot.slane %v3996, 4
  %v4010 = vsel %vm2781, %v4009, %v3972
  %v4011 = vrot.slane %v3972, 4
  %v4012 = vsel %vm2781, %v3996, %v4011
  %v4013 = vrot.slane %v2439, 4
  %v4014 = vsel %vm2781, %v4013, %v2421
  %v4015 = vrot.slane %v2421, 4
  %v4016 = vsel %vm2781, %v2439, %v4015
  %v4018 = vunpack.c.l.s4 1983009808
  %v4019 = vunpack.c.0.s8 %v4018
  %v4020 = vperm.slane %v4014, %v4019
  %v4022 = vunpack.c.l.s4 1983009808
  %v4023 = vunpack.c.0.s8 %v4022
  %v4024 = vperm.slane %v4016, %v4023
  %v4025 = vrot.slane %v2448, 4
  %v4026 = vsel %vm2781, %v4025, %v2430
  %v4027 = vrot.slane %v2430, 4
  %v4028 = vsel %vm2781, %v2448, %v4027
  %v4030 = vunpack.c.l.s4 1983009808
  %v4031 = vunpack.c.0.s8 %v4030
  %v4032 = vperm.slane %v4026, %v4031
  %v4034 = vunpack.c.l.s4 1983009808
  %v4035 = vunpack.c.0.s8 %v4034
  %v4036 = vperm.slane %v4028, %v4035
  %v4037 = vrot.slane %v2475, 4
  %v4038 = vsel %vm2781, %v4037, %v2457
  %v4039 = vrot.slane %v2457, 4
  %v4040 = vsel %vm2781, %v2475, %v4039
  %v4042 = vunpack.c.l.s4 1983009808
  %v4043 = vunpack.c.0.s8 %v4042
  %v4044 = vperm.slane %v4038, %v4043
  %v4046 = vunpack.c.l.s4 1983009808
  %v4047 = vunpack.c.0.s8 %v4046
  %v4048 = vperm.slane %v4040, %v4047
  %v4049 = vrot.slane %v2484, 4
  %v4050 = vsel %vm2781, %v4049, %v2466
  %v4051 = vrot.slane %v2466, 4
  %v4052 = vsel %vm2781, %v2484, %v4051
  %v4054 = vunpack.c.l.s4 1983009808
  %v4055 = vunpack.c.0.s8 %v4054
  %v4056 = vperm.slane %v4050, %v4055
  %v4058 = vunpack.c.l.s4 1983009808
  %v4059 = vunpack.c.0.s8 %v4058
  %v4060 = vperm.slane %v4052, %v4059
  %v4061 = vrot.slane %v4032, 4
  %v4062 = vsel %vm2781, %v4061, %v4020
  %v4063 = vrot.slane %v4020, 4
  %v4064 = vsel %vm2781, %v4032, %v4063
  %v4066 = vunpack.c.l.s4 1934713408
  %v4067 = vunpack.c.0.s8 %v4066
  %v4068 = vperm.slane %v4062, %v4067
  %v4070 = vunpack.c.l.s4 1934713408
  %v4071 = vunpack.c.0.s8 %v4070
  %v4072 = vperm.slane %v4064, %v4071
  %v4073 = vrot.slane %v4036, 4
  %v4074 = vsel %vm2781, %v4073, %v4024
  %v4075 = vrot.slane %v4024, 4
  %v4076 = vsel %vm2781, %v4036, %v4075
  %v4078 = vunpack.c.l.s4 1934713408
  %v4079 = vunpack.c.0.s8 %v4078
  %v4080 = vperm.slane %v4074, %v4079
  %v4082 = vunpack.c.l.s4 1934713408
  %v4083 = vunpack.c.0.s8 %v4082
  %v4084 = vperm.slane %v4076, %v4083
  %v4085 = vrot.slane %v4056, 4
  %v4086 = vsel %vm2781, %v4085, %v4044
  %v4087 = vrot.slane %v4044, 4
  %v4088 = vsel %vm2781, %v4056, %v4087
  %v4090 = vunpack.c.l.s4 1934713408
  %v4091 = vunpack.c.0.s8 %v4090
  %v4092 = vperm.slane %v4086, %v4091
  %v4094 = vunpack.c.l.s4 1934713408
  %v4095 = vunpack.c.0.s8 %v4094
  %v4096 = vperm.slane %v4088, %v4095
  %v4097 = vrot.slane %v4060, 4
  %v4098 = vsel %vm2781, %v4097, %v4048
  %v4099 = vrot.slane %v4048, 4
  %v4100 = vsel %vm2781, %v4060, %v4099
  %v4102 = vunpack.c.l.s4 1934713408
  %v4103 = vunpack.c.0.s8 %v4102
  %v4104 = vperm.slane %v4098, %v4103
  %v4106 = vunpack.c.l.s4 1934713408
  %v4107 = vunpack.c.0.s8 %v4106
  %v4108 = vperm.slane %v4100, %v4107
  %v4109 = vrot.slane %v4092, 4
  %v4110 = vsel %vm2781, %v4109, %v4068
  %v4111 = vrot.slane %v4068, 4
  %v4112 = vsel %vm2781, %v4092, %v4111
  %v4113 = vrot.slane %v4096, 4
  %v4114 = vsel %vm2781, %v4113, %v4072
  %v4115 = vrot.slane %v4072, 4
  %v4116 = vsel %vm2781, %v4096, %v4115
  %v4117 = vrot.slane %v4104, 4
  %v4118 = vsel %vm2781, %v4117, %v4080
  %v4119 = vrot.slane %v4080, 4
  %v4120 = vsel %vm2781, %v4104, %v4119
  %v4121 = vrot.slane %v4108, 4
  %v4122 = vsel %vm2781, %v4121, %v4084
  %v4123 = vrot.slane %v4084, 4
  %v4124 = vsel %vm2781, %v4108, %v4123
  %v4125 = vrot.slane %v2511, 4
  %v4126 = vsel %vm2781, %v4125, %v2493
  %v4127 = vrot.slane %v2493, 4
  %v4128 = vsel %vm2781, %v2511, %v4127
  %v4130 = vunpack.c.l.s4 1983009808
  %v4131 = vunpack.c.0.s8 %v4130
  %v4132 = vperm.slane %v4126, %v4131
  %v4134 = vunpack.c.l.s4 1983009808
  %v4135 = vunpack.c.0.s8 %v4134
  %v4136 = vperm.slane %v4128, %v4135
  %v4137 = vrot.slane %v2520, 4
  %v4138 = vsel %vm2781, %v4137, %v2502
  %v4139 = vrot.slane %v2502, 4
  %v4140 = vsel %vm2781, %v2520, %v4139
  %v4142 = vunpack.c.l.s4 1983009808
  %v4143 = vunpack.c.0.s8 %v4142
  %v4144 = vperm.slane %v4138, %v4143
  %v4146 = vunpack.c.l.s4 1983009808
  %v4147 = vunpack.c.0.s8 %v4146
  %v4148 = vperm.slane %v4140, %v4147
  %v4149 = vrot.slane %v2547, 4
  %v4150 = vsel %vm2781, %v4149, %v2529
  %v4151 = vrot.slane %v2529, 4
  %v4152 = vsel %vm2781, %v2547, %v4151
  %v4154 = vunpack.c.l.s4 1983009808
  %v4155 = vunpack.c.0.s8 %v4154
  %v4156 = vperm.slane %v4150, %v4155
  %v4158 = vunpack.c.l.s4 1983009808
  %v4159 = vunpack.c.0.s8 %v4158
  %v4160 = vperm.slane %v4152, %v4159
  %v4161 = vrot.slane %v2556, 4
  %v4162 = vsel %vm2781, %v4161, %v2538
  %v4163 = vrot.slane %v2538, 4
  %v4164 = vsel %vm2781, %v2556, %v4163
  %v4166 = vunpack.c.l.s4 1983009808
  %v4167 = vunpack.c.0.s8 %v4166
  %v4168 = vperm.slane %v4162, %v4167
  %v4170 = vunpack.c.l.s4 1983009808
  %v4171 = vunpack.c.0.s8 %v4170
  %v4172 = vperm.slane %v4164, %v4171
  %v4173 = vrot.slane %v4144, 4
  %v4174 = vsel %vm2781, %v4173, %v4132
  %v4175 = vrot.slane %v4132, 4
  %v4176 = vsel %vm2781, %v4144, %v4175
  %v4178 = vunpack.c.l.s4 1934713408
  %v4179 = vunpack.c.0.s8 %v4178
  %v4180 = vperm.slane %v4174, %v4179
  %v4182 = vunpack.c.l.s4 1934713408
  %v4183 = vunpack.c.0.s8 %v4182
  %v4184 = vperm.slane %v4176, %v4183
  %v4185 = vrot.slane %v4148, 4
  %v4186 = vsel %vm2781, %v4185, %v4136
  %v4187 = vrot.slane %v4136, 4
  %v4188 = vsel %vm2781, %v4148, %v4187
  %v4190 = vunpack.c.l.s4 1934713408
  %v4191 = vunpack.c.0.s8 %v4190
  %v4192 = vperm.slane %v4186, %v4191
  %v4194 = vunpack.c.l.s4 1934713408
  %v4195 = vunpack.c.0.s8 %v4194
  %v4196 = vperm.slane %v4188, %v4195
  %v4197 = vrot.slane %v4168, 4
  %v4198 = vsel %vm2781, %v4197, %v4156
  %v4199 = vrot.slane %v4156, 4
  %v4200 = vsel %vm2781, %v4168, %v4199
  %v4202 = vunpack.c.l.s4 1934713408
  %v4203 = vunpack.c.0.s8 %v4202
  %v4204 = vperm.slane %v4198, %v4203
  %v4206 = vunpack.c.l.s4 1934713408
  %v4207 = vunpack.c.0.s8 %v4206
  %v4208 = vperm.slane %v4200, %v4207
  %v4209 = vrot.slane %v4172, 4
  %v4210 = vsel %vm2781, %v4209, %v4160
  %v4211 = vrot.slane %v4160, 4
  %v4212 = vsel %vm2781, %v4172, %v4211
  %v4214 = vunpack.c.l.s4 1934713408
  %v4215 = vunpack.c.0.s8 %v4214
  %v4216 = vperm.slane %v4210, %v4215
  %v4218 = vunpack.c.l.s4 1934713408
  %v4219 = vunpack.c.0.s8 %v4218
  %v4220 = vperm.slane %v4212, %v4219
  %v4221 = vrot.slane %v4204, 4
  %v4222 = vsel %vm2781, %v4221, %v4180
  %v4223 = vrot.slane %v4180, 4
  %v4224 = vsel %vm2781, %v4204, %v4223
  %v4225 = vrot.slane %v4208, 4
  %v4226 = vsel %vm2781, %v4225, %v4184
  %v4227 = vrot.slane %v4184, 4
  %v4228 = vsel %vm2781, %v4208, %v4227
  %v4229 = vrot.slane %v4216, 4
  %v4230 = vsel %vm2781, %v4229, %v4192
  %v4231 = vrot.slane %v4192, 4
  %v4232 = vsel %vm2781, %v4216, %v4231
  %v4233 = vrot.slane %v4220, 4
  %v4234 = vsel %vm2781, %v4233, %v4196
  %v4235 = vrot.slane %v4196, 4
  %v4236 = vsel %vm2781, %v4220, %v4235
  %v4237 = vrot.slane %v2583, 4
  %v4238 = vsel %vm2781, %v4237, %v2565
  %v4239 = vrot.slane %v2565, 4
  %v4240 = vsel %vm2781, %v2583, %v4239
  %v4242 = vunpack.c.l.s4 1983009808
  %v4243 = vunpack.c.0.s8 %v4242
  %v4244 = vperm.slane %v4238, %v4243
  %v4246 = vunpack.c.l.s4 1983009808
  %v4247 = vunpack.c.0.s8 %v4246
  %v4248 = vperm.slane %v4240, %v4247
  %v4249 = vrot.slane %v2592, 4
  %v4250 = vsel %vm2781, %v4249, %v2574
  %v4251 = vrot.slane %v2574, 4
  %v4252 = vsel %vm2781, %v2592, %v4251
  %v4254 = vunpack.c.l.s4 1983009808
  %v4255 = vunpack.c.0.s8 %v4254
  %v4256 = vperm.slane %v4250, %v4255
  %v4258 = vunpack.c.l.s4 1983009808
  %v4259 = vunpack.c.0.s8 %v4258
  %v4260 = vperm.slane %v4252, %v4259
  %v4261 = vrot.slane %v2619, 4
  %v4262 = vsel %vm2781, %v4261, %v2601
  %v4263 = vrot.slane %v2601, 4
  %v4264 = vsel %vm2781, %v2619, %v4263
  %v4266 = vunpack.c.l.s4 1983009808
  %v4267 = vunpack.c.0.s8 %v4266
  %v4268 = vperm.slane %v4262, %v4267
  %v4270 = vunpack.c.l.s4 1983009808
  %v4271 = vunpack.c.0.s8 %v4270
  %v4272 = vperm.slane %v4264, %v4271
  %v4273 = vrot.slane %v2628, 4
  %v4274 = vsel %vm2781, %v4273, %v2610
  %v4275 = vrot.slane %v2610, 4
  %v4276 = vsel %vm2781, %v2628, %v4275
  %v4278 = vunpack.c.l.s4 1983009808
  %v4279 = vunpack.c.0.s8 %v4278
  %v4280 = vperm.slane %v4274, %v4279
  %v4282 = vunpack.c.l.s4 1983009808
  %v4283 = vunpack.c.0.s8 %v4282
  %v4284 = vperm.slane %v4276, %v4283
  %v4285 = vrot.slane %v4256, 4
  %v4286 = vsel %vm2781, %v4285, %v4244
  %v4287 = vrot.slane %v4244, 4
  %v4288 = vsel %vm2781, %v4256, %v4287
  %v4290 = vunpack.c.l.s4 1934713408
  %v4291 = vunpack.c.0.s8 %v4290
  %v4292 = vperm.slane %v4286, %v4291
  %v4294 = vunpack.c.l.s4 1934713408
  %v4295 = vunpack.c.0.s8 %v4294
  %v4296 = vperm.slane %v4288, %v4295
  %v4297 = vrot.slane %v4260, 4
  %v4298 = vsel %vm2781, %v4297, %v4248
  %v4299 = vrot.slane %v4248, 4
  %v4300 = vsel %vm2781, %v4260, %v4299
  %v4302 = vunpack.c.l.s4 1934713408
  %v4303 = vunpack.c.0.s8 %v4302
  %v4304 = vperm.slane %v4298, %v4303
  %v4306 = vunpack.c.l.s4 1934713408
  %v4307 = vunpack.c.0.s8 %v4306
  %v4308 = vperm.slane %v4300, %v4307
  %v4309 = vrot.slane %v4280, 4
  %v4310 = vsel %vm2781, %v4309, %v4268
  %v4311 = vrot.slane %v4268, 4
  %v4312 = vsel %vm2781, %v4280, %v4311
  %v4314 = vunpack.c.l.s4 1934713408
  %v4315 = vunpack.c.0.s8 %v4314
  %v4316 = vperm.slane %v4310, %v4315
  %v4318 = vunpack.c.l.s4 1934713408
  %v4319 = vunpack.c.0.s8 %v4318
  %v4320 = vperm.slane %v4312, %v4319
  %v4321 = vrot.slane %v4284, 4
  %v4322 = vsel %vm2781, %v4321, %v4272
  %v4323 = vrot.slane %v4272, 4
  %v4324 = vsel %vm2781, %v4284, %v4323
  %v4326 = vunpack.c.l.s4 1934713408
  %v4327 = vunpack.c.0.s8 %v4326
  %v4328 = vperm.slane %v4322, %v4327
  %v4330 = vunpack.c.l.s4 1934713408
  %v4331 = vunpack.c.0.s8 %v4330
  %v4332 = vperm.slane %v4324, %v4331
  %v4333 = vrot.slane %v4316, 4
  %v4334 = vsel %vm2781, %v4333, %v4292
  %v4335 = vrot.slane %v4292, 4
  %v4336 = vsel %vm2781, %v4316, %v4335
  %v4337 = vrot.slane %v4320, 4
  %v4338 = vsel %vm2781, %v4337, %v4296
  %v4339 = vrot.slane %v4296, 4
  %v4340 = vsel %vm2781, %v4320, %v4339
  %v4341 = vrot.slane %v4328, 4
  %v4342 = vsel %vm2781, %v4341, %v4304
  %v4343 = vrot.slane %v4304, 4
  %v4344 = vsel %vm2781, %v4328, %v4343
  %v4345 = vrot.slane %v4332, 4
  %v4346 = vsel %vm2781, %v4345, %v4308
  %v4347 = vrot.slane %v4308, 4
  %v4348 = vsel %vm2781, %v4332, %v4347
  %v4349 = vrot.slane %v2655, 4
  %v4350 = vsel %vm2781, %v4349, %v2637
  %v4351 = vrot.slane %v2637, 4
  %v4352 = vsel %vm2781, %v2655, %v4351
  %v4354 = vunpack.c.l.s4 1983009808
  %v4355 = vunpack.c.0.s8 %v4354
  %v4356 = vperm.slane %v4350, %v4355
  %v4358 = vunpack.c.l.s4 1983009808
  %v4359 = vunpack.c.0.s8 %v4358
  %v4360 = vperm.slane %v4352, %v4359
  %v4361 = vrot.slane %v2664, 4
  %v4362 = vsel %vm2781, %v4361, %v2646
  %v4363 = vrot.slane %v2646, 4
  %v4364 = vsel %vm2781, %v2664, %v4363
  %v4366 = vunpack.c.l.s4 1983009808
  %v4367 = vunpack.c.0.s8 %v4366
  %v4368 = vperm.slane %v4362, %v4367
  %v4370 = vunpack.c.l.s4 1983009808
  %v4371 = vunpack.c.0.s8 %v4370
  %v4372 = vperm.slane %v4364, %v4371
  %v4373 = vrot.slane %v2691, 4
  %v4374 = vsel %vm2781, %v4373, %v2673
  %v4375 = vrot.slane %v2673, 4
  %v4376 = vsel %vm2781, %v2691, %v4375
  %v4378 = vunpack.c.l.s4 1983009808
  %v4379 = vunpack.c.0.s8 %v4378
  %v4380 = vperm.slane %v4374, %v4379
  %v4382 = vunpack.c.l.s4 1983009808
  %v4383 = vunpack.c.0.s8 %v4382
  %v4384 = vperm.slane %v4376, %v4383
  %v4385 = vrot.slane %v2700, 4
  %v4386 = vsel %vm2781, %v4385, %v2682
  %v4387 = vrot.slane %v2682, 4
  %v4388 = vsel %vm2781, %v2700, %v4387
  %v4390 = vunpack.c.l.s4 1983009808
  %v4391 = vunpack.c.0.s8 %v4390
  %v4392 = vperm.slane %v4386, %v4391
  %v4394 = vunpack.c.l.s4 1983009808
  %v4395 = vunpack.c.0.s8 %v4394
  %v4396 = vperm.slane %v4388, %v4395
  %v4397 = vrot.slane %v4368, 4
  %v4398 = vsel %vm2781, %v4397, %v4356
  %v4399 = vrot.slane %v4356, 4
  %v4400 = vsel %vm2781, %v4368, %v4399
  %v4402 = vunpack.c.l.s4 1934713408
  %v4403 = vunpack.c.0.s8 %v4402
  %v4404 = vperm.slane %v4398, %v4403
  %v4406 = vunpack.c.l.s4 1934713408
  %v4407 = vunpack.c.0.s8 %v4406
  %v4408 = vperm.slane %v4400, %v4407
  %v4409 = vrot.slane %v4372, 4
  %v4410 = vsel %vm2781, %v4409, %v4360
  %v4411 = vrot.slane %v4360, 4
  %v4412 = vsel %vm2781, %v4372, %v4411
  %v4414 = vunpack.c.l.s4 1934713408
  %v4415 = vunpack.c.0.s8 %v4414
  %v4416 = vperm.slane %v4410, %v4415
  %v4418 = vunpack.c.l.s4 1934713408
  %v4419 = vunpack.c.0.s8 %v4418
  %v4420 = vperm.slane %v4412, %v4419
  %v4421 = vrot.slane %v4392, 4
  %v4422 = vsel %vm2781, %v4421, %v4380
  %v4423 = vrot.slane %v4380, 4
  %v4424 = vsel %vm2781, %v4392, %v4423
  %v4426 = vunpack.c.l.s4 1934713408
  %v4427 = vunpack.c.0.s8 %v4426
  %v4428 = vperm.slane %v4422, %v4427
  %v4430 = vunpack.c.l.s4 1934713408
  %v4431 = vunpack.c.0.s8 %v4430
  %v4432 = vperm.slane %v4424, %v4431
  %v4433 = vrot.slane %v4396, 4
  %v4434 = vsel %vm2781, %v4433, %v4384
  %v4435 = vrot.slane %v4384, 4
  %v4436 = vsel %vm2781, %v4396, %v4435
  %v4438 = vunpack.c.l.s4 1934713408
  %v4439 = vunpack.c.0.s8 %v4438
  %v4440 = vperm.slane %v4434, %v4439
  %v4442 = vunpack.c.l.s4 1934713408
  %v4443 = vunpack.c.0.s8 %v4442
  %v4444 = vperm.slane %v4436, %v4443
  %v4445 = vrot.slane %v4428, 4
  %v4446 = vsel %vm2781, %v4445, %v4404
  %v4447 = vrot.slane %v4404, 4
  %v4448 = vsel %vm2781, %v4428, %v4447
  %v4449 = vrot.slane %v4432, 4
  %v4450 = vsel %vm2781, %v4449, %v4408
  %v4451 = vrot.slane %v4408, 4
  %v4452 = vsel %vm2781, %v4432, %v4451
  %v4453 = vrot.slane %v4440, 4
  %v4454 = vsel %vm2781, %v4453, %v4416
  %v4455 = vrot.slane %v4416, 4
  %v4456 = vsel %vm2781, %v4440, %v4455
  %v4457 = vrot.slane %v4444, 4
  %v4458 = vsel %vm2781, %v4457, %v4420
  %v4459 = vrot.slane %v4420, 4
  %v4460 = vsel %vm2781, %v4444, %v4459
  %v4461 = vrot.slane %v2727, 4
  %v4462 = vsel %vm2781, %v4461, %v2709
  %v4463 = vrot.slane %v2709, 4
  %v4464 = vsel %vm2781, %v2727, %v4463
  %v4466 = vunpack.c.l.s4 1983009808
  %v4467 = vunpack.c.0.s8 %v4466
  %v4468 = vperm.slane %v4462, %v4467
  %v4470 = vunpack.c.l.s4 1983009808
  %v4471 = vunpack.c.0.s8 %v4470
  %v4472 = vperm.slane %v4464, %v4471
  %v4473 = vrot.slane %v2736, 4
  %v4474 = vsel %vm2781, %v4473, %v2718
  %v4475 = vrot.slane %v2718, 4
  %v4476 = vsel %vm2781, %v2736, %v4475
  %v4478 = vunpack.c.l.s4 1983009808
  %v4479 = vunpack.c.0.s8 %v4478
  %v4480 = vperm.slane %v4474, %v4479
  %v4482 = vunpack.c.l.s4 1983009808
  %v4483 = vunpack.c.0.s8 %v4482
  %v4484 = vperm.slane %v4476, %v4483
  %v4485 = vrot.slane %v2763, 4
  %v4486 = vsel %vm2781, %v4485, %v2745
  %v4487 = vrot.slane %v2745, 4
  %v4488 = vsel %vm2781, %v2763, %v4487
  %v4490 = vunpack.c.l.s4 1983009808
  %v4491 = vunpack.c.0.s8 %v4490
  %v4492 = vperm.slane %v4486, %v4491
  %v4494 = vunpack.c.l.s4 1983009808
  %v4495 = vunpack.c.0.s8 %v4494
  %v4496 = vperm.slane %v4488, %v4495
  %v4497 = vrot.slane %v2772, 4
  %v4498 = vsel %vm2781, %v4497, %v2754
  %v4499 = vrot.slane %v2754, 4
  %v4500 = vsel %vm2781, %v2772, %v4499
  %v4502 = vunpack.c.l.s4 1983009808
  %v4503 = vunpack.c.0.s8 %v4502
  %v4504 = vperm.slane %v4498, %v4503
  %v4506 = vunpack.c.l.s4 1983009808
  %v4507 = vunpack.c.0.s8 %v4506
  %v4508 = vperm.slane %v4500, %v4507
  %v4509 = vrot.slane %v4480, 4
  %v4510 = vsel %vm2781, %v4509, %v4468
  %v4511 = vrot.slane %v4468, 4
  %v4512 = vsel %vm2781, %v4480, %v4511
  %v4514 = vunpack.c.l.s4 1934713408
  %v4515 = vunpack.c.0.s8 %v4514
  %v4516 = vperm.slane %v4510, %v4515
  %v4518 = vunpack.c.l.s4 1934713408
  %v4519 = vunpack.c.0.s8 %v4518
  %v4520 = vperm.slane %v4512, %v4519
  %v4521 = vrot.slane %v4484, 4
  %v4522 = vsel %vm2781, %v4521, %v4472
  %v4523 = vrot.slane %v4472, 4
  %v4524 = vsel %vm2781, %v4484, %v4523
  %v4526 = vunpack.c.l.s4 1934713408
  %v4527 = vunpack.c.0.s8 %v4526
  %v4528 = vperm.slane %v4522, %v4527
  %v4530 = vunpack.c.l.s4 1934713408
  %v4531 = vunpack.c.0.s8 %v4530
  %v4532 = vperm.slane %v4524, %v4531
  %v4533 = vrot.slane %v4504, 4
  %v4534 = vsel %vm2781, %v4533, %v4492
  %v4535 = vrot.slane %v4492, 4
  %v4536 = vsel %vm2781, %v4504, %v4535
  %v4538 = vunpack.c.l.s4 1934713408
  %v4539 = vunpack.c.0.s8 %v4538
  %v4540 = vperm.slane %v4534, %v4539
  %v4542 = vunpack.c.l.s4 1934713408
  %v4543 = vunpack.c.0.s8 %v4542
  %v4544 = vperm.slane %v4536, %v4543
  %v4545 = vrot.slane %v4508, 4
  %v4546 = vsel %vm2781, %v4545, %v4496
  %v4547 = vrot.slane %v4496, 4
  %v4548 = vsel %vm2781, %v4508, %v4547
  %v4550 = vunpack.c.l.s4 1934713408
  %v4551 = vunpack.c.0.s8 %v4550
  %v4552 = vperm.slane %v4546, %v4551
  %v4554 = vunpack.c.l.s4 1934713408
  %v4555 = vunpack.c.0.s8 %v4554
  %v4556 = vperm.slane %v4548, %v4555
  %v4557 = vrot.slane %v4540, 4
  %v4558 = vsel %vm2781, %v4557, %v4516
  %v4559 = vrot.slane %v4516, 4
  %v4560 = vsel %vm2781, %v4540, %v4559
  %v4561 = vrot.slane %v4544, 4
  %v4562 = vsel %vm2781, %v4561, %v4520
  %v4563 = vrot.slane %v4520, 4
  %v4564 = vsel %vm2781, %v4544, %v4563
  %v4565 = vrot.slane %v4552, 4
  %v4566 = vsel %vm2781, %v4565, %v4528
  %v4567 = vrot.slane %v4528, 4
  %v4568 = vsel %vm2781, %v4552, %v4567
  %v4569 = vrot.slane %v4556, 4
  %v4570 = vsel %vm2781, %v4569, %v4532
  %v4571 = vrot.slane %v4532, 4
  %v4572 = vsel %vm2781, %v4556, %v4571
  %v4573 = vrot.slane %v1655, 4
  %v4574 = vsel %vm2781, %v4573, %v1636
  %v4575 = vrot.slane %v1636, 4
  %v4576 = vsel %vm2781, %v1655, %v4575
  %v4578 = vunpack.c.l.s4 1983009808
  %v4579 = vunpack.c.0.s8 %v4578
  %v4580 = vperm.slane %v4574, %v4579
  %v4582 = vunpack.c.l.s4 1983009808
  %v4583 = vunpack.c.0.s8 %v4582
  %v4584 = vperm.slane %v4576, %v4583
  %v4585 = vrot.slane %v1664, 4
  %v4586 = vsel %vm2781, %v4585, %v1646
  %v4587 = vrot.slane %v1646, 4
  %v4588 = vsel %vm2781, %v1664, %v4587
  %v4590 = vunpack.c.l.s4 1983009808
  %v4591 = vunpack.c.0.s8 %v4590
  %v4592 = vperm.slane %v4586, %v4591
  %v4594 = vunpack.c.l.s4 1983009808
  %v4595 = vunpack.c.0.s8 %v4594
  %v4596 = vperm.slane %v4588, %v4595
  %v4597 = vrot.slane %v1691, 4
  %v4598 = vsel %vm2781, %v4597, %v1673
  %v4599 = vrot.slane %v1673, 4
  %v4600 = vsel %vm2781, %v1691, %v4599
  %v4602 = vunpack.c.l.s4 1983009808
  %v4603 = vunpack.c.0.s8 %v4602
  %v4604 = vperm.slane %v4598, %v4603
  %v4606 = vunpack.c.l.s4 1983009808
  %v4607 = vunpack.c.0.s8 %v4606
  %v4608 = vperm.slane %v4600, %v4607
  %v4609 = vrot.slane %v1700, 4
  %v4610 = vsel %vm2781, %v4609, %v1682
  %v4611 = vrot.slane %v1682, 4
  %v4612 = vsel %vm2781, %v1700, %v4611
  %v4614 = vunpack.c.l.s4 1983009808
  %v4615 = vunpack.c.0.s8 %v4614
  %v4616 = vperm.slane %v4610, %v4615
  %v4618 = vunpack.c.l.s4 1983009808
  %v4619 = vunpack.c.0.s8 %v4618
  %v4620 = vperm.slane %v4612, %v4619
  %v4621 = vrot.slane %v4592, 4
  %v4622 = vsel %vm2781, %v4621, %v4580
  %v4623 = vrot.slane %v4580, 4
  %v4624 = vsel %vm2781, %v4592, %v4623
  %v4626 = vunpack.c.l.s4 1934713408
  %v4627 = vunpack.c.0.s8 %v4626
  %v4628 = vperm.slane %v4622, %v4627
  %v4630 = vunpack.c.l.s4 1934713408
  %v4631 = vunpack.c.0.s8 %v4630
  %v4632 = vperm.slane %v4624, %v4631
  %v4633 = vrot.slane %v4596, 4
  %v4634 = vsel %vm2781, %v4633, %v4584
  %v4635 = vrot.slane %v4584, 4
  %v4636 = vsel %vm2781, %v4596, %v4635
  %v4638 = vunpack.c.l.s4 1934713408
  %v4639 = vunpack.c.0.s8 %v4638
  %v4640 = vperm.slane %v4634, %v4639
  %v4642 = vunpack.c.l.s4 1934713408
  %v4643 = vunpack.c.0.s8 %v4642
  %v4644 = vperm.slane %v4636, %v4643
  %v4645 = vrot.slane %v4616, 4
  %v4646 = vsel %vm2781, %v4645, %v4604
  %v4647 = vrot.slane %v4604, 4
  %v4648 = vsel %vm2781, %v4616, %v4647
  %v4650 = vunpack.c.l.s4 1934713408
  %v4651 = vunpack.c.0.s8 %v4650
  %v4652 = vperm.slane %v4646, %v4651
  %v4654 = vunpack.c.l.s4 1934713408
  %v4655 = vunpack.c.0.s8 %v4654
  %v4656 = vperm.slane %v4648, %v4655
  %v4657 = vrot.slane %v4620, 4
  %v4658 = vsel %vm2781, %v4657, %v4608
  %v4659 = vrot.slane %v4608, 4
  %v4660 = vsel %vm2781, %v4620, %v4659
  %v4662 = vunpack.c.l.s4 1934713408
  %v4663 = vunpack.c.0.s8 %v4662
  %v4664 = vperm.slane %v4658, %v4663
  %v4666 = vunpack.c.l.s4 1934713408
  %v4667 = vunpack.c.0.s8 %v4666
  %v4668 = vperm.slane %v4660, %v4667
  %v4669 = vrot.slane %v4652, 4
  %v4670 = vsel %vm2781, %v4669, %v4628
  %v4671 = vrot.slane %v4628, 4
  %v4672 = vsel %vm2781, %v4652, %v4671
  %v4673 = vrot.slane %v4656, 4
  %v4674 = vsel %vm2781, %v4673, %v4632
  %v4675 = vrot.slane %v4632, 4
  %v4676 = vsel %vm2781, %v4656, %v4675
  %v4677 = vrot.slane %v4664, 4
  %v4678 = vsel %vm2781, %v4677, %v4640
  %v4679 = vrot.slane %v4640, 4
  %v4680 = vsel %vm2781, %v4664, %v4679
  %v4681 = vrot.slane %v4668, 4
  %v4682 = vsel %vm2781, %v4681, %v4644
  %v4683 = vrot.slane %v4644, 4
  %v4684 = vsel %vm2781, %v4668, %v4683
  %v4685 = vrot.slane %v1727, 4
  %v4686 = vsel %vm2781, %v4685, %v1709
  %v4687 = vrot.slane %v1709, 4
  %v4688 = vsel %vm2781, %v1727, %v4687
  %v4690 = vunpack.c.l.s4 1983009808
  %v4691 = vunpack.c.0.s8 %v4690
  %v4692 = vperm.slane %v4686, %v4691
  %v4694 = vunpack.c.l.s4 1983009808
  %v4695 = vunpack.c.0.s8 %v4694
  %v4696 = vperm.slane %v4688, %v4695
  %v4697 = vrot.slane %v1736, 4
  %v4698 = vsel %vm2781, %v4697, %v1718
  %v4699 = vrot.slane %v1718, 4
  %v4700 = vsel %vm2781, %v1736, %v4699
  %v4702 = vunpack.c.l.s4 1983009808
  %v4703 = vunpack.c.0.s8 %v4702
  %v4704 = vperm.slane %v4698, %v4703
  %v4706 = vunpack.c.l.s4 1983009808
  %v4707 = vunpack.c.0.s8 %v4706
  %v4708 = vperm.slane %v4700, %v4707
  %v4709 = vrot.slane %v1763, 4
  %v4710 = vsel %vm2781, %v4709, %v1745
  %v4711 = vrot.slane %v1745, 4
  %v4712 = vsel %vm2781, %v1763, %v4711
  %v4714 = vunpack.c.l.s4 1983009808
  %v4715 = vunpack.c.0.s8 %v4714
  %v4716 = vperm.slane %v4710, %v4715
  %v4718 = vunpack.c.l.s4 1983009808
  %v4719 = vunpack.c.0.s8 %v4718
  %v4720 = vperm.slane %v4712, %v4719
  %v4721 = vrot.slane %v1772, 4
  %v4722 = vsel %vm2781, %v4721, %v1754
  %v4723 = vrot.slane %v1754, 4
  %v4724 = vsel %vm2781, %v1772, %v4723
  %v4726 = vunpack.c.l.s4 1983009808
  %v4727 = vunpack.c.0.s8 %v4726
  %v4728 = vperm.slane %v4722, %v4727
  %v4730 = vunpack.c.l.s4 1983009808
  %v4731 = vunpack.c.0.s8 %v4730
  %v4732 = vperm.slane %v4724, %v4731
  %v4733 = vrot.slane %v4704, 4
  %v4734 = vsel %vm2781, %v4733, %v4692
  %v4735 = vrot.slane %v4692, 4
  %v4736 = vsel %vm2781, %v4704, %v4735
  %v4738 = vunpack.c.l.s4 1934713408
  %v4739 = vunpack.c.0.s8 %v4738
  %v4740 = vperm.slane %v4734, %v4739
  %v4742 = vunpack.c.l.s4 1934713408
  %v4743 = vunpack.c.0.s8 %v4742
  %v4744 = vperm.slane %v4736, %v4743
  %v4745 = vrot.slane %v4708, 4
  %v4746 = vsel %vm2781, %v4745, %v4696
  %v4747 = vrot.slane %v4696, 4
  %v4748 = vsel %vm2781, %v4708, %v4747
  %v4750 = vunpack.c.l.s4 1934713408
  %v4751 = vunpack.c.0.s8 %v4750
  %v4752 = vperm.slane %v4746, %v4751
  %v4754 = vunpack.c.l.s4 1934713408
  %v4755 = vunpack.c.0.s8 %v4754
  %v4756 = vperm.slane %v4748, %v4755
  %v4757 = vrot.slane %v4728, 4
  %v4758 = vsel %vm2781, %v4757, %v4716
  %v4759 = vrot.slane %v4716, 4
  %v4760 = vsel %vm2781, %v4728, %v4759
  %v4762 = vunpack.c.l.s4 1934713408
  %v4763 = vunpack.c.0.s8 %v4762
  %v4764 = vperm.slane %v4758, %v4763
  %v4766 = vunpack.c.l.s4 1934713408
  %v4767 = vunpack.c.0.s8 %v4766
  %v4768 = vperm.slane %v4760, %v4767
  %v4769 = vrot.slane %v4732, 4
  %v4770 = vsel %vm2781, %v4769, %v4720
  %v4771 = vrot.slane %v4720, 4
  %v4772 = vsel %vm2781, %v4732, %v4771
  %v4774 = vunpack.c.l.s4 1934713408
  %v4775 = vunpack.c.0.s8 %v4774
  %v4776 = vperm.slane %v4770, %v4775
  %v4778 = vunpack.c.l.s4 1934713408
  %v4779 = vunpack.c.0.s8 %v4778
  %v4780 = vperm.slane %v4772, %v4779
  %v4781 = vrot.slane %v4764, 4
  %v4782 = vsel %vm2781, %v4781, %v4740
  %v4783 = vrot.slane %v4740, 4
  %v4784 = vsel %vm2781, %v4764, %v4783
  %v4785 = vrot.slane %v4768, 4
  %v4786 = vsel %vm2781, %v4785, %v4744
  %v4787 = vrot.slane %v4744, 4
  %v4788 = vsel %vm2781, %v4768, %v4787
  %v4789 = vrot.slane %v4776, 4
  %v4790 = vsel %vm2781, %v4789, %v4752
  %v4791 = vrot.slane %v4752, 4
  %v4792 = vsel %vm2781, %v4776, %v4791
  %v4793 = vrot.slane %v4780, 4
  %v4794 = vsel %vm2781, %v4793, %v4756
  %v4795 = vrot.slane %v4756, 4
  %v4796 = vsel %vm2781, %v4780, %v4795
  %v4797 = vrot.slane %v1799, 4
  %v4798 = vsel %vm2781, %v4797, %v1781
  %v4799 = vrot.slane %v1781, 4
  %v4800 = vsel %vm2781, %v1799, %v4799
  %v4802 = vunpack.c.l.s4 1983009808
  %v4803 = vunpack.c.0.s8 %v4802
  %v4804 = vperm.slane %v4798, %v4803
  %v4806 = vunpack.c.l.s4 1983009808
  %v4807 = vunpack.c.0.s8 %v4806
  %v4808 = vperm.slane %v4800, %v4807
  %v4809 = vrot.slane %v1808, 4
  %v4810 = vsel %vm2781, %v4809, %v1790
  %v4811 = vrot.slane %v1790, 4
  %v4812 = vsel %vm2781, %v1808, %v4811
  %v4814 = vunpack.c.l.s4 1983009808
  %v4815 = vunpack.c.0.s8 %v4814
  %v4816 = vperm.slane %v4810, %v4815
  %v4818 = vunpack.c.l.s4 1983009808
  %v4819 = vunpack.c.0.s8 %v4818
  %v4820 = vperm.slane %v4812, %v4819
  %v4821 = vrot.slane %v1835, 4
  %v4822 = vsel %vm2781, %v4821, %v1817
  %v4823 = vrot.slane %v1817, 4
  %v4824 = vsel %vm2781, %v1835, %v4823
  %v4826 = vunpack.c.l.s4 1983009808
  %v4827 = vunpack.c.0.s8 %v4826
  %v4828 = vperm.slane %v4822, %v4827
  %v4830 = vunpack.c.l.s4 1983009808
  %v4831 = vunpack.c.0.s8 %v4830
  %v4832 = vperm.slane %v4824, %v4831
  %v4833 = vrot.slane %v1844, 4
  %v4834 = vsel %vm2781, %v4833, %v1826
  %v4835 = vrot.slane %v1826, 4
  %v4836 = vsel %vm2781, %v1844, %v4835
  %v4838 = vunpack.c.l.s4 1983009808
  %v4839 = vunpack.c.0.s8 %v4838
  %v4840 = vperm.slane %v4834, %v4839
  %v4842 = vunpack.c.l.s4 1983009808
  %v4843 = vunpack.c.0.s8 %v4842
  %v4844 = vperm.slane %v4836, %v4843
  %v4845 = vrot.slane %v4816, 4
  %v4846 = vsel %vm2781, %v4845, %v4804
  %v4847 = vrot.slane %v4804, 4
  %v4848 = vsel %vm2781, %v4816, %v4847
  %v4850 = vunpack.c.l.s4 1934713408
  %v4851 = vunpack.c.0.s8 %v4850
  %v4852 = vperm.slane %v4846, %v4851
  %v4854 = vunpack.c.l.s4 1934713408
  %v4855 = vunpack.c.0.s8 %v4854
  %v4856 = vperm.slane %v4848, %v4855
  %v4857 = vrot.slane %v4820, 4
  %v4858 = vsel %vm2781, %v4857, %v4808
  %v4859 = vrot.slane %v4808, 4
  %v4860 = vsel %vm2781, %v4820, %v4859
  %v4862 = vunpack.c.l.s4 1934713408
  %v4863 = vunpack.c.0.s8 %v4862
  %v4864 = vperm.slane %v4858, %v4863
  %v4866 = vunpack.c.l.s4 1934713408
  %v4867 = vunpack.c.0.s8 %v4866
  %v4868 = vperm.slane %v4860, %v4867
  %v4869 = vrot.slane %v4840, 4
  %v4870 = vsel %vm2781, %v4869, %v4828
  %v4871 = vrot.slane %v4828, 4
  %v4872 = vsel %vm2781, %v4840, %v4871
  %v4874 = vunpack.c.l.s4 1934713408
  %v4875 = vunpack.c.0.s8 %v4874
  %v4876 = vperm.slane %v4870, %v4875
  %v4878 = vunpack.c.l.s4 1934713408
  %v4879 = vunpack.c.0.s8 %v4878
  %v4880 = vperm.slane %v4872, %v4879
  %v4881 = vrot.slane %v4844, 4
  %v4882 = vsel %vm2781, %v4881, %v4832
  %v4883 = vrot.slane %v4832, 4
  %v4884 = vsel %vm2781, %v4844, %v4883
  %v4886 = vunpack.c.l.s4 1934713408
  %v4887 = vunpack.c.0.s8 %v4886
  %v4888 = vperm.slane %v4882, %v4887
  %v4890 = vunpack.c.l.s4 1934713408
  %v4891 = vunpack.c.0.s8 %v4890
  %v4892 = vperm.slane %v4884, %v4891
  %v4893 = vrot.slane %v4876, 4
  %v4894 = vsel %vm2781, %v4893, %v4852
  %v4895 = vrot.slane %v4852, 4
  %v4896 = vsel %vm2781, %v4876, %v4895
  %v4897 = vrot.slane %v4880, 4
  %v4898 = vsel %vm2781, %v4897, %v4856
  %v4899 = vrot.slane %v4856, 4
  %v4900 = vsel %vm2781, %v4880, %v4899
  %v4901 = vrot.slane %v4888, 4
  %v4902 = vsel %vm2781, %v4901, %v4864
  %v4903 = vrot.slane %v4864, 4
  %v4904 = vsel %vm2781, %v4888, %v4903
  %v4905 = vrot.slane %v4892, 4
  %v4906 = vsel %vm2781, %v4905, %v4868
  %v4907 = vrot.slane %v4868, 4
  %v4908 = vsel %vm2781, %v4892, %v4907
  %v4909 = vrot.slane %v1871, 4
  %v4910 = vsel %vm2781, %v4909, %v1853
  %v4911 = vrot.slane %v1853, 4
  %v4912 = vsel %vm2781, %v1871, %v4911
  %v4914 = vunpack.c.l.s4 1983009808
  %v4915 = vunpack.c.0.s8 %v4914
  %v4916 = vperm.slane %v4910, %v4915
  %v4918 = vunpack.c.l.s4 1983009808
  %v4919 = vunpack.c.0.s8 %v4918
  %v4920 = vperm.slane %v4912, %v4919
  %v4921 = vrot.slane %v1880, 4
  %v4922 = vsel %vm2781, %v4921, %v1862
  %v4923 = vrot.slane %v1862, 4
  %v4924 = vsel %vm2781, %v1880, %v4923
  %v4926 = vunpack.c.l.s4 1983009808
  %v4927 = vunpack.c.0.s8 %v4926
  %v4928 = vperm.slane %v4922, %v4927
  %v4930 = vunpack.c.l.s4 1983009808
  %v4931 = vunpack.c.0.s8 %v4930
  %v4932 = vperm.slane %v4924, %v4931
  %v4933 = vrot.slane %v1907, 4
  %v4934 = vsel %vm2781, %v4933, %v1889
  %v4935 = vrot.slane %v1889, 4
  %v4936 = vsel %vm2781, %v1907, %v4935
  %v4938 = vunpack.c.l.s4 1983009808
  %v4939 = vunpack.c.0.s8 %v4938
  %v4940 = vperm.slane %v4934, %v4939
  %v4942 = vunpack.c.l.s4 1983009808
  %v4943 = vunpack.c.0.s8 %v4942
  %v4944 = vperm.slane %v4936, %v4943
  %v4945 = vrot.slane %v1916, 4
  %v4946 = vsel %vm2781, %v4945, %v1898
  %v4947 = vrot.slane %v1898, 4
  %v4948 = vsel %vm2781, %v1916, %v4947
  %v4950 = vunpack.c.l.s4 1983009808
  %v4951 = vunpack.c.0.s8 %v4950
  %v4952 = vperm.slane %v4946, %v4951
  %v4954 = vunpack.c.l.s4 1983009808
  %v4955 = vunpack.c.0.s8 %v4954
  %v4956 = vperm.slane %v4948, %v4955
  %v4957 = vrot.slane %v4928, 4
  %v4958 = vsel %vm2781, %v4957, %v4916
  %v4959 = vrot.slane %v4916, 4
  %v4960 = vsel %vm2781, %v4928, %v4959
  %v4962 = vunpack.c.l.s4 1934713408
  %v4963 = vunpack.c.0.s8 %v4962
  %v4964 = vperm.slane %v4958, %v4963
  %v4966 = vunpack.c.l.s4 1934713408
  %v4967 = vunpack.c.0.s8 %v4966
  %v4968 = vperm.slane %v4960, %v4967
  %v4969 = vrot.slane %v4932, 4
  %v4970 = vsel %vm2781, %v4969, %v4920
  %v4971 = vrot.slane %v4920, 4
  %v4972 = vsel %vm2781, %v4932, %v4971
  %v4974 = vunpack.c.l.s4 1934713408
  %v4975 = vunpack.c.0.s8 %v4974
  %v4976 = vperm.slane %v4970, %v4975
  %v4978 = vunpack.c.l.s4 1934713408
  %v4979 = vunpack.c.0.s8 %v4978
  %v4980 = vperm.slane %v4972, %v4979
  %v4981 = vrot.slane %v4952, 4
  %v4982 = vsel %vm2781, %v4981, %v4940
  %v4983 = vrot.slane %v4940, 4
  %v4984 = vsel %vm2781, %v4952, %v4983
  %v4986 = vunpack.c.l.s4 1934713408
  %v4987 = vunpack.c.0.s8 %v4986
  %v4988 = vperm.slane %v4982, %v4987
  %v4990 = vunpack.c.l.s4 1934713408
  %v4991 = vunpack.c.0.s8 %v4990
  %v4992 = vperm.slane %v4984, %v4991
  %v4993 = vrot.slane %v4956, 4
  %v4994 = vsel %vm2781, %v4993, %v4944
  %v4995 = vrot.slane %v4944, 4
  %v4996 = vsel %vm2781, %v4956, %v4995
  %v4998 = vunpack.c.l.s4 1934713408
  %v4999 = vunpack.c.0.s8 %v4998
  %v5000 = vperm.slane %v4994, %v4999
  %v5002 = vunpack.c.l.s4 1934713408
  %v5003 = vunpack.c.0.s8 %v5002
  %v5004 = vperm.slane %v4996, %v5003
  %v5005 = vrot.slane %v4988, 4
  %v5006 = vsel %vm2781, %v5005, %v4964
  %v5007 = vrot.slane %v4964, 4
  %v5008 = vsel %vm2781, %v4988, %v5007
  %v5009 = vrot.slane %v4992, 4
  %v5010 = vsel %vm2781, %v5009, %v4968
  %v5011 = vrot.slane %v4968, 4
  %v5012 = vsel %vm2781, %v4992, %v5011
  %v5013 = vrot.slane %v5000, 4
  %v5014 = vsel %vm2781, %v5013, %v4976
  %v5015 = vrot.slane %v4976, 4
  %v5016 = vsel %vm2781, %v5000, %v5015
  %v5017 = vrot.slane %v5004, 4
  %v5018 = vsel %vm2781, %v5017, %v4980
  %v5019 = vrot.slane %v4980, 4
  %v5020 = vsel %vm2781, %v5004, %v5019
  %v5021 = vrot.slane %v1943, 4
  %v5022 = vsel %vm2781, %v5021, %v1925
  %v5023 = vrot.slane %v1925, 4
  %v5024 = vsel %vm2781, %v1943, %v5023
  %v5026 = vunpack.c.l.s4 1983009808
  %v5027 = vunpack.c.0.s8 %v5026
  %v5028 = vperm.slane %v5022, %v5027
  %v5030 = vunpack.c.l.s4 1983009808
  %v5031 = vunpack.c.0.s8 %v5030
  %v5032 = vperm.slane %v5024, %v5031
  %v5033 = vrot.slane %v1952, 4
  %v5034 = vsel %vm2781, %v5033, %v1934
  %v5035 = vrot.slane %v1934, 4
  %v5036 = vsel %vm2781, %v1952, %v5035
  %v5038 = vunpack.c.l.s4 1983009808
  %v5039 = vunpack.c.0.s8 %v5038
  %v5040 = vperm.slane %v5034, %v5039
  %v5042 = vunpack.c.l.s4 1983009808
  %v5043 = vunpack.c.0.s8 %v5042
  %v5044 = vperm.slane %v5036, %v5043
  %v5045 = vrot.slane %v1979, 4
  %v5046 = vsel %vm2781, %v5045, %v1961
  %v5047 = vrot.slane %v1961, 4
  %v5048 = vsel %vm2781, %v1979, %v5047
  %v5050 = vunpack.c.l.s4 1983009808
  %v5051 = vunpack.c.0.s8 %v5050
  %v5052 = vperm.slane %v5046, %v5051
  %v5054 = vunpack.c.l.s4 1983009808
  %v5055 = vunpack.c.0.s8 %v5054
  %v5056 = vperm.slane %v5048, %v5055
  %v5057 = vrot.slane %v1988, 4
  %v5058 = vsel %vm2781, %v5057, %v1970
  %v5059 = vrot.slane %v1970, 4
  %v5060 = vsel %vm2781, %v1988, %v5059
  %v5062 = vunpack.c.l.s4 1983009808
  %v5063 = vunpack.c.0.s8 %v5062
  %v5064 = vperm.slane %v5058, %v5063
  %v5066 = vunpack.c.l.s4 1983009808
  %v5067 = vunpack.c.0.s8 %v5066
  %v5068 = vperm.slane %v5060, %v5067
  %v5069 = vrot.slane %v5040, 4
  %v5070 = vsel %vm2781, %v5069, %v5028
  %v5071 = vrot.slane %v5028, 4
  %v5072 = vsel %vm2781, %v5040, %v5071
  %v5074 = vunpack.c.l.s4 1934713408
  %v5075 = vunpack.c.0.s8 %v5074
  %v5076 = vperm.slane %v5070, %v5075
  %v5078 = vunpack.c.l.s4 1934713408
  %v5079 = vunpack.c.0.s8 %v5078
  %v5080 = vperm.slane %v5072, %v5079
  %v5081 = vrot.slane %v5044, 4
  %v5082 = vsel %vm2781, %v5081, %v5032
  %v5083 = vrot.slane %v5032, 4
  %v5084 = vsel %vm2781, %v5044, %v5083
  %v5086 = vunpack.c.l.s4 1934713408
  %v5087 = vunpack.c.0.s8 %v5086
  %v5088 = vperm.slane %v5082, %v5087
  %v5090 = vunpack.c.l.s4 1934713408
  %v5091 = vunpack.c.0.s8 %v5090
  %v5092 = vperm.slane %v5084, %v5091
  %v5093 = vrot.slane %v5064, 4
  %v5094 = vsel %vm2781, %v5093, %v5052
  %v5095 = vrot.slane %v5052, 4
  %v5096 = vsel %vm2781, %v5064, %v5095
  %v5098 = vunpack.c.l.s4 1934713408
  %v5099 = vunpack.c.0.s8 %v5098
  %v5100 = vperm.slane %v5094, %v5099
  %v5102 = vunpack.c.l.s4 1934713408
  %v5103 = vunpack.c.0.s8 %v5102
  %v5104 = vperm.slane %v5096, %v5103
  %v5105 = vrot.slane %v5068, 4
  %v5106 = vsel %vm2781, %v5105, %v5056
  %v5107 = vrot.slane %v5056, 4
  %v5108 = vsel %vm2781, %v5068, %v5107
  %v5110 = vunpack.c.l.s4 1934713408
  %v5111 = vunpack.c.0.s8 %v5110
  %v5112 = vperm.slane %v5106, %v5111
  %v5114 = vunpack.c.l.s4 1934713408
  %v5115 = vunpack.c.0.s8 %v5114
  %v5116 = vperm.slane %v5108, %v5115
  %v5117 = vrot.slane %v5100, 4
  %v5118 = vsel %vm2781, %v5117, %v5076
  %v5119 = vrot.slane %v5076, 4
  %v5120 = vsel %vm2781, %v5100, %v5119
  %v5121 = vrot.slane %v5104, 4
  %v5122 = vsel %vm2781, %v5121, %v5080
  %v5123 = vrot.slane %v5080, 4
  %v5124 = vsel %vm2781, %v5104, %v5123
  %v5125 = vrot.slane %v5112, 4
  %v5126 = vsel %vm2781, %v5125, %v5088
  %v5127 = vrot.slane %v5088, 4
  %v5128 = vsel %vm2781, %v5112, %v5127
  %v5129 = vrot.slane %v5116, 4
  %v5130 = vsel %vm2781, %v5129, %v5092
  %v5131 = vrot.slane %v5092, 4
  %v5132 = vsel %vm2781, %v5116, %v5131
  %v5133 = vrot.slane %v2015, 4
  %v5134 = vsel %vm2781, %v5133, %v1997
  %v5135 = vrot.slane %v1997, 4
  %v5136 = vsel %vm2781, %v2015, %v5135
  %v5138 = vunpack.c.l.s4 1983009808
  %v5139 = vunpack.c.0.s8 %v5138
  %v5140 = vperm.slane %v5134, %v5139
  %v5142 = vunpack.c.l.s4 1983009808
  %v5143 = vunpack.c.0.s8 %v5142
  %v5144 = vperm.slane %v5136, %v5143
  %v5145 = vrot.slane %v2024, 4
  %v5146 = vsel %vm2781, %v5145, %v2006
  %v5147 = vrot.slane %v2006, 4
  %v5148 = vsel %vm2781, %v2024, %v5147
  %v5150 = vunpack.c.l.s4 1983009808
  %v5151 = vunpack.c.0.s8 %v5150
  %v5152 = vperm.slane %v5146, %v5151
  %v5154 = vunpack.c.l.s4 1983009808
  %v5155 = vunpack.c.0.s8 %v5154
  %v5156 = vperm.slane %v5148, %v5155
  %v5157 = vrot.slane %v2051, 4
  %v5158 = vsel %vm2781, %v5157, %v2033
  %v5159 = vrot.slane %v2033, 4
  %v5160 = vsel %vm2781, %v2051, %v5159
  %v5162 = vunpack.c.l.s4 1983009808
  %v5163 = vunpack.c.0.s8 %v5162
  %v5164 = vperm.slane %v5158, %v5163
  %v5166 = vunpack.c.l.s4 1983009808
  %v5167 = vunpack.c.0.s8 %v5166
  %v5168 = vperm.slane %v5160, %v5167
  %v5169 = vrot.slane %v2060, 4
  %v5170 = vsel %vm2781, %v5169, %v2042
  %v5171 = vrot.slane %v2042, 4
  %v5172 = vsel %vm2781, %v2060, %v5171
  %v5174 = vunpack.c.l.s4 1983009808
  %v5175 = vunpack.c.0.s8 %v5174
  %v5176 = vperm.slane %v5170, %v5175
  %v5178 = vunpack.c.l.s4 1983009808
  %v5179 = vunpack.c.0.s8 %v5178
  %v5180 = vperm.slane %v5172, %v5179
  %v5181 = vrot.slane %v5152, 4
  %v5182 = vsel %vm2781, %v5181, %v5140
  %v5183 = vrot.slane %v5140, 4
  %v5184 = vsel %vm2781, %v5152, %v5183
  %v5186 = vunpack.c.l.s4 1934713408
  %v5187 = vunpack.c.0.s8 %v5186
  %v5188 = vperm.slane %v5182, %v5187
  %v5190 = vunpack.c.l.s4 1934713408
  %v5191 = vunpack.c.0.s8 %v5190
  %v5192 = vperm.slane %v5184, %v5191
  %v5193 = vrot.slane %v5156, 4
  %v5194 = vsel %vm2781, %v5193, %v5144
  %v5195 = vrot.slane %v5144, 4
  %v5196 = vsel %vm2781, %v5156, %v5195
  %v5198 = vunpack.c.l.s4 1934713408
  %v5199 = vunpack.c.0.s8 %v5198
  %v5200 = vperm.slane %v5194, %v5199
  %v5202 = vunpack.c.l.s4 1934713408
  %v5203 = vunpack.c.0.s8 %v5202
  %v5204 = vperm.slane %v5196, %v5203
  %v5205 = vrot.slane %v5176, 4
  %v5206 = vsel %vm2781, %v5205, %v5164
  %v5207 = vrot.slane %v5164, 4
  %v5208 = vsel %vm2781, %v5176, %v5207
  %v5210 = vunpack.c.l.s4 1934713408
  %v5211 = vunpack.c.0.s8 %v5210
  %v5212 = vperm.slane %v5206, %v5211
  %v5214 = vunpack.c.l.s4 1934713408
  %v5215 = vunpack.c.0.s8 %v5214
  %v5216 = vperm.slane %v5208, %v5215
  %v5217 = vrot.slane %v5180, 4
  %v5218 = vsel %vm2781, %v5217, %v5168
  %v5219 = vrot.slane %v5168, 4
  %v5220 = vsel %vm2781, %v5180, %v5219
  %v5222 = vunpack.c.l.s4 1934713408
  %v5223 = vunpack.c.0.s8 %v5222
  %v5224 = vperm.slane %v5218, %v5223
  %v5226 = vunpack.c.l.s4 1934713408
  %v5227 = vunpack.c.0.s8 %v5226
  %v5228 = vperm.slane %v5220, %v5227
  %v5229 = vrot.slane %v5212, 4
  %v5230 = vsel %vm2781, %v5229, %v5188
  %v5231 = vrot.slane %v5188, 4
  %v5232 = vsel %vm2781, %v5212, %v5231
  %v5233 = vrot.slane %v5216, 4
  %v5234 = vsel %vm2781, %v5233, %v5192
  %v5235 = vrot.slane %v5192, 4
  %v5236 = vsel %vm2781, %v5216, %v5235
  %v5237 = vrot.slane %v5224, 4
  %v5238 = vsel %vm2781, %v5237, %v5200
  %v5239 = vrot.slane %v5200, 4
  %v5240 = vsel %vm2781, %v5224, %v5239
  %v5241 = vrot.slane %v5228, 4
  %v5242 = vsel %vm2781, %v5241, %v5204
  %v5243 = vrot.slane %v5204, 4
  %v5244 = vsel %vm2781, %v5228, %v5243
  %v5245 = vrot.slane %v2087, 4
  %v5246 = vsel %vm2781, %v5245, %v2069
  %v5247 = vrot.slane %v2069, 4
  %v5248 = vsel %vm2781, %v2087, %v5247
  %v5250 = vunpack.c.l.s4 1983009808
  %v5251 = vunpack.c.0.s8 %v5250
  %v5252 = vperm.slane %v5246, %v5251
  %v5254 = vunpack.c.l.s4 1983009808
  %v5255 = vunpack.c.0.s8 %v5254
  %v5256 = vperm.slane %v5248, %v5255
  %v5257 = vrot.slane %v2096, 4
  %v5258 = vsel %vm2781, %v5257, %v2078
  %v5259 = vrot.slane %v2078, 4
  %v5260 = vsel %vm2781, %v2096, %v5259
  %v5262 = vunpack.c.l.s4 1983009808
  %v5263 = vunpack.c.0.s8 %v5262
  %v5264 = vperm.slane %v5258, %v5263
  %v5266 = vunpack.c.l.s4 1983009808
  %v5267 = vunpack.c.0.s8 %v5266
  %v5268 = vperm.slane %v5260, %v5267
  %v5269 = vrot.slane %v2123, 4
  %v5270 = vsel %vm2781, %v5269, %v2105
  %v5271 = vrot.slane %v2105, 4
  %v5272 = vsel %vm2781, %v2123, %v5271
  %v5274 = vunpack.c.l.s4 1983009808
  %v5275 = vunpack.c.0.s8 %v5274
  %v5276 = vperm.slane %v5270, %v5275
  %v5278 = vunpack.c.l.s4 1983009808
  %v5279 = vunpack.c.0.s8 %v5278
  %v5280 = vperm.slane %v5272, %v5279
  %v5281 = vrot.slane %v2132, 4
  %v5282 = vsel %vm2781, %v5281, %v2114
  %v5283 = vrot.slane %v2114, 4
  %v5284 = vsel %vm2781, %v2132, %v5283
  %v5286 = vunpack.c.l.s4 1983009808
  %v5287 = vunpack.c.0.s8 %v5286
  %v5288 = vperm.slane %v5282, %v5287
  %v5290 = vunpack.c.l.s4 1983009808
  %v5291 = vunpack.c.0.s8 %v5290
  %v5292 = vperm.slane %v5284, %v5291
  %v5293 = vrot.slane %v5264, 4
  %v5294 = vsel %vm2781, %v5293, %v5252
  %v5295 = vrot.slane %v5252, 4
  %v5296 = vsel %vm2781, %v5264, %v5295
  %v5298 = vunpack.c.l.s4 1934713408
  %v5299 = vunpack.c.0.s8 %v5298
  %v5300 = vperm.slane %v5294, %v5299
  %v5302 = vunpack.c.l.s4 1934713408
  %v5303 = vunpack.c.0.s8 %v5302
  %v5304 = vperm.slane %v5296, %v5303
  %v5305 = vrot.slane %v5268, 4
  %v5306 = vsel %vm2781, %v5305, %v5256
  %v5307 = vrot.slane %v5256, 4
  %v5308 = vsel %vm2781, %v5268, %v5307
  %v5310 = vunpack.c.l.s4 1934713408
  %v5311 = vunpack.c.0.s8 %v5310
  %v5312 = vperm.slane %v5306, %v5311
  %v5314 = vunpack.c.l.s4 1934713408
  %v5315 = vunpack.c.0.s8 %v5314
  %v5316 = vperm.slane %v5308, %v5315
  %v5317 = vrot.slane %v5288, 4
  %v5318 = vsel %vm2781, %v5317, %v5276
  %v5319 = vrot.slane %v5276, 4
  %v5320 = vsel %vm2781, %v5288, %v5319
  %v5322 = vunpack.c.l.s4 1934713408
  %v5323 = vunpack.c.0.s8 %v5322
  %v5324 = vperm.slane %v5318, %v5323
  %v5326 = vunpack.c.l.s4 1934713408
  %v5327 = vunpack.c.0.s8 %v5326
  %v5328 = vperm.slane %v5320, %v5327
  %v5329 = vrot.slane %v5292, 4
  %v5330 = vsel %vm2781, %v5329, %v5280
  %v5331 = vrot.slane %v5280, 4
  %v5332 = vsel %vm2781, %v5292, %v5331
  %v5334 = vunpack.c.l.s4 1934713408
  %v5335 = vunpack.c.0.s8 %v5334
  %v5336 = vperm.slane %v5330, %v5335
  %v5338 = vunpack.c.l.s4 1934713408
  %v5339 = vunpack.c.0.s8 %v5338
  %v5340 = vperm.slane %v5332, %v5339
  %v5341 = vrot.slane %v5324, 4
  %v5342 = vsel %vm2781, %v5341, %v5300
  %v5343 = vrot.slane %v5300, 4
  %v5344 = vsel %vm2781, %v5324, %v5343
  %v5345 = vrot.slane %v5328, 4
  %v5346 = vsel %vm2781, %v5345, %v5304
  %v5347 = vrot.slane %v5304, 4
  %v5348 = vsel %vm2781, %v5328, %v5347
  %v5349 = vrot.slane %v5336, 4
  %v5350 = vsel %vm2781, %v5349, %v5312
  %v5351 = vrot.slane %v5312, 4
  %v5352 = vsel %vm2781, %v5336, %v5351
  %v5353 = vrot.slane %v5340, 4
  %v5354 = vsel %vm2781, %v5353, %v5316
  %v5355 = vrot.slane %v5316, 4
  %v5356 = vsel %vm2781, %v5340, %v5355
  %v5357 = vrot.slane %v2159, 4
  %v5358 = vsel %vm2781, %v5357, %v2141
  %v5359 = vrot.slane %v2141, 4
  %v5360 = vsel %vm2781, %v2159, %v5359
  %v5362 = vunpack.c.l.s4 1983009808
  %v5363 = vunpack.c.0.s8 %v5362
  %v5364 = vperm.slane %v5358, %v5363
  %v5366 = vunpack.c.l.s4 1983009808
  %v5367 = vunpack.c.0.s8 %v5366
  %v5368 = vperm.slane %v5360, %v5367
  %v5369 = vrot.slane %v2168, 4
  %v5370 = vsel %vm2781, %v5369, %v2150
  %v5371 = vrot.slane %v2150, 4
  %v5372 = vsel %vm2781, %v2168, %v5371
  %v5374 = vunpack.c.l.s4 1983009808
  %v5375 = vunpack.c.0.s8 %v5374
  %v5376 = vperm.slane %v5370, %v5375
  %v5378 = vunpack.c.l.s4 1983009808
  %v5379 = vunpack.c.0.s8 %v5378
  %v5380 = vperm.slane %v5372, %v5379
  %v5381 = vrot.slane %v2195, 4
  %v5382 = vsel %vm2781, %v5381, %v2177
  %v5383 = vrot.slane %v2177, 4
  %v5384 = vsel %vm2781, %v2195, %v5383
  %v5386 = vunpack.c.l.s4 1983009808
  %v5387 = vunpack.c.0.s8 %v5386
  %v5388 = vperm.slane %v5382, %v5387
  %v5390 = vunpack.c.l.s4 1983009808
  %v5391 = vunpack.c.0.s8 %v5390
  %v5392 = vperm.slane %v5384, %v5391
  %v5393 = vrot.slane %v2204, 4
  %v5394 = vsel %vm2781, %v5393, %v2186
  %v5395 = vrot.slane %v2186, 4
  %v5396 = vsel %vm2781, %v2204, %v5395
  %v5398 = vunpack.c.l.s4 1983009808
  %v5399 = vunpack.c.0.s8 %v5398
  %v5400 = vperm.slane %v5394, %v5399
  %v5402 = vunpack.c.l.s4 1983009808
  %v5403 = vunpack.c.0.s8 %v5402
  %v5404 = vperm.slane %v5396, %v5403
  %v5405 = vrot.slane %v5376, 4
  %v5406 = vsel %vm2781, %v5405, %v5364
  %v5407 = vrot.slane %v5364, 4
  %v5408 = vsel %vm2781, %v5376, %v5407
  %v5410 = vunpack.c.l.s4 1934713408
  %v5411 = vunpack.c.0.s8 %v5410
  %v5412 = vperm.slane %v5406, %v5411
  %v5414 = vunpack.c.l.s4 1934713408
  %v5415 = vunpack.c.0.s8 %v5414
  %v5416 = vperm.slane %v5408, %v5415
  %v5417 = vrot.slane %v5380, 4
  %v5418 = vsel %vm2781, %v5417, %v5368
  %v5419 = vrot.slane %v5368, 4
  %v5420 = vsel %vm2781, %v5380, %v5419
  %v5422 = vunpack.c.l.s4 1934713408
  %v5423 = vunpack.c.0.s8 %v5422
  %v5424 = vperm.slane %v5418, %v5423
  %v5426 = vunpack.c.l.s4 1934713408
  %v5427 = vunpack.c.0.s8 %v5426
  %v5428 = vperm.slane %v5420, %v5427
  %v5429 = vrot.slane %v5400, 4
  %v5430 = vsel %vm2781, %v5429, %v5388
  %v5431 = vrot.slane %v5388, 4
  %v5432 = vsel %vm2781, %v5400, %v5431
  %v5434 = vunpack.c.l.s4 1934713408
  %v5435 = vunpack.c.0.s8 %v5434
  %v5436 = vperm.slane %v5430, %v5435
  %v5438 = vunpack.c.l.s4 1934713408
  %v5439 = vunpack.c.0.s8 %v5438
  %v5440 = vperm.slane %v5432, %v5439
  %v5441 = vrot.slane %v5404, 4
  %v5442 = vsel %vm2781, %v5441, %v5392
  %v5443 = vrot.slane %v5392, 4
  %v5444 = vsel %vm2781, %v5404, %v5443
  %v5446 = vunpack.c.l.s4 1934713408
  %v5447 = vunpack.c.0.s8 %v5446
  %v5448 = vperm.slane %v5442, %v5447
  %v5450 = vunpack.c.l.s4 1934713408
  %v5451 = vunpack.c.0.s8 %v5450
  %v5452 = vperm.slane %v5444, %v5451
  %v5453 = vrot.slane %v5436, 4
  %v5454 = vsel %vm2781, %v5453, %v5412
  %v5455 = vrot.slane %v5412, 4
  %v5456 = vsel %vm2781, %v5436, %v5455
  %v5457 = vrot.slane %v5440, 4
  %v5458 = vsel %vm2781, %v5457, %v5416
  %v5459 = vrot.slane %v5416, 4
  %v5460 = vsel %vm2781, %v5440, %v5459
  %v5461 = vrot.slane %v5448, 4
  %v5462 = vsel %vm2781, %v5461, %v5424
  %v5463 = vrot.slane %v5424, 4
  %v5464 = vsel %vm2781, %v5448, %v5463
  %v5465 = vrot.slane %v5452, 4
  %v5466 = vsel %vm2781, %v5465, %v5428
  %v5467 = vrot.slane %v5428, 4
  %v5468 = vsel %vm2781, %v5452, %v5467
  %v5469 = vrot.slane %v2225, 4
  %v5470 = vsel %vm2781, %v5469, %v1637
  %v5471 = vrot.slane %v1637, 4
  %v5472 = vsel %vm2781, %v2225, %v5471
  %v5474 = vunpack.c.l.s4 1983009808
  %v5475 = vunpack.c.0.s8 %v5474
  %v5476 = vperm.slane %v5470, %v5475
  %v5478 = vunpack.c.l.s4 1983009808
  %v5479 = vunpack.c.0.s8 %v5478
  %v5480 = vperm.slane %v5472, %v5479
  %v5481 = vrot.slane %v2234, 4
  %v5482 = vsel %vm2781, %v5481, %v2216
  %v5483 = vrot.slane %v2216, 4
  %v5484 = vsel %vm2781, %v2234, %v5483
  %v5486 = vunpack.c.l.s4 1983009808
  %v5487 = vunpack.c.0.s8 %v5486
  %v5488 = vperm.slane %v5482, %v5487
  %v5490 = vunpack.c.l.s4 1983009808
  %v5491 = vunpack.c.0.s8 %v5490
  %v5492 = vperm.slane %v5484, %v5491
  %v5493 = vrot.slane %v2261, 4
  %v5494 = vsel %vm2781, %v5493, %v2243
  %v5495 = vrot.slane %v2243, 4
  %v5496 = vsel %vm2781, %v2261, %v5495
  %v5498 = vunpack.c.l.s4 1983009808
  %v5499 = vunpack.c.0.s8 %v5498
  %v5500 = vperm.slane %v5494, %v5499
  %v5502 = vunpack.c.l.s4 1983009808
  %v5503 = vunpack.c.0.s8 %v5502
  %v5504 = vperm.slane %v5496, %v5503
  %v5505 = vrot.slane %v2270, 4
  %v5506 = vsel %vm2781, %v5505, %v2252
  %v5507 = vrot.slane %v2252, 4
  %v5508 = vsel %vm2781, %v2270, %v5507
  %v5510 = vunpack.c.l.s4 1983009808
  %v5511 = vunpack.c.0.s8 %v5510
  %v5512 = vperm.slane %v5506, %v5511
  %v5514 = vunpack.c.l.s4 1983009808
  %v5515 = vunpack.c.0.s8 %v5514
  %v5516 = vperm.slane %v5508, %v5515
  %v5517 = vrot.slane %v5488, 4
  %v5518 = vsel %vm2781, %v5517, %v5476
  %v5519 = vrot.slane %v5476, 4
  %v5520 = vsel %vm2781, %v5488, %v5519
  %v5522 = vunpack.c.l.s4 1934713408
  %v5523 = vunpack.c.0.s8 %v5522
  %v5524 = vperm.slane %v5518, %v5523
  %v5526 = vunpack.c.l.s4 1934713408
  %v5527 = vunpack.c.0.s8 %v5526
  %v5528 = vperm.slane %v5520, %v5527
  %v5529 = vrot.slane %v5492, 4
  %v5530 = vsel %vm2781, %v5529, %v5480
  %v5531 = vrot.slane %v5480, 4
  %v5532 = vsel %vm2781, %v5492, %v5531
  %v5534 = vunpack.c.l.s4 1934713408
  %v5535 = vunpack.c.0.s8 %v5534
  %v5536 = vperm.slane %v5530, %v5535
  %v5538 = vunpack.c.l.s4 1934713408
  %v5539 = vunpack.c.0.s8 %v5538
  %v5540 = vperm.slane %v5532, %v5539
  %v5541 = vrot.slane %v5512, 4
  %v5542 = vsel %vm2781, %v5541, %v5500
  %v5543 = vrot.slane %v5500, 4
  %v5544 = vsel %vm2781, %v5512, %v5543
  %v5546 = vunpack.c.l.s4 1934713408
  %v5547 = vunpack.c.0.s8 %v5546
  %v5548 = vperm.slane %v5542, %v5547
  %v5550 = vunpack.c.l.s4 1934713408
  %v5551 = vunpack.c.0.s8 %v5550
  %v5552 = vperm.slane %v5544, %v5551
  %v5553 = vrot.slane %v5516, 4
  %v5554 = vsel %vm2781, %v5553, %v5504
  %v5555 = vrot.slane %v5504, 4
  %v5556 = vsel %vm2781, %v5516, %v5555
  %v5558 = vunpack.c.l.s4 1934713408
  %v5559 = vunpack.c.0.s8 %v5558
  %v5560 = vperm.slane %v5554, %v5559
  %v5562 = vunpack.c.l.s4 1934713408
  %v5563 = vunpack.c.0.s8 %v5562
  %v5564 = vperm.slane %v5556, %v5563
  %v5565 = vrot.slane %v5548, 4
  %v5566 = vsel %vm2781, %v5565, %v5524
  %v5567 = vrot.slane %v5524, 4
  %v5568 = vsel %vm2781, %v5548, %v5567
  %v5569 = vrot.slane %v5552, 4
  %v5570 = vsel %vm2781, %v5569, %v5528
  %v5571 = vrot.slane %v5528, 4
  %v5572 = vsel %vm2781, %v5552, %v5571
  %v5573 = vrot.slane %v5560, 4
  %v5574 = vsel %vm2781, %v5573, %v5536
  %v5575 = vrot.slane %v5536, 4
  %v5576 = vsel %vm2781, %v5560, %v5575
  %v5577 = vrot.slane %v5564, 4
  %v5578 = vsel %vm2781, %v5577, %v5540
  %v5579 = vrot.slane %v5540, 4
  %v5580 = vsel %vm2781, %v5564, %v5579
  %v5581 = vrot.slane %v2297, 4
  %v5582 = vsel %vm2781, %v5581, %v2279
  %v5583 = vrot.slane %v2279, 4
  %v5584 = vsel %vm2781, %v2297, %v5583
  %v5586 = vunpack.c.l.s4 1983009808
  %v5587 = vunpack.c.0.s8 %v5586
  %v5588 = vperm.slane %v5582, %v5587
  %v5590 = vunpack.c.l.s4 1983009808
  %v5591 = vunpack.c.0.s8 %v5590
  %v5592 = vperm.slane %v5584, %v5591
  %v5593 = vrot.slane %v2306, 4
  %v5594 = vsel %vm2781, %v5593, %v2288
  %v5595 = vrot.slane %v2288, 4
  %v5596 = vsel %vm2781, %v2306, %v5595
  %v5598 = vunpack.c.l.s4 1983009808
  %v5599 = vunpack.c.0.s8 %v5598
  %v5600 = vperm.slane %v5594, %v5599
  %v5602 = vunpack.c.l.s4 1983009808
  %v5603 = vunpack.c.0.s8 %v5602
  %v5604 = vperm.slane %v5596, %v5603
  %v5605 = vrot.slane %v2333, 4
  %v5606 = vsel %vm2781, %v5605, %v2315
  %v5607 = vrot.slane %v2315, 4
  %v5608 = vsel %vm2781, %v2333, %v5607
  %v5610 = vunpack.c.l.s4 1983009808
  %v5611 = vunpack.c.0.s8 %v5610
  %v5612 = vperm.slane %v5606, %v5611
  %v5614 = vunpack.c.l.s4 1983009808
  %v5615 = vunpack.c.0.s8 %v5614
  %v5616 = vperm.slane %v5608, %v5615
  %v5617 = vrot.slane %v2342, 4
  %v5618 = vsel %vm2781, %v5617, %v2324
  %v5619 = vrot.slane %v2324, 4
  %v5620 = vsel %vm2781, %v2342, %v5619
  %v5622 = vunpack.c.l.s4 1983009808
  %v5623 = vunpack.c.0.s8 %v5622
  %v5624 = vperm.slane %v5618, %v5623
  %v5626 = vunpack.c.l.s4 1983009808
  %v5627 = vunpack.c.0.s8 %v5626
  %v5628 = vperm.slane %v5620, %v5627
  %v5629 = vrot.slane %v5600, 4
  %v5630 = vsel %vm2781, %v5629, %v5588
  %v5631 = vrot.slane %v5588, 4
  %v5632 = vsel %vm2781, %v5600, %v5631
  %v5634 = vunpack.c.l.s4 1934713408
  %v5635 = vunpack.c.0.s8 %v5634
  %v5636 = vperm.slane %v5630, %v5635
  %v5638 = vunpack.c.l.s4 1934713408
  %v5639 = vunpack.c.0.s8 %v5638
  %v5640 = vperm.slane %v5632, %v5639
  %v5641 = vrot.slane %v5604, 4
  %v5642 = vsel %vm2781, %v5641, %v5592
  %v5643 = vrot.slane %v5592, 4
  %v5644 = vsel %vm2781, %v5604, %v5643
  %v5646 = vunpack.c.l.s4 1934713408
  %v5647 = vunpack.c.0.s8 %v5646
  %v5648 = vperm.slane %v5642, %v5647
  %v5650 = vunpack.c.l.s4 1934713408
  %v5651 = vunpack.c.0.s8 %v5650
  %v5652 = vperm.slane %v5644, %v5651
  %v5653 = vrot.slane %v5624, 4
  %v5654 = vsel %vm2781, %v5653, %v5612
  %v5655 = vrot.slane %v5612, 4
  %v5656 = vsel %vm2781, %v5624, %v5655
  %v5658 = vunpack.c.l.s4 1934713408
  %v5659 = vunpack.c.0.s8 %v5658
  %v5660 = vperm.slane %v5654, %v5659
  %v5662 = vunpack.c.l.s4 1934713408
  %v5663 = vunpack.c.0.s8 %v5662
  %v5664 = vperm.slane %v5656, %v5663
  %v5665 = vrot.slane %v5628, 4
  %v5666 = vsel %vm2781, %v5665, %v5616
  %v5667 = vrot.slane %v5616, 4
  %v5668 = vsel %vm2781, %v5628, %v5667
  %v5670 = vunpack.c.l.s4 1934713408
  %v5671 = vunpack.c.0.s8 %v5670
  %v5672 = vperm.slane %v5666, %v5671
  %v5674 = vunpack.c.l.s4 1934713408
  %v5675 = vunpack.c.0.s8 %v5674
  %v5676 = vperm.slane %v5668, %v5675
  %v5677 = vrot.slane %v5660, 4
  %v5678 = vsel %vm2781, %v5677, %v5636
  %v5679 = vrot.slane %v5636, 4
  %v5680 = vsel %vm2781, %v5660, %v5679
  %v5681 = vrot.slane %v5664, 4
  %v5682 = vsel %vm2781, %v5681, %v5640
  %v5683 = vrot.slane %v5640, 4
  %v5684 = vsel %vm2781, %v5664, %v5683
  %v5685 = vrot.slane %v5672, 4
  %v5686 = vsel %vm2781, %v5685, %v5648
  %v5687 = vrot.slane %v5648, 4
  %v5688 = vsel %vm2781, %v5672, %v5687
  %v5689 = vrot.slane %v5676, 4
  %v5690 = vsel %vm2781, %v5689, %v5652
  %v5691 = vrot.slane %v5652, 4
  %v5692 = vsel %vm2781, %v5676, %v5691
  %v5693 = vrot.slane %v2369, 4
  %v5694 = vsel %vm2781, %v5693, %v2351
  %v5695 = vrot.slane %v2351, 4
  %v5696 = vsel %vm2781, %v2369, %v5695
  %v5698 = vunpack.c.l.s4 1983009808
  %v5699 = vunpack.c.0.s8 %v5698
  %v5700 = vperm.slane %v5694, %v5699
  %v5702 = vunpack.c.l.s4 1983009808
  %v5703 = vunpack.c.0.s8 %v5702
  %v5704 = vperm.slane %v5696, %v5703
  %v5705 = vrot.slane %v2378, 4
  %v5706 = vsel %vm2781, %v5705, %v2360
  %v5707 = vrot.slane %v2360, 4
  %v5708 = vsel %vm2781, %v2378, %v5707
  %v5710 = vunpack.c.l.s4 1983009808
  %v5711 = vunpack.c.0.s8 %v5710
  %v5712 = vperm.slane %v5706, %v5711
  %v5714 = vunpack.c.l.s4 1983009808
  %v5715 = vunpack.c.0.s8 %v5714
  %v5716 = vperm.slane %v5708, %v5715
  %v5717 = vrot.slane %v2405, 4
  %v5718 = vsel %vm2781, %v5717, %v2387
  %v5719 = vrot.slane %v2387, 4
  %v5720 = vsel %vm2781, %v2405, %v5719
  %v5722 = vunpack.c.l.s4 1983009808
  %v5723 = vunpack.c.0.s8 %v5722
  %v5724 = vperm.slane %v5718, %v5723
  %v5726 = vunpack.c.l.s4 1983009808
  %v5727 = vunpack.c.0.s8 %v5726
  %v5728 = vperm.slane %v5720, %v5727
  %v5729 = vrot.slane %v2414, 4
  %v5730 = vsel %vm2781, %v5729, %v2396
  %v5731 = vrot.slane %v2396, 4
  %v5732 = vsel %vm2781, %v2414, %v5731
  %v5734 = vunpack.c.l.s4 1983009808
  %v5735 = vunpack.c.0.s8 %v5734
  %v5736 = vperm.slane %v5730, %v5735
  %v5738 = vunpack.c.l.s4 1983009808
  %v5739 = vunpack.c.0.s8 %v5738
  %v5740 = vperm.slane %v5732, %v5739
  %v5741 = vrot.slane %v5712, 4
  %v5742 = vsel %vm2781, %v5741, %v5700
  %v5743 = vrot.slane %v5700, 4
  %v5744 = vsel %vm2781, %v5712, %v5743
  %v5746 = vunpack.c.l.s4 1934713408
  %v5747 = vunpack.c.0.s8 %v5746
  %v5748 = vperm.slane %v5742, %v5747
  %v5750 = vunpack.c.l.s4 1934713408
  %v5751 = vunpack.c.0.s8 %v5750
  %v5752 = vperm.slane %v5744, %v5751
  %v5753 = vrot.slane %v5716, 4
  %v5754 = vsel %vm2781, %v5753, %v5704
  %v5755 = vrot.slane %v5704, 4
  %v5756 = vsel %vm2781, %v5716, %v5755
  %v5758 = vunpack.c.l.s4 1934713408
  %v5759 = vunpack.c.0.s8 %v5758
  %v5760 = vperm.slane %v5754, %v5759
  %v5762 = vunpack.c.l.s4 1934713408
  %v5763 = vunpack.c.0.s8 %v5762
  %v5764 = vperm.slane %v5756, %v5763
  %v5765 = vrot.slane %v5736, 4
  %v5766 = vsel %vm2781, %v5765, %v5724
  %v5767 = vrot.slane %v5724, 4
  %v5768 = vsel %vm2781, %v5736, %v5767
  %v5770 = vunpack.c.l.s4 1934713408
  %v5771 = vunpack.c.0.s8 %v5770
  %v5772 = vperm.slane %v5766, %v5771
  %v5774 = vunpack.c.l.s4 1934713408
  %v5775 = vunpack.c.0.s8 %v5774
  %v5776 = vperm.slane %v5768, %v5775
  %v5777 = vrot.slane %v5740, 4
  %v5778 = vsel %vm2781, %v5777, %v5728
  %v5779 = vrot.slane %v5728, 4
  %v5780 = vsel %vm2781, %v5740, %v5779
  %v5782 = vunpack.c.l.s4 1934713408
  %v5783 = vunpack.c.0.s8 %v5782
  %v5784 = vperm.slane %v5778, %v5783
  %v5786 = vunpack.c.l.s4 1934713408
  %v5787 = vunpack.c.0.s8 %v5786
  %v5788 = vperm.slane %v5780, %v5787
  %v5789 = vrot.slane %v5772, 4
  %v5790 = vsel %vm2781, %v5789, %v5748
  %v5791 = vrot.slane %v5748, 4
  %v5792 = vsel %vm2781, %v5772, %v5791
  %v5793 = vrot.slane %v5776, 4
  %v5794 = vsel %vm2781, %v5793, %v5752
  %v5795 = vrot.slane %v5752, 4
  %v5796 = vsel %vm2781, %v5776, %v5795
  %v5797 = vrot.slane %v5784, 4
  %v5798 = vsel %vm2781, %v5797, %v5760
  %v5799 = vrot.slane %v5760, 4
  %v5800 = vsel %vm2781, %v5784, %v5799
  %v5801 = vrot.slane %v5788, 4
  %v5802 = vsel %vm2781, %v5801, %v5764
  %v5803 = vrot.slane %v5764, 4
  %v5804 = vsel %vm2781, %v5788, %v5803
  %v5805 = vrot.slane %v2441, 4
  %v5806 = vsel %vm2781, %v5805, %v2423
  %v5807 = vrot.slane %v2423, 4
  %v5808 = vsel %vm2781, %v2441, %v5807
  %v5810 = vunpack.c.l.s4 1983009808
  %v5811 = vunpack.c.0.s8 %v5810
  %v5812 = vperm.slane %v5806, %v5811
  %v5814 = vunpack.c.l.s4 1983009808
  %v5815 = vunpack.c.0.s8 %v5814
  %v5816 = vperm.slane %v5808, %v5815
  %v5817 = vrot.slane %v2450, 4
  %v5818 = vsel %vm2781, %v5817, %v2432
  %v5819 = vrot.slane %v2432, 4
  %v5820 = vsel %vm2781, %v2450, %v5819
  %v5822 = vunpack.c.l.s4 1983009808
  %v5823 = vunpack.c.0.s8 %v5822
  %v5824 = vperm.slane %v5818, %v5823
  %v5826 = vunpack.c.l.s4 1983009808
  %v5827 = vunpack.c.0.s8 %v5826
  %v5828 = vperm.slane %v5820, %v5827
  %v5829 = vrot.slane %v2477, 4
  %v5830 = vsel %vm2781, %v5829, %v2459
  %v5831 = vrot.slane %v2459, 4
  %v5832 = vsel %vm2781, %v2477, %v5831
  %v5834 = vunpack.c.l.s4 1983009808
  %v5835 = vunpack.c.0.s8 %v5834
  %v5836 = vperm.slane %v5830, %v5835
  %v5838 = vunpack.c.l.s4 1983009808
  %v5839 = vunpack.c.0.s8 %v5838
  %v5840 = vperm.slane %v5832, %v5839
  %v5841 = vrot.slane %v2486, 4
  %v5842 = vsel %vm2781, %v5841, %v2468
  %v5843 = vrot.slane %v2468, 4
  %v5844 = vsel %vm2781, %v2486, %v5843
  %v5846 = vunpack.c.l.s4 1983009808
  %v5847 = vunpack.c.0.s8 %v5846
  %v5848 = vperm.slane %v5842, %v5847
  %v5850 = vunpack.c.l.s4 1983009808
  %v5851 = vunpack.c.0.s8 %v5850
  %v5852 = vperm.slane %v5844, %v5851
  %v5853 = vrot.slane %v5824, 4
  %v5854 = vsel %vm2781, %v5853, %v5812
  %v5855 = vrot.slane %v5812, 4
  %v5856 = vsel %vm2781, %v5824, %v5855
  %v5858 = vunpack.c.l.s4 1934713408
  %v5859 = vunpack.c.0.s8 %v5858
  %v5860 = vperm.slane %v5854, %v5859
  %v5862 = vunpack.c.l.s4 1934713408
  %v5863 = vunpack.c.0.s8 %v5862
  %v5864 = vperm.slane %v5856, %v5863
  %v5865 = vrot.slane %v5828, 4
  %v5866 = vsel %vm2781, %v5865, %v5816
  %v5867 = vrot.slane %v5816, 4
  %v5868 = vsel %vm2781, %v5828, %v5867
  %v5870 = vunpack.c.l.s4 1934713408
  %v5871 = vunpack.c.0.s8 %v5870
  %v5872 = vperm.slane %v5866, %v5871
  %v5874 = vunpack.c.l.s4 1934713408
  %v5875 = vunpack.c.0.s8 %v5874
  %v5876 = vperm.slane %v5868, %v5875
  %v5877 = vrot.slane %v5848, 4
  %v5878 = vsel %vm2781, %v5877, %v5836
  %v5879 = vrot.slane %v5836, 4
  %v5880 = vsel %vm2781, %v5848, %v5879
  %v5882 = vunpack.c.l.s4 1934713408
  %v5883 = vunpack.c.0.s8 %v5882
  %v5884 = vperm.slane %v5878, %v5883
  %v5886 = vunpack.c.l.s4 1934713408
  %v5887 = vunpack.c.0.s8 %v5886
  %v5888 = vperm.slane %v5880, %v5887
  %v5889 = vrot.slane %v5852, 4
  %v5890 = vsel %vm2781, %v5889, %v5840
  %v5891 = vrot.slane %v5840, 4
  %v5892 = vsel %vm2781, %v5852, %v5891
  %v5894 = vunpack.c.l.s4 1934713408
  %v5895 = vunpack.c.0.s8 %v5894
  %v5896 = vperm.slane %v5890, %v5895
  %v5898 = vunpack.c.l.s4 1934713408
  %v5899 = vunpack.c.0.s8 %v5898
  %v5900 = vperm.slane %v5892, %v5899
  %v5901 = vrot.slane %v5884, 4
  %v5902 = vsel %vm2781, %v5901, %v5860
  %v5903 = vrot.slane %v5860, 4
  %v5904 = vsel %vm2781, %v5884, %v5903
  %v5905 = vrot.slane %v5888, 4
  %v5906 = vsel %vm2781, %v5905, %v5864
  %v5907 = vrot.slane %v5864, 4
  %v5908 = vsel %vm2781, %v5888, %v5907
  %v5909 = vrot.slane %v5896, 4
  %v5910 = vsel %vm2781, %v5909, %v5872
  %v5911 = vrot.slane %v5872, 4
  %v5912 = vsel %vm2781, %v5896, %v5911
  %v5913 = vrot.slane %v5900, 4
  %v5914 = vsel %vm2781, %v5913, %v5876
  %v5915 = vrot.slane %v5876, 4
  %v5916 = vsel %vm2781, %v5900, %v5915
  %v5917 = vrot.slane %v2513, 4
  %v5918 = vsel %vm2781, %v5917, %v2495
  %v5919 = vrot.slane %v2495, 4
  %v5920 = vsel %vm2781, %v2513, %v5919
  %v5922 = vunpack.c.l.s4 1983009808
  %v5923 = vunpack.c.0.s8 %v5922
  %v5924 = vperm.slane %v5918, %v5923
  %v5926 = vunpack.c.l.s4 1983009808
  %v5927 = vunpack.c.0.s8 %v5926
  %v5928 = vperm.slane %v5920, %v5927
  %v5929 = vrot.slane %v2522, 4
  %v5930 = vsel %vm2781, %v5929, %v2504
  %v5931 = vrot.slane %v2504, 4
  %v5932 = vsel %vm2781, %v2522, %v5931
  %v5934 = vunpack.c.l.s4 1983009808
  %v5935 = vunpack.c.0.s8 %v5934
  %v5936 = vperm.slane %v5930, %v5935
  %v5938 = vunpack.c.l.s4 1983009808
  %v5939 = vunpack.c.0.s8 %v5938
  %v5940 = vperm.slane %v5932, %v5939
  %v5941 = vrot.slane %v2549, 4
  %v5942 = vsel %vm2781, %v5941, %v2531
  %v5943 = vrot.slane %v2531, 4
  %v5944 = vsel %vm2781, %v2549, %v5943
  %v5946 = vunpack.c.l.s4 1983009808
  %v5947 = vunpack.c.0.s8 %v5946
  %v5948 = vperm.slane %v5942, %v5947
  %v5950 = vunpack.c.l.s4 1983009808
  %v5951 = vunpack.c.0.s8 %v5950
  %v5952 = vperm.slane %v5944, %v5951
  %v5953 = vrot.slane %v2558, 4
  %v5954 = vsel %vm2781, %v5953, %v2540
  %v5955 = vrot.slane %v2540, 4
  %v5956 = vsel %vm2781, %v2558, %v5955
  %v5958 = vunpack.c.l.s4 1983009808
  %v5959 = vunpack.c.0.s8 %v5958
  %v5960 = vperm.slane %v5954, %v5959
  %v5962 = vunpack.c.l.s4 1983009808
  %v5963 = vunpack.c.0.s8 %v5962
  %v5964 = vperm.slane %v5956, %v5963
  %v5965 = vrot.slane %v5936, 4
  %v5966 = vsel %vm2781, %v5965, %v5924
  %v5967 = vrot.slane %v5924, 4
  %v5968 = vsel %vm2781, %v5936, %v5967
  %v5970 = vunpack.c.l.s4 1934713408
  %v5971 = vunpack.c.0.s8 %v5970
  %v5972 = vperm.slane %v5966, %v5971
  %v5974 = vunpack.c.l.s4 1934713408
  %v5975 = vunpack.c.0.s8 %v5974
  %v5976 = vperm.slane %v5968, %v5975
  %v5977 = vrot.slane %v5940, 4
  %v5978 = vsel %vm2781, %v5977, %v5928
  %v5979 = vrot.slane %v5928, 4
  %v5980 = vsel %vm2781, %v5940, %v5979
  %v5982 = vunpack.c.l.s4 1934713408
  %v5983 = vunpack.c.0.s8 %v5982
  %v5984 = vperm.slane %v5978, %v5983
  %v5986 = vunpack.c.l.s4 1934713408
  %v5987 = vunpack.c.0.s8 %v5986
  %v5988 = vperm.slane %v5980, %v5987
  %v5989 = vrot.slane %v5960, 4
  %v5990 = vsel %vm2781, %v5989, %v5948
  %v5991 = vrot.slane %v5948, 4
  %v5992 = vsel %vm2781, %v5960, %v5991
  %v5994 = vunpack.c.l.s4 1934713408
  %v5995 = vunpack.c.0.s8 %v5994
  %v5996 = vperm.slane %v5990, %v5995
  %v5998 = vunpack.c.l.s4 1934713408
  %v5999 = vunpack.c.0.s8 %v5998
  %v6000 = vperm.slane %v5992, %v5999
  %v6001 = vrot.slane %v5964, 4
  %v6002 = vsel %vm2781, %v6001, %v5952
  %v6003 = vrot.slane %v5952, 4
  %v6004 = vsel %vm2781, %v5964, %v6003
  %v6006 = vunpack.c.l.s4 1934713408
  %v6007 = vunpack.c.0.s8 %v6006
  %v6008 = vperm.slane %v6002, %v6007
  %v6010 = vunpack.c.l.s4 1934713408
  %v6011 = vunpack.c.0.s8 %v6010
  %v6012 = vperm.slane %v6004, %v6011
  %v6013 = vrot.slane %v5996, 4
  %v6014 = vsel %vm2781, %v6013, %v5972
  %v6015 = vrot.slane %v5972, 4
  %v6016 = vsel %vm2781, %v5996, %v6015
  %v6017 = vrot.slane %v6000, 4
  %v6018 = vsel %vm2781, %v6017, %v5976
  %v6019 = vrot.slane %v5976, 4
  %v6020 = vsel %vm2781, %v6000, %v6019
  %v6021 = vrot.slane %v6008, 4
  %v6022 = vsel %vm2781, %v6021, %v5984
  %v6023 = vrot.slane %v5984, 4
  %v6024 = vsel %vm2781, %v6008, %v6023
  %v6025 = vrot.slane %v6012, 4
  %v6026 = vsel %vm2781, %v6025, %v5988
  %v6027 = vrot.slane %v5988, 4
  %v6028 = vsel %vm2781, %v6012, %v6027
  %v6029 = vrot.slane %v2585, 4
  %v6030 = vsel %vm2781, %v6029, %v2567
  %v6031 = vrot.slane %v2567, 4
  %v6032 = vsel %vm2781, %v2585, %v6031
  %v6034 = vunpack.c.l.s4 1983009808
  %v6035 = vunpack.c.0.s8 %v6034
  %v6036 = vperm.slane %v6030, %v6035
  %v6038 = vunpack.c.l.s4 1983009808
  %v6039 = vunpack.c.0.s8 %v6038
  %v6040 = vperm.slane %v6032, %v6039
  %v6041 = vrot.slane %v2594, 4
  %v6042 = vsel %vm2781, %v6041, %v2576
  %v6043 = vrot.slane %v2576, 4
  %v6044 = vsel %vm2781, %v2594, %v6043
  %v6046 = vunpack.c.l.s4 1983009808
  %v6047 = vunpack.c.0.s8 %v6046
  %v6048 = vperm.slane %v6042, %v6047
  %v6050 = vunpack.c.l.s4 1983009808
  %v6051 = vunpack.c.0.s8 %v6050
  %v6052 = vperm.slane %v6044, %v6051
  %v6053 = vrot.slane %v2621, 4
  %v6054 = vsel %vm2781, %v6053, %v2603
  %v6055 = vrot.slane %v2603, 4
  %v6056 = vsel %vm2781, %v2621, %v6055
  %v6058 = vunpack.c.l.s4 1983009808
  %v6059 = vunpack.c.0.s8 %v6058
  %v6060 = vperm.slane %v6054, %v6059
  %v6062 = vunpack.c.l.s4 1983009808
  %v6063 = vunpack.c.0.s8 %v6062
  %v6064 = vperm.slane %v6056, %v6063
  %v6065 = vrot.slane %v2630, 4
  %v6066 = vsel %vm2781, %v6065, %v2612
  %v6067 = vrot.slane %v2612, 4
  %v6068 = vsel %vm2781, %v2630, %v6067
  %v6070 = vunpack.c.l.s4 1983009808
  %v6071 = vunpack.c.0.s8 %v6070
  %v6072 = vperm.slane %v6066, %v6071
  %v6074 = vunpack.c.l.s4 1983009808
  %v6075 = vunpack.c.0.s8 %v6074
  %v6076 = vperm.slane %v6068, %v6075
  %v6077 = vrot.slane %v6048, 4
  %v6078 = vsel %vm2781, %v6077, %v6036
  %v6079 = vrot.slane %v6036, 4
  %v6080 = vsel %vm2781, %v6048, %v6079
  %v6082 = vunpack.c.l.s4 1934713408
  %v6083 = vunpack.c.0.s8 %v6082
  %v6084 = vperm.slane %v6078, %v6083
  %v6086 = vunpack.c.l.s4 1934713408
  %v6087 = vunpack.c.0.s8 %v6086
  %v6088 = vperm.slane %v6080, %v6087
  %v6089 = vrot.slane %v6052, 4
  %v6090 = vsel %vm2781, %v6089, %v6040
  %v6091 = vrot.slane %v6040, 4
  %v6092 = vsel %vm2781, %v6052, %v6091
  %v6094 = vunpack.c.l.s4 1934713408
  %v6095 = vunpack.c.0.s8 %v6094
  %v6096 = vperm.slane %v6090, %v6095
  %v6098 = vunpack.c.l.s4 1934713408
  %v6099 = vunpack.c.0.s8 %v6098
  %v6100 = vperm.slane %v6092, %v6099
  %v6101 = vrot.slane %v6072, 4
  %v6102 = vsel %vm2781, %v6101, %v6060
  %v6103 = vrot.slane %v6060, 4
  %v6104 = vsel %vm2781, %v6072, %v6103
  %v6106 = vunpack.c.l.s4 1934713408
  %v6107 = vunpack.c.0.s8 %v6106
  %v6108 = vperm.slane %v6102, %v6107
  %v6110 = vunpack.c.l.s4 1934713408
  %v6111 = vunpack.c.0.s8 %v6110
  %v6112 = vperm.slane %v6104, %v6111
  %v6113 = vrot.slane %v6076, 4
  %v6114 = vsel %vm2781, %v6113, %v6064
  %v6115 = vrot.slane %v6064, 4
  %v6116 = vsel %vm2781, %v6076, %v6115
  %v6118 = vunpack.c.l.s4 1934713408
  %v6119 = vunpack.c.0.s8 %v6118
  %v6120 = vperm.slane %v6114, %v6119
  %v6122 = vunpack.c.l.s4 1934713408
  %v6123 = vunpack.c.0.s8 %v6122
  %v6124 = vperm.slane %v6116, %v6123
  %v6125 = vrot.slane %v6108, 4
  %v6126 = vsel %vm2781, %v6125, %v6084
  %v6127 = vrot.slane %v6084, 4
  %v6128 = vsel %vm2781, %v6108, %v6127
  %v6129 = vrot.slane %v6112, 4
  %v6130 = vsel %vm2781, %v6129, %v6088
  %v6131 = vrot.slane %v6088, 4
  %v6132 = vsel %vm2781, %v6112, %v6131
  %v6133 = vrot.slane %v6120, 4
  %v6134 = vsel %vm2781, %v6133, %v6096
  %v6135 = vrot.slane %v6096, 4
  %v6136 = vsel %vm2781, %v6120, %v6135
  %v6137 = vrot.slane %v6124, 4
  %v6138 = vsel %vm2781, %v6137, %v6100
  %v6139 = vrot.slane %v6100, 4
  %v6140 = vsel %vm2781, %v6124, %v6139
  %v6141 = vrot.slane %v2657, 4
  %v6142 = vsel %vm2781, %v6141, %v2639
  %v6143 = vrot.slane %v2639, 4
  %v6144 = vsel %vm2781, %v2657, %v6143
  %v6146 = vunpack.c.l.s4 1983009808
  %v6147 = vunpack.c.0.s8 %v6146
  %v6148 = vperm.slane %v6142, %v6147
  %v6150 = vunpack.c.l.s4 1983009808
  %v6151 = vunpack.c.0.s8 %v6150
  %v6152 = vperm.slane %v6144, %v6151
  %v6153 = vrot.slane %v2666, 4
  %v6154 = vsel %vm2781, %v6153, %v2648
  %v6155 = vrot.slane %v2648, 4
  %v6156 = vsel %vm2781, %v2666, %v6155
  %v6158 = vunpack.c.l.s4 1983009808
  %v6159 = vunpack.c.0.s8 %v6158
  %v6160 = vperm.slane %v6154, %v6159
  %v6162 = vunpack.c.l.s4 1983009808
  %v6163 = vunpack.c.0.s8 %v6162
  %v6164 = vperm.slane %v6156, %v6163
  %v6165 = vrot.slane %v2693, 4
  %v6166 = vsel %vm2781, %v6165, %v2675
  %v6167 = vrot.slane %v2675, 4
  %v6168 = vsel %vm2781, %v2693, %v6167
  %v6170 = vunpack.c.l.s4 1983009808
  %v6171 = vunpack.c.0.s8 %v6170
  %v6172 = vperm.slane %v6166, %v6171
  %v6174 = vunpack.c.l.s4 1983009808
  %v6175 = vunpack.c.0.s8 %v6174
  %v6176 = vperm.slane %v6168, %v6175
  %v6177 = vrot.slane %v2702, 4
  %v6178 = vsel %vm2781, %v6177, %v2684
  %v6179 = vrot.slane %v2684, 4
  %v6180 = vsel %vm2781, %v2702, %v6179
  %v6182 = vunpack.c.l.s4 1983009808
  %v6183 = vunpack.c.0.s8 %v6182
  %v6184 = vperm.slane %v6178, %v6183
  %v6186 = vunpack.c.l.s4 1983009808
  %v6187 = vunpack.c.0.s8 %v6186
  %v6188 = vperm.slane %v6180, %v6187
  %v6189 = vrot.slane %v6160, 4
  %v6190 = vsel %vm2781, %v6189, %v6148
  %v6191 = vrot.slane %v6148, 4
  %v6192 = vsel %vm2781, %v6160, %v6191
  %v6194 = vunpack.c.l.s4 1934713408
  %v6195 = vunpack.c.0.s8 %v6194
  %v6196 = vperm.slane %v6190, %v6195
  %v6198 = vunpack.c.l.s4 1934713408
  %v6199 = vunpack.c.0.s8 %v6198
  %v6200 = vperm.slane %v6192, %v6199
  %v6201 = vrot.slane %v6164, 4
  %v6202 = vsel %vm2781, %v6201, %v6152
  %v6203 = vrot.slane %v6152, 4
  %v6204 = vsel %vm2781, %v6164, %v6203
  %v6206 = vunpack.c.l.s4 1934713408
  %v6207 = vunpack.c.0.s8 %v6206
  %v6208 = vperm.slane %v6202, %v6207
  %v6210 = vunpack.c.l.s4 1934713408
  %v6211 = vunpack.c.0.s8 %v6210
  %v6212 = vperm.slane %v6204, %v6211
  %v6213 = vrot.slane %v6184, 4
  %v6214 = vsel %vm2781, %v6213, %v6172
  %v6215 = vrot.slane %v6172, 4
  %v6216 = vsel %vm2781, %v6184, %v6215
  %v6218 = vunpack.c.l.s4 1934713408
  %v6219 = vunpack.c.0.s8 %v6218
  %v6220 = vperm.slane %v6214, %v6219
  %v6222 = vunpack.c.l.s4 1934713408
  %v6223 = vunpack.c.0.s8 %v6222
  %v6224 = vperm.slane %v6216, %v6223
  %v6225 = vrot.slane %v6188, 4
  %v6226 = vsel %vm2781, %v6225, %v6176
  %v6227 = vrot.slane %v6176, 4
  %v6228 = vsel %vm2781, %v6188, %v6227
  %v6230 = vunpack.c.l.s4 1934713408
  %v6231 = vunpack.c.0.s8 %v6230
  %v6232 = vperm.slane %v6226, %v6231
  %v6234 = vunpack.c.l.s4 1934713408
  %v6235 = vunpack.c.0.s8 %v6234
  %v6236 = vperm.slane %v6228, %v6235
  %v6237 = vrot.slane %v6220, 4
  %v6238 = vsel %vm2781, %v6237, %v6196
  %v6239 = vrot.slane %v6196, 4
  %v6240 = vsel %vm2781, %v6220, %v6239
  %v6241 = vrot.slane %v6224, 4
  %v6242 = vsel %vm2781, %v6241, %v6200
  %v6243 = vrot.slane %v6200, 4
  %v6244 = vsel %vm2781, %v6224, %v6243
  %v6245 = vrot.slane %v6232, 4
  %v6246 = vsel %vm2781, %v6245, %v6208
  %v6247 = vrot.slane %v6208, 4
  %v6248 = vsel %vm2781, %v6232, %v6247
  %v6249 = vrot.slane %v6236, 4
  %v6250 = vsel %vm2781, %v6249, %v6212
  %v6251 = vrot.slane %v6212, 4
  %v6252 = vsel %vm2781, %v6236, %v6251
  %v6253 = vrot.slane %v2729, 4
  %v6254 = vsel %vm2781, %v6253, %v2711
  %v6255 = vrot.slane %v2711, 4
  %v6256 = vsel %vm2781, %v2729, %v6255
  %v6258 = vunpack.c.l.s4 1983009808
  %v6259 = vunpack.c.0.s8 %v6258
  %v6260 = vperm.slane %v6254, %v6259
  %v6262 = vunpack.c.l.s4 1983009808
  %v6263 = vunpack.c.0.s8 %v6262
  %v6264 = vperm.slane %v6256, %v6263
  %v6265 = vrot.slane %v2738, 4
  %v6266 = vsel %vm2781, %v6265, %v2720
  %v6267 = vrot.slane %v2720, 4
  %v6268 = vsel %vm2781, %v2738, %v6267
  %v6270 = vunpack.c.l.s4 1983009808
  %v6271 = vunpack.c.0.s8 %v6270
  %v6272 = vperm.slane %v6266, %v6271
  %v6274 = vunpack.c.l.s4 1983009808
  %v6275 = vunpack.c.0.s8 %v6274
  %v6276 = vperm.slane %v6268, %v6275
  %v6277 = vrot.slane %v2765, 4
  %v6278 = vsel %vm2781, %v6277, %v2747
  %v6279 = vrot.slane %v2747, 4
  %v6280 = vsel %vm2781, %v2765, %v6279
  %v6282 = vunpack.c.l.s4 1983009808
  %v6283 = vunpack.c.0.s8 %v6282
  %v6284 = vperm.slane %v6278, %v6283
  %v6286 = vunpack.c.l.s4 1983009808
  %v6287 = vunpack.c.0.s8 %v6286
  %v6288 = vperm.slane %v6280, %v6287
  %v6289 = vrot.slane %v2774, 4
  %v6290 = vsel %vm2781, %v6289, %v2756
  %v6291 = vrot.slane %v2756, 4
  %v6292 = vsel %vm2781, %v2774, %v6291
  %v6294 = vunpack.c.l.s4 1983009808
  %v6295 = vunpack.c.0.s8 %v6294
  %v6296 = vperm.slane %v6290, %v6295
  %v6298 = vunpack.c.l.s4 1983009808
  %v6299 = vunpack.c.0.s8 %v6298
  %v6300 = vperm.slane %v6292, %v6299
  %v6301 = vrot.slane %v6272, 4
  %v6302 = vsel %vm2781, %v6301, %v6260
  %v6303 = vrot.slane %v6260, 4
  %v6304 = vsel %vm2781, %v6272, %v6303
  %v6306 = vunpack.c.l.s4 1934713408
  %v6307 = vunpack.c.0.s8 %v6306
  %v6308 = vperm.slane %v6302, %v6307
  %v6310 = vunpack.c.l.s4 1934713408
  %v6311 = vunpack.c.0.s8 %v6310
  %v6312 = vperm.slane %v6304, %v6311
  %v6313 = vrot.slane %v6276, 4
  %v6314 = vsel %vm2781, %v6313, %v6264
  %v6315 = vrot.slane %v6264, 4
  %v6316 = vsel %vm2781, %v6276, %v6315
  %v6318 = vunpack.c.l.s4 1934713408
  %v6319 = vunpack.c.0.s8 %v6318
  %v6320 = vperm.slane %v6314, %v6319
  %v6322 = vunpack.c.l.s4 1934713408
  %v6323 = vunpack.c.0.s8 %v6322
  %v6324 = vperm.slane %v6316, %v6323
  %v6325 = vrot.slane %v6296, 4
  %v6326 = vsel %vm2781, %v6325, %v6284
  %v6327 = vrot.slane %v6284, 4
  %v6328 = vsel %vm2781, %v6296, %v6327
  %v6330 = vunpack.c.l.s4 1934713408
  %v6331 = vunpack.c.0.s8 %v6330
  %v6332 = vperm.slane %v6326, %v6331
  %v6334 = vunpack.c.l.s4 1934713408
  %v6335 = vunpack.c.0.s8 %v6334
  %v6336 = vperm.slane %v6328, %v6335
  %v6337 = vrot.slane %v6300, 4
  %v6338 = vsel %vm2781, %v6337, %v6288
  %v6339 = vrot.slane %v6288, 4
  %v6340 = vsel %vm2781, %v6300, %v6339
  %v6342 = vunpack.c.l.s4 1934713408
  %v6343 = vunpack.c.0.s8 %v6342
  %v6344 = vperm.slane %v6338, %v6343
  %v6346 = vunpack.c.l.s4 1934713408
  %v6347 = vunpack.c.0.s8 %v6346
  %v6348 = vperm.slane %v6340, %v6347
  %v6349 = vrot.slane %v6332, 4
  %v6350 = vsel %vm2781, %v6349, %v6308
  %v6351 = vrot.slane %v6308, 4
  %v6352 = vsel %vm2781, %v6332, %v6351
  %v6353 = vrot.slane %v6336, 4
  %v6354 = vsel %vm2781, %v6353, %v6312
  %v6355 = vrot.slane %v6312, 4
  %v6356 = vsel %vm2781, %v6336, %v6355
  %v6357 = vrot.slane %v6344, 4
  %v6358 = vsel %vm2781, %v6357, %v6320
  %v6359 = vrot.slane %v6320, 4
  %v6360 = vsel %vm2781, %v6344, %v6359
  %v6361 = vrot.slane %v6348, 4
  %v6362 = vsel %vm2781, %v6361, %v6324
  %v6363 = vrot.slane %v6324, 4
  %v6364 = vsel %vm2781, %v6348, %v6363
  %v6365 = vrot.slane %v1657, 4
  %v6366 = vsel %vm2781, %v6365, %v1638
  %v6367 = vrot.slane %v1638, 4
  %v6368 = vsel %vm2781, %v1657, %v6367
  %v6370 = vunpack.c.l.s4 1983009808
  %v6371 = vunpack.c.0.s8 %v6370
  %v6372 = vperm.slane %v6366, %v6371
  %v6374 = vunpack.c.l.s4 1983009808
  %v6375 = vunpack.c.0.s8 %v6374
  %v6376 = vperm.slane %v6368, %v6375
  %v6377 = vrot.slane %v1666, 4
  %v6378 = vsel %vm2781, %v6377, %v1648
  %v6379 = vrot.slane %v1648, 4
  %v6380 = vsel %vm2781, %v1666, %v6379
  %v6382 = vunpack.c.l.s4 1983009808
  %v6383 = vunpack.c.0.s8 %v6382
  %v6384 = vperm.slane %v6378, %v6383
  %v6386 = vunpack.c.l.s4 1983009808
  %v6387 = vunpack.c.0.s8 %v6386
  %v6388 = vperm.slane %v6380, %v6387
  %v6389 = vrot.slane %v1693, 4
  %v6390 = vsel %vm2781, %v6389, %v1675
  %v6391 = vrot.slane %v1675, 4
  %v6392 = vsel %vm2781, %v1693, %v6391
  %v6394 = vunpack.c.l.s4 1983009808
  %v6395 = vunpack.c.0.s8 %v6394
  %v6396 = vperm.slane %v6390, %v6395
  %v6398 = vunpack.c.l.s4 1983009808
  %v6399 = vunpack.c.0.s8 %v6398
  %v6400 = vperm.slane %v6392, %v6399
  %v6401 = vrot.slane %v1702, 4
  %v6402 = vsel %vm2781, %v6401, %v1684
  %v6403 = vrot.slane %v1684, 4
  %v6404 = vsel %vm2781, %v1702, %v6403
  %v6406 = vunpack.c.l.s4 1983009808
  %v6407 = vunpack.c.0.s8 %v6406
  %v6408 = vperm.slane %v6402, %v6407
  %v6410 = vunpack.c.l.s4 1983009808
  %v6411 = vunpack.c.0.s8 %v6410
  %v6412 = vperm.slane %v6404, %v6411
  %v6413 = vrot.slane %v6384, 4
  %v6414 = vsel %vm2781, %v6413, %v6372
  %v6415 = vrot.slane %v6372, 4
  %v6416 = vsel %vm2781, %v6384, %v6415
  %v6418 = vunpack.c.l.s4 1934713408
  %v6419 = vunpack.c.0.s8 %v6418
  %v6420 = vperm.slane %v6414, %v6419
  %v6422 = vunpack.c.l.s4 1934713408
  %v6423 = vunpack.c.0.s8 %v6422
  %v6424 = vperm.slane %v6416, %v6423
  %v6425 = vrot.slane %v6388, 4
  %v6426 = vsel %vm2781, %v6425, %v6376
  %v6427 = vrot.slane %v6376, 4
  %v6428 = vsel %vm2781, %v6388, %v6427
  %v6430 = vunpack.c.l.s4 1934713408
  %v6431 = vunpack.c.0.s8 %v6430
  %v6432 = vperm.slane %v6426, %v6431
  %v6434 = vunpack.c.l.s4 1934713408
  %v6435 = vunpack.c.0.s8 %v6434
  %v6436 = vperm.slane %v6428, %v6435
  %v6437 = vrot.slane %v6408, 4
  %v6438 = vsel %vm2781, %v6437, %v6396
  %v6439 = vrot.slane %v6396, 4
  %v6440 = vsel %vm2781, %v6408, %v6439
  %v6442 = vunpack.c.l.s4 1934713408
  %v6443 = vunpack.c.0.s8 %v6442
  %v6444 = vperm.slane %v6438, %v6443
  %v6446 = vunpack.c.l.s4 1934713408
  %v6447 = vunpack.c.0.s8 %v6446
  %v6448 = vperm.slane %v6440, %v6447
  %v6449 = vrot.slane %v6412, 4
  %v6450 = vsel %vm2781, %v6449, %v6400
  %v6451 = vrot.slane %v6400, 4
  %v6452 = vsel %vm2781, %v6412, %v6451
  %v6454 = vunpack.c.l.s4 1934713408
  %v6455 = vunpack.c.0.s8 %v6454
  %v6456 = vperm.slane %v6450, %v6455
  %v6458 = vunpack.c.l.s4 1934713408
  %v6459 = vunpack.c.0.s8 %v6458
  %v6460 = vperm.slane %v6452, %v6459
  %v6461 = vrot.slane %v6444, 4
  %v6462 = vsel %vm2781, %v6461, %v6420
  %v6463 = vrot.slane %v6420, 4
  %v6464 = vsel %vm2781, %v6444, %v6463
  %v6465 = vrot.slane %v6448, 4
  %v6466 = vsel %vm2781, %v6465, %v6424
  %v6467 = vrot.slane %v6424, 4
  %v6468 = vsel %vm2781, %v6448, %v6467
  %v6469 = vrot.slane %v6456, 4
  %v6470 = vsel %vm2781, %v6469, %v6432
  %v6471 = vrot.slane %v6432, 4
  %v6472 = vsel %vm2781, %v6456, %v6471
  %v6473 = vrot.slane %v6460, 4
  %v6474 = vsel %vm2781, %v6473, %v6436
  %v6475 = vrot.slane %v6436, 4
  %v6476 = vsel %vm2781, %v6460, %v6475
  %v6477 = vrot.slane %v1729, 4
  %v6478 = vsel %vm2781, %v6477, %v1711
  %v6479 = vrot.slane %v1711, 4
  %v6480 = vsel %vm2781, %v1729, %v6479
  %v6482 = vunpack.c.l.s4 1983009808
  %v6483 = vunpack.c.0.s8 %v6482
  %v6484 = vperm.slane %v6478, %v6483
  %v6486 = vunpack.c.l.s4 1983009808
  %v6487 = vunpack.c.0.s8 %v6486
  %v6488 = vperm.slane %v6480, %v6487
  %v6489 = vrot.slane %v1738, 4
  %v6490 = vsel %vm2781, %v6489, %v1720
  %v6491 = vrot.slane %v1720, 4
  %v6492 = vsel %vm2781, %v1738, %v6491
  %v6494 = vunpack.c.l.s4 1983009808
  %v6495 = vunpack.c.0.s8 %v6494
  %v6496 = vperm.slane %v6490, %v6495
  %v6498 = vunpack.c.l.s4 1983009808
  %v6499 = vunpack.c.0.s8 %v6498
  %v6500 = vperm.slane %v6492, %v6499
  %v6501 = vrot.slane %v1765, 4
  %v6502 = vsel %vm2781, %v6501, %v1747
  %v6503 = vrot.slane %v1747, 4
  %v6504 = vsel %vm2781, %v1765, %v6503
  %v6506 = vunpack.c.l.s4 1983009808
  %v6507 = vunpack.c.0.s8 %v6506
  %v6508 = vperm.slane %v6502, %v6507
  %v6510 = vunpack.c.l.s4 1983009808
  %v6511 = vunpack.c.0.s8 %v6510
  %v6512 = vperm.slane %v6504, %v6511
  %v6513 = vrot.slane %v1774, 4
  %v6514 = vsel %vm2781, %v6513, %v1756
  %v6515 = vrot.slane %v1756, 4
  %v6516 = vsel %vm2781, %v1774, %v6515
  %v6518 = vunpack.c.l.s4 1983009808
  %v6519 = vunpack.c.0.s8 %v6518
  %v6520 = vperm.slane %v6514, %v6519
  %v6522 = vunpack.c.l.s4 1983009808
  %v6523 = vunpack.c.0.s8 %v6522
  %v6524 = vperm.slane %v6516, %v6523
  %v6525 = vrot.slane %v6496, 4
  %v6526 = vsel %vm2781, %v6525, %v6484
  %v6527 = vrot.slane %v6484, 4
  %v6528 = vsel %vm2781, %v6496, %v6527
  %v6530 = vunpack.c.l.s4 1934713408
  %v6531 = vunpack.c.0.s8 %v6530
  %v6532 = vperm.slane %v6526, %v6531
  %v6534 = vunpack.c.l.s4 1934713408
  %v6535 = vunpack.c.0.s8 %v6534
  %v6536 = vperm.slane %v6528, %v6535
  %v6537 = vrot.slane %v6500, 4
  %v6538 = vsel %vm2781, %v6537, %v6488
  %v6539 = vrot.slane %v6488, 4
  %v6540 = vsel %vm2781, %v6500, %v6539
  %v6542 = vunpack.c.l.s4 1934713408
  %v6543 = vunpack.c.0.s8 %v6542
  %v6544 = vperm.slane %v6538, %v6543
  %v6546 = vunpack.c.l.s4 1934713408
  %v6547 = vunpack.c.0.s8 %v6546
  %v6548 = vperm.slane %v6540, %v6547
  %v6549 = vrot.slane %v6520, 4
  %v6550 = vsel %vm2781, %v6549, %v6508
  %v6551 = vrot.slane %v6508, 4
  %v6552 = vsel %vm2781, %v6520, %v6551
  %v6554 = vunpack.c.l.s4 1934713408
  %v6555 = vunpack.c.0.s8 %v6554
  %v6556 = vperm.slane %v6550, %v6555
  %v6558 = vunpack.c.l.s4 1934713408
  %v6559 = vunpack.c.0.s8 %v6558
  %v6560 = vperm.slane %v6552, %v6559
  %v6561 = vrot.slane %v6524, 4
  %v6562 = vsel %vm2781, %v6561, %v6512
  %v6563 = vrot.slane %v6512, 4
  %v6564 = vsel %vm2781, %v6524, %v6563
  %v6566 = vunpack.c.l.s4 1934713408
  %v6567 = vunpack.c.0.s8 %v6566
  %v6568 = vperm.slane %v6562, %v6567
  %v6570 = vunpack.c.l.s4 1934713408
  %v6571 = vunpack.c.0.s8 %v6570
  %v6572 = vperm.slane %v6564, %v6571
  %v6573 = vrot.slane %v6556, 4
  %v6574 = vsel %vm2781, %v6573, %v6532
  %v6575 = vrot.slane %v6532, 4
  %v6576 = vsel %vm2781, %v6556, %v6575
  %v6577 = vrot.slane %v6560, 4
  %v6578 = vsel %vm2781, %v6577, %v6536
  %v6579 = vrot.slane %v6536, 4
  %v6580 = vsel %vm2781, %v6560, %v6579
  %v6581 = vrot.slane %v6568, 4
  %v6582 = vsel %vm2781, %v6581, %v6544
  %v6583 = vrot.slane %v6544, 4
  %v6584 = vsel %vm2781, %v6568, %v6583
  %v6585 = vrot.slane %v6572, 4
  %v6586 = vsel %vm2781, %v6585, %v6548
  %v6587 = vrot.slane %v6548, 4
  %v6588 = vsel %vm2781, %v6572, %v6587
  %v6589 = vrot.slane %v1801, 4
  %v6590 = vsel %vm2781, %v6589, %v1783
  %v6591 = vrot.slane %v1783, 4
  %v6592 = vsel %vm2781, %v1801, %v6591
  %v6594 = vunpack.c.l.s4 1983009808
  %v6595 = vunpack.c.0.s8 %v6594
  %v6596 = vperm.slane %v6590, %v6595
  %v6598 = vunpack.c.l.s4 1983009808
  %v6599 = vunpack.c.0.s8 %v6598
  %v6600 = vperm.slane %v6592, %v6599
  %v6601 = vrot.slane %v1810, 4
  %v6602 = vsel %vm2781, %v6601, %v1792
  %v6603 = vrot.slane %v1792, 4
  %v6604 = vsel %vm2781, %v1810, %v6603
  %v6606 = vunpack.c.l.s4 1983009808
  %v6607 = vunpack.c.0.s8 %v6606
  %v6608 = vperm.slane %v6602, %v6607
  %v6610 = vunpack.c.l.s4 1983009808
  %v6611 = vunpack.c.0.s8 %v6610
  %v6612 = vperm.slane %v6604, %v6611
  %v6613 = vrot.slane %v1837, 4
  %v6614 = vsel %vm2781, %v6613, %v1819
  %v6615 = vrot.slane %v1819, 4
  %v6616 = vsel %vm2781, %v1837, %v6615
  %v6618 = vunpack.c.l.s4 1983009808
  %v6619 = vunpack.c.0.s8 %v6618
  %v6620 = vperm.slane %v6614, %v6619
  %v6622 = vunpack.c.l.s4 1983009808
  %v6623 = vunpack.c.0.s8 %v6622
  %v6624 = vperm.slane %v6616, %v6623
  %v6625 = vrot.slane %v1846, 4
  %v6626 = vsel %vm2781, %v6625, %v1828
  %v6627 = vrot.slane %v1828, 4
  %v6628 = vsel %vm2781, %v1846, %v6627
  %v6630 = vunpack.c.l.s4 1983009808
  %v6631 = vunpack.c.0.s8 %v6630
  %v6632 = vperm.slane %v6626, %v6631
  %v6634 = vunpack.c.l.s4 1983009808
  %v6635 = vunpack.c.0.s8 %v6634
  %v6636 = vperm.slane %v6628, %v6635
  %v6637 = vrot.slane %v6608, 4
  %v6638 = vsel %vm2781, %v6637, %v6596
  %v6639 = vrot.slane %v6596, 4
  %v6640 = vsel %vm2781, %v6608, %v6639
  %v6642 = vunpack.c.l.s4 1934713408
  %v6643 = vunpack.c.0.s8 %v6642
  %v6644 = vperm.slane %v6638, %v6643
  %v6646 = vunpack.c.l.s4 1934713408
  %v6647 = vunpack.c.0.s8 %v6646
  %v6648 = vperm.slane %v6640, %v6647
  %v6649 = vrot.slane %v6612, 4
  %v6650 = vsel %vm2781, %v6649, %v6600
  %v6651 = vrot.slane %v6600, 4
  %v6652 = vsel %vm2781, %v6612, %v6651
  %v6654 = vunpack.c.l.s4 1934713408
  %v6655 = vunpack.c.0.s8 %v6654
  %v6656 = vperm.slane %v6650, %v6655
  %v6658 = vunpack.c.l.s4 1934713408
  %v6659 = vunpack.c.0.s8 %v6658
  %v6660 = vperm.slane %v6652, %v6659
  %v6661 = vrot.slane %v6632, 4
  %v6662 = vsel %vm2781, %v6661, %v6620
  %v6663 = vrot.slane %v6620, 4
  %v6664 = vsel %vm2781, %v6632, %v6663
  %v6666 = vunpack.c.l.s4 1934713408
  %v6667 = vunpack.c.0.s8 %v6666
  %v6668 = vperm.slane %v6662, %v6667
  %v6670 = vunpack.c.l.s4 1934713408
  %v6671 = vunpack.c.0.s8 %v6670
  %v6672 = vperm.slane %v6664, %v6671
  %v6673 = vrot.slane %v6636, 4
  %v6674 = vsel %vm2781, %v6673, %v6624
  %v6675 = vrot.slane %v6624, 4
  %v6676 = vsel %vm2781, %v6636, %v6675
  %v6678 = vunpack.c.l.s4 1934713408
  %v6679 = vunpack.c.0.s8 %v6678
  %v6680 = vperm.slane %v6674, %v6679
  %v6682 = vunpack.c.l.s4 1934713408
  %v6683 = vunpack.c.0.s8 %v6682
  %v6684 = vperm.slane %v6676, %v6683
  %v6685 = vrot.slane %v6668, 4
  %v6686 = vsel %vm2781, %v6685, %v6644
  %v6687 = vrot.slane %v6644, 4
  %v6688 = vsel %vm2781, %v6668, %v6687
  %v6689 = vrot.slane %v6672, 4
  %v6690 = vsel %vm2781, %v6689, %v6648
  %v6691 = vrot.slane %v6648, 4
  %v6692 = vsel %vm2781, %v6672, %v6691
  %v6693 = vrot.slane %v6680, 4
  %v6694 = vsel %vm2781, %v6693, %v6656
  %v6695 = vrot.slane %v6656, 4
  %v6696 = vsel %vm2781, %v6680, %v6695
  %v6697 = vrot.slane %v6684, 4
  %v6698 = vsel %vm2781, %v6697, %v6660
  %v6699 = vrot.slane %v6660, 4
  %v6700 = vsel %vm2781, %v6684, %v6699
  %v6701 = vrot.slane %v1873, 4
  %v6702 = vsel %vm2781, %v6701, %v1855
  %v6703 = vrot.slane %v1855, 4
  %v6704 = vsel %vm2781, %v1873, %v6703
  %v6706 = vunpack.c.l.s4 1983009808
  %v6707 = vunpack.c.0.s8 %v6706
  %v6708 = vperm.slane %v6702, %v6707
  %v6710 = vunpack.c.l.s4 1983009808
  %v6711 = vunpack.c.0.s8 %v6710
  %v6712 = vperm.slane %v6704, %v6711
  %v6713 = vrot.slane %v1882, 4
  %v6714 = vsel %vm2781, %v6713, %v1864
  %v6715 = vrot.slane %v1864, 4
  %v6716 = vsel %vm2781, %v1882, %v6715
  %v6718 = vunpack.c.l.s4 1983009808
  %v6719 = vunpack.c.0.s8 %v6718
  %v6720 = vperm.slane %v6714, %v6719
  %v6722 = vunpack.c.l.s4 1983009808
  %v6723 = vunpack.c.0.s8 %v6722
  %v6724 = vperm.slane %v6716, %v6723
  %v6725 = vrot.slane %v1909, 4
  %v6726 = vsel %vm2781, %v6725, %v1891
  %v6727 = vrot.slane %v1891, 4
  %v6728 = vsel %vm2781, %v1909, %v6727
  %v6730 = vunpack.c.l.s4 1983009808
  %v6731 = vunpack.c.0.s8 %v6730
  %v6732 = vperm.slane %v6726, %v6731
  %v6734 = vunpack.c.l.s4 1983009808
  %v6735 = vunpack.c.0.s8 %v6734
  %v6736 = vperm.slane %v6728, %v6735
  %v6737 = vrot.slane %v1918, 4
  %v6738 = vsel %vm2781, %v6737, %v1900
  %v6739 = vrot.slane %v1900, 4
  %v6740 = vsel %vm2781, %v1918, %v6739
  %v6742 = vunpack.c.l.s4 1983009808
  %v6743 = vunpack.c.0.s8 %v6742
  %v6744 = vperm.slane %v6738, %v6743
  %v6746 = vunpack.c.l.s4 1983009808
  %v6747 = vunpack.c.0.s8 %v6746
  %v6748 = vperm.slane %v6740, %v6747
  %v6749 = vrot.slane %v6720, 4
  %v6750 = vsel %vm2781, %v6749, %v6708
  %v6751 = vrot.slane %v6708, 4
  %v6752 = vsel %vm2781, %v6720, %v6751
  %v6754 = vunpack.c.l.s4 1934713408
  %v6755 = vunpack.c.0.s8 %v6754
  %v6756 = vperm.slane %v6750, %v6755
  %v6758 = vunpack.c.l.s4 1934713408
  %v6759 = vunpack.c.0.s8 %v6758
  %v6760 = vperm.slane %v6752, %v6759
  %v6761 = vrot.slane %v6724, 4
  %v6762 = vsel %vm2781, %v6761, %v6712
  %v6763 = vrot.slane %v6712, 4
  %v6764 = vsel %vm2781, %v6724, %v6763
  %v6766 = vunpack.c.l.s4 1934713408
  %v6767 = vunpack.c.0.s8 %v6766
  %v6768 = vperm.slane %v6762, %v6767
  %v6770 = vunpack.c.l.s4 1934713408
  %v6771 = vunpack.c.0.s8 %v6770
  %v6772 = vperm.slane %v6764, %v6771
  %v6773 = vrot.slane %v6744, 4
  %v6774 = vsel %vm2781, %v6773, %v6732
  %v6775 = vrot.slane %v6732, 4
  %v6776 = vsel %vm2781, %v6744, %v6775
  %v6778 = vunpack.c.l.s4 1934713408
  %v6779 = vunpack.c.0.s8 %v6778
  %v6780 = vperm.slane %v6774, %v6779
  %v6782 = vunpack.c.l.s4 1934713408
  %v6783 = vunpack.c.0.s8 %v6782
  %v6784 = vperm.slane %v6776, %v6783
  %v6785 = vrot.slane %v6748, 4
  %v6786 = vsel %vm2781, %v6785, %v6736
  %v6787 = vrot.slane %v6736, 4
  %v6788 = vsel %vm2781, %v6748, %v6787
  %v6790 = vunpack.c.l.s4 1934713408
  %v6791 = vunpack.c.0.s8 %v6790
  %v6792 = vperm.slane %v6786, %v6791
  %v6794 = vunpack.c.l.s4 1934713408
  %v6795 = vunpack.c.0.s8 %v6794
  %v6796 = vperm.slane %v6788, %v6795
  %v6797 = vrot.slane %v6780, 4
  %v6798 = vsel %vm2781, %v6797, %v6756
  %v6799 = vrot.slane %v6756, 4
  %v6800 = vsel %vm2781, %v6780, %v6799
  %v6801 = vrot.slane %v6784, 4
  %v6802 = vsel %vm2781, %v6801, %v6760
  %v6803 = vrot.slane %v6760, 4
  %v6804 = vsel %vm2781, %v6784, %v6803
  %v6805 = vrot.slane %v6792, 4
  %v6806 = vsel %vm2781, %v6805, %v6768
  %v6807 = vrot.slane %v6768, 4
  %v6808 = vsel %vm2781, %v6792, %v6807
  %v6809 = vrot.slane %v6796, 4
  %v6810 = vsel %vm2781, %v6809, %v6772
  %v6811 = vrot.slane %v6772, 4
  %v6812 = vsel %vm2781, %v6796, %v6811
  %v6813 = vrot.slane %v1945, 4
  %v6814 = vsel %vm2781, %v6813, %v1927
  %v6815 = vrot.slane %v1927, 4
  %v6816 = vsel %vm2781, %v1945, %v6815
  %v6818 = vunpack.c.l.s4 1983009808
  %v6819 = vunpack.c.0.s8 %v6818
  %v6820 = vperm.slane %v6814, %v6819
  %v6822 = vunpack.c.l.s4 1983009808
  %v6823 = vunpack.c.0.s8 %v6822
  %v6824 = vperm.slane %v6816, %v6823
  %v6825 = vrot.slane %v1954, 4
  %v6826 = vsel %vm2781, %v6825, %v1936
  %v6827 = vrot.slane %v1936, 4
  %v6828 = vsel %vm2781, %v1954, %v6827
  %v6830 = vunpack.c.l.s4 1983009808
  %v6831 = vunpack.c.0.s8 %v6830
  %v6832 = vperm.slane %v6826, %v6831
  %v6834 = vunpack.c.l.s4 1983009808
  %v6835 = vunpack.c.0.s8 %v6834
  %v6836 = vperm.slane %v6828, %v6835
  %v6837 = vrot.slane %v1981, 4
  %v6838 = vsel %vm2781, %v6837, %v1963
  %v6839 = vrot.slane %v1963, 4
  %v6840 = vsel %vm2781, %v1981, %v6839
  %v6842 = vunpack.c.l.s4 1983009808
  %v6843 = vunpack.c.0.s8 %v6842
  %v6844 = vperm.slane %v6838, %v6843
  %v6846 = vunpack.c.l.s4 1983009808
  %v6847 = vunpack.c.0.s8 %v6846
  %v6848 = vperm.slane %v6840, %v6847
  %v6849 = vrot.slane %v1990, 4
  %v6850 = vsel %vm2781, %v6849, %v1972
  %v6851 = vrot.slane %v1972, 4
  %v6852 = vsel %vm2781, %v1990, %v6851
  %v6854 = vunpack.c.l.s4 1983009808
  %v6855 = vunpack.c.0.s8 %v6854
  %v6856 = vperm.slane %v6850, %v6855
  %v6858 = vunpack.c.l.s4 1983009808
  %v6859 = vunpack.c.0.s8 %v6858
  %v6860 = vperm.slane %v6852, %v6859
  %v6861 = vrot.slane %v6832, 4
  %v6862 = vsel %vm2781, %v6861, %v6820
  %v6863 = vrot.slane %v6820, 4
  %v6864 = vsel %vm2781, %v6832, %v6863
  %v6866 = vunpack.c.l.s4 1934713408
  %v6867 = vunpack.c.0.s8 %v6866
  %v6868 = vperm.slane %v6862, %v6867
  %v6870 = vunpack.c.l.s4 1934713408
  %v6871 = vunpack.c.0.s8 %v6870
  %v6872 = vperm.slane %v6864, %v6871
  %v6873 = vrot.slane %v6836, 4
  %v6874 = vsel %vm2781, %v6873, %v6824
  %v6875 = vrot.slane %v6824, 4
  %v6876 = vsel %vm2781, %v6836, %v6875
  %v6878 = vunpack.c.l.s4 1934713408
  %v6879 = vunpack.c.0.s8 %v6878
  %v6880 = vperm.slane %v6874, %v6879
  %v6882 = vunpack.c.l.s4 1934713408
  %v6883 = vunpack.c.0.s8 %v6882
  %v6884 = vperm.slane %v6876, %v6883
  %v6885 = vrot.slane %v6856, 4
  %v6886 = vsel %vm2781, %v6885, %v6844
  %v6887 = vrot.slane %v6844, 4
  %v6888 = vsel %vm2781, %v6856, %v6887
  %v6890 = vunpack.c.l.s4 1934713408
  %v6891 = vunpack.c.0.s8 %v6890
  %v6892 = vperm.slane %v6886, %v6891
  %v6894 = vunpack.c.l.s4 1934713408
  %v6895 = vunpack.c.0.s8 %v6894
  %v6896 = vperm.slane %v6888, %v6895
  %v6897 = vrot.slane %v6860, 4
  %v6898 = vsel %vm2781, %v6897, %v6848
  %v6899 = vrot.slane %v6848, 4
  %v6900 = vsel %vm2781, %v6860, %v6899
  %v6902 = vunpack.c.l.s4 1934713408
  %v6903 = vunpack.c.0.s8 %v6902
  %v6904 = vperm.slane %v6898, %v6903
  %v6906 = vunpack.c.l.s4 1934713408
  %v6907 = vunpack.c.0.s8 %v6906
  %v6908 = vperm.slane %v6900, %v6907
  %v6909 = vrot.slane %v6892, 4
  %v6910 = vsel %vm2781, %v6909, %v6868
  %v6911 = vrot.slane %v6868, 4
  %v6912 = vsel %vm2781, %v6892, %v6911
  %v6913 = vrot.slane %v6896, 4
  %v6914 = vsel %vm2781, %v6913, %v6872
  %v6915 = vrot.slane %v6872, 4
  %v6916 = vsel %vm2781, %v6896, %v6915
  %v6917 = vrot.slane %v6904, 4
  %v6918 = vsel %vm2781, %v6917, %v6880
  %v6919 = vrot.slane %v6880, 4
  %v6920 = vsel %vm2781, %v6904, %v6919
  %v6921 = vrot.slane %v6908, 4
  %v6922 = vsel %vm2781, %v6921, %v6884
  %v6923 = vrot.slane %v6884, 4
  %v6924 = vsel %vm2781, %v6908, %v6923
  %v6925 = vrot.slane %v2017, 4
  %v6926 = vsel %vm2781, %v6925, %v1999
  %v6927 = vrot.slane %v1999, 4
  %v6928 = vsel %vm2781, %v2017, %v6927
  %v6930 = vunpack.c.l.s4 1983009808
  %v6931 = vunpack.c.0.s8 %v6930
  %v6932 = vperm.slane %v6926, %v6931
  %v6934 = vunpack.c.l.s4 1983009808
  %v6935 = vunpack.c.0.s8 %v6934
  %v6936 = vperm.slane %v6928, %v6935
  %v6937 = vrot.slane %v2026, 4
  %v6938 = vsel %vm2781, %v6937, %v2008
  %v6939 = vrot.slane %v2008, 4
  %v6940 = vsel %vm2781, %v2026, %v6939
  %v6942 = vunpack.c.l.s4 1983009808
  %v6943 = vunpack.c.0.s8 %v6942
  %v6944 = vperm.slane %v6938, %v6943
  %v6946 = vunpack.c.l.s4 1983009808
  %v6947 = vunpack.c.0.s8 %v6946
  %v6948 = vperm.slane %v6940, %v6947
  %v6949 = vrot.slane %v2053, 4
  %v6950 = vsel %vm2781, %v6949, %v2035
  %v6951 = vrot.slane %v2035, 4
  %v6952 = vsel %vm2781, %v2053, %v6951
  %v6954 = vunpack.c.l.s4 1983009808
  %v6955 = vunpack.c.0.s8 %v6954
  %v6956 = vperm.slane %v6950, %v6955
  %v6958 = vunpack.c.l.s4 1983009808
  %v6959 = vunpack.c.0.s8 %v6958
  %v6960 = vperm.slane %v6952, %v6959
  %v6961 = vrot.slane %v2062, 4
  %v6962 = vsel %vm2781, %v6961, %v2044
  %v6963 = vrot.slane %v2044, 4
  %v6964 = vsel %vm2781, %v2062, %v6963
  %v6966 = vunpack.c.l.s4 1983009808
  %v6967 = vunpack.c.0.s8 %v6966
  %v6968 = vperm.slane %v6962, %v6967
  %v6970 = vunpack.c.l.s4 1983009808
  %v6971 = vunpack.c.0.s8 %v6970
  %v6972 = vperm.slane %v6964, %v6971
  %v6973 = vrot.slane %v6944, 4
  %v6974 = vsel %vm2781, %v6973, %v6932
  %v6975 = vrot.slane %v6932, 4
  %v6976 = vsel %vm2781, %v6944, %v6975
  %v6978 = vunpack.c.l.s4 1934713408
  %v6979 = vunpack.c.0.s8 %v6978
  %v6980 = vperm.slane %v6974, %v6979
  %v6982 = vunpack.c.l.s4 1934713408
  %v6983 = vunpack.c.0.s8 %v6982
  %v6984 = vperm.slane %v6976, %v6983
  %v6985 = vrot.slane %v6948, 4
  %v6986 = vsel %vm2781, %v6985, %v6936
  %v6987 = vrot.slane %v6936, 4
  %v6988 = vsel %vm2781, %v6948, %v6987
  %v6990 = vunpack.c.l.s4 1934713408
  %v6991 = vunpack.c.0.s8 %v6990
  %v6992 = vperm.slane %v6986, %v6991
  %v6994 = vunpack.c.l.s4 1934713408
  %v6995 = vunpack.c.0.s8 %v6994
  %v6996 = vperm.slane %v6988, %v6995
  %v6997 = vrot.slane %v6968, 4
  %v6998 = vsel %vm2781, %v6997, %v6956
  %v6999 = vrot.slane %v6956, 4
  %v7000 = vsel %vm2781, %v6968, %v6999
  %v7002 = vunpack.c.l.s4 1934713408
  %v7003 = vunpack.c.0.s8 %v7002
  %v7004 = vperm.slane %v6998, %v7003
  %v7006 = vunpack.c.l.s4 1934713408
  %v7007 = vunpack.c.0.s8 %v7006
  %v7008 = vperm.slane %v7000, %v7007
  %v7009 = vrot.slane %v6972, 4
  %v7010 = vsel %vm2781, %v7009, %v6960
  %v7011 = vrot.slane %v6960, 4
  %v7012 = vsel %vm2781, %v6972, %v7011
  %v7014 = vunpack.c.l.s4 1934713408
  %v7015 = vunpack.c.0.s8 %v7014
  %v7016 = vperm.slane %v7010, %v7015
  %v7018 = vunpack.c.l.s4 1934713408
  %v7019 = vunpack.c.0.s8 %v7018
  %v7020 = vperm.slane %v7012, %v7019
  %v7021 = vrot.slane %v7004, 4
  %v7022 = vsel %vm2781, %v7021, %v6980
  %v7023 = vrot.slane %v6980, 4
  %v7024 = vsel %vm2781, %v7004, %v7023
  %v7025 = vrot.slane %v7008, 4
  %v7026 = vsel %vm2781, %v7025, %v6984
  %v7027 = vrot.slane %v6984, 4
  %v7028 = vsel %vm2781, %v7008, %v7027
  %v7029 = vrot.slane %v7016, 4
  %v7030 = vsel %vm2781, %v7029, %v6992
  %v7031 = vrot.slane %v6992, 4
  %v7032 = vsel %vm2781, %v7016, %v7031
  %v7033 = vrot.slane %v7020, 4
  %v7034 = vsel %vm2781, %v7033, %v6996
  %v7035 = vrot.slane %v6996, 4
  %v7036 = vsel %vm2781, %v7020, %v7035
  %v7037 = vrot.slane %v2089, 4
  %v7038 = vsel %vm2781, %v7037, %v2071
  %v7039 = vrot.slane %v2071, 4
  %v7040 = vsel %vm2781, %v2089, %v7039
  %v7042 = vunpack.c.l.s4 1983009808
  %v7043 = vunpack.c.0.s8 %v7042
  %v7044 = vperm.slane %v7038, %v7043
  %v7046 = vunpack.c.l.s4 1983009808
  %v7047 = vunpack.c.0.s8 %v7046
  %v7048 = vperm.slane %v7040, %v7047
  %v7049 = vrot.slane %v2098, 4
  %v7050 = vsel %vm2781, %v7049, %v2080
  %v7051 = vrot.slane %v2080, 4
  %v7052 = vsel %vm2781, %v2098, %v7051
  %v7054 = vunpack.c.l.s4 1983009808
  %v7055 = vunpack.c.0.s8 %v7054
  %v7056 = vperm.slane %v7050, %v7055
  %v7058 = vunpack.c.l.s4 1983009808
  %v7059 = vunpack.c.0.s8 %v7058
  %v7060 = vperm.slane %v7052, %v7059
  %v7061 = vrot.slane %v2125, 4
  %v7062 = vsel %vm2781, %v7061, %v2107
  %v7063 = vrot.slane %v2107, 4
  %v7064 = vsel %vm2781, %v2125, %v7063
  %v7066 = vunpack.c.l.s4 1983009808
  %v7067 = vunpack.c.0.s8 %v7066
  %v7068 = vperm.slane %v7062, %v7067
  %v7070 = vunpack.c.l.s4 1983009808
  %v7071 = vunpack.c.0.s8 %v7070
  %v7072 = vperm.slane %v7064, %v7071
  %v7073 = vrot.slane %v2134, 4
  %v7074 = vsel %vm2781, %v7073, %v2116
  %v7075 = vrot.slane %v2116, 4
  %v7076 = vsel %vm2781, %v2134, %v7075
  %v7078 = vunpack.c.l.s4 1983009808
  %v7079 = vunpack.c.0.s8 %v7078
  %v7080 = vperm.slane %v7074, %v7079
  %v7082 = vunpack.c.l.s4 1983009808
  %v7083 = vunpack.c.0.s8 %v7082
  %v7084 = vperm.slane %v7076, %v7083
  %v7085 = vrot.slane %v7056, 4
  %v7086 = vsel %vm2781, %v7085, %v7044
  %v7087 = vrot.slane %v7044, 4
  %v7088 = vsel %vm2781, %v7056, %v7087
  %v7090 = vunpack.c.l.s4 1934713408
  %v7091 = vunpack.c.0.s8 %v7090
  %v7092 = vperm.slane %v7086, %v7091
  %v7094 = vunpack.c.l.s4 1934713408
  %v7095 = vunpack.c.0.s8 %v7094
  %v7096 = vperm.slane %v7088, %v7095
  %v7097 = vrot.slane %v7060, 4
  %v7098 = vsel %vm2781, %v7097, %v7048
  %v7099 = vrot.slane %v7048, 4
  %v7100 = vsel %vm2781, %v7060, %v7099
  %v7102 = vunpack.c.l.s4 1934713408
  %v7103 = vunpack.c.0.s8 %v7102
  %v7104 = vperm.slane %v7098, %v7103
  %v7106 = vunpack.c.l.s4 1934713408
  %v7107 = vunpack.c.0.s8 %v7106
  %v7108 = vperm.slane %v7100, %v7107
  %v7109 = vrot.slane %v7080, 4
  %v7110 = vsel %vm2781, %v7109, %v7068
  %v7111 = vrot.slane %v7068, 4
  %v7112 = vsel %vm2781, %v7080, %v7111
  %v7114 = vunpack.c.l.s4 1934713408
  %v7115 = vunpack.c.0.s8 %v7114
  %v7116 = vperm.slane %v7110, %v7115
  %v7118 = vunpack.c.l.s4 1934713408
  %v7119 = vunpack.c.0.s8 %v7118
  %v7120 = vperm.slane %v7112, %v7119
  %v7121 = vrot.slane %v7084, 4
  %v7122 = vsel %vm2781, %v7121, %v7072
  %v7123 = vrot.slane %v7072, 4
  %v7124 = vsel %vm2781, %v7084, %v7123
  %v7126 = vunpack.c.l.s4 1934713408
  %v7127 = vunpack.c.0.s8 %v7126
  %v7128 = vperm.slane %v7122, %v7127
  %v7130 = vunpack.c.l.s4 1934713408
  %v7131 = vunpack.c.0.s8 %v7130
  %v7132 = vperm.slane %v7124, %v7131
  %v7133 = vrot.slane %v7116, 4
  %v7134 = vsel %vm2781, %v7133, %v7092
  %v7135 = vrot.slane %v7092, 4
  %v7136 = vsel %vm2781, %v7116, %v7135
  %v7137 = vrot.slane %v7120, 4
  %v7138 = vsel %vm2781, %v7137, %v7096
  %v7139 = vrot.slane %v7096, 4
  %v7140 = vsel %vm2781, %v7120, %v7139
  %v7141 = vrot.slane %v7128, 4
  %v7142 = vsel %vm2781, %v7141, %v7104
  %v7143 = vrot.slane %v7104, 4
  %v7144 = vsel %vm2781, %v7128, %v7143
  %v7145 = vrot.slane %v7132, 4
  %v7146 = vsel %vm2781, %v7145, %v7108
  %v7147 = vrot.slane %v7108, 4
  %v7148 = vsel %vm2781, %v7132, %v7147
  %v7149 = vrot.slane %v2161, 4
  %v7150 = vsel %vm2781, %v7149, %v2143
  %v7151 = vrot.slane %v2143, 4
  %v7152 = vsel %vm2781, %v2161, %v7151
  %v7154 = vunpack.c.l.s4 1983009808
  %v7155 = vunpack.c.0.s8 %v7154
  %v7156 = vperm.slane %v7150, %v7155
  %v7158 = vunpack.c.l.s4 1983009808
  %v7159 = vunpack.c.0.s8 %v7158
  %v7160 = vperm.slane %v7152, %v7159
  %v7161 = vrot.slane %v2170, 4
  %v7162 = vsel %vm2781, %v7161, %v2152
  %v7163 = vrot.slane %v2152, 4
  %v7164 = vsel %vm2781, %v2170, %v7163
  %v7166 = vunpack.c.l.s4 1983009808
  %v7167 = vunpack.c.0.s8 %v7166
  %v7168 = vperm.slane %v7162, %v7167
  %v7170 = vunpack.c.l.s4 1983009808
  %v7171 = vunpack.c.0.s8 %v7170
  %v7172 = vperm.slane %v7164, %v7171
  %v7173 = vrot.slane %v2197, 4
  %v7174 = vsel %vm2781, %v7173, %v2179
  %v7175 = vrot.slane %v2179, 4
  %v7176 = vsel %vm2781, %v2197, %v7175
  %v7178 = vunpack.c.l.s4 1983009808
  %v7179 = vunpack.c.0.s8 %v7178
  %v7180 = vperm.slane %v7174, %v7179
  %v7182 = vunpack.c.l.s4 1983009808
  %v7183 = vunpack.c.0.s8 %v7182
  %v7184 = vperm.slane %v7176, %v7183
  %v7185 = vrot.slane %v2206, 4
  %v7186 = vsel %vm2781, %v7185, %v2188
  %v7187 = vrot.slane %v2188, 4
  %v7188 = vsel %vm2781, %v2206, %v7187
  %v7190 = vunpack.c.l.s4 1983009808
  %v7191 = vunpack.c.0.s8 %v7190
  %v7192 = vperm.slane %v7186, %v7191
  %v7194 = vunpack.c.l.s4 1983009808
  %v7195 = vunpack.c.0.s8 %v7194
  %v7196 = vperm.slane %v7188, %v7195
  %v7197 = vrot.slane %v7168, 4
  %v7198 = vsel %vm2781, %v7197, %v7156
  %v7199 = vrot.slane %v7156, 4
  %v7200 = vsel %vm2781, %v7168, %v7199
  %v7202 = vunpack.c.l.s4 1934713408
  %v7203 = vunpack.c.0.s8 %v7202
  %v7204 = vperm.slane %v7198, %v7203
  %v7206 = vunpack.c.l.s4 1934713408
  %v7207 = vunpack.c.0.s8 %v7206
  %v7208 = vperm.slane %v7200, %v7207
  %v7209 = vrot.slane %v7172, 4
  %v7210 = vsel %vm2781, %v7209, %v7160
  %v7211 = vrot.slane %v7160, 4
  %v7212 = vsel %vm2781, %v7172, %v7211
  %v7214 = vunpack.c.l.s4 1934713408
  %v7215 = vunpack.c.0.s8 %v7214
  %v7216 = vperm.slane %v7210, %v7215
  %v7218 = vunpack.c.l.s4 1934713408
  %v7219 = vunpack.c.0.s8 %v7218
  %v7220 = vperm.slane %v7212, %v7219
  %v7221 = vrot.slane %v7192, 4
  %v7222 = vsel %vm2781, %v7221, %v7180
  %v7223 = vrot.slane %v7180, 4
  %v7224 = vsel %vm2781, %v7192, %v7223
  %v7226 = vunpack.c.l.s4 1934713408
  %v7227 = vunpack.c.0.s8 %v7226
  %v7228 = vperm.slane %v7222, %v7227
  %v7230 = vunpack.c.l.s4 1934713408
  %v7231 = vunpack.c.0.s8 %v7230
  %v7232 = vperm.slane %v7224, %v7231
  %v7233 = vrot.slane %v7196, 4
  %v7234 = vsel %vm2781, %v7233, %v7184
  %v7235 = vrot.slane %v7184, 4
  %v7236 = vsel %vm2781, %v7196, %v7235
  %v7238 = vunpack.c.l.s4 1934713408
  %v7239 = vunpack.c.0.s8 %v7238
  %v7240 = vperm.slane %v7234, %v7239
  %v7242 = vunpack.c.l.s4 1934713408
  %v7243 = vunpack.c.0.s8 %v7242
  %v7244 = vperm.slane %v7236, %v7243
  %v7245 = vrot.slane %v7228, 4
  %v7246 = vsel %vm2781, %v7245, %v7204
  %v7247 = vrot.slane %v7204, 4
  %v7248 = vsel %vm2781, %v7228, %v7247
  %v7249 = vrot.slane %v7232, 4
  %v7250 = vsel %vm2781, %v7249, %v7208
  %v7251 = vrot.slane %v7208, 4
  %v7252 = vsel %vm2781, %v7232, %v7251
  %v7253 = vrot.slane %v7240, 4
  %v7254 = vsel %vm2781, %v7253, %v7216
  %v7255 = vrot.slane %v7216, 4
  %v7256 = vsel %vm2781, %v7240, %v7255
  %v7257 = vrot.slane %v7244, 4
  %v7258 = vsel %vm2781, %v7257, %v7220
  %v7259 = vrot.slane %v7220, 4
  %v7260 = vsel %vm2781, %v7244, %v7259
  %v7261 = vrot.slane %v2227, 4
  %v7262 = vsel %vm2781, %v7261, %v1639
  %v7263 = vrot.slane %v1639, 4
  %v7264 = vsel %vm2781, %v2227, %v7263
  %v7266 = vunpack.c.l.s4 1983009808
  %v7267 = vunpack.c.0.s8 %v7266
  %v7268 = vperm.slane %v7262, %v7267
  %v7270 = vunpack.c.l.s4 1983009808
  %v7271 = vunpack.c.0.s8 %v7270
  %v7272 = vperm.slane %v7264, %v7271
  %v7273 = vrot.slane %v2236, 4
  %v7274 = vsel %vm2781, %v7273, %v2218
  %v7275 = vrot.slane %v2218, 4
  %v7276 = vsel %vm2781, %v2236, %v7275
  %v7278 = vunpack.c.l.s4 1983009808
  %v7279 = vunpack.c.0.s8 %v7278
  %v7280 = vperm.slane %v7274, %v7279
  %v7282 = vunpack.c.l.s4 1983009808
  %v7283 = vunpack.c.0.s8 %v7282
  %v7284 = vperm.slane %v7276, %v7283
  %v7285 = vrot.slane %v2263, 4
  %v7286 = vsel %vm2781, %v7285, %v2245
  %v7287 = vrot.slane %v2245, 4
  %v7288 = vsel %vm2781, %v2263, %v7287
  %v7290 = vunpack.c.l.s4 1983009808
  %v7291 = vunpack.c.0.s8 %v7290
  %v7292 = vperm.slane %v7286, %v7291
  %v7294 = vunpack.c.l.s4 1983009808
  %v7295 = vunpack.c.0.s8 %v7294
  %v7296 = vperm.slane %v7288, %v7295
  %v7297 = vrot.slane %v2272, 4
  %v7298 = vsel %vm2781, %v7297, %v2254
  %v7299 = vrot.slane %v2254, 4
  %v7300 = vsel %vm2781, %v2272, %v7299
  %v7302 = vunpack.c.l.s4 1983009808
  %v7303 = vunpack.c.0.s8 %v7302
  %v7304 = vperm.slane %v7298, %v7303
  %v7306 = vunpack.c.l.s4 1983009808
  %v7307 = vunpack.c.0.s8 %v7306
  %v7308 = vperm.slane %v7300, %v7307
  %v7309 = vrot.slane %v7280, 4
  %v7310 = vsel %vm2781, %v7309, %v7268
  %v7311 = vrot.slane %v7268, 4
  %v7312 = vsel %vm2781, %v7280, %v7311
  %v7314 = vunpack.c.l.s4 1934713408
  %v7315 = vunpack.c.0.s8 %v7314
  %v7316 = vperm.slane %v7310, %v7315
  %v7318 = vunpack.c.l.s4 1934713408
  %v7319 = vunpack.c.0.s8 %v7318
  %v7320 = vperm.slane %v7312, %v7319
  %v7321 = vrot.slane %v7284, 4
  %v7322 = vsel %vm2781, %v7321, %v7272
  %v7323 = vrot.slane %v7272, 4
  %v7324 = vsel %vm2781, %v7284, %v7323
  %v7326 = vunpack.c.l.s4 1934713408
  %v7327 = vunpack.c.0.s8 %v7326
  %v7328 = vperm.slane %v7322, %v7327
  %v7330 = vunpack.c.l.s4 1934713408
  %v7331 = vunpack.c.0.s8 %v7330
  %v7332 = vperm.slane %v7324, %v7331
  %v7333 = vrot.slane %v7304, 4
  %v7334 = vsel %vm2781, %v7333, %v7292
  %v7335 = vrot.slane %v7292, 4
  %v7336 = vsel %vm2781, %v7304, %v7335
  %v7338 = vunpack.c.l.s4 1934713408
  %v7339 = vunpack.c.0.s8 %v7338
  %v7340 = vperm.slane %v7334, %v7339
  %v7342 = vunpack.c.l.s4 1934713408
  %v7343 = vunpack.c.0.s8 %v7342
  %v7344 = vperm.slane %v7336, %v7343
  %v7345 = vrot.slane %v7308, 4
  %v7346 = vsel %vm2781, %v7345, %v7296
  %v7347 = vrot.slane %v7296, 4
  %v7348 = vsel %vm2781, %v7308, %v7347
  %v7350 = vunpack.c.l.s4 1934713408
  %v7351 = vunpack.c.0.s8 %v7350
  %v7352 = vperm.slane %v7346, %v7351
  %v7354 = vunpack.c.l.s4 1934713408
  %v7355 = vunpack.c.0.s8 %v7354
  %v7356 = vperm.slane %v7348, %v7355
  %v7357 = vrot.slane %v7340, 4
  %v7358 = vsel %vm2781, %v7357, %v7316
  %v7359 = vrot.slane %v7316, 4
  %v7360 = vsel %vm2781, %v7340, %v7359
  %v7361 = vrot.slane %v7344, 4
  %v7362 = vsel %vm2781, %v7361, %v7320
  %v7363 = vrot.slane %v7320, 4
  %v7364 = vsel %vm2781, %v7344, %v7363
  %v7365 = vrot.slane %v7352, 4
  %v7366 = vsel %vm2781, %v7365, %v7328
  %v7367 = vrot.slane %v7328, 4
  %v7368 = vsel %vm2781, %v7352, %v7367
  %v7369 = vrot.slane %v7356, 4
  %v7370 = vsel %vm2781, %v7369, %v7332
  %v7371 = vrot.slane %v7332, 4
  %v7372 = vsel %vm2781, %v7356, %v7371
  %v7373 = vrot.slane %v2299, 4
  %v7374 = vsel %vm2781, %v7373, %v2281
  %v7375 = vrot.slane %v2281, 4
  %v7376 = vsel %vm2781, %v2299, %v7375
  %v7378 = vunpack.c.l.s4 1983009808
  %v7379 = vunpack.c.0.s8 %v7378
  %v7380 = vperm.slane %v7374, %v7379
  %v7382 = vunpack.c.l.s4 1983009808
  %v7383 = vunpack.c.0.s8 %v7382
  %v7384 = vperm.slane %v7376, %v7383
  %v7385 = vrot.slane %v2308, 4
  %v7386 = vsel %vm2781, %v7385, %v2290
  %v7387 = vrot.slane %v2290, 4
  %v7388 = vsel %vm2781, %v2308, %v7387
  %v7390 = vunpack.c.l.s4 1983009808
  %v7391 = vunpack.c.0.s8 %v7390
  %v7392 = vperm.slane %v7386, %v7391
  %v7394 = vunpack.c.l.s4 1983009808
  %v7395 = vunpack.c.0.s8 %v7394
  %v7396 = vperm.slane %v7388, %v7395
  %v7397 = vrot.slane %v2335, 4
  %v7398 = vsel %vm2781, %v7397, %v2317
  %v7399 = vrot.slane %v2317, 4
  %v7400 = vsel %vm2781, %v2335, %v7399
  %v7402 = vunpack.c.l.s4 1983009808
  %v7403 = vunpack.c.0.s8 %v7402
  %v7404 = vperm.slane %v7398, %v7403
  %v7406 = vunpack.c.l.s4 1983009808
  %v7407 = vunpack.c.0.s8 %v7406
  %v7408 = vperm.slane %v7400, %v7407
  %v7409 = vrot.slane %v2344, 4
  %v7410 = vsel %vm2781, %v7409, %v2326
  %v7411 = vrot.slane %v2326, 4
  %v7412 = vsel %vm2781, %v2344, %v7411
  %v7414 = vunpack.c.l.s4 1983009808
  %v7415 = vunpack.c.0.s8 %v7414
  %v7416 = vperm.slane %v7410, %v7415
  %v7418 = vunpack.c.l.s4 1983009808
  %v7419 = vunpack.c.0.s8 %v7418
  %v7420 = vperm.slane %v7412, %v7419
  %v7421 = vrot.slane %v7392, 4
  %v7422 = vsel %vm2781, %v7421, %v7380
  %v7423 = vrot.slane %v7380, 4
  %v7424 = vsel %vm2781, %v7392, %v7423
  %v7426 = vunpack.c.l.s4 1934713408
  %v7427 = vunpack.c.0.s8 %v7426
  %v7428 = vperm.slane %v7422, %v7427
  %v7430 = vunpack.c.l.s4 1934713408
  %v7431 = vunpack.c.0.s8 %v7430
  %v7432 = vperm.slane %v7424, %v7431
  %v7433 = vrot.slane %v7396, 4
  %v7434 = vsel %vm2781, %v7433, %v7384
  %v7435 = vrot.slane %v7384, 4
  %v7436 = vsel %vm2781, %v7396, %v7435
  %v7438 = vunpack.c.l.s4 1934713408
  %v7439 = vunpack.c.0.s8 %v7438
  %v7440 = vperm.slane %v7434, %v7439
  %v7442 = vunpack.c.l.s4 1934713408
  %v7443 = vunpack.c.0.s8 %v7442
  %v7444 = vperm.slane %v7436, %v7443
  %v7445 = vrot.slane %v7416, 4
  %v7446 = vsel %vm2781, %v7445, %v7404
  %v7447 = vrot.slane %v7404, 4
  %v7448 = vsel %vm2781, %v7416, %v7447
  %v7450 = vunpack.c.l.s4 1934713408
  %v7451 = vunpack.c.0.s8 %v7450
  %v7452 = vperm.slane %v7446, %v7451
  %v7454 = vunpack.c.l.s4 1934713408
  %v7455 = vunpack.c.0.s8 %v7454
  %v7456 = vperm.slane %v7448, %v7455
  %v7457 = vrot.slane %v7420, 4
  %v7458 = vsel %vm2781, %v7457, %v7408
  %v7459 = vrot.slane %v7408, 4
  %v7460 = vsel %vm2781, %v7420, %v7459
  %v7462 = vunpack.c.l.s4 1934713408
  %v7463 = vunpack.c.0.s8 %v7462
  %v7464 = vperm.slane %v7458, %v7463
  %v7466 = vunpack.c.l.s4 1934713408
  %v7467 = vunpack.c.0.s8 %v7466
  %v7468 = vperm.slane %v7460, %v7467
  %v7469 = vrot.slane %v7452, 4
  %v7470 = vsel %vm2781, %v7469, %v7428
  %v7471 = vrot.slane %v7428, 4
  %v7472 = vsel %vm2781, %v7452, %v7471
  %v7473 = vrot.slane %v7456, 4
  %v7474 = vsel %vm2781, %v7473, %v7432
  %v7475 = vrot.slane %v7432, 4
  %v7476 = vsel %vm2781, %v7456, %v7475
  %v7477 = vrot.slane %v7464, 4
  %v7478 = vsel %vm2781, %v7477, %v7440
  %v7479 = vrot.slane %v7440, 4
  %v7480 = vsel %vm2781, %v7464, %v7479
  %v7481 = vrot.slane %v7468, 4
  %v7482 = vsel %vm2781, %v7481, %v7444
  %v7483 = vrot.slane %v7444, 4
  %v7484 = vsel %vm2781, %v7468, %v7483
  %v7485 = vrot.slane %v2371, 4
  %v7486 = vsel %vm2781, %v7485, %v2353
  %v7487 = vrot.slane %v2353, 4
  %v7488 = vsel %vm2781, %v2371, %v7487
  %v7490 = vunpack.c.l.s4 1983009808
  %v7491 = vunpack.c.0.s8 %v7490
  %v7492 = vperm.slane %v7486, %v7491
  %v7494 = vunpack.c.l.s4 1983009808
  %v7495 = vunpack.c.0.s8 %v7494
  %v7496 = vperm.slane %v7488, %v7495
  %v7497 = vrot.slane %v2380, 4
  %v7498 = vsel %vm2781, %v7497, %v2362
  %v7499 = vrot.slane %v2362, 4
  %v7500 = vsel %vm2781, %v2380, %v7499
  %v7502 = vunpack.c.l.s4 1983009808
  %v7503 = vunpack.c.0.s8 %v7502
  %v7504 = vperm.slane %v7498, %v7503
  %v7506 = vunpack.c.l.s4 1983009808
  %v7507 = vunpack.c.0.s8 %v7506
  %v7508 = vperm.slane %v7500, %v7507
  %v7509 = vrot.slane %v2407, 4
  %v7510 = vsel %vm2781, %v7509, %v2389
  %v7511 = vrot.slane %v2389, 4
  %v7512 = vsel %vm2781, %v2407, %v7511
  %v7514 = vunpack.c.l.s4 1983009808
  %v7515 = vunpack.c.0.s8 %v7514
  %v7516 = vperm.slane %v7510, %v7515
  %v7518 = vunpack.c.l.s4 1983009808
  %v7519 = vunpack.c.0.s8 %v7518
  %v7520 = vperm.slane %v7512, %v7519
  %v7521 = vrot.slane %v2416, 4
  %v7522 = vsel %vm2781, %v7521, %v2398
  %v7523 = vrot.slane %v2398, 4
  %v7524 = vsel %vm2781, %v2416, %v7523
  %v7526 = vunpack.c.l.s4 1983009808
  %v7527 = vunpack.c.0.s8 %v7526
  %v7528 = vperm.slane %v7522, %v7527
  %v7530 = vunpack.c.l.s4 1983009808
  %v7531 = vunpack.c.0.s8 %v7530
  %v7532 = vperm.slane %v7524, %v7531
  %v7533 = vrot.slane %v7504, 4
  %v7534 = vsel %vm2781, %v7533, %v7492
  %v7535 = vrot.slane %v7492, 4
  %v7536 = vsel %vm2781, %v7504, %v7535
  %v7538 = vunpack.c.l.s4 1934713408
  %v7539 = vunpack.c.0.s8 %v7538
  %v7540 = vperm.slane %v7534, %v7539
  %v7542 = vunpack.c.l.s4 1934713408
  %v7543 = vunpack.c.0.s8 %v7542
  %v7544 = vperm.slane %v7536, %v7543
  %v7545 = vrot.slane %v7508, 4
  %v7546 = vsel %vm2781, %v7545, %v7496
  %v7547 = vrot.slane %v7496, 4
  %v7548 = vsel %vm2781, %v7508, %v7547
  %v7550 = vunpack.c.l.s4 1934713408
  %v7551 = vunpack.c.0.s8 %v7550
  %v7552 = vperm.slane %v7546, %v7551
  %v7554 = vunpack.c.l.s4 1934713408
  %v7555 = vunpack.c.0.s8 %v7554
  %v7556 = vperm.slane %v7548, %v7555
  %v7557 = vrot.slane %v7528, 4
  %v7558 = vsel %vm2781, %v7557, %v7516
  %v7559 = vrot.slane %v7516, 4
  %v7560 = vsel %vm2781, %v7528, %v7559
  %v7562 = vunpack.c.l.s4 1934713408
  %v7563 = vunpack.c.0.s8 %v7562
  %v7564 = vperm.slane %v7558, %v7563
  %v7566 = vunpack.c.l.s4 1934713408
  %v7567 = vunpack.c.0.s8 %v7566
  %v7568 = vperm.slane %v7560, %v7567
  %v7569 = vrot.slane %v7532, 4
  %v7570 = vsel %vm2781, %v7569, %v7520
  %v7571 = vrot.slane %v7520, 4
  %v7572 = vsel %vm2781, %v7532, %v7571
  %v7574 = vunpack.c.l.s4 1934713408
  %v7575 = vunpack.c.0.s8 %v7574
  %v7576 = vperm.slane %v7570, %v7575
  %v7578 = vunpack.c.l.s4 1934713408
  %v7579 = vunpack.c.0.s8 %v7578
  %v7580 = vperm.slane %v7572, %v7579
  %v7581 = vrot.slane %v7564, 4
  %v7582 = vsel %vm2781, %v7581, %v7540
  %v7583 = vrot.slane %v7540, 4
  %v7584 = vsel %vm2781, %v7564, %v7583
  %v7585 = vrot.slane %v7568, 4
  %v7586 = vsel %vm2781, %v7585, %v7544
  %v7587 = vrot.slane %v7544, 4
  %v7588 = vsel %vm2781, %v7568, %v7587
  %v7589 = vrot.slane %v7576, 4
  %v7590 = vsel %vm2781, %v7589, %v7552
  %v7591 = vrot.slane %v7552, 4
  %v7592 = vsel %vm2781, %v7576, %v7591
  %v7593 = vrot.slane %v7580, 4
  %v7594 = vsel %vm2781, %v7593, %v7556
  %v7595 = vrot.slane %v7556, 4
  %v7596 = vsel %vm2781, %v7580, %v7595
  %v7597 = vrot.slane %v2443, 4
  %v7598 = vsel %vm2781, %v7597, %v2425
  %v7599 = vrot.slane %v2425, 4
  %v7600 = vsel %vm2781, %v2443, %v7599
  %v7602 = vunpack.c.l.s4 1983009808
  %v7603 = vunpack.c.0.s8 %v7602
  %v7604 = vperm.slane %v7598, %v7603
  %v7606 = vunpack.c.l.s4 1983009808
  %v7607 = vunpack.c.0.s8 %v7606
  %v7608 = vperm.slane %v7600, %v7607
  %v7609 = vrot.slane %v2452, 4
  %v7610 = vsel %vm2781, %v7609, %v2434
  %v7611 = vrot.slane %v2434, 4
  %v7612 = vsel %vm2781, %v2452, %v7611
  %v7614 = vunpack.c.l.s4 1983009808
  %v7615 = vunpack.c.0.s8 %v7614
  %v7616 = vperm.slane %v7610, %v7615
  %v7618 = vunpack.c.l.s4 1983009808
  %v7619 = vunpack.c.0.s8 %v7618
  %v7620 = vperm.slane %v7612, %v7619
  %v7621 = vrot.slane %v2479, 4
  %v7622 = vsel %vm2781, %v7621, %v2461
  %v7623 = vrot.slane %v2461, 4
  %v7624 = vsel %vm2781, %v2479, %v7623
  %v7626 = vunpack.c.l.s4 1983009808
  %v7627 = vunpack.c.0.s8 %v7626
  %v7628 = vperm.slane %v7622, %v7627
  %v7630 = vunpack.c.l.s4 1983009808
  %v7631 = vunpack.c.0.s8 %v7630
  %v7632 = vperm.slane %v7624, %v7631
  %v7633 = vrot.slane %v2488, 4
  %v7634 = vsel %vm2781, %v7633, %v2470
  %v7635 = vrot.slane %v2470, 4
  %v7636 = vsel %vm2781, %v2488, %v7635
  %v7638 = vunpack.c.l.s4 1983009808
  %v7639 = vunpack.c.0.s8 %v7638
  %v7640 = vperm.slane %v7634, %v7639
  %v7642 = vunpack.c.l.s4 1983009808
  %v7643 = vunpack.c.0.s8 %v7642
  %v7644 = vperm.slane %v7636, %v7643
  %v7645 = vrot.slane %v7616, 4
  %v7646 = vsel %vm2781, %v7645, %v7604
  %v7647 = vrot.slane %v7604, 4
  %v7648 = vsel %vm2781, %v7616, %v7647
  %v7650 = vunpack.c.l.s4 1934713408
  %v7651 = vunpack.c.0.s8 %v7650
  %v7652 = vperm.slane %v7646, %v7651
  %v7654 = vunpack.c.l.s4 1934713408
  %v7655 = vunpack.c.0.s8 %v7654
  %v7656 = vperm.slane %v7648, %v7655
  %v7657 = vrot.slane %v7620, 4
  %v7658 = vsel %vm2781, %v7657, %v7608
  %v7659 = vrot.slane %v7608, 4
  %v7660 = vsel %vm2781, %v7620, %v7659
  %v7662 = vunpack.c.l.s4 1934713408
  %v7663 = vunpack.c.0.s8 %v7662
  %v7664 = vperm.slane %v7658, %v7663
  %v7666 = vunpack.c.l.s4 1934713408
  %v7667 = vunpack.c.0.s8 %v7666
  %v7668 = vperm.slane %v7660, %v7667
  %v7669 = vrot.slane %v7640, 4
  %v7670 = vsel %vm2781, %v7669, %v7628
  %v7671 = vrot.slane %v7628, 4
  %v7672 = vsel %vm2781, %v7640, %v7671
  %v7674 = vunpack.c.l.s4 1934713408
  %v7675 = vunpack.c.0.s8 %v7674
  %v7676 = vperm.slane %v7670, %v7675
  %v7678 = vunpack.c.l.s4 1934713408
  %v7679 = vunpack.c.0.s8 %v7678
  %v7680 = vperm.slane %v7672, %v7679
  %v7681 = vrot.slane %v7644, 4
  %v7682 = vsel %vm2781, %v7681, %v7632
  %v7683 = vrot.slane %v7632, 4
  %v7684 = vsel %vm2781, %v7644, %v7683
  %v7686 = vunpack.c.l.s4 1934713408
  %v7687 = vunpack.c.0.s8 %v7686
  %v7688 = vperm.slane %v7682, %v7687
  %v7690 = vunpack.c.l.s4 1934713408
  %v7691 = vunpack.c.0.s8 %v7690
  %v7692 = vperm.slane %v7684, %v7691
  %v7693 = vrot.slane %v7676, 4
  %v7694 = vsel %vm2781, %v7693, %v7652
  %v7695 = vrot.slane %v7652, 4
  %v7696 = vsel %vm2781, %v7676, %v7695
  %v7697 = vrot.slane %v7680, 4
  %v7698 = vsel %vm2781, %v7697, %v7656
  %v7699 = vrot.slane %v7656, 4
  %v7700 = vsel %vm2781, %v7680, %v7699
  %v7701 = vrot.slane %v7688, 4
  %v7702 = vsel %vm2781, %v7701, %v7664
  %v7703 = vrot.slane %v7664, 4
  %v7704 = vsel %vm2781, %v7688, %v7703
  %v7705 = vrot.slane %v7692, 4
  %v7706 = vsel %vm2781, %v7705, %v7668
  %v7707 = vrot.slane %v7668, 4
  %v7708 = vsel %vm2781, %v7692, %v7707
  %v7709 = vrot.slane %v2515, 4
  %v7710 = vsel %vm2781, %v7709, %v2497
  %v7711 = vrot.slane %v2497, 4
  %v7712 = vsel %vm2781, %v2515, %v7711
  %v7714 = vunpack.c.l.s4 1983009808
  %v7715 = vunpack.c.0.s8 %v7714
  %v7716 = vperm.slane %v7710, %v7715
  %v7718 = vunpack.c.l.s4 1983009808
  %v7719 = vunpack.c.0.s8 %v7718
  %v7720 = vperm.slane %v7712, %v7719
  %v7721 = vrot.slane %v2524, 4
  %v7722 = vsel %vm2781, %v7721, %v2506
  %v7723 = vrot.slane %v2506, 4
  %v7724 = vsel %vm2781, %v2524, %v7723
  %v7726 = vunpack.c.l.s4 1983009808
  %v7727 = vunpack.c.0.s8 %v7726
  %v7728 = vperm.slane %v7722, %v7727
  %v7730 = vunpack.c.l.s4 1983009808
  %v7731 = vunpack.c.0.s8 %v7730
  %v7732 = vperm.slane %v7724, %v7731
  %v7733 = vrot.slane %v2551, 4
  %v7734 = vsel %vm2781, %v7733, %v2533
  %v7735 = vrot.slane %v2533, 4
  %v7736 = vsel %vm2781, %v2551, %v7735
  %v7738 = vunpack.c.l.s4 1983009808
  %v7739 = vunpack.c.0.s8 %v7738
  %v7740 = vperm.slane %v7734, %v7739
  %v7742 = vunpack.c.l.s4 1983009808
  %v7743 = vunpack.c.0.s8 %v7742
  %v7744 = vperm.slane %v7736, %v7743
  %v7745 = vrot.slane %v2560, 4
  %v7746 = vsel %vm2781, %v7745, %v2542
  %v7747 = vrot.slane %v2542, 4
  %v7748 = vsel %vm2781, %v2560, %v7747
  %v7750 = vunpack.c.l.s4 1983009808
  %v7751 = vunpack.c.0.s8 %v7750
  %v7752 = vperm.slane %v7746, %v7751
  %v7754 = vunpack.c.l.s4 1983009808
  %v7755 = vunpack.c.0.s8 %v7754
  %v7756 = vperm.slane %v7748, %v7755
  %v7757 = vrot.slane %v7728, 4
  %v7758 = vsel %vm2781, %v7757, %v7716
  %v7759 = vrot.slane %v7716, 4
  %v7760 = vsel %vm2781, %v7728, %v7759
  %v7762 = vunpack.c.l.s4 1934713408
  %v7763 = vunpack.c.0.s8 %v7762
  %v7764 = vperm.slane %v7758, %v7763
  %v7766 = vunpack.c.l.s4 1934713408
  %v7767 = vunpack.c.0.s8 %v7766
  %v7768 = vperm.slane %v7760, %v7767
  %v7769 = vrot.slane %v7732, 4
  %v7770 = vsel %vm2781, %v7769, %v7720
  %v7771 = vrot.slane %v7720, 4
  %v7772 = vsel %vm2781, %v7732, %v7771
  %v7774 = vunpack.c.l.s4 1934713408
  %v7775 = vunpack.c.0.s8 %v7774
  %v7776 = vperm.slane %v7770, %v7775
  %v7778 = vunpack.c.l.s4 1934713408
  %v7779 = vunpack.c.0.s8 %v7778
  %v7780 = vperm.slane %v7772, %v7779
  %v7781 = vrot.slane %v7752, 4
  %v7782 = vsel %vm2781, %v7781, %v7740
  %v7783 = vrot.slane %v7740, 4
  %v7784 = vsel %vm2781, %v7752, %v7783
  %v7786 = vunpack.c.l.s4 1934713408
  %v7787 = vunpack.c.0.s8 %v7786
  %v7788 = vperm.slane %v7782, %v7787
  %v7790 = vunpack.c.l.s4 1934713408
  %v7791 = vunpack.c.0.s8 %v7790
  %v7792 = vperm.slane %v7784, %v7791
  %v7793 = vrot.slane %v7756, 4
  %v7794 = vsel %vm2781, %v7793, %v7744
  %v7795 = vrot.slane %v7744, 4
  %v7796 = vsel %vm2781, %v7756, %v7795
  %v7798 = vunpack.c.l.s4 1934713408
  %v7799 = vunpack.c.0.s8 %v7798
  %v7800 = vperm.slane %v7794, %v7799
  %v7802 = vunpack.c.l.s4 1934713408
  %v7803 = vunpack.c.0.s8 %v7802
  %v7804 = vperm.slane %v7796, %v7803
  %v7805 = vrot.slane %v7788, 4
  %v7806 = vsel %vm2781, %v7805, %v7764
  %v7807 = vrot.slane %v7764, 4
  %v7808 = vsel %vm2781, %v7788, %v7807
  %v7809 = vrot.slane %v7792, 4
  %v7810 = vsel %vm2781, %v7809, %v7768
  %v7811 = vrot.slane %v7768, 4
  %v7812 = vsel %vm2781, %v7792, %v7811
  %v7813 = vrot.slane %v7800, 4
  %v7814 = vsel %vm2781, %v7813, %v7776
  %v7815 = vrot.slane %v7776, 4
  %v7816 = vsel %vm2781, %v7800, %v7815
  %v7817 = vrot.slane %v7804, 4
  %v7818 = vsel %vm2781, %v7817, %v7780
  %v7819 = vrot.slane %v7780, 4
  %v7820 = vsel %vm2781, %v7804, %v7819
  %v7821 = vrot.slane %v2587, 4
  %v7822 = vsel %vm2781, %v7821, %v2569
  %v7823 = vrot.slane %v2569, 4
  %v7824 = vsel %vm2781, %v2587, %v7823
  %v7826 = vunpack.c.l.s4 1983009808
  %v7827 = vunpack.c.0.s8 %v7826
  %v7828 = vperm.slane %v7822, %v7827
  %v7830 = vunpack.c.l.s4 1983009808
  %v7831 = vunpack.c.0.s8 %v7830
  %v7832 = vperm.slane %v7824, %v7831
  %v7833 = vrot.slane %v2596, 4
  %v7834 = vsel %vm2781, %v7833, %v2578
  %v7835 = vrot.slane %v2578, 4
  %v7836 = vsel %vm2781, %v2596, %v7835
  %v7838 = vunpack.c.l.s4 1983009808
  %v7839 = vunpack.c.0.s8 %v7838
  %v7840 = vperm.slane %v7834, %v7839
  %v7842 = vunpack.c.l.s4 1983009808
  %v7843 = vunpack.c.0.s8 %v7842
  %v7844 = vperm.slane %v7836, %v7843
  %v7845 = vrot.slane %v2623, 4
  %v7846 = vsel %vm2781, %v7845, %v2605
  %v7847 = vrot.slane %v2605, 4
  %v7848 = vsel %vm2781, %v2623, %v7847
  %v7850 = vunpack.c.l.s4 1983009808
  %v7851 = vunpack.c.0.s8 %v7850
  %v7852 = vperm.slane %v7846, %v7851
  %v7854 = vunpack.c.l.s4 1983009808
  %v7855 = vunpack.c.0.s8 %v7854
  %v7856 = vperm.slane %v7848, %v7855
  %v7857 = vrot.slane %v2632, 4
  %v7858 = vsel %vm2781, %v7857, %v2614
  %v7859 = vrot.slane %v2614, 4
  %v7860 = vsel %vm2781, %v2632, %v7859
  %v7862 = vunpack.c.l.s4 1983009808
  %v7863 = vunpack.c.0.s8 %v7862
  %v7864 = vperm.slane %v7858, %v7863
  %v7866 = vunpack.c.l.s4 1983009808
  %v7867 = vunpack.c.0.s8 %v7866
  %v7868 = vperm.slane %v7860, %v7867
  %v7869 = vrot.slane %v7840, 4
  %v7870 = vsel %vm2781, %v7869, %v7828
  %v7871 = vrot.slane %v7828, 4
  %v7872 = vsel %vm2781, %v7840, %v7871
  %v7874 = vunpack.c.l.s4 1934713408
  %v7875 = vunpack.c.0.s8 %v7874
  %v7876 = vperm.slane %v7870, %v7875
  %v7878 = vunpack.c.l.s4 1934713408
  %v7879 = vunpack.c.0.s8 %v7878
  %v7880 = vperm.slane %v7872, %v7879
  %v7881 = vrot.slane %v7844, 4
  %v7882 = vsel %vm2781, %v7881, %v7832
  %v7883 = vrot.slane %v7832, 4
  %v7884 = vsel %vm2781, %v7844, %v7883
  %v7886 = vunpack.c.l.s4 1934713408
  %v7887 = vunpack.c.0.s8 %v7886
  %v7888 = vperm.slane %v7882, %v7887
  %v7890 = vunpack.c.l.s4 1934713408
  %v7891 = vunpack.c.0.s8 %v7890
  %v7892 = vperm.slane %v7884, %v7891
  %v7893 = vrot.slane %v7864, 4
  %v7894 = vsel %vm2781, %v7893, %v7852
  %v7895 = vrot.slane %v7852, 4
  %v7896 = vsel %vm2781, %v7864, %v7895
  %v7898 = vunpack.c.l.s4 1934713408
  %v7899 = vunpack.c.0.s8 %v7898
  %v7900 = vperm.slane %v7894, %v7899
  %v7902 = vunpack.c.l.s4 1934713408
  %v7903 = vunpack.c.0.s8 %v7902
  %v7904 = vperm.slane %v7896, %v7903
  %v7905 = vrot.slane %v7868, 4
  %v7906 = vsel %vm2781, %v7905, %v7856
  %v7907 = vrot.slane %v7856, 4
  %v7908 = vsel %vm2781, %v7868, %v7907
  %v7910 = vunpack.c.l.s4 1934713408
  %v7911 = vunpack.c.0.s8 %v7910
  %v7912 = vperm.slane %v7906, %v7911
  %v7914 = vunpack.c.l.s4 1934713408
  %v7915 = vunpack.c.0.s8 %v7914
  %v7916 = vperm.slane %v7908, %v7915
  %v7917 = vrot.slane %v7900, 4
  %v7918 = vsel %vm2781, %v7917, %v7876
  %v7919 = vrot.slane %v7876, 4
  %v7920 = vsel %vm2781, %v7900, %v7919
  %v7921 = vrot.slane %v7904, 4
  %v7922 = vsel %vm2781, %v7921, %v7880
  %v7923 = vrot.slane %v7880, 4
  %v7924 = vsel %vm2781, %v7904, %v7923
  %v7925 = vrot.slane %v7912, 4
  %v7926 = vsel %vm2781, %v7925, %v7888
  %v7927 = vrot.slane %v7888, 4
  %v7928 = vsel %vm2781, %v7912, %v7927
  %v7929 = vrot.slane %v7916, 4
  %v7930 = vsel %vm2781, %v7929, %v7892
  %v7931 = vrot.slane %v7892, 4
  %v7932 = vsel %vm2781, %v7916, %v7931
  %v7933 = vrot.slane %v2659, 4
  %v7934 = vsel %vm2781, %v7933, %v2641
  %v7935 = vrot.slane %v2641, 4
  %v7936 = vsel %vm2781, %v2659, %v7935
  %v7938 = vunpack.c.l.s4 1983009808
  %v7939 = vunpack.c.0.s8 %v7938
  %v7940 = vperm.slane %v7934, %v7939
  %v7942 = vunpack.c.l.s4 1983009808
  %v7943 = vunpack.c.0.s8 %v7942
  %v7944 = vperm.slane %v7936, %v7943
  %v7945 = vrot.slane %v2668, 4
  %v7946 = vsel %vm2781, %v7945, %v2650
  %v7947 = vrot.slane %v2650, 4
  %v7948 = vsel %vm2781, %v2668, %v7947
  %v7950 = vunpack.c.l.s4 1983009808
  %v7951 = vunpack.c.0.s8 %v7950
  %v7952 = vperm.slane %v7946, %v7951
  %v7954 = vunpack.c.l.s4 1983009808
  %v7955 = vunpack.c.0.s8 %v7954
  %v7956 = vperm.slane %v7948, %v7955
  %v7957 = vrot.slane %v2695, 4
  %v7958 = vsel %vm2781, %v7957, %v2677
  %v7959 = vrot.slane %v2677, 4
  %v7960 = vsel %vm2781, %v2695, %v7959
  %v7962 = vunpack.c.l.s4 1983009808
  %v7963 = vunpack.c.0.s8 %v7962
  %v7964 = vperm.slane %v7958, %v7963
  %v7966 = vunpack.c.l.s4 1983009808
  %v7967 = vunpack.c.0.s8 %v7966
  %v7968 = vperm.slane %v7960, %v7967
  %v7969 = vrot.slane %v2704, 4
  %v7970 = vsel %vm2781, %v7969, %v2686
  %v7971 = vrot.slane %v2686, 4
  %v7972 = vsel %vm2781, %v2704, %v7971
  %v7974 = vunpack.c.l.s4 1983009808
  %v7975 = vunpack.c.0.s8 %v7974
  %v7976 = vperm.slane %v7970, %v7975
  %v7978 = vunpack.c.l.s4 1983009808
  %v7979 = vunpack.c.0.s8 %v7978
  %v7980 = vperm.slane %v7972, %v7979
  %v7981 = vrot.slane %v7952, 4
  %v7982 = vsel %vm2781, %v7981, %v7940
  %v7983 = vrot.slane %v7940, 4
  %v7984 = vsel %vm2781, %v7952, %v7983
  %v7986 = vunpack.c.l.s4 1934713408
  %v7987 = vunpack.c.0.s8 %v7986
  %v7988 = vperm.slane %v7982, %v7987
  %v7990 = vunpack.c.l.s4 1934713408
  %v7991 = vunpack.c.0.s8 %v7990
  %v7992 = vperm.slane %v7984, %v7991
  %v7993 = vrot.slane %v7956, 4
  %v7994 = vsel %vm2781, %v7993, %v7944
  %v7995 = vrot.slane %v7944, 4
  %v7996 = vsel %vm2781, %v7956, %v7995
  %v7998 = vunpack.c.l.s4 1934713408
  %v7999 = vunpack.c.0.s8 %v7998
  %v8000 = vperm.slane %v7994, %v7999
  %v8002 = vunpack.c.l.s4 1934713408
  %v8003 = vunpack.c.0.s8 %v8002
  %v8004 = vperm.slane %v7996, %v8003
  %v8005 = vrot.slane %v7976, 4
  %v8006 = vsel %vm2781, %v8005, %v7964
  %v8007 = vrot.slane %v7964, 4
  %v8008 = vsel %vm2781, %v7976, %v8007
  %v8010 = vunpack.c.l.s4 1934713408
  %v8011 = vunpack.c.0.s8 %v8010
  %v8012 = vperm.slane %v8006, %v8011
  %v8014 = vunpack.c.l.s4 1934713408
  %v8015 = vunpack.c.0.s8 %v8014
  %v8016 = vperm.slane %v8008, %v8015
  %v8017 = vrot.slane %v7980, 4
  %v8018 = vsel %vm2781, %v8017, %v7968
  %v8019 = vrot.slane %v7968, 4
  %v8020 = vsel %vm2781, %v7980, %v8019
  %v8022 = vunpack.c.l.s4 1934713408
  %v8023 = vunpack.c.0.s8 %v8022
  %v8024 = vperm.slane %v8018, %v8023
  %v8026 = vunpack.c.l.s4 1934713408
  %v8027 = vunpack.c.0.s8 %v8026
  %v8028 = vperm.slane %v8020, %v8027
  %v8029 = vrot.slane %v8012, 4
  %v8030 = vsel %vm2781, %v8029, %v7988
  %v8031 = vrot.slane %v7988, 4
  %v8032 = vsel %vm2781, %v8012, %v8031
  %v8033 = vrot.slane %v8016, 4
  %v8034 = vsel %vm2781, %v8033, %v7992
  %v8035 = vrot.slane %v7992, 4
  %v8036 = vsel %vm2781, %v8016, %v8035
  %v8037 = vrot.slane %v8024, 4
  %v8038 = vsel %vm2781, %v8037, %v8000
  %v8039 = vrot.slane %v8000, 4
  %v8040 = vsel %vm2781, %v8024, %v8039
  %v8041 = vrot.slane %v8028, 4
  %v8042 = vsel %vm2781, %v8041, %v8004
  %v8043 = vrot.slane %v8004, 4
  %v8044 = vsel %vm2781, %v8028, %v8043
  %v8045 = vrot.slane %v2731, 4
  %v8046 = vsel %vm2781, %v8045, %v2713
  %v8047 = vrot.slane %v2713, 4
  %v8048 = vsel %vm2781, %v2731, %v8047
  %v8050 = vunpack.c.l.s4 1983009808
  %v8051 = vunpack.c.0.s8 %v8050
  %v8052 = vperm.slane %v8046, %v8051
  %v8054 = vunpack.c.l.s4 1983009808
  %v8055 = vunpack.c.0.s8 %v8054
  %v8056 = vperm.slane %v8048, %v8055
  %v8057 = vrot.slane %v2740, 4
  %v8058 = vsel %vm2781, %v8057, %v2722
  %v8059 = vrot.slane %v2722, 4
  %v8060 = vsel %vm2781, %v2740, %v8059
  %v8062 = vunpack.c.l.s4 1983009808
  %v8063 = vunpack.c.0.s8 %v8062
  %v8064 = vperm.slane %v8058, %v8063
  %v8066 = vunpack.c.l.s4 1983009808
  %v8067 = vunpack.c.0.s8 %v8066
  %v8068 = vperm.slane %v8060, %v8067
  %v8069 = vrot.slane %v2767, 4
  %v8070 = vsel %vm2781, %v8069, %v2749
  %v8071 = vrot.slane %v2749, 4
  %v8072 = vsel %vm2781, %v2767, %v8071
  %v8074 = vunpack.c.l.s4 1983009808
  %v8075 = vunpack.c.0.s8 %v8074
  %v8076 = vperm.slane %v8070, %v8075
  %v8078 = vunpack.c.l.s4 1983009808
  %v8079 = vunpack.c.0.s8 %v8078
  %v8080 = vperm.slane %v8072, %v8079
  %v8081 = vrot.slane %v2776, 4
  %v8082 = vsel %vm2781, %v8081, %v2758
  %v8083 = vrot.slane %v2758, 4
  %v8084 = vsel %vm2781, %v2776, %v8083
  %v8086 = vunpack.c.l.s4 1983009808
  %v8087 = vunpack.c.0.s8 %v8086
  %v8088 = vperm.slane %v8082, %v8087
  %v8090 = vunpack.c.l.s4 1983009808
  %v8091 = vunpack.c.0.s8 %v8090
  %v8092 = vperm.slane %v8084, %v8091
  %v8093 = vrot.slane %v8064, 4
  %v8094 = vsel %vm2781, %v8093, %v8052
  %v8095 = vrot.slane %v8052, 4
  %v8096 = vsel %vm2781, %v8064, %v8095
  %v8098 = vunpack.c.l.s4 1934713408
  %v8099 = vunpack.c.0.s8 %v8098
  %v8100 = vperm.slane %v8094, %v8099
  %v8102 = vunpack.c.l.s4 1934713408
  %v8103 = vunpack.c.0.s8 %v8102
  %v8104 = vperm.slane %v8096, %v8103
  %v8105 = vrot.slane %v8068, 4
  %v8106 = vsel %vm2781, %v8105, %v8056
  %v8107 = vrot.slane %v8056, 4
  %v8108 = vsel %vm2781, %v8068, %v8107
  %v8110 = vunpack.c.l.s4 1934713408
  %v8111 = vunpack.c.0.s8 %v8110
  %v8112 = vperm.slane %v8106, %v8111
  %v8114 = vunpack.c.l.s4 1934713408
  %v8115 = vunpack.c.0.s8 %v8114
  %v8116 = vperm.slane %v8108, %v8115
  %v8117 = vrot.slane %v8088, 4
  %v8118 = vsel %vm2781, %v8117, %v8076
  %v8119 = vrot.slane %v8076, 4
  %v8120 = vsel %vm2781, %v8088, %v8119
  %v8122 = vunpack.c.l.s4 1934713408
  %v8123 = vunpack.c.0.s8 %v8122
  %v8124 = vperm.slane %v8118, %v8123
  %v8126 = vunpack.c.l.s4 1934713408
  %v8127 = vunpack.c.0.s8 %v8126
  %v8128 = vperm.slane %v8120, %v8127
  %v8129 = vrot.slane %v8092, 4
  %v8130 = vsel %vm2781, %v8129, %v8080
  %v8131 = vrot.slane %v8080, 4
  %v8132 = vsel %vm2781, %v8092, %v8131
  %v8134 = vunpack.c.l.s4 1934713408
  %v8135 = vunpack.c.0.s8 %v8134
  %v8136 = vperm.slane %v8130, %v8135
  %v8138 = vunpack.c.l.s4 1934713408
  %v8139 = vunpack.c.0.s8 %v8138
  %v8140 = vperm.slane %v8132, %v8139
  %v8141 = vrot.slane %v8124, 4
  %v8142 = vsel %vm2781, %v8141, %v8100
  %v8143 = vrot.slane %v8100, 4
  %v8144 = vsel %vm2781, %v8124, %v8143
  %v8145 = vrot.slane %v8128, 4
  %v8146 = vsel %vm2781, %v8145, %v8104
  %v8147 = vrot.slane %v8104, 4
  %v8148 = vsel %vm2781, %v8128, %v8147
  %v8149 = vrot.slane %v8136, 4
  %v8150 = vsel %vm2781, %v8149, %v8112
  %v8151 = vrot.slane %v8112, 4
  %v8152 = vsel %vm2781, %v8136, %v8151
  %v8153 = vrot.slane %v8140, 4
  %v8154 = vsel %vm2781, %v8153, %v8116
  %v8155 = vrot.slane %v8116, 4
  %v8156 = vsel %vm2781, %v8140, %v8155
  %vm8157 = vcmask 15360
  %v8158 = vsel %vm8157, %v2878, -inf
  %8159 = vmax.xlane.f32.xlu0 %v8158
  %v8160 = vpop.xlane.xlu0 %8159
  %v8161 = vsel %vm8157, %v2990, -inf
  %8162 = vmax.xlane.f32.xlu0 %v8161
  %v8163 = vpop.xlane.xlu0 %8162
  %v8164 = vsel %vm8157, %v3102, -inf
  %8165 = vmax.xlane.f32.xlu0 %v8164
  %v8166 = vpop.xlane.xlu0 %8165
  %v8167 = vsel %vm8157, %v3214, -inf
  %8168 = vmax.xlane.f32.xlu0 %v8167
  %v8169 = vpop.xlane.xlu0 %8168
  %v8170 = vsel %vm8157, %v3326, -inf
  %8171 = vmax.xlane.f32.xlu0 %v8170
  %v8172 = vpop.xlane.xlu0 %8171
  %v8173 = vsel %vm8157, %v3438, -inf
  %8174 = vmax.xlane.f32.xlu0 %v8173
  %v8175 = vpop.xlane.xlu0 %8174
  %v8176 = vsel %vm8157, %v3550, -inf
  %8177 = vmax.xlane.f32.xlu0 %v8176
  %v8178 = vpop.xlane.xlu0 %8177
  %v8179 = vsel %vm8157, %v3662, -inf
  %8180 = vmax.xlane.f32.xlu0 %v8179
  %v8181 = vpop.xlane.xlu0 %8180
  %v8182 = vsel %vm8157, %v3774, -inf
  %8183 = vmax.xlane.f32.xlu0 %v8182
  %v8184 = vpop.xlane.xlu0 %8183
  %v8185 = vsel %vm8157, %v3886, -inf
  %8186 = vmax.xlane.f32.xlu0 %v8185
  %v8187 = vpop.xlane.xlu0 %8186
  %v8188 = vsel %vm8157, %v3998, -inf
  %8189 = vmax.xlane.f32.xlu0 %v8188
  %v8190 = vpop.xlane.xlu0 %8189
  %v8191 = vsel %vm8157, %v4110, -inf
  %8192 = vmax.xlane.f32.xlu0 %v8191
  %v8193 = vpop.xlane.xlu0 %8192
  %v8194 = vsel %vm8157, %v4222, -inf
  %8195 = vmax.xlane.f32.xlu0 %v8194
  %v8196 = vpop.xlane.xlu0 %8195
  %v8197 = vsel %vm8157, %v4334, -inf
  %8198 = vmax.xlane.f32.xlu0 %v8197
  %v8199 = vpop.xlane.xlu0 %8198
  %v8200 = vsel %vm8157, %v4446, -inf
  %8201 = vmax.xlane.f32.xlu0 %v8200
  %v8202 = vpop.xlane.xlu0 %8201
  %v8203 = vsel %vm8157, %v4558, -inf
  %8204 = vmax.xlane.f32.xlu0 %v8203
  %v8205 = vpop.xlane.xlu0 %8204
  %v8206 = vsel %vm8157, %v2880, -inf
  %8207 = vmax.xlane.f32.xlu0 %v8206
  %v8208 = vpop.xlane.xlu0 %8207
  %v8209 = vsel %vm8157, %v2992, -inf
  %8210 = vmax.xlane.f32.xlu0 %v8209
  %v8211 = vpop.xlane.xlu0 %8210
  %v8212 = vsel %vm8157, %v3104, -inf
  %8213 = vmax.xlane.f32.xlu0 %v8212
  %v8214 = vpop.xlane.xlu0 %8213
  %v8215 = vsel %vm8157, %v3216, -inf
  %8216 = vmax.xlane.f32.xlu0 %v8215
  %v8217 = vpop.xlane.xlu0 %8216
  %v8218 = vsel %vm8157, %v3328, -inf
  %8219 = vmax.xlane.f32.xlu0 %v8218
  %v8220 = vpop.xlane.xlu0 %8219
  %v8221 = vsel %vm8157, %v3440, -inf
  %8222 = vmax.xlane.f32.xlu0 %v8221
  %v8223 = vpop.xlane.xlu0 %8222
  %v8224 = vsel %vm8157, %v3552, -inf
  %8225 = vmax.xlane.f32.xlu0 %v8224
  %v8226 = vpop.xlane.xlu0 %8225
  %v8227 = vsel %vm8157, %v3664, -inf
  %8228 = vmax.xlane.f32.xlu0 %v8227
  %v8229 = vpop.xlane.xlu0 %8228
  %v8230 = vsel %vm8157, %v3776, -inf
  %8231 = vmax.xlane.f32.xlu0 %v8230
  %v8232 = vpop.xlane.xlu0 %8231
  %v8233 = vsel %vm8157, %v3888, -inf
  %8234 = vmax.xlane.f32.xlu0 %v8233
  %v8235 = vpop.xlane.xlu0 %8234
  %v8236 = vsel %vm8157, %v4000, -inf
  %8237 = vmax.xlane.f32.xlu0 %v8236
  %v8238 = vpop.xlane.xlu0 %8237
  %v8239 = vsel %vm8157, %v4112, -inf
  %8240 = vmax.xlane.f32.xlu0 %v8239
  %v8241 = vpop.xlane.xlu0 %8240
  %v8242 = vsel %vm8157, %v4224, -inf
  %8243 = vmax.xlane.f32.xlu0 %v8242
  %v8244 = vpop.xlane.xlu0 %8243
  %v8245 = vsel %vm8157, %v4336, -inf
  %8246 = vmax.xlane.f32.xlu0 %v8245
  %v8247 = vpop.xlane.xlu0 %8246
  %v8248 = vsel %vm8157, %v4448, -inf
  %8249 = vmax.xlane.f32.xlu0 %v8248
  %v8250 = vpop.xlane.xlu0 %8249
  %v8251 = vsel %vm8157, %v4560, -inf
  %8252 = vmax.xlane.f32.xlu0 %v8251
  %v8253 = vpop.xlane.xlu0 %8252
  %v8254 = vsel %vm8157, %v2882, -inf
  %8255 = vmax.xlane.f32.xlu0 %v8254
  %v8256 = vpop.xlane.xlu0 %8255
  %v8257 = vsel %vm8157, %v2994, -inf
  %8258 = vmax.xlane.f32.xlu0 %v8257
  %v8259 = vpop.xlane.xlu0 %8258
  %v8260 = vsel %vm8157, %v3106, -inf
  %8261 = vmax.xlane.f32.xlu0 %v8260
  %v8262 = vpop.xlane.xlu0 %8261
  %v8263 = vsel %vm8157, %v3218, -inf
  %8264 = vmax.xlane.f32.xlu0 %v8263
  %v8265 = vpop.xlane.xlu0 %8264
  %v8266 = vsel %vm8157, %v3330, -inf
  %8267 = vmax.xlane.f32.xlu0 %v8266
  %v8268 = vpop.xlane.xlu0 %8267
  %v8269 = vsel %vm8157, %v3442, -inf
  %8270 = vmax.xlane.f32.xlu0 %v8269
  %v8271 = vpop.xlane.xlu0 %8270
  %v8272 = vsel %vm8157, %v3554, -inf
  %8273 = vmax.xlane.f32.xlu0 %v8272
  %v8274 = vpop.xlane.xlu0 %8273
  %v8275 = vsel %vm8157, %v3666, -inf
  %8276 = vmax.xlane.f32.xlu0 %v8275
  %v8277 = vpop.xlane.xlu0 %8276
  %v8278 = vsel %vm8157, %v3778, -inf
  %8279 = vmax.xlane.f32.xlu0 %v8278
  %v8280 = vpop.xlane.xlu0 %8279
  %v8281 = vsel %vm8157, %v3890, -inf
  %8282 = vmax.xlane.f32.xlu0 %v8281
  %v8283 = vpop.xlane.xlu0 %8282
  %v8284 = vsel %vm8157, %v4002, -inf
  %8285 = vmax.xlane.f32.xlu0 %v8284
  %v8286 = vpop.xlane.xlu0 %8285
  %v8287 = vsel %vm8157, %v4114, -inf
  %8288 = vmax.xlane.f32.xlu0 %v8287
  %v8289 = vpop.xlane.xlu0 %8288
  %v8290 = vsel %vm8157, %v4226, -inf
  %8291 = vmax.xlane.f32.xlu0 %v8290
  %v8292 = vpop.xlane.xlu0 %8291
  %v8293 = vsel %vm8157, %v4338, -inf
  %8294 = vmax.xlane.f32.xlu0 %v8293
  %v8295 = vpop.xlane.xlu0 %8294
  %v8296 = vsel %vm8157, %v4450, -inf
  %8297 = vmax.xlane.f32.xlu0 %v8296
  %v8298 = vpop.xlane.xlu0 %8297
  %v8299 = vsel %vm8157, %v4562, -inf
  %8300 = vmax.xlane.f32.xlu0 %v8299
  %v8301 = vpop.xlane.xlu0 %8300
  %v8302 = vsel %vm8157, %v2884, -inf
  %8303 = vmax.xlane.f32.xlu0 %v8302
  %v8304 = vpop.xlane.xlu0 %8303
  %v8305 = vsel %vm8157, %v2996, -inf
  %8306 = vmax.xlane.f32.xlu0 %v8305
  %v8307 = vpop.xlane.xlu0 %8306
  %v8308 = vsel %vm8157, %v3108, -inf
  %8309 = vmax.xlane.f32.xlu0 %v8308
  %v8310 = vpop.xlane.xlu0 %8309
  %v8311 = vsel %vm8157, %v3220, -inf
  %8312 = vmax.xlane.f32.xlu0 %v8311
  %v8313 = vpop.xlane.xlu0 %8312
  %v8314 = vsel %vm8157, %v3332, -inf
  %8315 = vmax.xlane.f32.xlu0 %v8314
  %v8316 = vpop.xlane.xlu0 %8315
  %v8317 = vsel %vm8157, %v3444, -inf
  %8318 = vmax.xlane.f32.xlu0 %v8317
  %v8319 = vpop.xlane.xlu0 %8318
  %v8320 = vsel %vm8157, %v3556, -inf
  %8321 = vmax.xlane.f32.xlu0 %v8320
  %v8322 = vpop.xlane.xlu0 %8321
  %v8323 = vsel %vm8157, %v3668, -inf
  %8324 = vmax.xlane.f32.xlu0 %v8323
  %v8325 = vpop.xlane.xlu0 %8324
  %v8326 = vsel %vm8157, %v3780, -inf
  %8327 = vmax.xlane.f32.xlu0 %v8326
  %v8328 = vpop.xlane.xlu0 %8327
  %v8329 = vsel %vm8157, %v3892, -inf
  %8330 = vmax.xlane.f32.xlu0 %v8329
  %v8331 = vpop.xlane.xlu0 %8330
  %v8332 = vsel %vm8157, %v4004, -inf
  %8333 = vmax.xlane.f32.xlu0 %v8332
  %v8334 = vpop.xlane.xlu0 %8333
  %v8335 = vsel %vm8157, %v4116, -inf
  %8336 = vmax.xlane.f32.xlu0 %v8335
  %v8337 = vpop.xlane.xlu0 %8336
  %v8338 = vsel %vm8157, %v4228, -inf
  %8339 = vmax.xlane.f32.xlu0 %v8338
  %v8340 = vpop.xlane.xlu0 %8339
  %v8341 = vsel %vm8157, %v4340, -inf
  %8342 = vmax.xlane.f32.xlu0 %v8341
  %v8343 = vpop.xlane.xlu0 %8342
  %v8344 = vsel %vm8157, %v4452, -inf
  %8345 = vmax.xlane.f32.xlu0 %v8344
  %v8346 = vpop.xlane.xlu0 %8345
  %v8347 = vsel %vm8157, %v4564, -inf
  %8348 = vmax.xlane.f32.xlu0 %v8347
  %v8349 = vpop.xlane.xlu0 %8348
  %v8350 = vsel %vm8157, %v2886, -inf
  %8351 = vmax.xlane.f32.xlu0 %v8350
  %v8352 = vpop.xlane.xlu0 %8351
  %v8353 = vsel %vm8157, %v2998, -inf
  %8354 = vmax.xlane.f32.xlu0 %v8353
  %v8355 = vpop.xlane.xlu0 %8354
  %v8356 = vsel %vm8157, %v3110, -inf
  %8357 = vmax.xlane.f32.xlu0 %v8356
  %v8358 = vpop.xlane.xlu0 %8357
  %v8359 = vsel %vm8157, %v3222, -inf
  %8360 = vmax.xlane.f32.xlu0 %v8359
  %v8361 = vpop.xlane.xlu0 %8360
  %v8362 = vsel %vm8157, %v3334, -inf
  %8363 = vmax.xlane.f32.xlu0 %v8362
  %v8364 = vpop.xlane.xlu0 %8363
  %v8365 = vsel %vm8157, %v3446, -inf
  %8366 = vmax.xlane.f32.xlu0 %v8365
  %v8367 = vpop.xlane.xlu0 %8366
  %v8368 = vsel %vm8157, %v3558, -inf
  %8369 = vmax.xlane.f32.xlu0 %v8368
  %v8370 = vpop.xlane.xlu0 %8369
  %v8371 = vsel %vm8157, %v3670, -inf
  %8372 = vmax.xlane.f32.xlu0 %v8371
  %v8373 = vpop.xlane.xlu0 %8372
  %v8374 = vsel %vm8157, %v3782, -inf
  %8375 = vmax.xlane.f32.xlu0 %v8374
  %v8376 = vpop.xlane.xlu0 %8375
  %v8377 = vsel %vm8157, %v3894, -inf
  %8378 = vmax.xlane.f32.xlu0 %v8377
  %v8379 = vpop.xlane.xlu0 %8378
  %v8380 = vsel %vm8157, %v4006, -inf
  %8381 = vmax.xlane.f32.xlu0 %v8380
  %v8382 = vpop.xlane.xlu0 %8381
  %v8383 = vsel %vm8157, %v4118, -inf
  %8384 = vmax.xlane.f32.xlu0 %v8383
  %v8385 = vpop.xlane.xlu0 %8384
  %v8386 = vsel %vm8157, %v4230, -inf
  %8387 = vmax.xlane.f32.xlu0 %v8386
  %v8388 = vpop.xlane.xlu0 %8387
  %v8389 = vsel %vm8157, %v4342, -inf
  %8390 = vmax.xlane.f32.xlu0 %v8389
  %v8391 = vpop.xlane.xlu0 %8390
  %v8392 = vsel %vm8157, %v4454, -inf
  %8393 = vmax.xlane.f32.xlu0 %v8392
  %v8394 = vpop.xlane.xlu0 %8393
  %v8395 = vsel %vm8157, %v4566, -inf
  %8396 = vmax.xlane.f32.xlu0 %v8395
  %v8397 = vpop.xlane.xlu0 %8396
  %v8398 = vsel %vm8157, %v2888, -inf
  %8399 = vmax.xlane.f32.xlu0 %v8398
  %v8400 = vpop.xlane.xlu0 %8399
  %v8401 = vsel %vm8157, %v3000, -inf
  %8402 = vmax.xlane.f32.xlu0 %v8401
  %v8403 = vpop.xlane.xlu0 %8402
  %v8404 = vsel %vm8157, %v3112, -inf
  %8405 = vmax.xlane.f32.xlu0 %v8404
  %v8406 = vpop.xlane.xlu0 %8405
  %v8407 = vsel %vm8157, %v3224, -inf
  %8408 = vmax.xlane.f32.xlu0 %v8407
  %v8409 = vpop.xlane.xlu0 %8408
  %v8410 = vsel %vm8157, %v3336, -inf
  %8411 = vmax.xlane.f32.xlu0 %v8410
  %v8412 = vpop.xlane.xlu0 %8411
  %v8413 = vsel %vm8157, %v3448, -inf
  %8414 = vmax.xlane.f32.xlu0 %v8413
  %v8415 = vpop.xlane.xlu0 %8414
  %v8416 = vsel %vm8157, %v3560, -inf
  %8417 = vmax.xlane.f32.xlu0 %v8416
  %v8418 = vpop.xlane.xlu0 %8417
  %v8419 = vsel %vm8157, %v3672, -inf
  %8420 = vmax.xlane.f32.xlu0 %v8419
  %v8421 = vpop.xlane.xlu0 %8420
  %v8422 = vsel %vm8157, %v3784, -inf
  %8423 = vmax.xlane.f32.xlu0 %v8422
  %v8424 = vpop.xlane.xlu0 %8423
  %v8425 = vsel %vm8157, %v3896, -inf
  %8426 = vmax.xlane.f32.xlu0 %v8425
  %v8427 = vpop.xlane.xlu0 %8426
  %v8428 = vsel %vm8157, %v4008, -inf
  %8429 = vmax.xlane.f32.xlu0 %v8428
  %v8430 = vpop.xlane.xlu0 %8429
  %v8431 = vsel %vm8157, %v4120, -inf
  %8432 = vmax.xlane.f32.xlu0 %v8431
  %v8433 = vpop.xlane.xlu0 %8432
  %v8434 = vsel %vm8157, %v4232, -inf
  %8435 = vmax.xlane.f32.xlu0 %v8434
  %v8436 = vpop.xlane.xlu0 %8435
  %v8437 = vsel %vm8157, %v4344, -inf
  %8438 = vmax.xlane.f32.xlu0 %v8437
  %v8439 = vpop.xlane.xlu0 %8438
  %v8440 = vsel %vm8157, %v4456, -inf
  %8441 = vmax.xlane.f32.xlu0 %v8440
  %v8442 = vpop.xlane.xlu0 %8441
  %v8443 = vsel %vm8157, %v4568, -inf
  %8444 = vmax.xlane.f32.xlu0 %v8443
  %v8445 = vpop.xlane.xlu0 %8444
  %v8446 = vsel %vm8157, %v2890, -inf
  %8447 = vmax.xlane.f32.xlu0 %v8446
  %v8448 = vpop.xlane.xlu0 %8447
  %v8449 = vsel %vm8157, %v3002, -inf
  %8450 = vmax.xlane.f32.xlu0 %v8449
  %v8451 = vpop.xlane.xlu0 %8450
  %v8452 = vsel %vm8157, %v3114, -inf
  %8453 = vmax.xlane.f32.xlu0 %v8452
  %v8454 = vpop.xlane.xlu0 %8453
  %v8455 = vsel %vm8157, %v3226, -inf
  %8456 = vmax.xlane.f32.xlu0 %v8455
  %v8457 = vpop.xlane.xlu0 %8456
  %v8458 = vsel %vm8157, %v3338, -inf
  %8459 = vmax.xlane.f32.xlu0 %v8458
  %v8460 = vpop.xlane.xlu0 %8459
  %v8461 = vsel %vm8157, %v3450, -inf
  %8462 = vmax.xlane.f32.xlu0 %v8461
  %v8463 = vpop.xlane.xlu0 %8462
  %v8464 = vsel %vm8157, %v3562, -inf
  %8465 = vmax.xlane.f32.xlu0 %v8464
  %v8466 = vpop.xlane.xlu0 %8465
  %v8467 = vsel %vm8157, %v3674, -inf
  %8468 = vmax.xlane.f32.xlu0 %v8467
  %v8469 = vpop.xlane.xlu0 %8468
  %v8470 = vsel %vm8157, %v3786, -inf
  %8471 = vmax.xlane.f32.xlu0 %v8470
  %v8472 = vpop.xlane.xlu0 %8471
  %v8473 = vsel %vm8157, %v3898, -inf
  %8474 = vmax.xlane.f32.xlu0 %v8473
  %v8475 = vpop.xlane.xlu0 %8474
  %v8476 = vsel %vm8157, %v4010, -inf
  %8477 = vmax.xlane.f32.xlu0 %v8476
  %v8478 = vpop.xlane.xlu0 %8477
  %v8479 = vsel %vm8157, %v4122, -inf
  %8480 = vmax.xlane.f32.xlu0 %v8479
  %v8481 = vpop.xlane.xlu0 %8480
  %v8482 = vsel %vm8157, %v4234, -inf
  %8483 = vmax.xlane.f32.xlu0 %v8482
  %v8484 = vpop.xlane.xlu0 %8483
  %v8485 = vsel %vm8157, %v4346, -inf
  %8486 = vmax.xlane.f32.xlu0 %v8485
  %v8487 = vpop.xlane.xlu0 %8486
  %v8488 = vsel %vm8157, %v4458, -inf
  %8489 = vmax.xlane.f32.xlu0 %v8488
  %v8490 = vpop.xlane.xlu0 %8489
  %v8491 = vsel %vm8157, %v4570, -inf
  %8492 = vmax.xlane.f32.xlu0 %v8491
  %v8493 = vpop.xlane.xlu0 %8492
  %v8494 = vsel %vm8157, %v2892, -inf
  %8495 = vmax.xlane.f32.xlu0 %v8494
  %v8496 = vpop.xlane.xlu0 %8495
  %v8497 = vsel %vm8157, %v3004, -inf
  %8498 = vmax.xlane.f32.xlu0 %v8497
  %v8499 = vpop.xlane.xlu0 %8498
  %v8500 = vsel %vm8157, %v3116, -inf
  %8501 = vmax.xlane.f32.xlu0 %v8500
  %v8502 = vpop.xlane.xlu0 %8501
  %v8503 = vsel %vm8157, %v3228, -inf
  %8504 = vmax.xlane.f32.xlu0 %v8503
  %v8505 = vpop.xlane.xlu0 %8504
  %v8506 = vsel %vm8157, %v3340, -inf
  %8507 = vmax.xlane.f32.xlu0 %v8506
  %v8508 = vpop.xlane.xlu0 %8507
  %v8509 = vsel %vm8157, %v3452, -inf
  %8510 = vmax.xlane.f32.xlu0 %v8509
  %v8511 = vpop.xlane.xlu0 %8510
  %v8512 = vsel %vm8157, %v3564, -inf
  %8513 = vmax.xlane.f32.xlu0 %v8512
  %v8514 = vpop.xlane.xlu0 %8513
  %v8515 = vsel %vm8157, %v3676, -inf
  %8516 = vmax.xlane.f32.xlu0 %v8515
  %v8517 = vpop.xlane.xlu0 %8516
  %v8518 = vsel %vm8157, %v3788, -inf
  %8519 = vmax.xlane.f32.xlu0 %v8518
  %v8520 = vpop.xlane.xlu0 %8519
  %v8521 = vsel %vm8157, %v3900, -inf
  %8522 = vmax.xlane.f32.xlu0 %v8521
  %v8523 = vpop.xlane.xlu0 %8522
  %v8524 = vsel %vm8157, %v4012, -inf
  %8525 = vmax.xlane.f32.xlu0 %v8524
  %v8526 = vpop.xlane.xlu0 %8525
  %v8527 = vsel %vm8157, %v4124, -inf
  %8528 = vmax.xlane.f32.xlu0 %v8527
  %v8529 = vpop.xlane.xlu0 %8528
  %v8530 = vsel %vm8157, %v4236, -inf
  %8531 = vmax.xlane.f32.xlu0 %v8530
  %v8532 = vpop.xlane.xlu0 %8531
  %v8533 = vsel %vm8157, %v4348, -inf
  %8534 = vmax.xlane.f32.xlu0 %v8533
  %v8535 = vpop.xlane.xlu0 %8534
  %v8536 = vsel %vm8157, %v4460, -inf
  %8537 = vmax.xlane.f32.xlu0 %v8536
  %v8538 = vpop.xlane.xlu0 %8537
  %v8539 = vsel %vm8157, %v4572, -inf
  %8540 = vmax.xlane.f32.xlu0 %v8539
  %v8541 = vpop.xlane.xlu0 %8540
  %v8542 = vsel %vm8157, %v4670, -inf
  %8543 = vmax.xlane.f32.xlu0 %v8542
  %v8544 = vpop.xlane.xlu0 %8543
  %v8545 = vsel %vm8157, %v4782, -inf
  %8546 = vmax.xlane.f32.xlu0 %v8545
  %v8547 = vpop.xlane.xlu0 %8546
  %v8548 = vsel %vm8157, %v4894, -inf
  %8549 = vmax.xlane.f32.xlu0 %v8548
  %v8550 = vpop.xlane.xlu0 %8549
  %v8551 = vsel %vm8157, %v5006, -inf
  %8552 = vmax.xlane.f32.xlu0 %v8551
  %v8553 = vpop.xlane.xlu0 %8552
  %v8554 = vsel %vm8157, %v5118, -inf
  %8555 = vmax.xlane.f32.xlu0 %v8554
  %v8556 = vpop.xlane.xlu0 %8555
  %v8557 = vsel %vm8157, %v5230, -inf
  %8558 = vmax.xlane.f32.xlu0 %v8557
  %v8559 = vpop.xlane.xlu0 %8558
  %v8560 = vsel %vm8157, %v5342, -inf
  %8561 = vmax.xlane.f32.xlu0 %v8560
  %v8562 = vpop.xlane.xlu0 %8561
  %v8563 = vsel %vm8157, %v5454, -inf
  %8564 = vmax.xlane.f32.xlu0 %v8563
  %v8565 = vpop.xlane.xlu0 %8564
  %v8566 = vsel %vm8157, %v5566, -inf
  %8567 = vmax.xlane.f32.xlu0 %v8566
  %v8568 = vpop.xlane.xlu0 %8567
  %v8569 = vsel %vm8157, %v5678, -inf
  %8570 = vmax.xlane.f32.xlu0 %v8569
  %v8571 = vpop.xlane.xlu0 %8570
  %v8572 = vsel %vm8157, %v5790, -inf
  %8573 = vmax.xlane.f32.xlu0 %v8572
  %v8574 = vpop.xlane.xlu0 %8573
  %v8575 = vsel %vm8157, %v5902, -inf
  %8576 = vmax.xlane.f32.xlu0 %v8575
  %v8577 = vpop.xlane.xlu0 %8576
  %v8578 = vsel %vm8157, %v6014, -inf
  %8579 = vmax.xlane.f32.xlu0 %v8578
  %v8580 = vpop.xlane.xlu0 %8579
  %v8581 = vsel %vm8157, %v6126, -inf
  %8582 = vmax.xlane.f32.xlu0 %v8581
  %v8583 = vpop.xlane.xlu0 %8582
  %v8584 = vsel %vm8157, %v6238, -inf
  %8585 = vmax.xlane.f32.xlu0 %v8584
  %v8586 = vpop.xlane.xlu0 %8585
  %v8587 = vsel %vm8157, %v6350, -inf
  %8588 = vmax.xlane.f32.xlu0 %v8587
  %v8589 = vpop.xlane.xlu0 %8588
  %v8590 = vsel %vm8157, %v4672, -inf
  %8591 = vmax.xlane.f32.xlu0 %v8590
  %v8592 = vpop.xlane.xlu0 %8591
  %v8593 = vsel %vm8157, %v4784, -inf
  %8594 = vmax.xlane.f32.xlu0 %v8593
  %v8595 = vpop.xlane.xlu0 %8594
  %v8596 = vsel %vm8157, %v4896, -inf
  %8597 = vmax.xlane.f32.xlu0 %v8596
  %v8598 = vpop.xlane.xlu0 %8597
  %v8599 = vsel %vm8157, %v5008, -inf
  %8600 = vmax.xlane.f32.xlu0 %v8599
  %v8601 = vpop.xlane.xlu0 %8600
  %v8602 = vsel %vm8157, %v5120, -inf
  %8603 = vmax.xlane.f32.xlu0 %v8602
  %v8604 = vpop.xlane.xlu0 %8603
  %v8605 = vsel %vm8157, %v5232, -inf
  %8606 = vmax.xlane.f32.xlu0 %v8605
  %v8607 = vpop.xlane.xlu0 %8606
  %v8608 = vsel %vm8157, %v5344, -inf
  %8609 = vmax.xlane.f32.xlu0 %v8608
  %v8610 = vpop.xlane.xlu0 %8609
  %v8611 = vsel %vm8157, %v5456, -inf
  %8612 = vmax.xlane.f32.xlu0 %v8611
  %v8613 = vpop.xlane.xlu0 %8612
  %v8614 = vsel %vm8157, %v5568, -inf
  %8615 = vmax.xlane.f32.xlu0 %v8614
  %v8616 = vpop.xlane.xlu0 %8615
  %v8617 = vsel %vm8157, %v5680, -inf
  %8618 = vmax.xlane.f32.xlu0 %v8617
  %v8619 = vpop.xlane.xlu0 %8618
  %v8620 = vsel %vm8157, %v5792, -inf
  %8621 = vmax.xlane.f32.xlu0 %v8620
  %v8622 = vpop.xlane.xlu0 %8621
  %v8623 = vsel %vm8157, %v5904, -inf
  %8624 = vmax.xlane.f32.xlu0 %v8623
  %v8625 = vpop.xlane.xlu0 %8624
  %v8626 = vsel %vm8157, %v6016, -inf
  %8627 = vmax.xlane.f32.xlu0 %v8626
  %v8628 = vpop.xlane.xlu0 %8627
  %v8629 = vsel %vm8157, %v6128, -inf
  %8630 = vmax.xlane.f32.xlu0 %v8629
  %v8631 = vpop.xlane.xlu0 %8630
  %v8632 = vsel %vm8157, %v6240, -inf
  %8633 = vmax.xlane.f32.xlu0 %v8632
  %v8634 = vpop.xlane.xlu0 %8633
  %v8635 = vsel %vm8157, %v6352, -inf
  %8636 = vmax.xlane.f32.xlu0 %v8635
  %v8637 = vpop.xlane.xlu0 %8636
  %v8638 = vsel %vm8157, %v4674, -inf
  %8639 = vmax.xlane.f32.xlu0 %v8638
  %v8640 = vpop.xlane.xlu0 %8639
  %v8641 = vsel %vm8157, %v4786, -inf
  %8642 = vmax.xlane.f32.xlu0 %v8641
  %v8643 = vpop.xlane.xlu0 %8642
  %v8644 = vsel %vm8157, %v4898, -inf
  %8645 = vmax.xlane.f32.xlu0 %v8644
  %v8646 = vpop.xlane.xlu0 %8645
  %v8647 = vsel %vm8157, %v5010, -inf
  %8648 = vmax.xlane.f32.xlu0 %v8647
  %v8649 = vpop.xlane.xlu0 %8648
  %v8650 = vsel %vm8157, %v5122, -inf
  %8651 = vmax.xlane.f32.xlu0 %v8650
  %v8652 = vpop.xlane.xlu0 %8651
  %v8653 = vsel %vm8157, %v5234, -inf
  %8654 = vmax.xlane.f32.xlu0 %v8653
  %v8655 = vpop.xlane.xlu0 %8654
  %v8656 = vsel %vm8157, %v5346, -inf
  %8657 = vmax.xlane.f32.xlu0 %v8656
  %v8658 = vpop.xlane.xlu0 %8657
  %v8659 = vsel %vm8157, %v5458, -inf
  %8660 = vmax.xlane.f32.xlu0 %v8659
  %v8661 = vpop.xlane.xlu0 %8660
  %v8662 = vsel %vm8157, %v5570, -inf
  %8663 = vmax.xlane.f32.xlu0 %v8662
  %v8664 = vpop.xlane.xlu0 %8663
  %v8665 = vsel %vm8157, %v5682, -inf
  %8666 = vmax.xlane.f32.xlu0 %v8665
  %v8667 = vpop.xlane.xlu0 %8666
  %v8668 = vsel %vm8157, %v5794, -inf
  %8669 = vmax.xlane.f32.xlu0 %v8668
  %v8670 = vpop.xlane.xlu0 %8669
  %v8671 = vsel %vm8157, %v5906, -inf
  %8672 = vmax.xlane.f32.xlu0 %v8671
  %v8673 = vpop.xlane.xlu0 %8672
  %v8674 = vsel %vm8157, %v6018, -inf
  %8675 = vmax.xlane.f32.xlu0 %v8674
  %v8676 = vpop.xlane.xlu0 %8675
  %v8677 = vsel %vm8157, %v6130, -inf
  %8678 = vmax.xlane.f32.xlu0 %v8677
  %v8679 = vpop.xlane.xlu0 %8678
  %v8680 = vsel %vm8157, %v6242, -inf
  %8681 = vmax.xlane.f32.xlu0 %v8680
  %v8682 = vpop.xlane.xlu0 %8681
  %v8683 = vsel %vm8157, %v6354, -inf
  %8684 = vmax.xlane.f32.xlu0 %v8683
  %v8685 = vpop.xlane.xlu0 %8684
  %v8686 = vsel %vm8157, %v4676, -inf
  %8687 = vmax.xlane.f32.xlu0 %v8686
  %v8688 = vpop.xlane.xlu0 %8687
  %v8689 = vsel %vm8157, %v4788, -inf
  %8690 = vmax.xlane.f32.xlu0 %v8689
  %v8691 = vpop.xlane.xlu0 %8690
  %v8692 = vsel %vm8157, %v4900, -inf
  %8693 = vmax.xlane.f32.xlu0 %v8692
  %v8694 = vpop.xlane.xlu0 %8693
  %v8695 = vsel %vm8157, %v5012, -inf
  %8696 = vmax.xlane.f32.xlu0 %v8695
  %v8697 = vpop.xlane.xlu0 %8696
  %v8698 = vsel %vm8157, %v5124, -inf
  %8699 = vmax.xlane.f32.xlu0 %v8698
  %v8700 = vpop.xlane.xlu0 %8699
  %v8701 = vsel %vm8157, %v5236, -inf
  %8702 = vmax.xlane.f32.xlu0 %v8701
  %v8703 = vpop.xlane.xlu0 %8702
  %v8704 = vsel %vm8157, %v5348, -inf
  %8705 = vmax.xlane.f32.xlu0 %v8704
  %v8706 = vpop.xlane.xlu0 %8705
  %v8707 = vsel %vm8157, %v5460, -inf
  %8708 = vmax.xlane.f32.xlu0 %v8707
  %v8709 = vpop.xlane.xlu0 %8708
  %v8710 = vsel %vm8157, %v5572, -inf
  %8711 = vmax.xlane.f32.xlu0 %v8710
  %v8712 = vpop.xlane.xlu0 %8711
  %v8713 = vsel %vm8157, %v5684, -inf
  %8714 = vmax.xlane.f32.xlu0 %v8713
  %v8715 = vpop.xlane.xlu0 %8714
  %v8716 = vsel %vm8157, %v5796, -inf
  %8717 = vmax.xlane.f32.xlu0 %v8716
  %v8718 = vpop.xlane.xlu0 %8717
  %v8719 = vsel %vm8157, %v5908, -inf
  %8720 = vmax.xlane.f32.xlu0 %v8719
  %v8721 = vpop.xlane.xlu0 %8720
  %v8722 = vsel %vm8157, %v6020, -inf
  %8723 = vmax.xlane.f32.xlu0 %v8722
  %v8724 = vpop.xlane.xlu0 %8723
  %v8725 = vsel %vm8157, %v6132, -inf
  %8726 = vmax.xlane.f32.xlu0 %v8725
  %v8727 = vpop.xlane.xlu0 %8726
  %v8728 = vsel %vm8157, %v6244, -inf
  %8729 = vmax.xlane.f32.xlu0 %v8728
  %v8730 = vpop.xlane.xlu0 %8729
  %v8731 = vsel %vm8157, %v6356, -inf
  %8732 = vmax.xlane.f32.xlu0 %v8731
  %v8733 = vpop.xlane.xlu0 %8732
  %v8734 = vsel %vm8157, %v4678, -inf
  %8735 = vmax.xlane.f32.xlu0 %v8734
  %v8736 = vpop.xlane.xlu0 %8735
  %v8737 = vsel %vm8157, %v4790, -inf
  %8738 = vmax.xlane.f32.xlu0 %v8737
  %v8739 = vpop.xlane.xlu0 %8738
  %v8740 = vsel %vm8157, %v4902, -inf
  %8741 = vmax.xlane.f32.xlu0 %v8740
  %v8742 = vpop.xlane.xlu0 %8741
  %v8743 = vsel %vm8157, %v5014, -inf
  %8744 = vmax.xlane.f32.xlu0 %v8743
  %v8745 = vpop.xlane.xlu0 %8744
  %v8746 = vsel %vm8157, %v5126, -inf
  %8747 = vmax.xlane.f32.xlu0 %v8746
  %v8748 = vpop.xlane.xlu0 %8747
  %v8749 = vsel %vm8157, %v5238, -inf
  %8750 = vmax.xlane.f32.xlu0 %v8749
  %v8751 = vpop.xlane.xlu0 %8750
  %v8752 = vsel %vm8157, %v5350, -inf
  %8753 = vmax.xlane.f32.xlu0 %v8752
  %v8754 = vpop.xlane.xlu0 %8753
  %v8755 = vsel %vm8157, %v5462, -inf
  %8756 = vmax.xlane.f32.xlu0 %v8755
  %v8757 = vpop.xlane.xlu0 %8756
  %v8758 = vsel %vm8157, %v5574, -inf
  %8759 = vmax.xlane.f32.xlu0 %v8758
  %v8760 = vpop.xlane.xlu0 %8759
  %v8761 = vsel %vm8157, %v5686, -inf
  %8762 = vmax.xlane.f32.xlu0 %v8761
  %v8763 = vpop.xlane.xlu0 %8762
  %v8764 = vsel %vm8157, %v5798, -inf
  %8765 = vmax.xlane.f32.xlu0 %v8764
  %v8766 = vpop.xlane.xlu0 %8765
  %v8767 = vsel %vm8157, %v5910, -inf
  %8768 = vmax.xlane.f32.xlu0 %v8767
  %v8769 = vpop.xlane.xlu0 %8768
  %v8770 = vsel %vm8157, %v6022, -inf
  %8771 = vmax.xlane.f32.xlu0 %v8770
  %v8772 = vpop.xlane.xlu0 %8771
  %v8773 = vsel %vm8157, %v6134, -inf
  %8774 = vmax.xlane.f32.xlu0 %v8773
  %v8775 = vpop.xlane.xlu0 %8774
  %v8776 = vsel %vm8157, %v6246, -inf
  %8777 = vmax.xlane.f32.xlu0 %v8776
  %v8778 = vpop.xlane.xlu0 %8777
  %v8779 = vsel %vm8157, %v6358, -inf
  %8780 = vmax.xlane.f32.xlu0 %v8779
  %v8781 = vpop.xlane.xlu0 %8780
  %v8782 = vsel %vm8157, %v4680, -inf
  %8783 = vmax.xlane.f32.xlu0 %v8782
  %v8784 = vpop.xlane.xlu0 %8783
  %v8785 = vsel %vm8157, %v4792, -inf
  %8786 = vmax.xlane.f32.xlu0 %v8785
  %v8787 = vpop.xlane.xlu0 %8786
  %v8788 = vsel %vm8157, %v4904, -inf
  %8789 = vmax.xlane.f32.xlu0 %v8788
  %v8790 = vpop.xlane.xlu0 %8789
  %v8791 = vsel %vm8157, %v5016, -inf
  %8792 = vmax.xlane.f32.xlu0 %v8791
  %v8793 = vpop.xlane.xlu0 %8792
  %v8794 = vsel %vm8157, %v5128, -inf
  %8795 = vmax.xlane.f32.xlu0 %v8794
  %v8796 = vpop.xlane.xlu0 %8795
  %v8797 = vsel %vm8157, %v5240, -inf
  %8798 = vmax.xlane.f32.xlu0 %v8797
  %v8799 = vpop.xlane.xlu0 %8798
  %v8800 = vsel %vm8157, %v5352, -inf
  %8801 = vmax.xlane.f32.xlu0 %v8800
  %v8802 = vpop.xlane.xlu0 %8801
  %v8803 = vsel %vm8157, %v5464, -inf
  %8804 = vmax.xlane.f32.xlu0 %v8803
  %v8805 = vpop.xlane.xlu0 %8804
  %v8806 = vsel %vm8157, %v5576, -inf
  %8807 = vmax.xlane.f32.xlu0 %v8806
  %v8808 = vpop.xlane.xlu0 %8807
  %v8809 = vsel %vm8157, %v5688, -inf
  %8810 = vmax.xlane.f32.xlu0 %v8809
  %v8811 = vpop.xlane.xlu0 %8810
  %v8812 = vsel %vm8157, %v5800, -inf
  %8813 = vmax.xlane.f32.xlu0 %v8812
  %v8814 = vpop.xlane.xlu0 %8813
  %v8815 = vsel %vm8157, %v5912, -inf
  %8816 = vmax.xlane.f32.xlu0 %v8815
  %v8817 = vpop.xlane.xlu0 %8816
  %v8818 = vsel %vm8157, %v6024, -inf
  %8819 = vmax.xlane.f32.xlu0 %v8818
  %v8820 = vpop.xlane.xlu0 %8819
  %v8821 = vsel %vm8157, %v6136, -inf
  %8822 = vmax.xlane.f32.xlu0 %v8821
  %v8823 = vpop.xlane.xlu0 %8822
  %v8824 = vsel %vm8157, %v6248, -inf
  %8825 = vmax.xlane.f32.xlu0 %v8824
  %v8826 = vpop.xlane.xlu0 %8825
  %v8827 = vsel %vm8157, %v6360, -inf
  %8828 = vmax.xlane.f32.xlu0 %v8827
  %v8829 = vpop.xlane.xlu0 %8828
  %v8830 = vsel %vm8157, %v4682, -inf
  %8831 = vmax.xlane.f32.xlu0 %v8830
  %v8832 = vpop.xlane.xlu0 %8831
  %v8833 = vsel %vm8157, %v4794, -inf
  %8834 = vmax.xlane.f32.xlu0 %v8833
  %v8835 = vpop.xlane.xlu0 %8834
  %v8836 = vsel %vm8157, %v4906, -inf
  %8837 = vmax.xlane.f32.xlu0 %v8836
  %v8838 = vpop.xlane.xlu0 %8837
  %v8839 = vsel %vm8157, %v5018, -inf
  %8840 = vmax.xlane.f32.xlu0 %v8839
  %v8841 = vpop.xlane.xlu0 %8840
  %v8842 = vsel %vm8157, %v5130, -inf
  %8843 = vmax.xlane.f32.xlu0 %v8842
  %v8844 = vpop.xlane.xlu0 %8843
  %v8845 = vsel %vm8157, %v5242, -inf
  %8846 = vmax.xlane.f32.xlu0 %v8845
  %v8847 = vpop.xlane.xlu0 %8846
  %v8848 = vsel %vm8157, %v5354, -inf
  %8849 = vmax.xlane.f32.xlu0 %v8848
  %v8850 = vpop.xlane.xlu0 %8849
  %v8851 = vsel %vm8157, %v5466, -inf
  %8852 = vmax.xlane.f32.xlu0 %v8851
  %v8853 = vpop.xlane.xlu0 %8852
  %v8854 = vsel %vm8157, %v5578, -inf
  %8855 = vmax.xlane.f32.xlu0 %v8854
  %v8856 = vpop.xlane.xlu0 %8855
  %v8857 = vsel %vm8157, %v5690, -inf
  %8858 = vmax.xlane.f32.xlu0 %v8857
  %v8859 = vpop.xlane.xlu0 %8858
  %v8860 = vsel %vm8157, %v5802, -inf
  %8861 = vmax.xlane.f32.xlu0 %v8860
  %v8862 = vpop.xlane.xlu0 %8861
  %v8863 = vsel %vm8157, %v5914, -inf
  %8864 = vmax.xlane.f32.xlu0 %v8863
  %v8865 = vpop.xlane.xlu0 %8864
  %v8866 = vsel %vm8157, %v6026, -inf
  %8867 = vmax.xlane.f32.xlu0 %v8866
  %v8868 = vpop.xlane.xlu0 %8867
  %v8869 = vsel %vm8157, %v6138, -inf
  %8870 = vmax.xlane.f32.xlu0 %v8869
  %v8871 = vpop.xlane.xlu0 %8870
  %v8872 = vsel %vm8157, %v6250, -inf
  %8873 = vmax.xlane.f32.xlu0 %v8872
  %v8874 = vpop.xlane.xlu0 %8873
  %v8875 = vsel %vm8157, %v6362, -inf
  %8876 = vmax.xlane.f32.xlu0 %v8875
  %v8877 = vpop.xlane.xlu0 %8876
  %v8878 = vsel %vm8157, %v4684, -inf
  %8879 = vmax.xlane.f32.xlu0 %v8878
  %v8880 = vpop.xlane.xlu0 %8879
  %v8881 = vsel %vm8157, %v4796, -inf
  %8882 = vmax.xlane.f32.xlu0 %v8881
  %v8883 = vpop.xlane.xlu0 %8882
  %v8884 = vsel %vm8157, %v4908, -inf
  %8885 = vmax.xlane.f32.xlu0 %v8884
  %v8886 = vpop.xlane.xlu0 %8885
  %v8887 = vsel %vm8157, %v5020, -inf
  %8888 = vmax.xlane.f32.xlu0 %v8887
  %v8889 = vpop.xlane.xlu0 %8888
  %v8890 = vsel %vm8157, %v5132, -inf
  %8891 = vmax.xlane.f32.xlu0 %v8890
  %v8892 = vpop.xlane.xlu0 %8891
  %v8893 = vsel %vm8157, %v5244, -inf
  %8894 = vmax.xlane.f32.xlu0 %v8893
  %v8895 = vpop.xlane.xlu0 %8894
  %v8896 = vsel %vm8157, %v5356, -inf
  %8897 = vmax.xlane.f32.xlu0 %v8896
  %v8898 = vpop.xlane.xlu0 %8897
  %v8899 = vsel %vm8157, %v5468, -inf
  %8900 = vmax.xlane.f32.xlu0 %v8899
  %v8901 = vpop.xlane.xlu0 %8900
  %v8902 = vsel %vm8157, %v5580, -inf
  %8903 = vmax.xlane.f32.xlu0 %v8902
  %v8904 = vpop.xlane.xlu0 %8903
  %v8905 = vsel %vm8157, %v5692, -inf
  %8906 = vmax.xlane.f32.xlu0 %v8905
  %v8907 = vpop.xlane.xlu0 %8906
  %v8908 = vsel %vm8157, %v5804, -inf
  %8909 = vmax.xlane.f32.xlu0 %v8908
  %v8910 = vpop.xlane.xlu0 %8909
  %v8911 = vsel %vm8157, %v5916, -inf
  %8912 = vmax.xlane.f32.xlu0 %v8911
  %v8913 = vpop.xlane.xlu0 %8912
  %v8914 = vsel %vm8157, %v6028, -inf
  %8915 = vmax.xlane.f32.xlu0 %v8914
  %v8916 = vpop.xlane.xlu0 %8915
  %v8917 = vsel %vm8157, %v6140, -inf
  %8918 = vmax.xlane.f32.xlu0 %v8917
  %v8919 = vpop.xlane.xlu0 %8918
  %v8920 = vsel %vm8157, %v6252, -inf
  %8921 = vmax.xlane.f32.xlu0 %v8920
  %v8922 = vpop.xlane.xlu0 %8921
  %v8923 = vsel %vm8157, %v6364, -inf
  %8924 = vmax.xlane.f32.xlu0 %v8923
  %v8925 = vpop.xlane.xlu0 %8924
  %v8926 = vsel %vm8157, %v6462, -inf
  %8927 = vmax.xlane.f32.xlu0 %v8926
  %v8928 = vpop.xlane.xlu0 %8927
  %v8929 = vsel %vm8157, %v6574, -inf
  %8930 = vmax.xlane.f32.xlu0 %v8929
  %v8931 = vpop.xlane.xlu0 %8930
  %v8932 = vsel %vm8157, %v6686, -inf
  %8933 = vmax.xlane.f32.xlu0 %v8932
  %v8934 = vpop.xlane.xlu0 %8933
  %v8935 = vsel %vm8157, %v6798, -inf
  %8936 = vmax.xlane.f32.xlu0 %v8935
  %v8937 = vpop.xlane.xlu0 %8936
  %v8938 = vsel %vm8157, %v6910, -inf
  %8939 = vmax.xlane.f32.xlu0 %v8938
  %v8940 = vpop.xlane.xlu0 %8939
  %v8941 = vsel %vm8157, %v7022, -inf
  %8942 = vmax.xlane.f32.xlu0 %v8941
  %v8943 = vpop.xlane.xlu0 %8942
  %v8944 = vsel %vm8157, %v7134, -inf
  %8945 = vmax.xlane.f32.xlu0 %v8944
  %v8946 = vpop.xlane.xlu0 %8945
  %v8947 = vsel %vm8157, %v7246, -inf
  %8948 = vmax.xlane.f32.xlu0 %v8947
  %v8949 = vpop.xlane.xlu0 %8948
  %v8950 = vsel %vm8157, %v7358, -inf
  %8951 = vmax.xlane.f32.xlu0 %v8950
  %v8952 = vpop.xlane.xlu0 %8951
  %v8953 = vsel %vm8157, %v7470, -inf
  %8954 = vmax.xlane.f32.xlu0 %v8953
  %v8955 = vpop.xlane.xlu0 %8954
  %v8956 = vsel %vm8157, %v7582, -inf
  %8957 = vmax.xlane.f32.xlu0 %v8956
  %v8958 = vpop.xlane.xlu0 %8957
  %v8959 = vsel %vm8157, %v7694, -inf
  %8960 = vmax.xlane.f32.xlu0 %v8959
  %v8961 = vpop.xlane.xlu0 %8960
  %v8962 = vsel %vm8157, %v7806, -inf
  %8963 = vmax.xlane.f32.xlu0 %v8962
  %v8964 = vpop.xlane.xlu0 %8963
  %v8965 = vsel %vm8157, %v7918, -inf
  %8966 = vmax.xlane.f32.xlu0 %v8965
  %v8967 = vpop.xlane.xlu0 %8966
  %v8968 = vsel %vm8157, %v8030, -inf
  %8969 = vmax.xlane.f32.xlu0 %v8968
  %v8970 = vpop.xlane.xlu0 %8969
  %v8971 = vsel %vm8157, %v8142, -inf
  %8972 = vmax.xlane.f32.xlu0 %v8971
  %v8973 = vpop.xlane.xlu0 %8972
  %v8974 = vsel %vm8157, %v6464, -inf
  %8975 = vmax.xlane.f32.xlu0 %v8974
  %v8976 = vpop.xlane.xlu0 %8975
  %v8977 = vsel %vm8157, %v6576, -inf
  %8978 = vmax.xlane.f32.xlu0 %v8977
  %v8979 = vpop.xlane.xlu0 %8978
  %v8980 = vsel %vm8157, %v6688, -inf
  %8981 = vmax.xlane.f32.xlu0 %v8980
  %v8982 = vpop.xlane.xlu0 %8981
  %v8983 = vsel %vm8157, %v6800, -inf
  %8984 = vmax.xlane.f32.xlu0 %v8983
  %v8985 = vpop.xlane.xlu0 %8984
  %v8986 = vsel %vm8157, %v6912, -inf
  %8987 = vmax.xlane.f32.xlu0 %v8986
  %v8988 = vpop.xlane.xlu0 %8987
  %v8989 = vsel %vm8157, %v7024, -inf
  %8990 = vmax.xlane.f32.xlu0 %v8989
  %v8991 = vpop.xlane.xlu0 %8990
  %v8992 = vsel %vm8157, %v7136, -inf
  %8993 = vmax.xlane.f32.xlu0 %v8992
  %v8994 = vpop.xlane.xlu0 %8993
  %v8995 = vsel %vm8157, %v7248, -inf
  %8996 = vmax.xlane.f32.xlu0 %v8995
  %v8997 = vpop.xlane.xlu0 %8996
  %v8998 = vsel %vm8157, %v7360, -inf
  %8999 = vmax.xlane.f32.xlu0 %v8998
  %v9000 = vpop.xlane.xlu0 %8999
  %v9001 = vsel %vm8157, %v7472, -inf
  %9002 = vmax.xlane.f32.xlu0 %v9001
  %v9003 = vpop.xlane.xlu0 %9002
  %v9004 = vsel %vm8157, %v7584, -inf
  %9005 = vmax.xlane.f32.xlu0 %v9004
  %v9006 = vpop.xlane.xlu0 %9005
  %v9007 = vsel %vm8157, %v7696, -inf
  %9008 = vmax.xlane.f32.xlu0 %v9007
  %v9009 = vpop.xlane.xlu0 %9008
  %v9010 = vsel %vm8157, %v7808, -inf
  %9011 = vmax.xlane.f32.xlu0 %v9010
  %v9012 = vpop.xlane.xlu0 %9011
  %v9013 = vsel %vm8157, %v7920, -inf
  %9014 = vmax.xlane.f32.xlu0 %v9013
  %v9015 = vpop.xlane.xlu0 %9014
  %v9016 = vsel %vm8157, %v8032, -inf
  %9017 = vmax.xlane.f32.xlu0 %v9016
  %v9018 = vpop.xlane.xlu0 %9017
  %v9019 = vsel %vm8157, %v8144, -inf
  %9020 = vmax.xlane.f32.xlu0 %v9019
  %v9021 = vpop.xlane.xlu0 %9020
  %v9022 = vsel %vm8157, %v6466, -inf
  %9023 = vmax.xlane.f32.xlu0 %v9022
  %v9024 = vpop.xlane.xlu0 %9023
  %v9025 = vsel %vm8157, %v6578, -inf
  %9026 = vmax.xlane.f32.xlu0 %v9025
  %v9027 = vpop.xlane.xlu0 %9026
  %v9028 = vsel %vm8157, %v6690, -inf
  %9029 = vmax.xlane.f32.xlu0 %v9028
  %v9030 = vpop.xlane.xlu0 %9029
  %v9031 = vsel %vm8157, %v6802, -inf
  %9032 = vmax.xlane.f32.xlu0 %v9031
  %v9033 = vpop.xlane.xlu0 %9032
  %v9034 = vsel %vm8157, %v6914, -inf
  %9035 = vmax.xlane.f32.xlu0 %v9034
  %v9036 = vpop.xlane.xlu0 %9035
  %v9037 = vsel %vm8157, %v7026, -inf
  %9038 = vmax.xlane.f32.xlu0 %v9037
  %v9039 = vpop.xlane.xlu0 %9038
  %v9040 = vsel %vm8157, %v7138, -inf
  %9041 = vmax.xlane.f32.xlu0 %v9040
  %v9042 = vpop.xlane.xlu0 %9041
  %v9043 = vsel %vm8157, %v7250, -inf
  %9044 = vmax.xlane.f32.xlu0 %v9043
  %v9045 = vpop.xlane.xlu0 %9044
  %v9046 = vsel %vm8157, %v7362, -inf
  %9047 = vmax.xlane.f32.xlu0 %v9046
  %v9048 = vpop.xlane.xlu0 %9047
  %v9049 = vsel %vm8157, %v7474, -inf
  %9050 = vmax.xlane.f32.xlu0 %v9049
  %v9051 = vpop.xlane.xlu0 %9050
  %v9052 = vsel %vm8157, %v7586, -inf
  %9053 = vmax.xlane.f32.xlu0 %v9052
  %v9054 = vpop.xlane.xlu0 %9053
  %v9055 = vsel %vm8157, %v7698, -inf
  %9056 = vmax.xlane.f32.xlu0 %v9055
  %v9057 = vpop.xlane.xlu0 %9056
  %v9058 = vsel %vm8157, %v7810, -inf
  %9059 = vmax.xlane.f32.xlu0 %v9058
  %v9060 = vpop.xlane.xlu0 %9059
  %v9061 = vsel %vm8157, %v7922, -inf
  %9062 = vmax.xlane.f32.xlu0 %v9061
  %v9063 = vpop.xlane.xlu0 %9062
  %v9064 = vsel %vm8157, %v8034, -inf
  %9065 = vmax.xlane.f32.xlu0 %v9064
  %v9066 = vpop.xlane.xlu0 %9065
  %v9067 = vsel %vm8157, %v8146, -inf
  %9068 = vmax.xlane.f32.xlu0 %v9067
  %v9069 = vpop.xlane.xlu0 %9068
  %v9070 = vsel %vm8157, %v6468, -inf
  %9071 = vmax.xlane.f32.xlu0 %v9070
  %v9072 = vpop.xlane.xlu0 %9071
  %v9073 = vsel %vm8157, %v6580, -inf
  %9074 = vmax.xlane.f32.xlu0 %v9073
  %v9075 = vpop.xlane.xlu0 %9074
  %v9076 = vsel %vm8157, %v6692, -inf
  %9077 = vmax.xlane.f32.xlu0 %v9076
  %v9078 = vpop.xlane.xlu0 %9077
  %v9079 = vsel %vm8157, %v6804, -inf
  %9080 = vmax.xlane.f32.xlu0 %v9079
  %v9081 = vpop.xlane.xlu0 %9080
  %v9082 = vsel %vm8157, %v6916, -inf
  %9083 = vmax.xlane.f32.xlu0 %v9082
  %v9084 = vpop.xlane.xlu0 %9083
  %v9085 = vsel %vm8157, %v7028, -inf
  %9086 = vmax.xlane.f32.xlu0 %v9085
  %v9087 = vpop.xlane.xlu0 %9086
  %v9088 = vsel %vm8157, %v7140, -inf
  %9089 = vmax.xlane.f32.xlu0 %v9088
  %v9090 = vpop.xlane.xlu0 %9089
  %v9091 = vsel %vm8157, %v7252, -inf
  %9092 = vmax.xlane.f32.xlu0 %v9091
  %v9093 = vpop.xlane.xlu0 %9092
  %v9094 = vsel %vm8157, %v7364, -inf
  %9095 = vmax.xlane.f32.xlu0 %v9094
  %v9096 = vpop.xlane.xlu0 %9095
  %v9097 = vsel %vm8157, %v7476, -inf
  %9098 = vmax.xlane.f32.xlu0 %v9097
  %v9099 = vpop.xlane.xlu0 %9098
  %v9100 = vsel %vm8157, %v7588, -inf
  %9101 = vmax.xlane.f32.xlu0 %v9100
  %v9102 = vpop.xlane.xlu0 %9101
  %v9103 = vsel %vm8157, %v7700, -inf
  %9104 = vmax.xlane.f32.xlu0 %v9103
  %v9105 = vpop.xlane.xlu0 %9104
  %v9106 = vsel %vm8157, %v7812, -inf
  %9107 = vmax.xlane.f32.xlu0 %v9106
  %v9108 = vpop.xlane.xlu0 %9107
  %v9109 = vsel %vm8157, %v7924, -inf
  %9110 = vmax.xlane.f32.xlu0 %v9109
  %v9111 = vpop.xlane.xlu0 %9110
  %v9112 = vsel %vm8157, %v8036, -inf
  %9113 = vmax.xlane.f32.xlu0 %v9112
  %v9114 = vpop.xlane.xlu0 %9113
  %v9115 = vsel %vm8157, %v8148, -inf
  %9116 = vmax.xlane.f32.xlu0 %v9115
  %v9117 = vpop.xlane.xlu0 %9116
  %v9118 = vsel %vm8157, %v6470, -inf
  %9119 = vmax.xlane.f32.xlu0 %v9118
  %v9120 = vpop.xlane.xlu0 %9119
  %v9121 = vsel %vm8157, %v6582, -inf
  %9122 = vmax.xlane.f32.xlu0 %v9121
  %v9123 = vpop.xlane.xlu0 %9122
  %v9124 = vsel %vm8157, %v6694, -inf
  %9125 = vmax.xlane.f32.xlu0 %v9124
  %v9126 = vpop.xlane.xlu0 %9125
  %v9127 = vsel %vm8157, %v6806, -inf
  %9128 = vmax.xlane.f32.xlu0 %v9127
  %v9129 = vpop.xlane.xlu0 %9128
  %v9130 = vsel %vm8157, %v6918, -inf
  %9131 = vmax.xlane.f32.xlu0 %v9130
  %v9132 = vpop.xlane.xlu0 %9131
  %v9133 = vsel %vm8157, %v7030, -inf
  %9134 = vmax.xlane.f32.xlu0 %v9133
  %v9135 = vpop.xlane.xlu0 %9134
  %v9136 = vsel %vm8157, %v7142, -inf
  %9137 = vmax.xlane.f32.xlu0 %v9136
  %v9138 = vpop.xlane.xlu0 %9137
  %v9139 = vsel %vm8157, %v7254, -inf
  %9140 = vmax.xlane.f32.xlu0 %v9139
  %v9141 = vpop.xlane.xlu0 %9140
  %v9142 = vsel %vm8157, %v7366, -inf
  %9143 = vmax.xlane.f32.xlu0 %v9142
  %v9144 = vpop.xlane.xlu0 %9143
  %v9145 = vsel %vm8157, %v7478, -inf
  %9146 = vmax.xlane.f32.xlu0 %v9145
  %v9147 = vpop.xlane.xlu0 %9146
  %v9148 = vsel %vm8157, %v7590, -inf
  %9149 = vmax.xlane.f32.xlu0 %v9148
  %v9150 = vpop.xlane.xlu0 %9149
  %v9151 = vsel %vm8157, %v7702, -inf
  %9152 = vmax.xlane.f32.xlu0 %v9151
  %v9153 = vpop.xlane.xlu0 %9152
  %v9154 = vsel %vm8157, %v7814, -inf
  %9155 = vmax.xlane.f32.xlu0 %v9154
  %v9156 = vpop.xlane.xlu0 %9155
  %v9157 = vsel %vm8157, %v7926, -inf
  %9158 = vmax.xlane.f32.xlu0 %v9157
  %v9159 = vpop.xlane.xlu0 %9158
  %v9160 = vsel %vm8157, %v8038, -inf
  %9161 = vmax.xlane.f32.xlu0 %v9160
  %v9162 = vpop.xlane.xlu0 %9161
  %v9163 = vsel %vm8157, %v8150, -inf
  %9164 = vmax.xlane.f32.xlu0 %v9163
  %v9165 = vpop.xlane.xlu0 %9164
  %v9166 = vsel %vm8157, %v6472, -inf
  %9167 = vmax.xlane.f32.xlu0 %v9166
  %v9168 = vpop.xlane.xlu0 %9167
  %v9169 = vsel %vm8157, %v6584, -inf
  %9170 = vmax.xlane.f32.xlu0 %v9169
  %v9171 = vpop.xlane.xlu0 %9170
  %v9172 = vsel %vm8157, %v6696, -inf
  %9173 = vmax.xlane.f32.xlu0 %v9172
  %v9174 = vpop.xlane.xlu0 %9173
  %v9175 = vsel %vm8157, %v6808, -inf
  %9176 = vmax.xlane.f32.xlu0 %v9175
  %v9177 = vpop.xlane.xlu0 %9176
  %v9178 = vsel %vm8157, %v6920, -inf
  %9179 = vmax.xlane.f32.xlu0 %v9178
  %v9180 = vpop.xlane.xlu0 %9179
  %v9181 = vsel %vm8157, %v7032, -inf
  %9182 = vmax.xlane.f32.xlu0 %v9181
  %v9183 = vpop.xlane.xlu0 %9182
  %v9184 = vsel %vm8157, %v7144, -inf
  %9185 = vmax.xlane.f32.xlu0 %v9184
  %v9186 = vpop.xlane.xlu0 %9185
  %v9187 = vsel %vm8157, %v7256, -inf
  %9188 = vmax.xlane.f32.xlu0 %v9187
  %v9189 = vpop.xlane.xlu0 %9188
  %v9190 = vsel %vm8157, %v7368, -inf
  %9191 = vmax.xlane.f32.xlu0 %v9190
  %v9192 = vpop.xlane.xlu0 %9191
  %v9193 = vsel %vm8157, %v7480, -inf
  %9194 = vmax.xlane.f32.xlu0 %v9193
  %v9195 = vpop.xlane.xlu0 %9194
  %v9196 = vsel %vm8157, %v7592, -inf
  %9197 = vmax.xlane.f32.xlu0 %v9196
  %v9198 = vpop.xlane.xlu0 %9197
  %v9199 = vsel %vm8157, %v7704, -inf
  %9200 = vmax.xlane.f32.xlu0 %v9199
  %v9201 = vpop.xlane.xlu0 %9200
  %v9202 = vsel %vm8157, %v7816, -inf
  %9203 = vmax.xlane.f32.xlu0 %v9202
  %v9204 = vpop.xlane.xlu0 %9203
  %v9205 = vsel %vm8157, %v7928, -inf
  %9206 = vmax.xlane.f32.xlu0 %v9205
  %v9207 = vpop.xlane.xlu0 %9206
  %v9208 = vsel %vm8157, %v8040, -inf
  %9209 = vmax.xlane.f32.xlu0 %v9208
  %v9210 = vpop.xlane.xlu0 %9209
  %v9211 = vsel %vm8157, %v8152, -inf
  %9212 = vmax.xlane.f32.xlu0 %v9211
  %v9213 = vpop.xlane.xlu0 %9212
  %v9214 = vsel %vm8157, %v6474, -inf
  %9215 = vmax.xlane.f32.xlu0 %v9214
  %v9216 = vpop.xlane.xlu0 %9215
  %v9217 = vsel %vm8157, %v6586, -inf
  %9218 = vmax.xlane.f32.xlu0 %v9217
  %v9219 = vpop.xlane.xlu0 %9218
  %v9220 = vsel %vm8157, %v6698, -inf
  %9221 = vmax.xlane.f32.xlu0 %v9220
  %v9222 = vpop.xlane.xlu0 %9221
  %v9223 = vsel %vm8157, %v6810, -inf
  %9224 = vmax.xlane.f32.xlu0 %v9223
  %v9225 = vpop.xlane.xlu0 %9224
  %v9226 = vsel %vm8157, %v6922, -inf
  %9227 = vmax.xlane.f32.xlu0 %v9226
  %v9228 = vpop.xlane.xlu0 %9227
  %v9229 = vsel %vm8157, %v7034, -inf
  %9230 = vmax.xlane.f32.xlu0 %v9229
  %v9231 = vpop.xlane.xlu0 %9230
  %v9232 = vsel %vm8157, %v7146, -inf
  %9233 = vmax.xlane.f32.xlu0 %v9232
  %v9234 = vpop.xlane.xlu0 %9233
  %v9235 = vsel %vm8157, %v7258, -inf
  %9236 = vmax.xlane.f32.xlu0 %v9235
  %v9237 = vpop.xlane.xlu0 %9236
  %v9238 = vsel %vm8157, %v7370, -inf
  %9239 = vmax.xlane.f32.xlu0 %v9238
  %v9240 = vpop.xlane.xlu0 %9239
  %v9241 = vsel %vm8157, %v7482, -inf
  %9242 = vmax.xlane.f32.xlu0 %v9241
  %v9243 = vpop.xlane.xlu0 %9242
  %v9244 = vsel %vm8157, %v7594, -inf
  %9245 = vmax.xlane.f32.xlu0 %v9244
  %v9246 = vpop.xlane.xlu0 %9245
  %v9247 = vsel %vm8157, %v7706, -inf
  %9248 = vmax.xlane.f32.xlu0 %v9247
  %v9249 = vpop.xlane.xlu0 %9248
  %v9250 = vsel %vm8157, %v7818, -inf
  %9251 = vmax.xlane.f32.xlu0 %v9250
  %v9252 = vpop.xlane.xlu0 %9251
  %v9253 = vsel %vm8157, %v7930, -inf
  %9254 = vmax.xlane.f32.xlu0 %v9253
  %v9255 = vpop.xlane.xlu0 %9254
  %v9256 = vsel %vm8157, %v8042, -inf
  %9257 = vmax.xlane.f32.xlu0 %v9256
  %v9258 = vpop.xlane.xlu0 %9257
  %v9259 = vsel %vm8157, %v8154, -inf
  %9260 = vmax.xlane.f32.xlu0 %v9259
  %v9261 = vpop.xlane.xlu0 %9260
  %v9262 = vsel %vm8157, %v6476, -inf
  %9263 = vmax.xlane.f32.xlu0 %v9262
  %v9264 = vpop.xlane.xlu0 %9263
  %v9265 = vsel %vm8157, %v6588, -inf
  %9266 = vmax.xlane.f32.xlu0 %v9265
  %v9267 = vpop.xlane.xlu0 %9266
  %v9268 = vsel %vm8157, %v6700, -inf
  %9269 = vmax.xlane.f32.xlu0 %v9268
  %v9270 = vpop.xlane.xlu0 %9269
  %v9271 = vsel %vm8157, %v6812, -inf
  %9272 = vmax.xlane.f32.xlu0 %v9271
  %v9273 = vpop.xlane.xlu0 %9272
  %v9274 = vsel %vm8157, %v6924, -inf
  %9275 = vmax.xlane.f32.xlu0 %v9274
  %v9276 = vpop.xlane.xlu0 %9275
  %v9277 = vsel %vm8157, %v7036, -inf
  %9278 = vmax.xlane.f32.xlu0 %v9277
  %v9279 = vpop.xlane.xlu0 %9278
  %v9280 = vsel %vm8157, %v7148, -inf
  %9281 = vmax.xlane.f32.xlu0 %v9280
  %v9282 = vpop.xlane.xlu0 %9281
  %v9283 = vsel %vm8157, %v7260, -inf
  %9284 = vmax.xlane.f32.xlu0 %v9283
  %v9285 = vpop.xlane.xlu0 %9284
  %v9286 = vsel %vm8157, %v7372, -inf
  %9287 = vmax.xlane.f32.xlu0 %v9286
  %v9288 = vpop.xlane.xlu0 %9287
  %v9289 = vsel %vm8157, %v7484, -inf
  %9290 = vmax.xlane.f32.xlu0 %v9289
  %v9291 = vpop.xlane.xlu0 %9290
  %v9292 = vsel %vm8157, %v7596, -inf
  %9293 = vmax.xlane.f32.xlu0 %v9292
  %v9294 = vpop.xlane.xlu0 %9293
  %v9295 = vsel %vm8157, %v7708, -inf
  %9296 = vmax.xlane.f32.xlu0 %v9295
  %v9297 = vpop.xlane.xlu0 %9296
  %v9298 = vsel %vm8157, %v7820, -inf
  %9299 = vmax.xlane.f32.xlu0 %v9298
  %v9300 = vpop.xlane.xlu0 %9299
  %v9301 = vsel %vm8157, %v7932, -inf
  %9302 = vmax.xlane.f32.xlu0 %v9301
  %v9303 = vpop.xlane.xlu0 %9302
  %v9304 = vsel %vm8157, %v8044, -inf
  %9305 = vmax.xlane.f32.xlu0 %v9304
  %v9306 = vpop.xlane.xlu0 %9305
  %v9307 = vsel %vm8157, %v8156, -inf
  %9308 = vmax.xlane.f32.xlu0 %v9307
  %v9309 = vpop.xlane.xlu0 %9308
  %v9694 = vperm.slane %v8160, %v66
  %v9695 = vadd.s32 %v66, 4294967288
  %v9696 = vperm.slane %v8163, %v9695
  %vm9697 = vcmask 130112
  %v9698 = vsel %vm9697, %v9696, %v9694
  %v9699 = vadd.s32 %v66, 4294967280
  %v9700 = vperm.slane %v8166, %v9699
  %vm9701 = vcmask 195712
  %v9702 = vsel %vm9701, %v9700, %v9698
  %v9703 = vadd.s32 %v66, 4294967272
  %v9704 = vperm.slane %v8169, %v9703
  %vm9705 = vcmask 261312
  %v9706 = vsel %vm9705, %v9704, %v9702
  %v9707 = vadd.s32 %v66, 4294967264
  %v9708 = vperm.slane %v8172, %v9707
  %vm9709 = vcmask 326912
  %v9710 = vsel %vm9709, %v9708, %v9706
  %v9711 = vadd.s32 %v66, 4294967256
  %v9712 = vperm.slane %v8175, %v9711
  %vm9713 = vcmask 392512
  %v9714 = vsel %vm9713, %v9712, %v9710
  %v9715 = vadd.s32 %v66, 4294967248
  %v9716 = vperm.slane %v8178, %v9715
  %vm9717 = vcmask 458112
  %v9718 = vsel %vm9717, %v9716, %v9714
  %v9719 = vadd.s32 %v66, 4294967240
  %v9720 = vperm.slane %v8181, %v9719
  %vm9721 = vcmask 523712
  %v9722 = vsel %vm9721, %v9720, %v9718
  %v9723 = vadd.s32 %v66, 4294967232
  %v9724 = vperm.slane %v8184, %v9723
  %vm9725 = vcmask 589312
  %v9726 = vsel %vm9725, %v9724, %v9722
  %v9727 = vadd.s32 %v66, 4294967224
  %v9728 = vperm.slane %v8187, %v9727
  %vm9729 = vcmask 654912
  %v9730 = vsel %vm9729, %v9728, %v9726
  %v9731 = vadd.s32 %v66, 4294967216
  %v9732 = vperm.slane %v8190, %v9731
  %vm9733 = vcmask 720512
  %v9734 = vsel %vm9733, %v9732, %v9730
  %v9735 = vadd.s32 %v66, 4294967208
  %v9736 = vperm.slane %v8193, %v9735
  %vm9737 = vcmask 786112
  %v9738 = vsel %vm9737, %v9736, %v9734
  %v9739 = vadd.s32 %v66, 4294967200
  %v9740 = vperm.slane %v8196, %v9739
  %vm9741 = vcmask 851712
  %v9742 = vsel %vm9741, %v9740, %v9738
  %v9743 = vadd.s32 %v66, 4294967192
  %v9744 = vperm.slane %v8199, %v9743
  %vm9745 = vcmask 917312
  %v9746 = vsel %vm9745, %v9744, %v9742
  %v9747 = vadd.s32 %v66, 4294967184
  %v9748 = vperm.slane %v8202, %v9747
  %vm9749 = vcmask 982912
  %v9750 = vsel %vm9749, %v9748, %v9746
  %v9751 = vadd.s32 %v66, 4294967176
  %v9752 = vperm.slane %v8205, %v9751
  %vm9753 = vcmask 1048512
  %v9754 = vsel %vm9753, %v9752, %v9750
  %v9755 = vperm.slane %v8208, %v66
  %v9756 = vperm.slane %v8211, %v9695
  %v9757 = vsel %vm9697, %v9756, %v9755
  %v9758 = vperm.slane %v8214, %v9699
  %v9759 = vsel %vm9701, %v9758, %v9757
  %v9760 = vperm.slane %v8217, %v9703
  %v9761 = vsel %vm9705, %v9760, %v9759
  %v9762 = vperm.slane %v8220, %v9707
  %v9763 = vsel %vm9709, %v9762, %v9761
  %v9764 = vperm.slane %v8223, %v9711
  %v9765 = vsel %vm9713, %v9764, %v9763
  %v9766 = vperm.slane %v8226, %v9715
  %v9767 = vsel %vm9717, %v9766, %v9765
  %v9768 = vperm.slane %v8229, %v9719
  %v9769 = vsel %vm9721, %v9768, %v9767
  %v9770 = vperm.slane %v8232, %v9723
  %v9771 = vsel %vm9725, %v9770, %v9769
  %v9772 = vperm.slane %v8235, %v9727
  %v9773 = vsel %vm9729, %v9772, %v9771
  %v9774 = vperm.slane %v8238, %v9731
  %v9775 = vsel %vm9733, %v9774, %v9773
  %v9776 = vperm.slane %v8241, %v9735
  %v9777 = vsel %vm9737, %v9776, %v9775
  %v9778 = vperm.slane %v8244, %v9739
  %v9779 = vsel %vm9741, %v9778, %v9777
  %v9780 = vperm.slane %v8247, %v9743
  %v9781 = vsel %vm9745, %v9780, %v9779
  %v9782 = vperm.slane %v8250, %v9747
  %v9783 = vsel %vm9749, %v9782, %v9781
  %v9784 = vperm.slane %v8253, %v9751
  %v9785 = vsel %vm9753, %v9784, %v9783
  %v9786 = vperm.slane %v8256, %v66
  %v9787 = vperm.slane %v8259, %v9695
  %v9788 = vsel %vm9697, %v9787, %v9786
  %v9789 = vperm.slane %v8262, %v9699
  %v9790 = vsel %vm9701, %v9789, %v9788
  %v9791 = vperm.slane %v8265, %v9703
  %v9792 = vsel %vm9705, %v9791, %v9790
  %v9793 = vperm.slane %v8268, %v9707
  %v9794 = vsel %vm9709, %v9793, %v9792
  %v9795 = vperm.slane %v8271, %v9711
  %v9796 = vsel %vm9713, %v9795, %v9794
  %v9797 = vperm.slane %v8274, %v9715
  %v9798 = vsel %vm9717, %v9797, %v9796
  %v9799 = vperm.slane %v8277, %v9719
  %v9800 = vsel %vm9721, %v9799, %v9798
  %v9801 = vperm.slane %v8280, %v9723
  %v9802 = vsel %vm9725, %v9801, %v9800
  %v9803 = vperm.slane %v8283, %v9727
  %v9804 = vsel %vm9729, %v9803, %v9802
  %v9805 = vperm.slane %v8286, %v9731
  %v9806 = vsel %vm9733, %v9805, %v9804
  %v9807 = vperm.slane %v8289, %v9735
  %v9808 = vsel %vm9737, %v9807, %v9806
  %v9809 = vperm.slane %v8292, %v9739
  %v9810 = vsel %vm9741, %v9809, %v9808
  %v9811 = vperm.slane %v8295, %v9743
  %v9812 = vsel %vm9745, %v9811, %v9810
  %v9813 = vperm.slane %v8298, %v9747
  %v9814 = vsel %vm9749, %v9813, %v9812
  %v9815 = vperm.slane %v8301, %v9751
  %v9816 = vsel %vm9753, %v9815, %v9814
  %v9817 = vperm.slane %v8304, %v66
  %v9818 = vperm.slane %v8307, %v9695
  %v9819 = vsel %vm9697, %v9818, %v9817
  %v9820 = vperm.slane %v8310, %v9699
  %v9821 = vsel %vm9701, %v9820, %v9819
  %v9822 = vperm.slane %v8313, %v9703
  %v9823 = vsel %vm9705, %v9822, %v9821
  %v9824 = vperm.slane %v8316, %v9707
  %v9825 = vsel %vm9709, %v9824, %v9823
  %v9826 = vperm.slane %v8319, %v9711
  %v9827 = vsel %vm9713, %v9826, %v9825
  %v9828 = vperm.slane %v8322, %v9715
  %v9829 = vsel %vm9717, %v9828, %v9827
  %v9830 = vperm.slane %v8325, %v9719
  %v9831 = vsel %vm9721, %v9830, %v9829
  %v9832 = vperm.slane %v8328, %v9723
  %v9833 = vsel %vm9725, %v9832, %v9831
  %v9834 = vperm.slane %v8331, %v9727
  %v9835 = vsel %vm9729, %v9834, %v9833
  %v9836 = vperm.slane %v8334, %v9731
  %v9837 = vsel %vm9733, %v9836, %v9835
  %v9838 = vperm.slane %v8337, %v9735
  %v9839 = vsel %vm9737, %v9838, %v9837
  %v9840 = vperm.slane %v8340, %v9739
  %v9841 = vsel %vm9741, %v9840, %v9839
  %v9842 = vperm.slane %v8343, %v9743
  %v9843 = vsel %vm9745, %v9842, %v9841
  %v9844 = vperm.slane %v8346, %v9747
  %v9845 = vsel %vm9749, %v9844, %v9843
  %v9846 = vperm.slane %v8349, %v9751
  %v9847 = vsel %vm9753, %v9846, %v9845
  %v9848 = vperm.slane %v8352, %v66
  %v9849 = vperm.slane %v8355, %v9695
  %v9850 = vsel %vm9697, %v9849, %v9848
  %v9851 = vperm.slane %v8358, %v9699
  %v9852 = vsel %vm9701, %v9851, %v9850
  %v9853 = vperm.slane %v8361, %v9703
  %v9854 = vsel %vm9705, %v9853, %v9852
  %v9855 = vperm.slane %v8364, %v9707
  %v9856 = vsel %vm9709, %v9855, %v9854
  %v9857 = vperm.slane %v8367, %v9711
  %v9858 = vsel %vm9713, %v9857, %v9856
  %v9859 = vperm.slane %v8370, %v9715
  %v9860 = vsel %vm9717, %v9859, %v9858
  %v9861 = vperm.slane %v8373, %v9719
  %v9862 = vsel %vm9721, %v9861, %v9860
  %v9863 = vperm.slane %v8376, %v9723
  %v9864 = vsel %vm9725, %v9863, %v9862
  %v9865 = vperm.slane %v8379, %v9727
  %v9866 = vsel %vm9729, %v9865, %v9864
  %v9867 = vperm.slane %v8382, %v9731
  %v9868 = vsel %vm9733, %v9867, %v9866
  %v9869 = vperm.slane %v8385, %v9735
  %v9870 = vsel %vm9737, %v9869, %v9868
  %v9871 = vperm.slane %v8388, %v9739
  %v9872 = vsel %vm9741, %v9871, %v9870
  %v9873 = vperm.slane %v8391, %v9743
  %v9874 = vsel %vm9745, %v9873, %v9872
  %v9875 = vperm.slane %v8394, %v9747
  %v9876 = vsel %vm9749, %v9875, %v9874
  %v9877 = vperm.slane %v8397, %v9751
  %v9878 = vsel %vm9753, %v9877, %v9876
  %v9879 = vperm.slane %v8400, %v66
  %v9880 = vperm.slane %v8403, %v9695
  %v9881 = vsel %vm9697, %v9880, %v9879
  %v9882 = vperm.slane %v8406, %v9699
  %v9883 = vsel %vm9701, %v9882, %v9881
  %v9884 = vperm.slane %v8409, %v9703
  %v9885 = vsel %vm9705, %v9884, %v9883
  %v9886 = vperm.slane %v8412, %v9707
  %v9887 = vsel %vm9709, %v9886, %v9885
  %v9888 = vperm.slane %v8415, %v9711
  %v9889 = vsel %vm9713, %v9888, %v9887
  %v9890 = vperm.slane %v8418, %v9715
  %v9891 = vsel %vm9717, %v9890, %v9889
  %v9892 = vperm.slane %v8421, %v9719
  %v9893 = vsel %vm9721, %v9892, %v9891
  %v9894 = vperm.slane %v8424, %v9723
  %v9895 = vsel %vm9725, %v9894, %v9893
  %v9896 = vperm.slane %v8427, %v9727
  %v9897 = vsel %vm9729, %v9896, %v9895
  %v9898 = vperm.slane %v8430, %v9731
  %v9899 = vsel %vm9733, %v9898, %v9897
  %v9900 = vperm.slane %v8433, %v9735
  %v9901 = vsel %vm9737, %v9900, %v9899
  %v9902 = vperm.slane %v8436, %v9739
  %v9903 = vsel %vm9741, %v9902, %v9901
  %v9904 = vperm.slane %v8439, %v9743
  %v9905 = vsel %vm9745, %v9904, %v9903
  %v9906 = vperm.slane %v8442, %v9747
  %v9907 = vsel %vm9749, %v9906, %v9905
  %v9908 = vperm.slane %v8445, %v9751
  %v9909 = vsel %vm9753, %v9908, %v9907
  %v9910 = vperm.slane %v8448, %v66
  %v9911 = vperm.slane %v8451, %v9695
  %v9912 = vsel %vm9697, %v9911, %v9910
  %v9913 = vperm.slane %v8454, %v9699
  %v9914 = vsel %vm9701, %v9913, %v9912
  %v9915 = vperm.slane %v8457, %v9703
  %v9916 = vsel %vm9705, %v9915, %v9914
  %v9917 = vperm.slane %v8460, %v9707
  %v9918 = vsel %vm9709, %v9917, %v9916
  %v9919 = vperm.slane %v8463, %v9711
  %v9920 = vsel %vm9713, %v9919, %v9918
  %v9921 = vperm.slane %v8466, %v9715
  %v9922 = vsel %vm9717, %v9921, %v9920
  %v9923 = vperm.slane %v8469, %v9719
  %v9924 = vsel %vm9721, %v9923, %v9922
  %v9925 = vperm.slane %v8472, %v9723
  %v9926 = vsel %vm9725, %v9925, %v9924
  %v9927 = vperm.slane %v8475, %v9727
  %v9928 = vsel %vm9729, %v9927, %v9926
  %v9929 = vperm.slane %v8478, %v9731
  %v9930 = vsel %vm9733, %v9929, %v9928
  %v9931 = vperm.slane %v8481, %v9735
  %v9932 = vsel %vm9737, %v9931, %v9930
  %v9933 = vperm.slane %v8484, %v9739
  %v9934 = vsel %vm9741, %v9933, %v9932
  %v9935 = vperm.slane %v8487, %v9743
  %v9936 = vsel %vm9745, %v9935, %v9934
  %v9937 = vperm.slane %v8490, %v9747
  %v9938 = vsel %vm9749, %v9937, %v9936
  %v9939 = vperm.slane %v8493, %v9751
  %v9940 = vsel %vm9753, %v9939, %v9938
  %v9941 = vperm.slane %v8496, %v66
  %v9942 = vperm.slane %v8499, %v9695
  %v9943 = vsel %vm9697, %v9942, %v9941
  %v9944 = vperm.slane %v8502, %v9699
  %v9945 = vsel %vm9701, %v9944, %v9943
  %v9946 = vperm.slane %v8505, %v9703
  %v9947 = vsel %vm9705, %v9946, %v9945
  %v9948 = vperm.slane %v8508, %v9707
  %v9949 = vsel %vm9709, %v9948, %v9947
  %v9950 = vperm.slane %v8511, %v9711
  %v9951 = vsel %vm9713, %v9950, %v9949
  %v9952 = vperm.slane %v8514, %v9715
  %v9953 = vsel %vm9717, %v9952, %v9951
  %v9954 = vperm.slane %v8517, %v9719
  %v9955 = vsel %vm9721, %v9954, %v9953
  %v9956 = vperm.slane %v8520, %v9723
  %v9957 = vsel %vm9725, %v9956, %v9955
  %v9958 = vperm.slane %v8523, %v9727
  %v9959 = vsel %vm9729, %v9958, %v9957
  %v9960 = vperm.slane %v8526, %v9731
  %v9961 = vsel %vm9733, %v9960, %v9959
  %v9962 = vperm.slane %v8529, %v9735
  %v9963 = vsel %vm9737, %v9962, %v9961
  %v9964 = vperm.slane %v8532, %v9739
  %v9965 = vsel %vm9741, %v9964, %v9963
  %v9966 = vperm.slane %v8535, %v9743
  %v9967 = vsel %vm9745, %v9966, %v9965
  %v9968 = vperm.slane %v8538, %v9747
  %v9969 = vsel %vm9749, %v9968, %v9967
  %v9970 = vperm.slane %v8541, %v9751
  %v9971 = vsel %vm9753, %v9970, %v9969
  %v9972 = vperm.slane %v8544, %v66
  %v9973 = vperm.slane %v8547, %v9695
  %v9974 = vsel %vm9697, %v9973, %v9972
  %v9975 = vperm.slane %v8550, %v9699
  %v9976 = vsel %vm9701, %v9975, %v9974
  %v9977 = vperm.slane %v8553, %v9703
  %v9978 = vsel %vm9705, %v9977, %v9976
  %v9979 = vperm.slane %v8556, %v9707
  %v9980 = vsel %vm9709, %v9979, %v9978
  %v9981 = vperm.slane %v8559, %v9711
  %v9982 = vsel %vm9713, %v9981, %v9980
  %v9983 = vperm.slane %v8562, %v9715
  %v9984 = vsel %vm9717, %v9983, %v9982
  %v9985 = vperm.slane %v8565, %v9719
  %v9986 = vsel %vm9721, %v9985, %v9984
  %v9987 = vperm.slane %v8568, %v9723
  %v9988 = vsel %vm9725, %v9987, %v9986
  %v9989 = vperm.slane %v8571, %v9727
  %v9990 = vsel %vm9729, %v9989, %v9988
  %v9991 = vperm.slane %v8574, %v9731
  %v9992 = vsel %vm9733, %v9991, %v9990
  %v9993 = vperm.slane %v8577, %v9735
  %v9994 = vsel %vm9737, %v9993, %v9992
  %v9995 = vperm.slane %v8580, %v9739
  %v9996 = vsel %vm9741, %v9995, %v9994
  %v9997 = vperm.slane %v8583, %v9743
  %v9998 = vsel %vm9745, %v9997, %v9996
  %v9999 = vperm.slane %v8586, %v9747
  %v10000 = vsel %vm9749, %v9999, %v9998
  %v10001 = vperm.slane %v8589, %v9751
  %v10002 = vsel %vm9753, %v10001, %v10000
  %v10003 = vperm.slane %v8592, %v66
  %v10004 = vperm.slane %v8595, %v9695
  %v10005 = vsel %vm9697, %v10004, %v10003
  %v10006 = vperm.slane %v8598, %v9699
  %v10007 = vsel %vm9701, %v10006, %v10005
  %v10008 = vperm.slane %v8601, %v9703
  %v10009 = vsel %vm9705, %v10008, %v10007
  %v10010 = vperm.slane %v8604, %v9707
  %v10011 = vsel %vm9709, %v10010, %v10009
  %v10012 = vperm.slane %v8607, %v9711
  %v10013 = vsel %vm9713, %v10012, %v10011
  %v10014 = vperm.slane %v8610, %v9715
  %v10015 = vsel %vm9717, %v10014, %v10013
  %v10016 = vperm.slane %v8613, %v9719
  %v10017 = vsel %vm9721, %v10016, %v10015
  %v10018 = vperm.slane %v8616, %v9723
  %v10019 = vsel %vm9725, %v10018, %v10017
  %v10020 = vperm.slane %v8619, %v9727
  %v10021 = vsel %vm9729, %v10020, %v10019
  %v10022 = vperm.slane %v8622, %v9731
  %v10023 = vsel %vm9733, %v10022, %v10021
  %v10024 = vperm.slane %v8625, %v9735
  %v10025 = vsel %vm9737, %v10024, %v10023
  %v10026 = vperm.slane %v8628, %v9739
  %v10027 = vsel %vm9741, %v10026, %v10025
  %v10028 = vperm.slane %v8631, %v9743
  %v10029 = vsel %vm9745, %v10028, %v10027
  %v10030 = vperm.slane %v8634, %v9747
  %v10031 = vsel %vm9749, %v10030, %v10029
  %v10032 = vperm.slane %v8637, %v9751
  %v10033 = vsel %vm9753, %v10032, %v10031
  %v10034 = vperm.slane %v8640, %v66
  %v10035 = vperm.slane %v8643, %v9695
  %v10036 = vsel %vm9697, %v10035, %v10034
  %v10037 = vperm.slane %v8646, %v9699
  %v10038 = vsel %vm9701, %v10037, %v10036
  %v10039 = vperm.slane %v8649, %v9703
  %v10040 = vsel %vm9705, %v10039, %v10038
  %v10041 = vperm.slane %v8652, %v9707
  %v10042 = vsel %vm9709, %v10041, %v10040
  %v10043 = vperm.slane %v8655, %v9711
  %v10044 = vsel %vm9713, %v10043, %v10042
  %v10045 = vperm.slane %v8658, %v9715
  %v10046 = vsel %vm9717, %v10045, %v10044
  %v10047 = vperm.slane %v8661, %v9719
  %v10048 = vsel %vm9721, %v10047, %v10046
  %v10049 = vperm.slane %v8664, %v9723
  %v10050 = vsel %vm9725, %v10049, %v10048
  %v10051 = vperm.slane %v8667, %v9727
  %v10052 = vsel %vm9729, %v10051, %v10050
  %v10053 = vperm.slane %v8670, %v9731
  %v10054 = vsel %vm9733, %v10053, %v10052
  %v10055 = vperm.slane %v8673, %v9735
  %v10056 = vsel %vm9737, %v10055, %v10054
  %v10057 = vperm.slane %v8676, %v9739
  %v10058 = vsel %vm9741, %v10057, %v10056
  %v10059 = vperm.slane %v8679, %v9743
  %v10060 = vsel %vm9745, %v10059, %v10058
  %v10061 = vperm.slane %v8682, %v9747
  %v10062 = vsel %vm9749, %v10061, %v10060
  %v10063 = vperm.slane %v8685, %v9751
  %v10064 = vsel %vm9753, %v10063, %v10062
  %v10065 = vperm.slane %v8688, %v66
  %v10066 = vperm.slane %v8691, %v9695
  %v10067 = vsel %vm9697, %v10066, %v10065
  %v10068 = vperm.slane %v8694, %v9699
  %v10069 = vsel %vm9701, %v10068, %v10067
  %v10070 = vperm.slane %v8697, %v9703
  %v10071 = vsel %vm9705, %v10070, %v10069
  %v10072 = vperm.slane %v8700, %v9707
  %v10073 = vsel %vm9709, %v10072, %v10071
  %v10074 = vperm.slane %v8703, %v9711
  %v10075 = vsel %vm9713, %v10074, %v10073
  %v10076 = vperm.slane %v8706, %v9715
  %v10077 = vsel %vm9717, %v10076, %v10075
  %v10078 = vperm.slane %v8709, %v9719
  %v10079 = vsel %vm9721, %v10078, %v10077
  %v10080 = vperm.slane %v8712, %v9723
  %v10081 = vsel %vm9725, %v10080, %v10079
  %v10082 = vperm.slane %v8715, %v9727
  %v10083 = vsel %vm9729, %v10082, %v10081
  %v10084 = vperm.slane %v8718, %v9731
  %v10085 = vsel %vm9733, %v10084, %v10083
  %v10086 = vperm.slane %v8721, %v9735
  %v10087 = vsel %vm9737, %v10086, %v10085
  %v10088 = vperm.slane %v8724, %v9739
  %v10089 = vsel %vm9741, %v10088, %v10087
  %v10090 = vperm.slane %v8727, %v9743
  %v10091 = vsel %vm9745, %v10090, %v10089
  %v10092 = vperm.slane %v8730, %v9747
  %v10093 = vsel %vm9749, %v10092, %v10091
  %v10094 = vperm.slane %v8733, %v9751
  %v10095 = vsel %vm9753, %v10094, %v10093
  %v10096 = vperm.slane %v8736, %v66
  %v10097 = vperm.slane %v8739, %v9695
  %v10098 = vsel %vm9697, %v10097, %v10096
  %v10099 = vperm.slane %v8742, %v9699
  %v10100 = vsel %vm9701, %v10099, %v10098
  %v10101 = vperm.slane %v8745, %v9703
  %v10102 = vsel %vm9705, %v10101, %v10100
  %v10103 = vperm.slane %v8748, %v9707
  %v10104 = vsel %vm9709, %v10103, %v10102
  %v10105 = vperm.slane %v8751, %v9711
  %v10106 = vsel %vm9713, %v10105, %v10104
  %v10107 = vperm.slane %v8754, %v9715
  %v10108 = vsel %vm9717, %v10107, %v10106
  %v10109 = vperm.slane %v8757, %v9719
  %v10110 = vsel %vm9721, %v10109, %v10108
  %v10111 = vperm.slane %v8760, %v9723
  %v10112 = vsel %vm9725, %v10111, %v10110
  %v10113 = vperm.slane %v8763, %v9727
  %v10114 = vsel %vm9729, %v10113, %v10112
  %v10115 = vperm.slane %v8766, %v9731
  %v10116 = vsel %vm9733, %v10115, %v10114
  %v10117 = vperm.slane %v8769, %v9735
  %v10118 = vsel %vm9737, %v10117, %v10116
  %v10119 = vperm.slane %v8772, %v9739
  %v10120 = vsel %vm9741, %v10119, %v10118
  %v10121 = vperm.slane %v8775, %v9743
  %v10122 = vsel %vm9745, %v10121, %v10120
  %v10123 = vperm.slane %v8778, %v9747
  %v10124 = vsel %vm9749, %v10123, %v10122
  %v10125 = vperm.slane %v8781, %v9751
  %v10126 = vsel %vm9753, %v10125, %v10124
  %v10127 = vperm.slane %v8784, %v66
  %v10128 = vperm.slane %v8787, %v9695
  %v10129 = vsel %vm9697, %v10128, %v10127
  %v10130 = vperm.slane %v8790, %v9699
  %v10131 = vsel %vm9701, %v10130, %v10129
  %v10132 = vperm.slane %v8793, %v9703
  %v10133 = vsel %vm9705, %v10132, %v10131
  %v10134 = vperm.slane %v8796, %v9707
  %v10135 = vsel %vm9709, %v10134, %v10133
  %v10136 = vperm.slane %v8799, %v9711
  %v10137 = vsel %vm9713, %v10136, %v10135
  %v10138 = vperm.slane %v8802, %v9715
  %v10139 = vsel %vm9717, %v10138, %v10137
  %v10140 = vperm.slane %v8805, %v9719
  %v10141 = vsel %vm9721, %v10140, %v10139
  %v10142 = vperm.slane %v8808, %v9723
  %v10143 = vsel %vm9725, %v10142, %v10141
  %v10144 = vperm.slane %v8811, %v9727
  %v10145 = vsel %vm9729, %v10144, %v10143
  %v10146 = vperm.slane %v8814, %v9731
  %v10147 = vsel %vm9733, %v10146, %v10145
  %v10148 = vperm.slane %v8817, %v9735
  %v10149 = vsel %vm9737, %v10148, %v10147
  %v10150 = vperm.slane %v8820, %v9739
  %v10151 = vsel %vm9741, %v10150, %v10149
  %v10152 = vperm.slane %v8823, %v9743
  %v10153 = vsel %vm9745, %v10152, %v10151
  %v10154 = vperm.slane %v8826, %v9747
  %v10155 = vsel %vm9749, %v10154, %v10153
  %v10156 = vperm.slane %v8829, %v9751
  %v10157 = vsel %vm9753, %v10156, %v10155
  %v10158 = vperm.slane %v8832, %v66
  %v10159 = vperm.slane %v8835, %v9695
  %v10160 = vsel %vm9697, %v10159, %v10158
  %v10161 = vperm.slane %v8838, %v9699
  %v10162 = vsel %vm9701, %v10161, %v10160
  %v10163 = vperm.slane %v8841, %v9703
  %v10164 = vsel %vm9705, %v10163, %v10162
  %v10165 = vperm.slane %v8844, %v9707
  %v10166 = vsel %vm9709, %v10165, %v10164
  %v10167 = vperm.slane %v8847, %v9711
  %v10168 = vsel %vm9713, %v10167, %v10166
  %v10169 = vperm.slane %v8850, %v9715
  %v10170 = vsel %vm9717, %v10169, %v10168
  %v10171 = vperm.slane %v8853, %v9719
  %v10172 = vsel %vm9721, %v10171, %v10170
  %v10173 = vperm.slane %v8856, %v9723
  %v10174 = vsel %vm9725, %v10173, %v10172
  %v10175 = vperm.slane %v8859, %v9727
  %v10176 = vsel %vm9729, %v10175, %v10174
  %v10177 = vperm.slane %v8862, %v9731
  %v10178 = vsel %vm9733, %v10177, %v10176
  %v10179 = vperm.slane %v8865, %v9735
  %v10180 = vsel %vm9737, %v10179, %v10178
  %v10181 = vperm.slane %v8868, %v9739
  %v10182 = vsel %vm9741, %v10181, %v10180
  %v10183 = vperm.slane %v8871, %v9743
  %v10184 = vsel %vm9745, %v10183, %v10182
  %v10185 = vperm.slane %v8874, %v9747
  %v10186 = vsel %vm9749, %v10185, %v10184
  %v10187 = vperm.slane %v8877, %v9751
  %v10188 = vsel %vm9753, %v10187, %v10186
  %v10189 = vperm.slane %v8880, %v66
  %v10190 = vperm.slane %v8883, %v9695
  %v10191 = vsel %vm9697, %v10190, %v10189
  %v10192 = vperm.slane %v8886, %v9699
  %v10193 = vsel %vm9701, %v10192, %v10191
  %v10194 = vperm.slane %v8889, %v9703
  %v10195 = vsel %vm9705, %v10194, %v10193
  %v10196 = vperm.slane %v8892, %v9707
  %v10197 = vsel %vm9709, %v10196, %v10195
  %v10198 = vperm.slane %v8895, %v9711
  %v10199 = vsel %vm9713, %v10198, %v10197
  %v10200 = vperm.slane %v8898, %v9715
  %v10201 = vsel %vm9717, %v10200, %v10199
  %v10202 = vperm.slane %v8901, %v9719
  %v10203 = vsel %vm9721, %v10202, %v10201
  %v10204 = vperm.slane %v8904, %v9723
  %v10205 = vsel %vm9725, %v10204, %v10203
  %v10206 = vperm.slane %v8907, %v9727
  %v10207 = vsel %vm9729, %v10206, %v10205
  %v10208 = vperm.slane %v8910, %v9731
  %v10209 = vsel %vm9733, %v10208, %v10207
  %v10210 = vperm.slane %v8913, %v9735
  %v10211 = vsel %vm9737, %v10210, %v10209
  %v10212 = vperm.slane %v8916, %v9739
  %v10213 = vsel %vm9741, %v10212, %v10211
  %v10214 = vperm.slane %v8919, %v9743
  %v10215 = vsel %vm9745, %v10214, %v10213
  %v10216 = vperm.slane %v8922, %v9747
  %v10217 = vsel %vm9749, %v10216, %v10215
  %v10218 = vperm.slane %v8925, %v9751
  %v10219 = vsel %vm9753, %v10218, %v10217
  %v10220 = vperm.slane %v8928, %v66
  %v10221 = vperm.slane %v8931, %v9695
  %v10222 = vsel %vm9697, %v10221, %v10220
  %v10223 = vperm.slane %v8934, %v9699
  %v10224 = vsel %vm9701, %v10223, %v10222
  %v10225 = vperm.slane %v8937, %v9703
  %v10226 = vsel %vm9705, %v10225, %v10224
  %v10227 = vperm.slane %v8940, %v9707
  %v10228 = vsel %vm9709, %v10227, %v10226
  %v10229 = vperm.slane %v8943, %v9711
  %v10230 = vsel %vm9713, %v10229, %v10228
  %v10231 = vperm.slane %v8946, %v9715
  %v10232 = vsel %vm9717, %v10231, %v10230
  %v10233 = vperm.slane %v8949, %v9719
  %v10234 = vsel %vm9721, %v10233, %v10232
  %v10235 = vperm.slane %v8952, %v9723
  %v10236 = vsel %vm9725, %v10235, %v10234
  %v10237 = vperm.slane %v8955, %v9727
  %v10238 = vsel %vm9729, %v10237, %v10236
  %v10239 = vperm.slane %v8958, %v9731
  %v10240 = vsel %vm9733, %v10239, %v10238
  %v10241 = vperm.slane %v8961, %v9735
  %v10242 = vsel %vm9737, %v10241, %v10240
  %v10243 = vperm.slane %v8964, %v9739
  %v10244 = vsel %vm9741, %v10243, %v10242
  %v10245 = vperm.slane %v8967, %v9743
  %v10246 = vsel %vm9745, %v10245, %v10244
  %v10247 = vperm.slane %v8970, %v9747
  %v10248 = vsel %vm9749, %v10247, %v10246
  %v10249 = vperm.slane %v8973, %v9751
  %v10250 = vsel %vm9753, %v10249, %v10248
  %v10251 = vperm.slane %v8976, %v66
  %v10252 = vperm.slane %v8979, %v9695
  %v10253 = vsel %vm9697, %v10252, %v10251
  %v10254 = vperm.slane %v8982, %v9699
  %v10255 = vsel %vm9701, %v10254, %v10253
  %v10256 = vperm.slane %v8985, %v9703
  %v10257 = vsel %vm9705, %v10256, %v10255
  %v10258 = vperm.slane %v8988, %v9707
  %v10259 = vsel %vm9709, %v10258, %v10257
  %v10260 = vperm.slane %v8991, %v9711
  %v10261 = vsel %vm9713, %v10260, %v10259
  %v10262 = vperm.slane %v8994, %v9715
  %v10263 = vsel %vm9717, %v10262, %v10261
  %v10264 = vperm.slane %v8997, %v9719
  %v10265 = vsel %vm9721, %v10264, %v10263
  %v10266 = vperm.slane %v9000, %v9723
  %v10267 = vsel %vm9725, %v10266, %v10265
  %v10268 = vperm.slane %v9003, %v9727
  %v10269 = vsel %vm9729, %v10268, %v10267
  %v10270 = vperm.slane %v9006, %v9731
  %v10271 = vsel %vm9733, %v10270, %v10269
  %v10272 = vperm.slane %v9009, %v9735
  %v10273 = vsel %vm9737, %v10272, %v10271
  %v10274 = vperm.slane %v9012, %v9739
  %v10275 = vsel %vm9741, %v10274, %v10273
  %v10276 = vperm.slane %v9015, %v9743
  %v10277 = vsel %vm9745, %v10276, %v10275
  %v10278 = vperm.slane %v9018, %v9747
  %v10279 = vsel %vm9749, %v10278, %v10277
  %v10280 = vperm.slane %v9021, %v9751
  %v10281 = vsel %vm9753, %v10280, %v10279
  %v10282 = vperm.slane %v9024, %v66
  %v10283 = vperm.slane %v9027, %v9695
  %v10284 = vsel %vm9697, %v10283, %v10282
  %v10285 = vperm.slane %v9030, %v9699
  %v10286 = vsel %vm9701, %v10285, %v10284
  %v10287 = vperm.slane %v9033, %v9703
  %v10288 = vsel %vm9705, %v10287, %v10286
  %v10289 = vperm.slane %v9036, %v9707
  %v10290 = vsel %vm9709, %v10289, %v10288
  %v10291 = vperm.slane %v9039, %v9711
  %v10292 = vsel %vm9713, %v10291, %v10290
  %v10293 = vperm.slane %v9042, %v9715
  %v10294 = vsel %vm9717, %v10293, %v10292
  %v10295 = vperm.slane %v9045, %v9719
  %v10296 = vsel %vm9721, %v10295, %v10294
  %v10297 = vperm.slane %v9048, %v9723
  %v10298 = vsel %vm9725, %v10297, %v10296
  %v10299 = vperm.slane %v9051, %v9727
  %v10300 = vsel %vm9729, %v10299, %v10298
  %v10301 = vperm.slane %v9054, %v9731
  %v10302 = vsel %vm9733, %v10301, %v10300
  %v10303 = vperm.slane %v9057, %v9735
  %v10304 = vsel %vm9737, %v10303, %v10302
  %v10305 = vperm.slane %v9060, %v9739
  %v10306 = vsel %vm9741, %v10305, %v10304
  %v10307 = vperm.slane %v9063, %v9743
  %v10308 = vsel %vm9745, %v10307, %v10306
  %v10309 = vperm.slane %v9066, %v9747
  %v10310 = vsel %vm9749, %v10309, %v10308
  %v10311 = vperm.slane %v9069, %v9751
  %v10312 = vsel %vm9753, %v10311, %v10310
  %v10313 = vperm.slane %v9072, %v66
  %v10314 = vperm.slane %v9075, %v9695
  %v10315 = vsel %vm9697, %v10314, %v10313
  %v10316 = vperm.slane %v9078, %v9699
  %v10317 = vsel %vm9701, %v10316, %v10315
  %v10318 = vperm.slane %v9081, %v9703
  %v10319 = vsel %vm9705, %v10318, %v10317
  %v10320 = vperm.slane %v9084, %v9707
  %v10321 = vsel %vm9709, %v10320, %v10319
  %v10322 = vperm.slane %v9087, %v9711
  %v10323 = vsel %vm9713, %v10322, %v10321
  %v10324 = vperm.slane %v9090, %v9715
  %v10325 = vsel %vm9717, %v10324, %v10323
  %v10326 = vperm.slane %v9093, %v9719
  %v10327 = vsel %vm9721, %v10326, %v10325
  %v10328 = vperm.slane %v9096, %v9723
  %v10329 = vsel %vm9725, %v10328, %v10327
  %v10330 = vperm.slane %v9099, %v9727
  %v10331 = vsel %vm9729, %v10330, %v10329
  %v10332 = vperm.slane %v9102, %v9731
  %v10333 = vsel %vm9733, %v10332, %v10331
  %v10334 = vperm.slane %v9105, %v9735
  %v10335 = vsel %vm9737, %v10334, %v10333
  %v10336 = vperm.slane %v9108, %v9739
  %v10337 = vsel %vm9741, %v10336, %v10335
  %v10338 = vperm.slane %v9111, %v9743
  %v10339 = vsel %vm9745, %v10338, %v10337
  %v10340 = vperm.slane %v9114, %v9747
  %v10341 = vsel %vm9749, %v10340, %v10339
  %v10342 = vperm.slane %v9117, %v9751
  %v10343 = vsel %vm9753, %v10342, %v10341
  %v10344 = vperm.slane %v9120, %v66
  %v10345 = vperm.slane %v9123, %v9695
  %v10346 = vsel %vm9697, %v10345, %v10344
  %v10347 = vperm.slane %v9126, %v9699
  %v10348 = vsel %vm9701, %v10347, %v10346
  %v10349 = vperm.slane %v9129, %v9703
  %v10350 = vsel %vm9705, %v10349, %v10348
  %v10351 = vperm.slane %v9132, %v9707
  %v10352 = vsel %vm9709, %v10351, %v10350
  %v10353 = vperm.slane %v9135, %v9711
  %v10354 = vsel %vm9713, %v10353, %v10352
  %v10355 = vperm.slane %v9138, %v9715
  %v10356 = vsel %vm9717, %v10355, %v10354
  %v10357 = vperm.slane %v9141, %v9719
  %v10358 = vsel %vm9721, %v10357, %v10356
  %v10359 = vperm.slane %v9144, %v9723
  %v10360 = vsel %vm9725, %v10359, %v10358
  %v10361 = vperm.slane %v9147, %v9727
  %v10362 = vsel %vm9729, %v10361, %v10360
  %v10363 = vperm.slane %v9150, %v9731
  %v10364 = vsel %vm9733, %v10363, %v10362
  %v10365 = vperm.slane %v9153, %v9735
  %v10366 = vsel %vm9737, %v10365, %v10364
  %v10367 = vperm.slane %v9156, %v9739
  %v10368 = vsel %vm9741, %v10367, %v10366
  %v10369 = vperm.slane %v9159, %v9743
  %v10370 = vsel %vm9745, %v10369, %v10368
  %v10371 = vperm.slane %v9162, %v9747
  %v10372 = vsel %vm9749, %v10371, %v10370
  %v10373 = vperm.slane %v9165, %v9751
  %v10374 = vsel %vm9753, %v10373, %v10372
  %v10375 = vperm.slane %v9168, %v66
  %v10376 = vperm.slane %v9171, %v9695
  %v10377 = vsel %vm9697, %v10376, %v10375
  %v10378 = vperm.slane %v9174, %v9699
  %v10379 = vsel %vm9701, %v10378, %v10377
  %v10380 = vperm.slane %v9177, %v9703
  %v10381 = vsel %vm9705, %v10380, %v10379
  %v10382 = vperm.slane %v9180, %v9707
  %v10383 = vsel %vm9709, %v10382, %v10381
  %v10384 = vperm.slane %v9183, %v9711
  %v10385 = vsel %vm9713, %v10384, %v10383
  %v10386 = vperm.slane %v9186, %v9715
  %v10387 = vsel %vm9717, %v10386, %v10385
  %v10388 = vperm.slane %v9189, %v9719
  %v10389 = vsel %vm9721, %v10388, %v10387
  %v10390 = vperm.slane %v9192, %v9723
  %v10391 = vsel %vm9725, %v10390, %v10389
  %v10392 = vperm.slane %v9195, %v9727
  %v10393 = vsel %vm9729, %v10392, %v10391
  %v10394 = vperm.slane %v9198, %v9731
  %v10395 = vsel %vm9733, %v10394, %v10393
  %v10396 = vperm.slane %v9201, %v9735
  %v10397 = vsel %vm9737, %v10396, %v10395
  %v10398 = vperm.slane %v9204, %v9739
  %v10399 = vsel %vm9741, %v10398, %v10397
  %v10400 = vperm.slane %v9207, %v9743
  %v10401 = vsel %vm9745, %v10400, %v10399
  %v10402 = vperm.slane %v9210, %v9747
  %v10403 = vsel %vm9749, %v10402, %v10401
  %v10404 = vperm.slane %v9213, %v9751
  %v10405 = vsel %vm9753, %v10404, %v10403
  %v10406 = vperm.slane %v9216, %v66
  %v10407 = vperm.slane %v9219, %v9695
  %v10408 = vsel %vm9697, %v10407, %v10406
  %v10409 = vperm.slane %v9222, %v9699
  %v10410 = vsel %vm9701, %v10409, %v10408
  %v10411 = vperm.slane %v9225, %v9703
  %v10412 = vsel %vm9705, %v10411, %v10410
  %v10413 = vperm.slane %v9228, %v9707
  %v10414 = vsel %vm9709, %v10413, %v10412
  %v10415 = vperm.slane %v9231, %v9711
  %v10416 = vsel %vm9713, %v10415, %v10414
  %v10417 = vperm.slane %v9234, %v9715
  %v10418 = vsel %vm9717, %v10417, %v10416
  %v10419 = vperm.slane %v9237, %v9719
  %v10420 = vsel %vm9721, %v10419, %v10418
  %v10421 = vperm.slane %v9240, %v9723
  %v10422 = vsel %vm9725, %v10421, %v10420
  %v10423 = vperm.slane %v9243, %v9727
  %v10424 = vsel %vm9729, %v10423, %v10422
  %v10425 = vperm.slane %v9246, %v9731
  %v10426 = vsel %vm9733, %v10425, %v10424
  %v10427 = vperm.slane %v9249, %v9735
  %v10428 = vsel %vm9737, %v10427, %v10426
  %v10429 = vperm.slane %v9252, %v9739
  %v10430 = vsel %vm9741, %v10429, %v10428
  %v10431 = vperm.slane %v9255, %v9743
  %v10432 = vsel %vm9745, %v10431, %v10430
  %v10433 = vperm.slane %v9258, %v9747
  %v10434 = vsel %vm9749, %v10433, %v10432
  %v10435 = vperm.slane %v9261, %v9751
  %v10436 = vsel %vm9753, %v10435, %v10434
  %v10437 = vperm.slane %v9264, %v66
  %v10438 = vperm.slane %v9267, %v9695
  %v10439 = vsel %vm9697, %v10438, %v10437
  %v10440 = vperm.slane %v9270, %v9699
  %v10441 = vsel %vm9701, %v10440, %v10439
  %v10442 = vperm.slane %v9273, %v9703
  %v10443 = vsel %vm9705, %v10442, %v10441
  %v10444 = vperm.slane %v9276, %v9707
  %v10445 = vsel %vm9709, %v10444, %v10443
  %v10446 = vperm.slane %v9279, %v9711
  %v10447 = vsel %vm9713, %v10446, %v10445
  %v10448 = vperm.slane %v9282, %v9715
  %v10449 = vsel %vm9717, %v10448, %v10447
  %v10450 = vperm.slane %v9285, %v9719
  %v10451 = vsel %vm9721, %v10450, %v10449
  %v10452 = vperm.slane %v9288, %v9723
  %v10453 = vsel %vm9725, %v10452, %v10451
  %v10454 = vperm.slane %v9291, %v9727
  %v10455 = vsel %vm9729, %v10454, %v10453
  %v10456 = vperm.slane %v9294, %v9731
  %v10457 = vsel %vm9733, %v10456, %v10455
  %v10458 = vperm.slane %v9297, %v9735
  %v10459 = vsel %vm9737, %v10458, %v10457
  %v10460 = vperm.slane %v9300, %v9739
  %v10461 = vsel %vm9741, %v10460, %v10459
  %v10462 = vperm.slane %v9303, %v9743
  %v10463 = vsel %vm9745, %v10462, %v10461
  %v10464 = vperm.slane %v9306, %v9747
  %v10465 = vsel %vm9749, %v10464, %v10463
  %v10466 = vperm.slane %v9309, %v9751
  %v10467 = vsel %vm9753, %v10466, %v10465
  %vm10468 = vcmask 1041409
  %v10469 = vsel %vm10468, %v9785, %v9754
  %vm10470 = vcmask 1042434
  %v10471 = vsel %vm10470, %v9816, %v10469
  %vm10472 = vcmask 1043459
  %v10473 = vsel %vm10472, %v9847, %v10471
  %vm10474 = vcmask 1044484
  %v10475 = vsel %vm10474, %v9878, %v10473
  %vm10476 = vcmask 1045509
  %v10477 = vsel %vm10476, %v9909, %v10475
  %vm10478 = vcmask 1046534
  %v10479 = vsel %vm10478, %v9940, %v10477
  %vm10480 = vcmask 1047559
  %v10481 = vsel %vm10480, %v9971, %v10479
  %v10482 = vsel %vm10468, %v10033, %v10002
  %v10483 = vsel %vm10470, %v10064, %v10482
  %v10484 = vsel %vm10472, %v10095, %v10483
  %v10485 = vsel %vm10474, %v10126, %v10484
  %v10486 = vsel %vm10476, %v10157, %v10485
  %v10487 = vsel %vm10478, %v10188, %v10486
  %v10488 = vsel %vm10480, %v10219, %v10487
  %v10489 = vsel %vm10468, %v10281, %v10250
  %v10490 = vsel %vm10470, %v10312, %v10489
  %v10491 = vsel %vm10472, %v10343, %v10490
  %v10492 = vsel %vm10474, %v10374, %v10491
  %v10493 = vsel %vm10476, %v10405, %v10492
  %v10494 = vsel %vm10478, %v10436, %v10493
  %v10495 = vsel %vm10480, %v10467, %v10494
  %10499 = vst [vmem:[%s19] sm:$0xff] %v10481
  %10500 = vst [vmem:[%s19 + $0x8] sm:$0xff] %v10488
  %10501 = vst [vmem:[%s19 + $0x10] sm:$0xff] %v10495
  // Predicated region
  $region78: #{dilated_basic_block_layer.1} parent=0 // pred_check
    _
  $region79: #{dilated_basic_block_layer.1} parent=0 // pred_check_branch
    %10503 = sbr.rel (0) target = $region81
  $region80: #{dilated_basic_block_layer.1} parent=0 // pred_region
    _
  $region81: #{dilated_basic_block_layer.1} parent=0 // pred_fallthru
    _
  // Predicated region
  $region82: #{dilated_basic_block_layer.1} parent=0 // pred_check
    _
  $region83: #{dilated_basic_block_layer.1} parent=0 // pred_check_branch
    %10505 = sbr.rel (0) target = $region85
  $region84: #{dilated_basic_block_layer.1} parent=0 // pred_region
    _
  $region85: #{dilated_basic_block_layer.1} parent=0 // pred_fallthru
    _

</llo_original>
